<compile_context>
chip_gen: v5e
topology: v5e:2x2
jax: 0.10.0
libtpu: 0.0.40
codegen_flags: <defaults>
</compile_context>

<pallas_src>
import functools

import jax
import jax.numpy as jnp
from jax import lax
from jax.experimental import pallas as pl
from jax.experimental.pallas import tpu as pltpu

EPS = 1e-5
LANE = 128
TM_ROWS = 2048                   # max grouped-row tile for the 1x1x1 conv kernels
TR_MAX = 2048                    # max row tile for the lane-dense elementwise kernels
VMEM_LIMIT = 32 * 1024 * 1024    # explicit scoped-VMEM budget (safe on v5e/v6e/v7x)


def round_up(x, m):
    return (x + m - 1) // m * m


# ----------------------------------------------------------------------------
# fused 1x1x1 convolutions (1 or 2 streams) + per-channel batch statistics
# ----------------------------------------------------------------------------
def conv1x1_multi(streams, *, m, cout, out_dtype=jnp.bfloat16):
    """Fused 1x1x1 convs sharing one parallel row grid, with per-channel batch stats.

    streams: list of dicts
        a      : (m, cin) activation (f32 or bf16; cast to bf16 inside the kernel)
        w      : (cin, cout) f32 weight
        affine : None or (sc, sh) per-channel (1, cin) f32 -> relu(a*sc+sh) before matmul
    Returns per stream: y (m, cout) out_dtype, ch_sum (cout,) f32, ch_sq (cout,) f32.

    Lane density: rows are grouped G = 128//cout, A -> (m/G, G*cin) (free reshape) and
    the weight becomes block-diagonal kron(I_G, W), so output tiles are 128 lanes wide
    (no masked vst) and stats rows are 128-wide; replicated stats reduced here.
    """
    if cout <= LANE and LANE % cout == 0 and m % (LANE // cout) == 0:
        grp = LANE // cout
    else:
        grp = 1
    r = m // grp
    tm = r if r <= TM_ROWS else TM_ROWS
    rpad = round_up(r, tm)
    nt = rpad // tm
    need_mask = rpad != r
    ns = len(streams)
    wout = grp * cout

    ops, in_specs, has_aff = [], [], []
    for st in streams:
        cin = st["a"].shape[1]
        ka = grp * cin
        a = st["a"].reshape(r, ka)
        if rpad != r:
            a = jnp.pad(a, ((0, rpad - r), (0, 0)))
        wbig = jnp.kron(jnp.eye(grp, dtype=jnp.float32),
                        st["w"].astype(jnp.float32)).astype(jnp.bfloat16)
        ops += [a, wbig]
        in_specs += [pl.BlockSpec((tm, ka), lambda i: (i, 0)),
                     pl.BlockSpec((ka, wout), lambda i: (0, 0))]
        if st["affine"] is not None:
            sc, sh = st["affine"]
            ops += [jnp.tile(sc.reshape(1, -1).astype(jnp.float32), (1, grp)),
                    jnp.tile(sh.reshape(1, -1).astype(jnp.float32), (1, grp))]
            in_specs += [pl.BlockSpec((1, ka), lambda i: (0, 0)),
                         pl.BlockSpec((1, ka), lambda i: (0, 0))]
        has_aff.append(st["affine"] is not None)

    def kernel(*refs):
        p = 0
        ins = []
        for si in range(ns):
            if has_aff[si]:
                ins.append(refs[p:p + 4])
                p += 4
            else:
                ins.append(refs[p:p + 2] + (None, None))
                p += 2
        outs = refs[p:]
        for si in range(ns):
            a_ref, w_ref, sc_ref, sh_ref = ins[si]
            av = a_ref[...]
            if sc_ref is not None:                      # fused bn+ReLU on the input load
                av = jnp.maximum(av.astype(jnp.float32) * sc_ref[...] + sh_ref[...], 0.0)
            av = av.astype(jnp.bfloat16)                # in-kernel cast to the MXU dtype
            y = jnp.dot(av, w_ref[...], preferred_element_type=jnp.float32)
            y_ref, s_ref, q_ref = outs[3 * si: 3 * si + 3]
            y_ref[...] = y.astype(y_ref.dtype)
            if need_mask:                               # only when rows were padded
                row = pl.program_id(0) * tm + lax.broadcasted_iota(jnp.int32, (tm, 1), 0)
                y = jnp.where(row < r, y, 0.0)
            s_ref[...] = jnp.sum(y, axis=0, keepdims=True)[None]
            q_ref[...] = jnp.sum(y * y, axis=0, keepdims=True)[None]

    out_shape, out_specs = [], []
    for _ in range(ns):
        out_shape += [jax.ShapeDtypeStruct((rpad, wout), out_dtype),
                      jax.ShapeDtypeStruct((nt, 1, wout), jnp.float32),
                      jax.ShapeDtypeStruct((nt, 1, wout), jnp.float32)]
        out_specs += [pl.BlockSpec((tm, wout), lambda i: (i, 0)),
                      pl.BlockSpec((1, 1, wout), lambda i: (i, 0, 0)),
                      pl.BlockSpec((1, 1, wout), lambda i: (i, 0, 0))]

    outs = pl.pallas_call(
        kernel,
        out_shape=tuple(out_shape),
        grid=(nt,),
        in_specs=in_specs,
        out_specs=tuple(out_specs),
        compiler_params=pltpu.CompilerParams(dimension_semantics=("parallel",),
                                             vmem_limit_bytes=VMEM_LIMIT),
    )(*ops)

    results = []
    for si in range(ns):
        y, s, q = outs[3 * si: 3 * si + 3]
        if rpad != r:
            y = y[:r]
        y = y.reshape(m, cout)
        ch_sum = jnp.sum(s, axis=(0, 1)).reshape(grp, cout).sum(axis=0)
        ch_sq = jnp.sum(q, axis=(0, 1)).reshape(grp, cout).sum(axis=0)
        results.append((y, ch_sum, ch_sq))
    return results


# ----------------------------------------------------------------------------
# conv2: 3x3x3, stride, pad 1 -- streamed taps (no HBM im2col) + batch statistics
# ----------------------------------------------------------------------------
def conv2_streamed(x2, w2big, *, n, do, hq, ho, wo, c1, stride):
    """x2    : (n, dp, hq, wq*cb) bf16 -- zero-padded (and, for stride 2, phase-split)
               activation with W / stride phases / channels fused into the lane dim.
       w2big : (27, wo*cb, wo*c1) bf16 -- per-tap weights expanded block-diagonally over
               the wo output columns, so each tap is one lane-dense 2-D matmul and the
               output stays in the fused (ho, wo*c1) layout.
       Returns y2 (n, do, ho, wo*c1) bf16 and per-channel sum / sum^2 (c1,) f32."""
    cb = stride * stride * c1
    wq = x2.shape[3] // cb
    k2 = wo * cb
    n2 = wo * c1

    def kernel(p0_ref, p1_ref, p2_ref, w_ref, y_ref, s_ref, q_ref):
        planes = (p0_ref, p1_ref, p2_ref)
        acc = jnp.zeros((ho, n2), jnp.float32)
        for kd in range(3):
            plane = planes[kd][...]                     # (hq, wq*cb) bf16, loaded once
            for kh in range(3):
                h0 = kh // stride
                for kw in range(3):
                    w0 = kw // stride
                    t = (kd * 3 + kh) * 3 + kw
                    a = plane[h0:h0 + ho, w0 * cb:(w0 + wo) * cb]   # static 2-D slice
                    acc = acc + jnp.dot(a, w_ref[t], preferred_element_type=jnp.float32)
        y_ref[...] = acc.astype(y_ref.dtype)
        s_ref[...] = jnp.sum(acc, axis=0, keepdims=True)
        q_ref[...] = jnp.sum(acc * acc, axis=0, keepdims=True)

    in_specs = [pl.BlockSpec((None, None, hq, wq * cb),
                             (lambda i, j, kd=kd: (i, j * stride + kd, 0, 0)))
                for kd in range(3)]
    in_specs.append(pl.BlockSpec((27, k2, n2), lambda i, j: (0, 0, 0)))

    y2, s2, q2 = pl.pallas_call(
        kernel,
        out_shape=(jax.ShapeDtypeStruct((n, do, ho, n2), jnp.bfloat16),
                   jax.ShapeDtypeStruct((n, do, 1, n2), jnp.float32),
                   jax.ShapeDtypeStruct((n, do, 1, n2), jnp.float32)),
        grid=(n, do),
        in_specs=in_specs,
        out_specs=(pl.BlockSpec((None, None, ho, n2), lambda i, j: (i, j, 0, 0)),
                   pl.BlockSpec((None, None, 1, n2), lambda i, j: (i, j, 0, 0)),
                   pl.BlockSpec((None, None, 1, n2), lambda i, j: (i, j, 0, 0))),
        compiler_params=pltpu.CompilerParams(dimension_semantics=("parallel", "parallel"),
                                             vmem_limit_bytes=VMEM_LIMIT),
    )(x2, x2, x2, w2big)

    ch_sum = jnp.sum(s2, axis=(0, 1, 2)).reshape(wo, c1).sum(axis=0)
    ch_sq = jnp.sum(q2, axis=(0, 1, 2)).reshape(wo, c1).sum(axis=0)
    return y2, ch_sum, ch_sq


# ----------------------------------------------------------------------------
# elementwise kernels (fp32 math) on lane-dense (rows, 128) views
# ----------------------------------------------------------------------------
def _bn_relu_kernel(y_ref, sc_ref, sh_ref, o_ref):
    y = y_ref[...].astype(jnp.float32)
    o_ref[...] = jnp.maximum(y * sc_ref[...] + sh_ref[...], 0.0).astype(o_ref.dtype)


def _bn_add_relu_kernel(y_ref, sc_ref, sh_ref, r_ref, rsc_ref, rsh_ref, o_ref):
    y = y_ref[...].astype(jnp.float32) * sc_ref[...] + sh_ref[...]
    r = r_ref[...].astype(jnp.float32) * rsc_ref[...] + rsh_ref[...]
    o_ref[...] = jnp.maximum(y + r, 0.0).astype(o_ref.dtype)


def _elementwise(kernel, args, is_vec, out_dtype):
    """(M, C) tensors + (1, C) per-channel vectors -> (M, C).  When C | 128 the tensors
    are viewed lane-dense as (M*C/128, 128) and the vectors tiled to (1, 128), so every
    store is a full 128-lane vst."""
    m, c = args[is_vec.index(False)].shape
    lane_dense = (LANE % c == 0) and ((m * c) % LANE == 0)

    if lane_dense:
        reps = LANE // c
        tot = m * c
        rows = tot // LANE
        blk = rows if rows <= TR_MAX else TR_MAX
        rows_pad = round_up(rows, blk)
        width = LANE

        def prep(a, vec):
            if vec:
                return jnp.tile(a.astype(jnp.float32), (1, reps))
            f = a.reshape(tot)
            if rows_pad * LANE != tot:
                f = jnp.pad(f, (0, rows_pad * LANE - tot))
            return f.reshape(rows_pad, LANE)
    else:  # fallback layout (last dim = C); not hit by the test shapes
        blk = m if m <= TR_MAX else TR_MAX
        rows_pad = round_up(m, blk)
        width = c

        def prep(a, vec):
            if vec:
                return a.astype(jnp.float32)
            return a if a.shape[0] == rows_pad else jnp.pad(a, ((0, rows_pad - m), (0, 0)))

    ops = [prep(a, v) for a, v in zip(args, is_vec)]
    in_specs = [pl.BlockSpec((1, width), lambda i: (0, 0)) if v
                else pl.BlockSpec((blk, width), lambda i: (i, 0))
                for v in is_vec]
    out = pl.pallas_call(
        kernel,
        out_shape=jax.ShapeDtypeStruct((rows_pad, width), out_dtype),
        grid=(rows_pad // blk,),
        in_specs=in_specs,
        out_specs=pl.BlockSpec((blk, width), lambda i: (i, 0)),
        compiler_params=pltpu.CompilerParams(dimension_semantics=("parallel",),
                                             vmem_limit_bytes=VMEM_LIMIT),
    )(*ops)
    if lane_dense:
        return out.reshape(-1)[: m * c].reshape(m, c)
    return out[:m]


def bn_relu(y, sc, sh):
    return _elementwise(_bn_relu_kernel, [y, sc, sh], [False, True, True], jnp.bfloat16)


def bn_add_relu(y, sc, sh, r, rsc, rsh):
    return _elementwise(_bn_add_relu_kernel, [y, sc, sh, r, rsc, rsh],
                        [False, True, True, False, True, True], jnp.float32)


# ----------------------------------------------------------------------------
# BN affine from batch statistics (training-mode biased variance)
# ----------------------------------------------------------------------------
def bn_affine(ch_sum, ch_sq, m, gamma, beta, eps=EPS):
    mean = ch_sum / m
    var = jnp.maximum(ch_sq / m - mean * mean, 0.0)
    scale = gamma.reshape(-1) / jnp.sqrt(var + eps)
    shift = beta.reshape(-1) - mean * scale
    return scale.reshape(1, -1), shift.reshape(1, -1)


# ----------------------------------------------------------------------------
# PostResBottleneck forward (Pallas)
# ----------------------------------------------------------------------------
@functools.partial(jax.jit, static_argnums=(2,))
def postres_bottleneck_forward(x_ncdhw, params, stride):
    x = jnp.transpose(x_ncdhw, (0, 2, 3, 4, 1)).astype(jnp.float32)   # -> NDHWC
    n, d, h, w, c0 = x.shape
    c1 = params["w1"].shape[1]
    c2 = params["w3"].shape[1]
    has_shortcut = (stride != 1) or (c0 == c1)    # mirrors the PyTorch condition

    m0 = n * d * h * w
    x_flat = x.reshape(m0, c0)

    # conv1 (1x1x1) + batch stats (f32 input, in-kernel bf16 cast; bias cancels in BN)
    ((y1, s1, q1),) = conv1x1_multi([dict(a=x_flat, w=params["w1"], affine=None)],
                                    m=m0, cout=c1)
    sc1, sh1 = bn_affine(s1, q1, m0, params["g1"], params["be1"])

    # bn1 + ReLU (lane-dense) -- must precede conv2's exact zero spatial padding
    h1 = bn_relu(y1, sc1, sh1)                                        # (m0, c1) bf16

    # conv2 (3x3x3, stride, pad 1): streamed taps, no HBM im2col
    do = (d - 1) // stride + 1
    ho = (h - 1) // stride + 1
    wo = (w - 1) // stride + 1
    m2 = n * do * ho * wo

    hp = jnp.pad(h1.reshape(n, d, h, w, c1), ((0, 0), (1, 1), (1, 1), (1, 1), (0, 0)))
    dp, hpad, wpad = d + 2, h + 2, w + 2
    hpad2, wpad2 = round_up(hpad, stride), round_up(wpad, stride)
    if (hpad2, wpad2) != (hpad, wpad):
        hp = jnp.pad(hp, ((0, 0), (0, 0), (0, hpad2 - hpad), (0, wpad2 - wpad), (0, 0)))
    hq, wq = hpad2 // stride, wpad2 // stride
    cb = stride * stride * c1
    x2in = hp.reshape(n, dp, hq, stride, wq, stride, c1)
    x2in = x2in.transpose(0, 1, 2, 4, 3, 5, 6).reshape(n, dp, hq, wq * cb)

    eye_w = jnp.eye(wo, dtype=jnp.float32)
    w2 = params["w2"].astype(jnp.float32)
    taps = []
    for kd in range(3):
        for kh in range(3):
            for kw in range(3):
                phase = (kh % stride) * stride + (kw % stride)
                sel = jnp.zeros((stride * stride, 1), jnp.float32).at[phase, 0].set(1.0)
                taps.append(jnp.kron(eye_w, jnp.kron(sel, w2[kd, kh, kw])))
    w2big = jnp.stack(taps).astype(jnp.bfloat16)        # (27, wo*cb, wo*c1)

    y2, s2, q2 = conv2_streamed(x2in, w2big, n=n, do=do, hq=hq, ho=ho, wo=wo,
                                c1=c1, stride=stride)
    sc2, sh2 = bn_affine(s2, q2, m2, params["g2"], params["be2"])

    # conv3 (1x1x1, bn2+ReLU fused into its input load) merged with the shortcut conv
    y2_flat = y2.reshape(m2, c1)
    streams = [dict(a=y2_flat, w=params["w3"], affine=(sc2, sh2))]
    if has_shortcut:
        xs = x[:, ::stride, ::stride, ::stride, :].reshape(m2, c0)
        streams.append(dict(a=xs, w=params["ws"], affine=None))
    res3 = conv1x1_multi(streams, m=m2, cout=c2)
    y3, s3, q3 = res3[0]
    sc3, sh3 = bn_affine(s3, q3, m2, params["g3"], params["be3"])

    if has_shortcut:
        ys, ss, qs = res3[1]
        scs, shs = bn_affine(ss, qs, m2, params["gs"], params["bes"])
        res = ys
    else:
        assert stride == 1 and c0 == c2, "identity residual requires stride=1, C_in == C_out"
        res = x_flat
        scs = jnp.ones((1, c2), jnp.float32)
        shs = jnp.zeros((1, c2), jnp.float32)

    # bn3 + (residual BN affine) + add + ReLU, lane-dense
    out = bn_add_relu(y3, sc3, sh3, res, scs, shs).reshape(n, do, ho, wo, c2)
    return jnp.transpose(out, (0, 4, 1, 2, 3))          # back to NCDHW


# ----------------------------------------------------------------------------
# pure-JAX fp32 reference (independent path, includes the conv biases)
# ----------------------------------------------------------------------------
def ref_forward(x_ncdhw, params, stride):
    x = jnp.transpose(x_ncdhw, (0, 2, 3, 4, 1)).astype(jnp.float32)
    c0 = x.shape[-1]
    c1 = params["w1"].shape[1]
    c2 = params["w3"].shape[1]
    has_shortcut = (stride != 1) or (c0 == c1)

    def conv(v, w5, b, s, pad):
        y = lax.conv_general_dilated(v, w5, (s, s, s), [(pad, pad)] * 3,
                                     dimension_numbers=("NDHWC", "DHWIO", "NDHWC"))
        return y + b.reshape(-1)

    def bn(v, g, b):
        mean = jnp.mean(v, axis=(0, 1, 2, 3))
        var = jnp.var(v, axis=(0, 1, 2, 3))
        return (v - mean) / jnp.sqrt(var + EPS) * g.reshape(-1) + b.reshape(-1)

    residual = x
    if has_shortcut:
        residual = bn(conv(x, params["ws"].reshape(1, 1, 1, c0, c2), params["bs"], stride, 0),
                      params["gs"], params["bes"])
    out = jnp.maximum(bn(conv(x, params["w1"].reshape(1, 1, 1, c0, c1), params["b1"], 1, 0),
                         params["g1"], params["be1"]), 0.0)
    out = jnp.maximum(bn(conv(out, params["w2"], params["b2"], stride, 1),
                         params["g2"], params["be2"]), 0.0)
    out = bn(conv(out, params["w3"].reshape(1, 1, 1, c1, c2), params["b3"], 1, 0),
             params["g3"], params["be3"])
    out = jnp.maximum(out + residual, 0.0)
    return jnp.transpose(out, (0, 4, 1, 2, 3))


# ----------------------------------------------------------------------------
# deterministic synthetic parameters (shapes from PostResBottleneck.__init__, bias=True)
# ----------------------------------------------------------------------------
def init_params(key, c0, c1, c2, has_shortcut):
    ks = jax.random.split(key, 16)
    s = 0.1
    p = {
        "w1": jax.random.normal(ks[0], (c0, c1), jnp.float32) * s,
        "b1": jax.random.normal(ks[1], (c1,), jnp.float32) * s,
        "g1": 1.0 + 0.1 * jax.random.normal(ks[2], (1, c1), jnp.float32),
        "be1": 0.1 * jax.random.normal(ks[3], (1, c1), jnp.float32),
        "w2": jax.random.normal(ks[4], (3, 3, 3, c1, c1), jnp.float32) * s,
        "b2": jax.random.normal(ks[5], (c1,), jnp.float32) * s,
        "g2": 1.0 + 0.1 * jax.random.normal(ks[6], (1, c1), jnp.float32),
        "be2": 0.1 * jax.random.normal(ks[7], (1, c1), jnp.float32),
        "w3": jax.random.normal(ks[8], (c1, c2), jnp.float32) * s,
        "b3": jax.random.normal(ks[9], (c2,), jnp.float32) * s,
        "g3": 1.0 + 0.1 * jax.random.normal(ks[10], (1, c2), jnp.float32),
        "be3": 0.1 * jax.random.normal(ks[11], (1, c2), jnp.float32),
    }
    if has_shortcut:
        p["ws"] = jax.random.normal(ks[12], (c0, c2), jnp.float32) * s
        p["bs"] = jax.random.normal(ks[13], (c2,), jnp.float32) * s
        p["gs"] = 1.0 + 0.1 * jax.random.normal(ks[14], (1, c2), jnp.float32)
        p["bes"] = 0.1 * jax.random.normal(ks[15], (1, c2), jnp.float32)
    return p


if __name__ == "__main__":
    root = jax.random.PRNGKey(0)
    kx1, kp1, kx2, kp2 = jax.random.split(root, 4)

    # bf16 MXU path vs. fp32 reference across 3 conv+BN stages -> 5e-2 tolerance.
    RTOL = ATOL = 5e-2

    # Case 1: projection shortcut (stride=2), n_channel = [4, 8, 16]
    c0, c1, c2, stride = 4, 8, 16, 2
    x1 = jax.random.normal(kx1, (2, c0, 16, 16, 16), jnp.float32)
    params1 = init_params(kp1, c0, c1, c2, True)
    out1 = postres_bottleneck_forward(x1, params1, stride)
    jax.block_until_ready(out1)
    ref1 = ref_forward(x1, params1, stride)
    assert out1.shape == (2, c2, 8, 8, 8), out1.shape
    assert jnp.allclose(out1, ref1, rtol=RTOL, atol=ATOL), float(jnp.max(jnp.abs(out1 - ref1)))

    # Case 2: identity residual (stride=1, c0 != c1, c0 == c2 -> shortcut is None)
    c0, c1, c2, stride = 8, 4, 8, 1
    x2 = jax.random.normal(kx2, (2, c0, 8, 8, 8), jnp.float32)
    params2 = init_params(kp2, c0, c1, c2, False)
    out2 = postres_bottleneck_forward(x2, params2, stride)
    jax.block_until_ready(out2)
    ref2 = ref_forward(x2, params2, stride)
    assert out2.shape == (2, c2, 8, 8, 8), out2.shape
    assert jnp.allclose(out2, ref2, rtol=RTOL, atol=ATOL), float(jnp.max(jnp.abs(out2 - ref2)))

    print("KERNEL_OK")
</pallas_src>

<mosaic_0001>
module attributes {stable_mosaic.version = 11 : i64} {
  func.func @kernel(%arg0: i32, %arg1: memref<512x64xf32, #tpu.memory_space<vmem>>, %arg2: memref<64x128xbf16, #tpu.memory_space<vmem>>, %arg3: memref<512x128xbf16, #tpu.memory_space<vmem>>, %arg4: memref<1x1x128xf32, #tpu.memory_space<vmem>>, %arg5: memref<1x1x128xf32, #tpu.memory_space<vmem>>) attributes {dimension_semantics = [#tpu.dimension_semantics<parallel>], iteration_bounds = array<i64: 1>, scalar_prefetch = 0 : i64, scratch_operands = 0 : i64, tpu.core_type = #tpu.core_type<tc>, window_params = [{transform_indices = @transform_0, window_bounds = array<i64: 512, 64>}, {pipeline_mode = #tpu.pipeline_mode<synchronous>, transform_indices = @transform_1, window_bounds = array<i64: 64, 128>}, {transform_indices = @transform_2, window_bounds = array<i64: 512, 128>}, {transform_indices = @transform_3, window_bounds = array<i64: 1, 1, 128>}, {transform_indices = @transform_4, window_bounds = array<i64: 1, 1, 128>}]} {
    %c0 = arith.constant 0 : index
    %c0_0 = arith.constant 0 : index
    %0 = vector.load %arg1[%c0, %c0_0] : memref<512x64xf32, #tpu.memory_space<vmem>>, vector<512x64xf32>
    %1 = arith.truncf %0 : vector<512x64xf32> to vector<512x64xbf16>
    %c0_1 = arith.constant 0 : index
    %c0_2 = arith.constant 0 : index
    %2 = vector.load %arg2[%c0_1, %c0_2] : memref<64x128xbf16, #tpu.memory_space<vmem>>, vector<64x128xbf16>
    %cst = arith.constant dense<0.000000e+00> : vector<512x128xf32>
    %3 = tpu.matmul %1, %2, %cst {dimension_numbers = #tpu.dot_dimension_numbers<[1], [0], [0], [1], [0, 0, 1, 1], [], []>} : vector<512x64xbf16>, vector<64x128xbf16>, vector<512x128xf32> -> vector<512x128xf32>
    %4 = arith.truncf %3 : vector<512x128xf32> to vector<512x128xbf16>
    %c0_3 = arith.constant 0 : index
    %c0_4 = arith.constant 0 : index
    %5 = vector.load %arg3[%c0_3, %c0_4] : memref<512x128xbf16, #tpu.memory_space<vmem>>, vector<512x128xbf16>
    tpu.vector_store %arg3[%c0_3, %c0_4], %4 {strides = array<i32>} : memref<512x128xbf16, #tpu.memory_space<vmem>>, vector<512x128xbf16>,
    %cst_5 = arith.constant dense<0.000000e+00> : vector<128xf32>
    %6 = vector.multi_reduction <add>, %3, %cst_5 [0] : vector<512x128xf32> to vector<128xf32>
    %7 = vector.shape_cast %6 : vector<128xf32> to vector<1x128xf32>
    %8 = vector.shape_cast %7 : vector<1x128xf32> to vector<1x1x128xf32>
    %c0_6 = arith.constant 0 : index
    %c0_7 = arith.constant 0 : index
    %c0_8 = arith.constant 0 : index
    %9 = vector.load %arg4[%c0_6, %c0_7, %c0_8] : memref<1x1x128xf32, #tpu.memory_space<vmem>>, vector<1x1x128xf32>
    tpu.vector_store %arg4[%c0_6, %c0_7, %c0_8], %8 {strides = array<i32>} : memref<1x1x128xf32, #tpu.memory_space<vmem>>, vector<1x1x128xf32>,
    %10 = arith.mulf %3, %3 : vector<512x128xf32>
    %cst_9 = arith.constant dense<0.000000e+00> : vector<128xf32>
    %11 = vector.multi_reduction <add>, %10, %cst_9 [0] : vector<512x128xf32> to vector<128xf32>
    %12 = vector.shape_cast %11 : vector<128xf32> to vector<1x128xf32>
    %13 = vector.shape_cast %12 : vector<1x128xf32> to vector<1x1x128xf32>
    %c0_10 = arith.constant 0 : index
    %c0_11 = arith.constant 0 : index
    %c0_12 = arith.constant 0 : index
    %14 = vector.load %arg5[%c0_10, %c0_11, %c0_12] : memref<1x1x128xf32, #tpu.memory_space<vmem>>, vector<1x1x128xf32>
    tpu.vector_store %arg5[%c0_10, %c0_11, %c0_12], %13 {strides = array<i32>} : memref<1x1x128xf32, #tpu.memory_space<vmem>>, vector<1x1x128xf32>,
    return
  }
  func.func @transform_0(%arg0: i32) -> (i32, i32) {
    %c0_i32 = arith.constant 0 : i32
    %c0_i32_0 = arith.constant 0 : i32
    return %arg0, %c0_i32 : i32, i32
  }
  func.func @transform_1(%arg0: i32) -> (i32, i32) {
    %c0_i32 = arith.constant 0 : i32
    %c0_i32_0 = arith.constant 0 : i32
    %c0_i32_1 = arith.constant 0 : i32
    return %c0_i32, %c0_i32_0 : i32, i32
  }
  func.func @transform_2(%arg0: i32) -> (i32, i32) {
    %c0_i32 = arith.constant 0 : i32
    %c0_i32_0 = arith.constant 0 : i32
    return %arg0, %c0_i32 : i32, i32
  }
  func.func @transform_3(%arg0: i32) -> (i32, i32, i32) {
    %c0_i32 = arith.constant 0 : i32
    %c0_i32_0 = arith.constant 0 : i32
    %c0_i32_1 = arith.constant 0 : i32
    return %arg0, %c0_i32, %c0_i32_0 : i32, i32, i32
  }
  func.func @transform_4(%arg0: i32) -> (i32, i32, i32) {
    %c0_i32 = arith.constant 0 : i32
    %c0_i32_0 = arith.constant 0 : i32
    %c0_i32_1 = arith.constant 0 : i32
    return %arg0, %c0_i32, %c0_i32_0 : i32, i32, i32
  }
}

module attributes {stable_mosaic.version = 11 : i64} {
  func.func @_bn_relu_kernel(%arg0: i32, %arg1: memref<512x128xbf16, #tpu.memory_space<vmem>>, %arg2: memref<1x128xf32, #tpu.memory_space<vmem>>, %arg3: memref<1x128xf32, #tpu.memory_space<vmem>>, %arg4: memref<512x128xbf16, #tpu.memory_space<vmem>>) attributes {dimension_semantics = [#tpu.dimension_semantics<parallel>], iteration_bounds = array<i64: 1>, scalar_prefetch = 0 : i64, scratch_operands = 0 : i64, tpu.core_type = #tpu.core_type<tc>, window_params = [{transform_indices = @transform_0, window_bounds = array<i64: 512, 128>}, {pipeline_mode = #tpu.pipeline_mode<synchronous>, transform_indices = @transform_1, window_bounds = array<i64: 1, 128>}, {pipeline_mode = #tpu.pipeline_mode<synchronous>, transform_indices = @transform_2, window_bounds = array<i64: 1, 128>}, {transform_indices = @transform_3, window_bounds = array<i64: 512, 128>}]} {
    %c0 = arith.constant 0 : index
    %c0_0 = arith.constant 0 : index
    %0 = vector.load %arg1[%c0, %c0_0] : memref<512x128xbf16, #tpu.memory_space<vmem>>, vector<512x128xbf16>
    %1 = arith.extf %0 : vector<512x128xbf16> to vector<512x128xf32>
    %c0_1 = arith.constant 0 : index
    %c0_2 = arith.constant 0 : index
    %2 = vector.load %arg2[%c0_1, %c0_2] : memref<1x128xf32, #tpu.memory_space<vmem>>, vector<1x128xf32>
    %3 = vector.broadcast %2 : vector<1x128xf32> to vector<512x128xf32>
    %4 = arith.mulf %1, %3 : vector<512x128xf32>
    %c0_3 = arith.constant 0 : index
    %c0_4 = arith.constant 0 : index
    %5 = vector.load %arg3[%c0_3, %c0_4] : memref<1x128xf32, #tpu.memory_space<vmem>>, vector<1x128xf32>
    %6 = vector.broadcast %5 : vector<1x128xf32> to vector<512x128xf32>
    %7 = arith.addf %4, %6 : vector<512x128xf32>
    %cst = arith.constant 0.000000e+00 : f32
    %8 = vector.broadcast %cst : f32 to vector<512x128xf32>
    %9 = arith.maximumf %7, %8 : vector<512x128xf32>
    %10 = arith.truncf %9 : vector<512x128xf32> to vector<512x128xbf16>
    %c0_5 = arith.constant 0 : index
    %c0_6 = arith.constant 0 : index
    %11 = vector.load %arg4[%c0_5, %c0_6] : memref<512x128xbf16, #tpu.memory_space<vmem>>, vector<512x128xbf16>
    tpu.vector_store %arg4[%c0_5, %c0_6], %10 {strides = array<i32>} : memref<512x128xbf16, #tpu.memory_space<vmem>>, vector<512x128xbf16>,
    return
  }
  func.func @transform_0(%arg0: i32) -> (i32, i32) {
    %c0_i32 = arith.constant 0 : i32
    %c0_i32_0 = arith.constant 0 : i32
    return %arg0, %c0_i32 : i32, i32
  }
  func.func @transform_1(%arg0: i32) -> (i32, i32) {
    %c0_i32 = arith.constant 0 : i32
    %c0_i32_0 = arith.constant 0 : i32
    %c0_i32_1 = arith.constant 0 : i32
    return %c0_i32, %c0_i32_0 : i32, i32
  }
  func.func @transform_2(%arg0: i32) -> (i32, i32) {
    %c0_i32 = arith.constant 0 : i32
    %c0_i32_0 = arith.constant 0 : i32
    %c0_i32_1 = arith.constant 0 : i32
    return %c0_i32, %c0_i32_0 : i32, i32
  }
  func.func @transform_3(%arg0: i32) -> (i32, i32) {
    %c0_i32 = arith.constant 0 : i32
    %c0_i32_0 = arith.constant 0 : i32
    return %arg0, %c0_i32 : i32, i32
  }
}

module attributes {stable_mosaic.version = 11 : i64} {
  func.func @kernel(%arg0: i32, %arg1: i32, %arg2: memref<1x1x9x288xbf16, #tpu.memory_space<vmem>>, %arg3: memref<1x1x9x288xbf16, #tpu.memory_space<vmem>>, %arg4: memref<1x1x9x288xbf16, #tpu.memory_space<vmem>>, %arg5: memref<27x256x64xbf16, #tpu.memory_space<vmem>>, %arg6: memref<1x1x8x64xbf16, #tpu.memory_space<vmem>>, %arg7: memref<1x1x1x64xf32, #tpu.memory_space<vmem>>, %arg8: memref<1x1x1x64xf32, #tpu.memory_space<vmem>>) attributes {dimension_semantics = [#tpu.dimension_semantics<parallel>, #tpu.dimension_semantics<parallel>], iteration_bounds = array<i64: 2, 8>, scalar_prefetch = 0 : i64, scratch_operands = 0 : i64, tpu.core_type = #tpu.core_type<tc>, window_params = [{transform_indices = @transform_0, window_bounds = array<i64: 1, 1, 9, 288>}, {transform_indices = @transform_1, window_bounds = array<i64: 1, 1, 9, 288>}, {transform_indices = @transform_2, window_bounds = array<i64: 1, 1, 9, 288>}, {pipeline_mode = #tpu.pipeline_mode<synchronous>, transform_indices = @transform_3, window_bounds = array<i64: 27, 256, 64>}, {transform_indices = @transform_4, window_bounds = array<i64: 1, 1, 8, 64>}, {transform_indices = @transform_5, window_bounds = array<i64: 1, 1, 1, 64>}, {transform_indices = @transform_6, window_bounds = array<i64: 1, 1, 1, 64>}]} {
    %cst = arith.constant 0.000000e+00 : f32
    %0 = vector.broadcast %cst : f32 to vector<8x64xf32>
    %c0 = arith.constant 0 : index
    %c0_0 = arith.constant 0 : index
    %c0_1 = arith.constant 0 : index
    %c0_2 = arith.constant 0 : index
    %1 = vector.load %arg2[%c0, %c0_0, %c0_1, %c0_2] : memref<1x1x9x288xbf16, #tpu.memory_space<vmem>>, vector<1x1x9x288xbf16>
    %2 = vector.shape_cast %1 : vector<1x1x9x288xbf16> to vector<9x288xbf16>
    %3 = vector.extract_strided_slice %2 {offsets = [0, 0], sizes = [8, 256], strides = [1, 1]} : vector<9x288xbf16> to vector<8x256xbf16>
    %c0_3 = arith.constant 0 : index
    %c0_4 = arith.constant 0 : index
    %c0_5 = arith.constant 0 : index
    %4 = vector.load %arg5[%c0_3, %c0_4, %c0_5] : memref<27x256x64xbf16, #tpu.memory_space<vmem>>, vector<1x256x64xbf16>
    %5 = vector.shape_cast %4 : vector<1x256x64xbf16> to vector<256x64xbf16>
    %cst_6 = arith.constant dense<0.000000e+00> : vector<8x64xf32>
    %6 = tpu.matmul %3, %5, %cst_6 {dimension_numbers = #tpu.dot_dimension_numbers<[1], [0], [0], [1], [0, 0, 1, 1], [], []>} : vector<8x256xbf16>, vector<256x64xbf16>, vector<8x64xf32> -> vector<8x64xf32>
    %7 = arith.addf %0, %6 : vector<8x64xf32>
    %8 = vector.extract_strided_slice %2 {offsets = [0, 0], sizes = [8, 256], strides = [1, 1]} : vector<9x288xbf16> to vector<8x256xbf16>
    %c1 = arith.constant 1 : index
    %c0_7 = arith.constant 0 : index
    %c0_8 = arith.constant 0 : index
    %9 = vector.load %arg5[%c1, %c0_7, %c0_8] : memref<27x256x64xbf16, #tpu.memory_space<vmem>>, vector<1x256x64xbf16>
    %10 = vector.shape_cast %9 : vector<1x256x64xbf16> to vector<256x64xbf16>
    %cst_9 = arith.constant dense<0.000000e+00> : vector<8x64xf32>
    %11 = tpu.matmul %8, %10, %cst_9 {dimension_numbers = #tpu.dot_dimension_numbers<[1], [0], [0], [1], [0, 0, 1, 1], [], []>} : vector<8x256xbf16>, vector<256x64xbf16>, vector<8x64xf32> -> vector<8x64xf32>
    %12 = arith.addf %7, %11 : vector<8x64xf32>
    %13 = vector.extract_strided_slice %2 {offsets = [0, 32], sizes = [8, 256], strides = [1, 1]} : vector<9x288xbf16> to vector<8x256xbf16>
    %c2 = arith.constant 2 : index
    %c0_10 = arith.constant 0 : index
    %c0_11 = arith.constant 0 : index
    %14 = vector.load %arg5[%c2, %c0_10, %c0_11] : memref<27x256x64xbf16, #tpu.memory_space<vmem>>, vector<1x256x64xbf16>
    %15 = vector.shape_cast %14 : vector<1x256x64xbf16> to vector<256x64xbf16>
    %cst_12 = arith.constant dense<0.000000e+00> : vector<8x64xf32>
    %16 = tpu.matmul %13, %15, %cst_12 {dimension_numbers = #tpu.dot_dimension_numbers<[1], [0], [0], [1], [0, 0, 1, 1], [], []>} : vector<8x256xbf16>, vector<256x64xbf16>, vector<8x64xf32> -> vector<8x64xf32>
    %17 = arith.addf %12, %16 : vector<8x64xf32>
    %18 = vector.extract_strided_slice %2 {offsets = [0, 0], sizes = [8, 256], strides = [1, 1]} : vector<9x288xbf16> to vector<8x256xbf16>
    %c3 = arith.constant 3 : index
    %c0_13 = arith.constant 0 : index
    %c0_14 = arith.constant 0 : index
    %19 = vector.load %arg5[%c3, %c0_13, %c0_14] : memref<27x256x64xbf16, #tpu.memory_space<vmem>>, vector<1x256x64xbf16>
    %20 = vector.shape_cast %19 : vector<1x256x64xbf16> to vector<256x64xbf16>
    %cst_15 = arith.constant dense<0.000000e+00> : vector<8x64xf32>
    %21 = tpu.matmul %18, %20, %cst_15 {dimension_numbers = #tpu.dot_dimension_numbers<[1], [0], [0], [1], [0, 0, 1, 1], [], []>} : vector<8x256xbf16>, vector<256x64xbf16>, vector<8x64xf32> -> vector<8x64xf32>
    %22 = arith.addf %17, %21 : vector<8x64xf32>
    %23 = vector.extract_strided_slice %2 {offsets = [0, 0], sizes = [8, 256], strides = [1, 1]} : vector<9x288xbf16> to vector<8x256xbf16>
    %c4 = arith.constant 4 : index
    %c0_16 = arith.constant 0 : index
    %c0_17 = arith.constant 0 : index
    %24 = vector.load %arg5[%c4, %c0_16, %c0_17] : memref<27x256x64xbf16, #tpu.memory_space<vmem>>, vector<1x256x64xbf16>
    %25 = vector.shape_cast %24 : vector<1x256x64xbf16> to vector<256x64xbf16>
    %cst_18 = arith.constant dense<0.000000e+00> : vector<8x64xf32>
    %26 = tpu.matmul %23, %25, %cst_18 {dimension_numbers = #tpu.dot_dimension_numbers<[1], [0], [0], [1], [0, 0, 1, 1], [], []>} : vector<8x256xbf16>, vector<256x64xbf16>, vector<8x64xf32> -> vector<8x64xf32>
    %27 = arith.addf %22, %26 : vector<8x64xf32>
    %28 = vector.extract_strided_slice %2 {offsets = [0, 32], sizes = [8, 256], strides = [1, 1]} : vector<9x288xbf16> to vector<8x256xbf16>
    %c5 = arith.constant 5 : index
    %c0_19 = arith.constant 0 : index
    %c0_20 = arith.constant 0 : index
    %29 = vector.load %arg5[%c5, %c0_19, %c0_20] : memref<27x256x64xbf16, #tpu.memory_space<vmem>>, vector<1x256x64xbf16>
    %30 = vector.shape_cast %29 : vector<1x256x64xbf16> to vector<256x64xbf16>
    %cst_21 = arith.constant dense<0.000000e+00> : vector<8x64xf32>
    %31 = tpu.matmul %28, %30, %cst_21 {dimension_numbers = #tpu.dot_dimension_numbers<[1], [0], [0], [1], [0, 0, 1, 1], [], []>} : vector<8x256xbf16>, vector<256x64xbf16>, vector<8x64xf32> -> vector<8x64xf32>
    %32 = arith.addf %27, %31 : vector<8x64xf32>
    %33 = vector.extract_strided_slice %2 {offsets = [1, 0], sizes = [8, 256], strides = [1, 1]} : vector<9x288xbf16> to vector<8x256xbf16>
    %c6 = arith.constant 6 : index
    %c0_22 = arith.constant 0 : index
    %c0_23 = arith.constant 0 : index
    %34 = vector.load %arg5[%c6, %c0_22, %c0_23] : memref<27x256x64xbf16, #tpu.memory_space<vmem>>, vector<1x256x64xbf16>
    %35 = vector.shape_cast %34 : vector<1x256x64xbf16> to vector<256x64xbf16>
    %cst_24 = arith.constant dense<0.000000e+00> : vector<8x64xf32>
    %36 = tpu.matmul %33, %35, %cst_24 {dimension_numbers = #tpu.dot_dimension_numbers<[1], [0], [0], [1], [0, 0, 1, 1], [], []>} : vector<8x256xbf16>, vector<256x64xbf16>, vector<8x64xf32> -> vector<8x64xf32>
    %37 = arith.addf %32, %36 : vector<8x64xf32>
    %38 = vector.extract_strided_slice %2 {offsets = [1, 0], sizes = [8, 256], strides = [1, 1]} : vector<9x288xbf16> to vector<8x256xbf16>
    %c7 = arith.constant 7 : index
    %c0_25 = arith.constant 0 : index
    %c0_26 = arith.constant 0 : index
    %39 = vector.load %arg5[%c7, %c0_25, %c0_26] : memref<27x256x64xbf16, #tpu.memory_space<vmem>>, vector<1x256x64xbf16>
    %40 = vector.shape_cast %39 : vector<1x256x64xbf16> to vector<256x64xbf16>
    %cst_27 = arith.constant dense<0.000000e+00> : vector<8x64xf32>
    %41 = tpu.matmul %38, %40, %cst_27 {dimension_numbers = #tpu.dot_dimension_numbers<[1], [0], [0], [1], [0, 0, 1, 1], [], []>} : vector<8x256xbf16>, vector<256x64xbf16>, vector<8x64xf32> -> vector<8x64xf32>
    %42 = arith.addf %37, %41 : vector<8x64xf32>
    %43 = vector.extract_strided_slice %2 {offsets = [1, 32], sizes = [8, 256], strides = [1, 1]} : vector<9x288xbf16> to vector<8x256xbf16>
    %c8 = arith.constant 8 : index
    %c0_28 = arith.constant 0 : index
    %c0_29 = arith.constant 0 : index
    %44 = vector.load %arg5[%c8, %c0_28, %c0_29] : memref<27x256x64xbf16, #tpu.memory_space<vmem>>, vector<1x256x64xbf16>
    %45 = vector.shape_cast %44 : vector<1x256x64xbf16> to vector<256x64xbf16>
    %cst_30 = arith.constant dense<0.000000e+00> : vector<8x64xf32>
    %46 = tpu.matmul %43, %45, %cst_30 {dimension_numbers = #tpu.dot_dimension_numbers<[1], [0], [0], [1], [0, 0, 1, 1], [], []>} : vector<8x256xbf16>, vector<256x64xbf16>, vector<8x64xf32> -> vector<8x64xf32>
    %47 = arith.addf %42, %46 : vector<8x64xf32>
    %c0_31 = arith.constant 0 : index
    %c0_32 = arith.constant 0 : index
    %c0_33 = arith.constant 0 : index
    %c0_34 = arith.constant 0 : index
    %48 = vector.load %arg3[%c0_31, %c0_32, %c0_33, %c0_34] : memref<1x1x9x288xbf16, #tpu.memory_space<vmem>>, vector<1x1x9x288xbf16>
    %49 = vector.shape_cast %48 : vector<1x1x9x288xbf16> to vector<9x288xbf16>
    %50 = vector.extract_strided_slice %49 {offsets = [0, 0], sizes = [8, 256], strides = [1, 1]} : vector<9x288xbf16> to vector<8x256xbf16>
    %c9 = arith.constant 9 : index
    %c0_35 = arith.constant 0 : index
    %c0_36 = arith.constant 0 : index
    %51 = vector.load %arg5[%c9, %c0_35, %c0_36] : memref<27x256x64xbf16, #tpu.memory_space<vmem>>, vector<1x256x64xbf16>
    %52 = vector.shape_cast %51 : vector<1x256x64xbf16> to vector<256x64xbf16>
    %cst_37 = arith.constant dense<0.000000e+00> : vector<8x64xf32>
    %53 = tpu.matmul %50, %52, %cst_37 {dimension_numbers = #tpu.dot_dimension_numbers<[1], [0], [0], [1], [0, 0, 1, 1], [], []>} : vector<8x256xbf16>, vector<256x64xbf16>, vector<8x64xf32> -> vector<8x64xf32>
    %54 = arith.addf %47, %53 : vector<8x64xf32>
    %55 = vector.extract_strided_slice %49 {offsets = [0, 0], sizes = [8, 256], strides = [1, 1]} : vector<9x288xbf16> to vector<8x256xbf16>
    %c10 = arith.constant 10 : index
    %c0_38 = arith.constant 0 : index
    %c0_39 = arith.constant 0 : index
    %56 = vector.load %arg5[%c10, %c0_38, %c0_39] : memref<27x256x64xbf16, #tpu.memory_space<vmem>>, vector<1x256x64xbf16>
    %57 = vector.shape_cast %56 : vector<1x256x64xbf16> to vector<256x64xbf16>
    %cst_40 = arith.constant dense<0.000000e+00> : vector<8x64xf32>
    %58 = tpu.matmul %55, %57, %cst_40 {dimension_numbers = #tpu.dot_dimension_numbers<[1], [0], [0], [1], [0, 0, 1, 1], [], []>} : vector<8x256xbf16>, vector<256x64xbf16>, vector<8x64xf32> -> vector<8x64xf32>
    %59 = arith.addf %54, %58 : vector<8x64xf32>
    %60 = vector.extract_strided_slice %49 {offsets = [0, 32], sizes = [8, 256], strides = [1, 1]} : vector<9x288xbf16> to vector<8x256xbf16>
    %c11 = arith.constant 11 : index
    %c0_41 = arith.constant 0 : index
    %c0_42 = arith.constant 0 : index
    %61 = vector.load %arg5[%c11, %c0_41, %c0_42] : memref<27x256x64xbf16, #tpu.memory_space<vmem>>, vector<1x256x64xbf16>
    %62 = vector.shape_cast %61 : vector<1x256x64xbf16> to vector<256x64xbf16>
    %cst_43 = arith.constant dense<0.000000e+00> : vector<8x64xf32>
    %63 = tpu.matmul %60, %62, %cst_43 {dimension_numbers = #tpu.dot_dimension_numbers<[1], [0], [0], [1], [0, 0, 1, 1], [], []>} : vector<8x256xbf16>, vector<256x64xbf16>, vector<8x64xf32> -> vector<8x64xf32>
    %64 = arith.addf %59, %63 : vector<8x64xf32>
    %65 = vector.extract_strided_slice %49 {offsets = [0, 0], sizes = [8, 256], strides = [1, 1]} : vector<9x288xbf16> to vector<8x256xbf16>
    %c12 = arith.constant 12 : index
    %c0_44 = arith.constant 0 : index
    %c0_45 = arith.constant 0 : index
    %66 = vector.load %arg5[%c12, %c0_44, %c0_45] : memref<27x256x64xbf16, #tpu.memory_space<vmem>>, vector<1x256x64xbf16>
    %67 = vector.shape_cast %66 : vector<1x256x64xbf16> to vector<256x64xbf16>
    %cst_46 = arith.constant dense<0.000000e+00> : vector<8x64xf32>
    %68 = tpu.matmul %65, %67, %cst_46 {dimension_numbers = #tpu.dot_dimension_numbers<[1], [0], [0], [1], [0, 0, 1, 1], [], []>} : vector<8x256xbf16>, vector<256x64xbf16>, vector<8x64xf32> -> vector<8x64xf32>
    %69 = arith.addf %64, %68 : vector<8x64xf32>
    %70 = vector.extract_strided_slice %49 {offsets = [0, 0], sizes = [8, 256], strides = [1, 1]} : vector<9x288xbf16> to vector<8x256xbf16>
    %c13 = arith.constant 13 : index
    %c0_47 = arith.constant 0 : index
    %c0_48 = arith.constant 0 : index
    %71 = vector.load %arg5[%c13, %c0_47, %c0_48] : memref<27x256x64xbf16, #tpu.memory_space<vmem>>, vector<1x256x64xbf16>
    %72 = vector.shape_cast %71 : vector<1x256x64xbf16> to vector<256x64xbf16>
    %cst_49 = arith.constant dense<0.000000e+00> : vector<8x64xf32>
    %73 = tpu.matmul %70, %72, %cst_49 {dimension_numbers = #tpu.dot_dimension_numbers<[1], [0], [0], [1], [0, 0, 1, 1], [], []>} : vector<8x256xbf16>, vector<256x64xbf16>, vector<8x64xf32> -> vector<8x64xf32>
    %74 = arith.addf %69, %73 : vector<8x64xf32>
    %75 = vector.extract_strided_slice %49 {offsets = [0, 32], sizes = [8, 256], strides = [1, 1]} : vector<9x288xbf16> to vector<8x256xbf16>
    %c14 = arith.constant 14 : index
    %c0_50 = arith.constant 0 : index
    %c0_51 = arith.constant 0 : index
    %76 = vector.load %arg5[%c14, %c0_50, %c0_51] : memref<27x256x64xbf16, #tpu.memory_space<vmem>>, vector<1x256x64xbf16>
    %77 = vector.shape_cast %76 : vector<1x256x64xbf16> to vector<256x64xbf16>
    %cst_52 = arith.constant dense<0.000000e+00> : vector<8x64xf32>
    %78 = tpu.matmul %75, %77, %cst_52 {dimension_numbers = #tpu.dot_dimension_numbers<[1], [0], [0], [1], [0, 0, 1, 1], [], []>} : vector<8x256xbf16>, vector<256x64xbf16>, vector<8x64xf32> -> vector<8x64xf32>
    %79 = arith.addf %74, %78 : vector<8x64xf32>
    %80 = vector.extract_strided_slice %49 {offsets = [1, 0], sizes = [8, 256], strides = [1, 1]} : vector<9x288xbf16> to vector<8x256xbf16>
    %c15 = arith.constant 15 : index
    %c0_53 = arith.constant 0 : index
    %c0_54 = arith.constant 0 : index
    %81 = vector.load %arg5[%c15, %c0_53, %c0_54] : memref<27x256x64xbf16, #tpu.memory_space<vmem>>, vector<1x256x64xbf16>
    %82 = vector.shape_cast %81 : vector<1x256x64xbf16> to vector<256x64xbf16>
    %cst_55 = arith.constant dense<0.000000e+00> : vector<8x64xf32>
    %83 = tpu.matmul %80, %82, %cst_55 {dimension_numbers = #tpu.dot_dimension_numbers<[1], [0], [0], [1], [0, 0, 1, 1], [], []>} : vector<8x256xbf16>, vector<256x64xbf16>, vector<8x64xf32> -> vector<8x64xf32>
    %84 = arith.addf %79, %83 : vector<8x64xf32>
    %85 = vector.extract_strided_slice %49 {offsets = [1, 0], sizes = [8, 256], strides = [1, 1]} : vector<9x288xbf16> to vector<8x256xbf16>
    %c16 = arith.constant 16 : index
    %c0_56 = arith.constant 0 : index
    %c0_57 = arith.constant 0 : index
    %86 = vector.load %arg5[%c16, %c0_56, %c0_57] : memref<27x256x64xbf16, #tpu.memory_space<vmem>>, vector<1x256x64xbf16>
    %87 = vector.shape_cast %86 : vector<1x256x64xbf16> to vector<256x64xbf16>
    %cst_58 = arith.constant dense<0.000000e+00> : vector<8x64xf32>
    %88 = tpu.matmul %85, %87, %cst_58 {dimension_numbers = #tpu.dot_dimension_numbers<[1], [0], [0], [1], [0, 0, 1, 1], [], []>} : vector<8x256xbf16>, vector<256x64xbf16>, vector<8x64xf32> -> vector<8x64xf32>
    %89 = arith.addf %84, %88 : vector<8x64xf32>
    %90 = vector.extract_strided_slice %49 {offsets = [1, 32], sizes = [8, 256], strides = [1, 1]} : vector<9x288xbf16> to vector<8x256xbf16>
    %c17 = arith.constant 17 : index
    %c0_59 = arith.constant 0 : index
    %c0_60 = arith.constant 0 : index
    %91 = vector.load %arg5[%c17, %c0_59, %c0_60] : memref<27x256x64xbf16, #tpu.memory_space<vmem>>, vector<1x256x64xbf16>
    %92 = vector.shape_cast %91 : vector<1x256x64xbf16> to vector<256x64xbf16>
    %cst_61 = arith.constant dense<0.000000e+00> : vector<8x64xf32>
    %93 = tpu.matmul %90, %92, %cst_61 {dimension_numbers = #tpu.dot_dimension_numbers<[1], [0], [0], [1], [0, 0, 1, 1], [], []>} : vector<8x256xbf16>, vector<256x64xbf16>, vector<8x64xf32> -> vector<8x64xf32>
    %94 = arith.addf %89, %93 : vector<8x64xf32>
    %c0_62 = arith.constant 0 : index
    %c0_63 = arith.constant 0 : index
    %c0_64 = arith.constant 0 : index
    %c0_65 = arith.constant 0 : index
    %95 = vector.load %arg4[%c0_62, %c0_63, %c0_64, %c0_65] : memref<1x1x9x288xbf16, #tpu.memory_space<vmem>>, vector<1x1x9x288xbf16>
    %96 = vector.shape_cast %95 : vector<1x1x9x288xbf16> to vector<9x288xbf16>
    %97 = vector.extract_strided_slice %96 {offsets = [0, 0], sizes = [8, 256], strides = [1, 1]} : vector<9x288xbf16> to vector<8x256xbf16>
    %c18 = arith.constant 18 : index
    %c0_66 = arith.constant 0 : index
    %c0_67 = arith.constant 0 : index
    %98 = vector.load %arg5[%c18, %c0_66, %c0_67] : memref<27x256x64xbf16, #tpu.memory_space<vmem>>, vector<1x256x64xbf16>
    %99 = vector.shape_cast %98 : vector<1x256x64xbf16> to vector<256x64xbf16>
    %cst_68 = arith.constant dense<0.000000e+00> : vector<8x64xf32>
    %100 = tpu.matmul %97, %99, %cst_68 {dimension_numbers = #tpu.dot_dimension_numbers<[1], [0], [0], [1], [0, 0, 1, 1], [], []>} : vector<8x256xbf16>, vector<256x64xbf16>, vector<8x64xf32> -> vector<8x64xf32>
    %101 = arith.addf %94, %100 : vector<8x64xf32>
    %102 = vector.extract_strided_slice %96 {offsets = [0, 0], sizes = [8, 256], strides = [1, 1]} : vector<9x288xbf16> to vector<8x256xbf16>
    %c19 = arith.constant 19 : index
    %c0_69 = arith.constant 0 : index
    %c0_70 = arith.constant 0 : index
    %103 = vector.load %arg5[%c19, %c0_69, %c0_70] : memref<27x256x64xbf16, #tpu.memory_space<vmem>>, vector<1x256x64xbf16>
    %104 = vector.shape_cast %103 : vector<1x256x64xbf16> to vector<256x64xbf16>
    %cst_71 = arith.constant dense<0.000000e+00> : vector<8x64xf32>
    %105 = tpu.matmul %102, %104, %cst_71 {dimension_numbers = #tpu.dot_dimension_numbers<[1], [0], [0], [1], [0, 0, 1, 1], [], []>} : vector<8x256xbf16>, vector<256x64xbf16>, vector<8x64xf32> -> vector<8x64xf32>
    %106 = arith.addf %101, %105 : vector<8x64xf32>
    %107 = vector.extract_strided_slice %96 {offsets = [0, 32], sizes = [8, 256], strides = [1, 1]} : vector<9x288xbf16> to vector<8x256xbf16>
    %c20 = arith.constant 20 : index
    %c0_72 = arith.constant 0 : index
    %c0_73 = arith.constant 0 : index
    %108 = vector.load %arg5[%c20, %c0_72, %c0_73] : memref<27x256x64xbf16, #tpu.memory_space<vmem>>, vector<1x256x64xbf16>
    %109 = vector.shape_cast %108 : vector<1x256x64xbf16> to vector<256x64xbf16>
    %cst_74 = arith.constant dense<0.000000e+00> : vector<8x64xf32>
    %110 = tpu.matmul %107, %109, %cst_74 {dimension_numbers = #tpu.dot_dimension_numbers<[1], [0], [0], [1], [0, 0, 1, 1], [], []>} : vector<8x256xbf16>, vector<256x64xbf16>, vector<8x64xf32> -> vector<8x64xf32>
    %111 = arith.addf %106, %110 : vector<8x64xf32>
    %112 = vector.extract_strided_slice %96 {offsets = [0, 0], sizes = [8, 256], strides = [1, 1]} : vector<9x288xbf16> to vector<8x256xbf16>
    %c21 = arith.constant 21 : index
    %c0_75 = arith.constant 0 : index
    %c0_76 = arith.constant 0 : index
    %113 = vector.load %arg5[%c21, %c0_75, %c0_76] : memref<27x256x64xbf16, #tpu.memory_space<vmem>>, vector<1x256x64xbf16>
    %114 = vector.shape_cast %113 : vector<1x256x64xbf16> to vector<256x64xbf16>
    %cst_77 = arith.constant dense<0.000000e+00> : vector<8x64xf32>
    %115 = tpu.matmul %112, %114, %cst_77 {dimension_numbers = #tpu.dot_dimension_numbers<[1], [0], [0], [1], [0, 0, 1, 1], [], []>} : vector<8x256xbf16>, vector<256x64xbf16>, vector<8x64xf32> -> vector<8x64xf32>
    %116 = arith.addf %111, %115 : vector<8x64xf32>
    %117 = vector.extract_strided_slice %96 {offsets = [0, 0], sizes = [8, 256], strides = [1, 1]} : vector<9x288xbf16> to vector<8x256xbf16>
    %c22 = arith.constant 22 : index
    %c0_78 = arith.constant 0 : index
    %c0_79 = arith.constant 0 : index
    %118 = vector.load %arg5[%c22, %c0_78, %c0_79] : memref<27x256x64xbf16, #tpu.memory_space<vmem>>, vector<1x256x64xbf16>
    %119 = vector.shape_cast %118 : vector<1x256x64xbf16> to vector<256x64xbf16>
    %cst_80 = arith.constant dense<0.000000e+00> : vector<8x64xf32>
    %120 = tpu.matmul %117, %119, %cst_80 {dimension_numbers = #tpu.dot_dimension_numbers<[1], [0], [0], [1], [0, 0, 1, 1], [], []>} : vector<8x256xbf16>, vector<256x64xbf16>, vector<8x64xf32> -> vector<8x64xf32>
    %121 = arith.addf %116, %120 : vector<8x64xf32>
    %122 = vector.extract_strided_slice %96 {offsets = [0, 32], sizes = [8, 256], strides = [1, 1]} : vector<9x288xbf16> to vector<8x256xbf16>
    %c23 = arith.constant 23 : index
    %c0_81 = arith.constant 0 : index
    %c0_82 = arith.constant 0 : index
    %123 = vector.load %arg5[%c23, %c0_81, %c0_82] : memref<27x256x64xbf16, #tpu.memory_space<vmem>>, vector<1x256x64xbf16>
    %124 = vector.shape_cast %123 : vector<1x256x64xbf16> to vector<256x64xbf16>
    %cst_83 = arith.constant dense<0.000000e+00> : vector<8x64xf32>
    %125 = tpu.matmul %122, %124, %cst_83 {dimension_numbers = #tpu.dot_dimension_numbers<[1], [0], [0], [1], [0, 0, 1, 1], [], []>} : vector<8x256xbf16>, vector<256x64xbf16>, vector<8x64xf32> -> vector<8x64xf32>
    %126 = arith.addf %121, %125 : vector<8x64xf32>
    %127 = vector.extract_strided_slice %96 {offsets = [1, 0], sizes = [8, 256], strides = [1, 1]} : vector<9x288xbf16> to vector<8x256xbf16>
    %c24 = arith.constant 24 : index
    %c0_84 = arith.constant 0 : index
    %c0_85 = arith.constant 0 : index
    %128 = vector.load %arg5[%c24, %c0_84, %c0_85] : memref<27x256x64xbf16, #tpu.memory_space<vmem>>, vector<1x256x64xbf16>
    %129 = vector.shape_cast %128 : vector<1x256x64xbf16> to vector<256x64xbf16>
    %cst_86 = arith.constant dense<0.000000e+00> : vector<8x64xf32>
    %130 = tpu.matmul %127, %129, %cst_86 {dimension_numbers = #tpu.dot_dimension_numbers<[1], [0], [0], [1], [0, 0, 1, 1], [], []>} : vector<8x256xbf16>, vector<256x64xbf16>, vector<8x64xf32> -> vector<8x64xf32>
    %131 = arith.addf %126, %130 : vector<8x64xf32>
    %132 = vector.extract_strided_slice %96 {offsets = [1, 0], sizes = [8, 256], strides = [1, 1]} : vector<9x288xbf16> to vector<8x256xbf16>
    %c25 = arith.constant 25 : index
    %c0_87 = arith.constant 0 : index
    %c0_88 = arith.constant 0 : index
    %133 = vector.load %arg5[%c25, %c0_87, %c0_88] : memref<27x256x64xbf16, #tpu.memory_space<vmem>>, vector<1x256x64xbf16>
    %134 = vector.shape_cast %133 : vector<1x256x64xbf16> to vector<256x64xbf16>
    %cst_89 = arith.constant dense<0.000000e+00> : vector<8x64xf32>
    %135 = tpu.matmul %132, %134, %cst_89 {dimension_numbers = #tpu.dot_dimension_numbers<[1], [0], [0], [1], [0, 0, 1, 1], [], []>} : vector<8x256xbf16>, vector<256x64xbf16>, vector<8x64xf32> -> vector<8x64xf32>
    %136 = arith.addf %131, %135 : vector<8x64xf32>
    %137 = vector.extract_strided_slice %96 {offsets = [1, 32], sizes = [8, 256], strides = [1, 1]} : vector<9x288xbf16> to vector<8x256xbf16>
    %c26 = arith.constant 26 : index
    %c0_90 = arith.constant 0 : index
    %c0_91 = arith.constant 0 : index
    %138 = vector.load %arg5[%c26, %c0_90, %c0_91] : memref<27x256x64xbf16, #tpu.memory_space<vmem>>, vector<1x256x64xbf16>
    %139 = vector.shape_cast %138 : vector<1x256x64xbf16> to vector<256x64xbf16>
    %cst_92 = arith.constant dense<0.000000e+00> : vector<8x64xf32>
    %140 = tpu.matmul %137, %139, %cst_92 {dimension_numbers = #tpu.dot_dimension_numbers<[1], [0], [0], [1], [0, 0, 1, 1], [], []>} : vector<8x256xbf16>, vector<256x64xbf16>, vector<8x64xf32> -> vector<8x64xf32>
    %141 = arith.addf %136, %140 : vector<8x64xf32>
    %142 = arith.truncf %141 : vector<8x64xf32> to vector<8x64xbf16>
    %c0_93 = arith.constant 0 : index
    %c0_94 = arith.constant 0 : index
    %c0_95 = arith.constant 0 : index
    %c0_96 = arith.constant 0 : index
    %143 = vector.load %arg6[%c0_93, %c0_94, %c0_95, %c0_96] : memref<1x1x8x64xbf16, #tpu.memory_space<vmem>>, vector<1x1x8x64xbf16>
    %144 = vector.shape_cast %143 : vector<1x1x8x64xbf16> to vector<8x64xbf16>
    %145 = vector.shape_cast %142 : vector<8x64xbf16> to vector<1x1x8x64xbf16>
    tpu.vector_store %arg6[%c0_93, %c0_94, %c0_95, %c0_96], %145 {strides = array<i32>} : memref<1x1x8x64xbf16, #tpu.memory_space<vmem>>, vector<1x1x8x64xbf16>,
    %cst_97 = arith.constant dense<0.000000e+00> : vector<64xf32>
    %146 = vector.multi_reduction <add>, %141, %cst_97 [0] : vector<8x64xf32> to vector<64xf32>
    %147 = vector.shape_cast %146 : vector<64xf32> to vector<1x64xf32>
    %c0_98 = arith.constant 0 : index
    %c0_99 = arith.constant 0 : index
    %c0_100 = arith.constant 0 : index
    %c0_101 = arith.constant 0 : index
    %148 = vector.load %arg7[%c0_98, %c0_99, %c0_100, %c0_101] : memref<1x1x1x64xf32, #tpu.memory_space<vmem>>, vector<1x1x1x64xf32>
    %149 = vector.shape_cast %148 : vector<1x1x1x64xf32> to vector<1x64xf32>
    %150 = vector.shape_cast %147 : vector<1x64xf32> to vector<1x1x1x64xf32>
    tpu.vector_store %arg7[%c0_98, %c0_99, %c0_100, %c0_101], %150 {strides = array<i32>} : memref<1x1x1x64xf32, #tpu.memory_space<vmem>>, vector<1x1x1x64xf32>,
    %151 = arith.mulf %141, %141 : vector<8x64xf32>
    %cst_102 = arith.constant dense<0.000000e+00> : vector<64xf32>
    %152 = vector.multi_reduction <add>, %151, %cst_102 [0] : vector<8x64xf32> to vector<64xf32>
    %153 = vector.shape_cast %152 : vector<64xf32> to vector<1x64xf32>
    %c0_103 = arith.constant 0 : index
    %c0_104 = arith.constant 0 : index
    %c0_105 = arith.constant 0 : index
    %c0_106 = arith.constant 0 : index
    %154 = vector.load %arg8[%c0_103, %c0_104, %c0_105, %c0_106] : memref<1x1x1x64xf32, #tpu.memory_space<vmem>>, vector<1x1x1x64xf32>
    %155 = vector.shape_cast %154 : vector<1x1x1x64xf32> to vector<1x64xf32>
    %156 = vector.shape_cast %153 : vector<1x64xf32> to vector<1x1x1x64xf32>
    tpu.vector_store %arg8[%c0_103, %c0_104, %c0_105, %c0_106], %156 {strides = array<i32>} : memref<1x1x1x64xf32, #tpu.memory_space<vmem>>, vector<1x1x1x64xf32>,
    return
  }
  func.func @transform_0(%arg0: i32, %arg1: i32) -> (i32, i32, i32, i32) {
    %c2_i32 = arith.constant 2 : i32
    %0 = arith.muli %arg1, %c2_i32 : i32
    %c0_i32 = arith.constant 0 : i32
    %1 = arith.addi %0, %c0_i32 : i32
    %c0_i32_0 = arith.constant 0 : i32
    %c0_i32_1 = arith.constant 0 : i32
    %c0_i32_2 = arith.constant 0 : i32
    return %arg0, %1, %c0_i32_0, %c0_i32_1 : i32, i32, i32, i32
  }
  func.func @transform_1(%arg0: i32, %arg1: i32) -> (i32, i32, i32, i32) {
    %c2_i32 = arith.constant 2 : i32
    %0 = arith.muli %arg1, %c2_i32 : i32
    %c1_i32 = arith.constant 1 : i32
    %1 = arith.addi %0, %c1_i32 : i32
    %c0_i32 = arith.constant 0 : i32
    %c0_i32_0 = arith.constant 0 : i32
    %c0_i32_1 = arith.constant 0 : i32
    return %arg0, %1, %c0_i32, %c0_i32_0 : i32, i32, i32, i32
  }
  func.func @transform_2(%arg0: i32, %arg1: i32) -> (i32, i32, i32, i32) {
    %c2_i32 = arith.constant 2 : i32
    %0 = arith.muli %arg1, %c2_i32 : i32
    %c2_i32_0 = arith.constant 2 : i32
    %1 = arith.addi %0, %c2_i32_0 : i32
    %c0_i32 = arith.constant 0 : i32
    %c0_i32_1 = arith.constant 0 : i32
    %c0_i32_2 = arith.constant 0 : i32
    return %arg0, %1, %c0_i32, %c0_i32_1 : i32, i32, i32, i32
  }
  func.func @transform_3(%arg0: i32, %arg1: i32) -> (i32, i32, i32) {
    %c0_i32 = arith.constant 0 : i32
    %c0_i32_0 = arith.constant 0 : i32
    %c0_i32_1 = arith.constant 0 : i32
    %c0_i32_2 = arith.constant 0 : i32
    return %c0_i32, %c0_i32_0, %c0_i32_1 : i32, i32, i32
  }
  func.func @transform_4(%arg0: i32, %arg1: i32) -> (i32, i32, i32, i32) {
    %c0_i32 = arith.constant 0 : i32
    %c0_i32_0 = arith.constant 0 : i32
    %c0_i32_1 = arith.constant 0 : i32
    return %arg0, %arg1, %c0_i32, %c0_i32_0 : i32, i32, i32, i32
  }
  func.func @transform_5(%arg0: i32, %arg1: i32) -> (i32, i32, i32, i32) {
    %c0_i32 = arith.constant 0 : i32
    %c0_i32_0 = arith.constant 0 : i32
    %c0_i32_1 = arith.constant 0 : i32
    return %arg0, %arg1, %c0_i32, %c0_i32_0 : i32, i32, i32, i32
  }
  func.func @transform_6(%arg0: i32, %arg1: i32) -> (i32, i32, i32, i32) {
    %c0_i32 = arith.constant 0 : i32
    %c0_i32_0 = arith.constant 0 : i32
    %c0_i32_1 = arith.constant 0 : i32
    return %arg0, %arg1, %c0_i32, %c0_i32_0 : i32, i32, i32, i32
  }
}

module attributes {stable_mosaic.version = 11 : i64} {
  func.func @kernel(%arg0: i32, %arg1: memref<128x64xbf16, #tpu.memory_space<vmem>>, %arg2: memref<64x128xbf16, #tpu.memory_space<vmem>>, %arg3: memref<1x64xf32, #tpu.memory_space<vmem>>, %arg4: memref<1x64xf32, #tpu.memory_space<vmem>>, %arg5: memref<128x32xf32, #tpu.memory_space<vmem>>, %arg6: memref<32x128xbf16, #tpu.memory_space<vmem>>, %arg7: memref<128x128xbf16, #tpu.memory_space<vmem>>, %arg8: memref<1x1x128xf32, #tpu.memory_space<vmem>>, %arg9: memref<1x1x128xf32, #tpu.memory_space<vmem>>, %arg10: memref<128x128xbf16, #tpu.memory_space<vmem>>, %arg11: memref<1x1x128xf32, #tpu.memory_space<vmem>>, %arg12: memref<1x1x128xf32, #tpu.memory_space<vmem>>) attributes {dimension_semantics = [#tpu.dimension_semantics<parallel>], iteration_bounds = array<i64: 1>, scalar_prefetch = 0 : i64, scratch_operands = 0 : i64, tpu.core_type = #tpu.core_type<tc>, window_params = [{transform_indices = @transform_0, window_bounds = array<i64: 128, 64>}, {pipeline_mode = #tpu.pipeline_mode<synchronous>, transform_indices = @transform_1, window_bounds = array<i64: 64, 128>}, {pipeline_mode = #tpu.pipeline_mode<synchronous>, transform_indices = @transform_2, window_bounds = array<i64: 1, 64>}, {pipeline_mode = #tpu.pipeline_mode<synchronous>, transform_indices = @transform_3, window_bounds = array<i64: 1, 64>}, {transform_indices = @transform_4, window_bounds = array<i64: 128, 32>}, {pipeline_mode = #tpu.pipeline_mode<synchronous>, transform_indices = @transform_5, window_bounds = array<i64: 32, 128>}, {transform_indices = @transform_6, window_bounds = array<i64: 128, 128>}, {transform_indices = @transform_7, window_bounds = array<i64: 1, 1, 128>}, {transform_indices = @transform_8, window_bounds = array<i64: 1, 1, 128>}, {transform_indices = @transform_9, window_bounds = array<i64: 128, 128>}, {transform_indices = @transform_10, window_bounds = array<i64: 1, 1, 128>}, {transform_indices = @transform_11, window_bounds = array<i64: 1, 1, 128>}]} {
    %c0 = arith.constant 0 : index
    %c0_0 = arith.constant 0 : index
    %0 = vector.load %arg1[%c0, %c0_0] : memref<128x64xbf16, #tpu.memory_space<vmem>>, vector<128x64xbf16>
    %1 = arith.extf %0 : vector<128x64xbf16> to vector<128x64xf32>
    %c0_1 = arith.constant 0 : index
    %c0_2 = arith.constant 0 : index
    %2 = vector.load %arg3[%c0_1, %c0_2] : memref<1x64xf32, #tpu.memory_space<vmem>>, vector<1x64xf32>
    %3 = vector.broadcast %2 : vector<1x64xf32> to vector<128x64xf32>
    %4 = arith.mulf %1, %3 : vector<128x64xf32>
    %c0_3 = arith.constant 0 : index
    %c0_4 = arith.constant 0 : index
    %5 = vector.load %arg4[%c0_3, %c0_4] : memref<1x64xf32, #tpu.memory_space<vmem>>, vector<1x64xf32>
    %6 = vector.broadcast %5 : vector<1x64xf32> to vector<128x64xf32>
    %7 = arith.addf %4, %6 : vector<128x64xf32>
    %cst = arith.constant 0.000000e+00 : f32
    %8 = vector.broadcast %cst : f32 to vector<128x64xf32>
    %9 = arith.maximumf %7, %8 : vector<128x64xf32>
    %10 = arith.truncf %9 : vector<128x64xf32> to vector<128x64xbf16>
    %c0_5 = arith.constant 0 : index
    %c0_6 = arith.constant 0 : index
    %11 = vector.load %arg2[%c0_5, %c0_6] : memref<64x128xbf16, #tpu.memory_space<vmem>>, vector<64x128xbf16>
    %cst_7 = arith.constant dense<0.000000e+00> : vector<128x128xf32>
    %12 = tpu.matmul %10, %11, %cst_7 {dimension_numbers = #tpu.dot_dimension_numbers<[1], [0], [0], [1], [0, 0, 1, 1], [], []>} : vector<128x64xbf16>, vector<64x128xbf16>, vector<128x128xf32> -> vector<128x128xf32>
    %13 = arith.truncf %12 : vector<128x128xf32> to vector<128x128xbf16>
    %c0_8 = arith.constant 0 : index
    %c0_9 = arith.constant 0 : index
    %14 = vector.load %arg7[%c0_8, %c0_9] : memref<128x128xbf16, #tpu.memory_space<vmem>>, vector<128x128xbf16>
    tpu.vector_store %arg7[%c0_8, %c0_9], %13 {strides = array<i32>} : memref<128x128xbf16, #tpu.memory_space<vmem>>, vector<128x128xbf16>,
    %cst_10 = arith.constant dense<0.000000e+00> : vector<128xf32>
    %15 = vector.multi_reduction <add>, %12, %cst_10 [0] : vector<128x128xf32> to vector<128xf32>
    %16 = vector.shape_cast %15 : vector<128xf32> to vector<1x128xf32>
    %17 = vector.shape_cast %16 : vector<1x128xf32> to vector<1x1x128xf32>
    %c0_11 = arith.constant 0 : index
    %c0_12 = arith.constant 0 : index
    %c0_13 = arith.constant 0 : index
    %18 = vector.load %arg8[%c0_11, %c0_12, %c0_13] : memref<1x1x128xf32, #tpu.memory_space<vmem>>, vector<1x1x128xf32>
    tpu.vector_store %arg8[%c0_11, %c0_12, %c0_13], %17 {strides = array<i32>} : memref<1x1x128xf32, #tpu.memory_space<vmem>>, vector<1x1x128xf32>,
    %19 = arith.mulf %12, %12 : vector<128x128xf32>
    %cst_14 = arith.constant dense<0.000000e+00> : vector<128xf32>
    %20 = vector.multi_reduction <add>, %19, %cst_14 [0] : vector<128x128xf32> to vector<128xf32>
    %21 = vector.shape_cast %20 : vector<128xf32> to vector<1x128xf32>
    %22 = vector.shape_cast %21 : vector<1x128xf32> to vector<1x1x128xf32>
    %c0_15 = arith.constant 0 : index
    %c0_16 = arith.constant 0 : index
    %c0_17 = arith.constant 0 : index
    %23 = vector.load %arg9[%c0_15, %c0_16, %c0_17] : memref<1x1x128xf32, #tpu.memory_space<vmem>>, vector<1x1x128xf32>
    tpu.vector_store %arg9[%c0_15, %c0_16, %c0_17], %22 {strides = array<i32>} : memref<1x1x128xf32, #tpu.memory_space<vmem>>, vector<1x1x128xf32>,
    %c0_18 = arith.constant 0 : index
    %c0_19 = arith.constant 0 : index
    %24 = vector.load %arg5[%c0_18, %c0_19] : memref<128x32xf32, #tpu.memory_space<vmem>>, vector<128x32xf32>
    %25 = arith.truncf %24 : vector<128x32xf32> to vector<128x32xbf16>
    %c0_20 = arith.constant 0 : index
    %c0_21 = arith.constant 0 : index
    %26 = vector.load %arg6[%c0_20, %c0_21] : memref<32x128xbf16, #tpu.memory_space<vmem>>, vector<32x128xbf16>
    %cst_22 = arith.constant dense<0.000000e+00> : vector<128x128xf32>
    %27 = tpu.matmul %25, %26, %cst_22 {dimension_numbers = #tpu.dot_dimension_numbers<[1], [0], [0], [1], [0, 0, 1, 1], [], []>} : vector<128x32xbf16>, vector<32x128xbf16>, vector<128x128xf32> -> vector<128x128xf32>
    %28 = arith.truncf %27 : vector<128x128xf32> to vector<128x128xbf16>
    %c0_23 = arith.constant 0 : index
    %c0_24 = arith.constant 0 : index
    %29 = vector.load %arg10[%c0_23, %c0_24] : memref<128x128xbf16, #tpu.memory_space<vmem>>, vector<128x128xbf16>
    tpu.vector_store %arg10[%c0_23, %c0_24], %28 {strides = array<i32>} : memref<128x128xbf16, #tpu.memory_space<vmem>>, vector<128x128xbf16>,
    %cst_25 = arith.constant dense<0.000000e+00> : vector<128xf32>
    %30 = vector.multi_reduction <add>, %27, %cst_25 [0] : vector<128x128xf32> to vector<128xf32>
    %31 = vector.shape_cast %30 : vector<128xf32> to vector<1x128xf32>
    %32 = vector.shape_cast %31 : vector<1x128xf32> to vector<1x1x128xf32>
    %c0_26 = arith.constant 0 : index
    %c0_27 = arith.constant 0 : index
    %c0_28 = arith.constant 0 : index
    %33 = vector.load %arg11[%c0_26, %c0_27, %c0_28] : memref<1x1x128xf32, #tpu.memory_space<vmem>>, vector<1x1x128xf32>
    tpu.vector_store %arg11[%c0_26, %c0_27, %c0_28], %32 {strides = array<i32>} : memref<1x1x128xf32, #tpu.memory_space<vmem>>, vector<1x1x128xf32>,
    %34 = arith.mulf %27, %27 : vector<128x128xf32>
    %cst_29 = arith.constant dense<0.000000e+00> : vector<128xf32>
    %35 = vector.multi_reduction <add>, %34, %cst_29 [0] : vector<128x128xf32> to vector<128xf32>
    %36 = vector.shape_cast %35 : vector<128xf32> to vector<1x128xf32>
    %37 = vector.shape_cast %36 : vector<1x128xf32> to vector<1x1x128xf32>
    %c0_30 = arith.constant 0 : index
    %c0_31 = arith.constant 0 : index
    %c0_32 = arith.constant 0 : index
    %38 = vector.load %arg12[%c0_30, %c0_31, %c0_32] : memref<1x1x128xf32, #tpu.memory_space<vmem>>, vector<1x1x128xf32>
    tpu.vector_store %arg12[%c0_30, %c0_31, %c0_32], %37 {strides = array<i32>} : memref<1x1x128xf32, #tpu.memory_space<vmem>>, vector<1x1x128xf32>,
    return
  }
  func.func @transform_0(%arg0: i32) -> (i32, i32) {
    %c0_i32 = arith.constant 0 : i32
    %c0_i32_0 = arith.constant 0 : i32
    return %arg0, %c0_i32 : i32, i32
  }
  func.func @transform_1(%arg0: i32) -> (i32, i32) {
    %c0_i32 = arith.constant 0 : i32
    %c0_i32_0 = arith.constant 0 : i32
    %c0_i32_1 = arith.constant 0 : i32
    return %c0_i32, %c0_i32_0 : i32, i32
  }
  func.func @transform_2(%arg0: i32) -> (i32, i32) {
    %c0_i32 = arith.constant 0 : i32
    %c0_i32_0 = arith.constant 0 : i32
    %c0_i32_1 = arith.constant 0 : i32
    return %c0_i32, %c0_i32_0 : i32, i32
  }
  func.func @transform_3(%arg0: i32) -> (i32, i32) {
    %c0_i32 = arith.constant 0 : i32
    %c0_i32_0 = arith.constant 0 : i32
    %c0_i32_1 = arith.constant 0 : i32
    return %c0_i32, %c0_i32_0 : i32, i32
  }
  func.func @transform_4(%arg0: i32) -> (i32, i32) {
    %c0_i32 = arith.constant 0 : i32
    %c0_i32_0 = arith.constant 0 : i32
    return %arg0, %c0_i32 : i32, i32
  }
  func.func @transform_5(%arg0: i32) -> (i32, i32) {
    %c0_i32 = arith.constant 0 : i32
    %c0_i32_0 = arith.constant 0 : i32
    %c0_i32_1 = arith.constant 0 : i32
    return %c0_i32, %c0_i32_0 : i32, i32
  }
  func.func @transform_6(%arg0: i32) -> (i32, i32) {
    %c0_i32 = arith.constant 0 : i32
    %c0_i32_0 = arith.constant 0 : i32
    return %arg0, %c0_i32 : i32, i32
  }
  func.func @transform_7(%arg0: i32) -> (i32, i32, i32) {
    %c0_i32 = arith.constant 0 : i32
    %c0_i32_0 = arith.constant 0 : i32
    %c0_i32_1 = arith.constant 0 : i32
    return %arg0, %c0_i32, %c0_i32_0 : i32, i32, i32
  }
  func.func @transform_8(%arg0: i32) -> (i32, i32, i32) {
    %c0_i32 = arith.constant 0 : i32
    %c0_i32_0 = arith.constant 0 : i32
    %c0_i32_1 = arith.constant 0 : i32
    return %arg0, %c0_i32, %c0_i32_0 : i32, i32, i32
  }
  func.func @transform_9(%arg0: i32) -> (i32, i32) {
    %c0_i32 = arith.constant 0 : i32
    %c0_i32_0 = arith.constant 0 : i32
    return %arg0, %c0_i32 : i32, i32
  }
  func.func @transform_10(%arg0: i32) -> (i32, i32, i32) {
    %c0_i32 = arith.constant 0 : i32
    %c0_i32_0 = arith.constant 0 : i32
    %c0_i32_1 = arith.constant 0 : i32
    return %arg0, %c0_i32, %c0_i32_0 : i32, i32, i32
  }
  func.func @transform_11(%arg0: i32) -> (i32, i32, i32) {
    %c0_i32 = arith.constant 0 : i32
    %c0_i32_0 = arith.constant 0 : i32
    %c0_i32_1 = arith.constant 0 : i32
    return %arg0, %c0_i32, %c0_i32_0 : i32, i32, i32
  }
}

module attributes {stable_mosaic.version = 11 : i64} {
  func.func @_bn_add_relu_kernel(%arg0: i32, %arg1: memref<128x128xbf16, #tpu.memory_space<vmem>>, %arg2: memref<1x128xf32, #tpu.memory_space<vmem>>, %arg3: memref<1x128xf32, #tpu.memory_space<vmem>>, %arg4: memref<128x128xbf16, #tpu.memory_space<vmem>>, %arg5: memref<1x128xf32, #tpu.memory_space<vmem>>, %arg6: memref<1x128xf32, #tpu.memory_space<vmem>>, %arg7: memref<128x128xf32, #tpu.memory_space<vmem>>) attributes {dimension_semantics = [#tpu.dimension_semantics<parallel>], iteration_bounds = array<i64: 1>, scalar_prefetch = 0 : i64, scratch_operands = 0 : i64, tpu.core_type = #tpu.core_type<tc>, window_params = [{transform_indices = @transform_0, window_bounds = array<i64: 128, 128>}, {pipeline_mode = #tpu.pipeline_mode<synchronous>, transform_indices = @transform_1, window_bounds = array<i64: 1, 128>}, {pipeline_mode = #tpu.pipeline_mode<synchronous>, transform_indices = @transform_2, window_bounds = array<i64: 1, 128>}, {transform_indices = @transform_3, window_bounds = array<i64: 128, 128>}, {pipeline_mode = #tpu.pipeline_mode<synchronous>, transform_indices = @transform_4, window_bounds = array<i64: 1, 128>}, {pipeline_mode = #tpu.pipeline_mode<synchronous>, transform_indices = @transform_5, window_bounds = array<i64: 1, 128>}, {transform_indices = @transform_6, window_bounds = array<i64: 128, 128>}]} {
    %c0 = arith.constant 0 : index
    %c0_0 = arith.constant 0 : index
    %0 = vector.load %arg1[%c0, %c0_0] : memref<128x128xbf16, #tpu.memory_space<vmem>>, vector<128x128xbf16>
    %1 = arith.extf %0 : vector<128x128xbf16> to vector<128x128xf32>
    %c0_1 = arith.constant 0 : index
    %c0_2 = arith.constant 0 : index
    %2 = vector.load %arg2[%c0_1, %c0_2] : memref<1x128xf32, #tpu.memory_space<vmem>>, vector<1x128xf32>
    %3 = vector.broadcast %2 : vector<1x128xf32> to vector<128x128xf32>
    %4 = arith.mulf %1, %3 : vector<128x128xf32>
    %c0_3 = arith.constant 0 : index
    %c0_4 = arith.constant 0 : index
    %5 = vector.load %arg3[%c0_3, %c0_4] : memref<1x128xf32, #tpu.memory_space<vmem>>, vector<1x128xf32>
    %6 = vector.broadcast %5 : vector<1x128xf32> to vector<128x128xf32>
    %7 = arith.addf %4, %6 : vector<128x128xf32>
    %c0_5 = arith.constant 0 : index
    %c0_6 = arith.constant 0 : index
    %8 = vector.load %arg4[%c0_5, %c0_6] : memref<128x128xbf16, #tpu.memory_space<vmem>>, vector<128x128xbf16>
    %9 = arith.extf %8 : vector<128x128xbf16> to vector<128x128xf32>
    %c0_7 = arith.constant 0 : index
    %c0_8 = arith.constant 0 : index
    %10 = vector.load %arg5[%c0_7, %c0_8] : memref<1x128xf32, #tpu.memory_space<vmem>>, vector<1x128xf32>
    %11 = vector.broadcast %10 : vector<1x128xf32> to vector<128x128xf32>
    %12 = arith.mulf %9, %11 : vector<128x128xf32>
    %c0_9 = arith.constant 0 : index
    %c0_10 = arith.constant 0 : index
    %13 = vector.load %arg6[%c0_9, %c0_10] : memref<1x128xf32, #tpu.memory_space<vmem>>, vector<1x128xf32>
    %14 = vector.broadcast %13 : vector<1x128xf32> to vector<128x128xf32>
    %15 = arith.addf %12, %14 : vector<128x128xf32>
    %16 = arith.addf %7, %15 : vector<128x128xf32>
    %cst = arith.constant 0.000000e+00 : f32
    %17 = vector.broadcast %cst : f32 to vector<128x128xf32>
    %18 = arith.maximumf %16, %17 : vector<128x128xf32>
    %c0_11 = arith.constant 0 : index
    %c0_12 = arith.constant 0 : index
    %19 = vector.load %arg7[%c0_11, %c0_12] : memref<128x128xf32, #tpu.memory_space<vmem>>, vector<128x128xf32>
    tpu.vector_store %arg7[%c0_11, %c0_12], %18 {strides = array<i32>} : memref<128x128xf32, #tpu.memory_space<vmem>>, vector<128x128xf32>,
    return
  }
  func.func @transform_0(%arg0: i32) -> (i32, i32) {
    %c0_i32 = arith.constant 0 : i32
    %c0_i32_0 = arith.constant 0 : i32
    return %arg0, %c0_i32 : i32, i32
  }
  func.func @transform_1(%arg0: i32) -> (i32, i32) {
    %c0_i32 = arith.constant 0 : i32
    %c0_i32_0 = arith.constant 0 : i32
    %c0_i32_1 = arith.constant 0 : i32
    return %c0_i32, %c0_i32_0 : i32, i32
  }
  func.func @transform_2(%arg0: i32) -> (i32, i32) {
    %c0_i32 = arith.constant 0 : i32
    %c0_i32_0 = arith.constant 0 : i32
    %c0_i32_1 = arith.constant 0 : i32
    return %c0_i32, %c0_i32_0 : i32, i32
  }
  func.func @transform_3(%arg0: i32) -> (i32, i32) {
    %c0_i32 = arith.constant 0 : i32
    %c0_i32_0 = arith.constant 0 : i32
    return %arg0, %c0_i32 : i32, i32
  }
  func.func @transform_4(%arg0: i32) -> (i32, i32) {
    %c0_i32 = arith.constant 0 : i32
    %c0_i32_0 = arith.constant 0 : i32
    %c0_i32_1 = arith.constant 0 : i32
    return %c0_i32, %c0_i32_0 : i32, i32
  }
  func.func @transform_5(%arg0: i32) -> (i32, i32) {
    %c0_i32 = arith.constant 0 : i32
    %c0_i32_0 = arith.constant 0 : i32
    %c0_i32_1 = arith.constant 0 : i32
    return %c0_i32, %c0_i32_0 : i32, i32
  }
  func.func @transform_6(%arg0: i32) -> (i32, i32) {
    %c0_i32 = arith.constant 0 : i32
    %c0_i32_0 = arith.constant 0 : i32
    return %arg0, %c0_i32 : i32, i32
  }
}

</mosaic_0001>

<llo_original>
// kernel: postres_bottleneck_forward.5
$region0: #{postres_bottleneck_forward.5}
  #allocation0 [shape = 'u32[]', space=smem, size = 0x4, offset = 0x4, fixed_abs, tag = 'smem constant byte address 0x4 - core index']
  #allocation1 [shape = 'u32[72,128]{1,0:T(1,128)}', space=vmem, size = 0x9000, scoped, tag = 'internal scratch']
  %s0 = inlined_call_operand.vmem [shape: f32[512,64], index: 0, kind: input, shape index: {}]
  %s1 = inlined_call_operand.vmem [shape: bf16[64,128], index: 1, kind: input, shape index: {}]
  %s2 = inlined_call_operand.vmem [shape: bf16[512,128], index: 2, kind: output, shape index: {0}]
  %s3 = inlined_call_operand.vmem [shape: f32[1,1,128], index: 3, kind: output, shape index: {1}]
  %s4 = inlined_call_operand.vmem [shape: f32[1,1,128], index: 4, kind: output, shape index: {2}]
  %5 = xla_tuple %s2, %s3, %s4
  %s6 = sld [smem:[#allocation0]]
  $region34: #{postres_bottleneck_forward.5} parent=0
    _
  %s8 = ssub.s32 1, %s6
  %s9 = scalar_select 0, %s8, %s6
  // Predicated region
  $region2: #{postres_bottleneck_forward.5} parent=0 // pred_check
    _
  $region3: #{postres_bottleneck_forward.5} parent=0 // pred_check_branch
    %11 = sbr.rel (0) target = $region5
  $region4: #{postres_bottleneck_forward.5} parent=0 // pred_region
    _
  $region5: #{postres_bottleneck_forward.5} parent=0 // pred_fallthru
    _
  // Predicated region
  $region6: #{postres_bottleneck_forward.5} parent=0 // pred_check
    _
  $region7: #{postres_bottleneck_forward.5} parent=0 // pred_check_branch
    %13 = sbr.rel (0) target = $region9
  $region8: #{postres_bottleneck_forward.5} parent=0 // pred_region
    _
  $region9: #{postres_bottleneck_forward.5} parent=0 // pred_fallthru
    _
  %v15 = vld [vmem:[%s0] sm:$0xff]
  %v16 = vld [vmem:[%s0 + $0x8] sm:$0xff]
  %v17 = vld [vmem:[%s0 + $0x10] sm:$0xff]
  %v18 = vld [vmem:[%s0 + $0x18] sm:$0xff]
  %v19 = vld [vmem:[%s0 + $0x20] sm:$0xff]
  %v20 = vld [vmem:[%s0 + $0x28] sm:$0xff]
  %v21 = vld [vmem:[%s0 + $0x30] sm:$0xff]
  %v22 = vld [vmem:[%s0 + $0x38] sm:$0xff]
  %v23 = vld [vmem:[%s0 + $0x40] sm:$0xff]
  %v24 = vld [vmem:[%s0 + $0x48] sm:$0xff]
  %v25 = vld [vmem:[%s0 + $0x50] sm:$0xff]
  %v26 = vld [vmem:[%s0 + $0x58] sm:$0xff]
  %v27 = vld [vmem:[%s0 + $0x60] sm:$0xff]
  %v28 = vld [vmem:[%s0 + $0x68] sm:$0xff]
  %v29 = vld [vmem:[%s0 + $0x70] sm:$0xff]
  %v30 = vld [vmem:[%s0 + $0x78] sm:$0xff]
  %v31 = vld [vmem:[%s0 + $0x80] sm:$0xff]
  %v32 = vld [vmem:[%s0 + $0x88] sm:$0xff]
  %v33 = vld [vmem:[%s0 + $0x90] sm:$0xff]
  %v34 = vld [vmem:[%s0 + $0x98] sm:$0xff]
  %v35 = vld [vmem:[%s0 + $0xa0] sm:$0xff]
  %v36 = vld [vmem:[%s0 + $0xa8] sm:$0xff]
  %v37 = vld [vmem:[%s0 + $0xb0] sm:$0xff]
  %v38 = vld [vmem:[%s0 + $0xb8] sm:$0xff]
  %v39 = vld [vmem:[%s0 + $0xc0] sm:$0xff]
  %v40 = vld [vmem:[%s0 + $0xc8] sm:$0xff]
  %v41 = vld [vmem:[%s0 + $0xd0] sm:$0xff]
  %v42 = vld [vmem:[%s0 + $0xd8] sm:$0xff]
  %v43 = vld [vmem:[%s0 + $0xe0] sm:$0xff]
  %v44 = vld [vmem:[%s0 + $0xe8] sm:$0xff]
  %v45 = vld [vmem:[%s0 + $0xf0] sm:$0xff]
  %v46 = vld [vmem:[%s0 + $0xf8] sm:$0xff]
  %v47 = vld [vmem:[%s0 + $0x100] sm:$0xff]
  %v48 = vld [vmem:[%s0 + $0x108] sm:$0xff]
  %v49 = vld [vmem:[%s0 + $0x110] sm:$0xff]
  %v50 = vld [vmem:[%s0 + $0x118] sm:$0xff]
  %v51 = vld [vmem:[%s0 + $0x120] sm:$0xff]
  %v52 = vld [vmem:[%s0 + $0x128] sm:$0xff]
  %v53 = vld [vmem:[%s0 + $0x130] sm:$0xff]
  %v54 = vld [vmem:[%s0 + $0x138] sm:$0xff]
  %v55 = vld [vmem:[%s0 + $0x140] sm:$0xff]
  %v56 = vld [vmem:[%s0 + $0x148] sm:$0xff]
  %v57 = vld [vmem:[%s0 + $0x150] sm:$0xff]
  %v58 = vld [vmem:[%s0 + $0x158] sm:$0xff]
  %v59 = vld [vmem:[%s0 + $0x160] sm:$0xff]
  %v60 = vld [vmem:[%s0 + $0x168] sm:$0xff]
  %v61 = vld [vmem:[%s0 + $0x170] sm:$0xff]
  %v62 = vld [vmem:[%s0 + $0x178] sm:$0xff]
  %v63 = vld [vmem:[%s0 + $0x180] sm:$0xff]
  %v64 = vld [vmem:[%s0 + $0x188] sm:$0xff]
  %v65 = vld [vmem:[%s0 + $0x190] sm:$0xff]
  %v66 = vld [vmem:[%s0 + $0x198] sm:$0xff]
  %v67 = vld [vmem:[%s0 + $0x1a0] sm:$0xff]
  %v68 = vld [vmem:[%s0 + $0x1a8] sm:$0xff]
  %v69 = vld [vmem:[%s0 + $0x1b0] sm:$0xff]
  %v70 = vld [vmem:[%s0 + $0x1b8] sm:$0xff]
  %v71 = vld [vmem:[%s0 + $0x1c0] sm:$0xff]
  %v72 = vld [vmem:[%s0 + $0x1c8] sm:$0xff]
  %v73 = vld [vmem:[%s0 + $0x1d0] sm:$0xff]
  %v74 = vld [vmem:[%s0 + $0x1d8] sm:$0xff]
  %v75 = vld [vmem:[%s0 + $0x1e0] sm:$0xff]
  %v76 = vld [vmem:[%s0 + $0x1e8] sm:$0xff]
  %v77 = vld [vmem:[%s0 + $0x1f0] sm:$0xff]
  %v78 = vld [vmem:[%s0 + $0x1f8] sm:$0xff]
  %v79 = vpack.c.bf16 %v16, %v15
  %v80 = vpack.c.bf16 %v18, %v17
  %v81 = vpack.c.bf16 %v20, %v19
  %v82 = vpack.c.bf16 %v22, %v21
  %v83 = vpack.c.bf16 %v24, %v23
  %v84 = vpack.c.bf16 %v26, %v25
  %v85 = vpack.c.bf16 %v28, %v27
  %v86 = vpack.c.bf16 %v30, %v29
  %v87 = vpack.c.bf16 %v32, %v31
  %v88 = vpack.c.bf16 %v34, %v33
  %v89 = vpack.c.bf16 %v36, %v35
  %v90 = vpack.c.bf16 %v38, %v37
  %v91 = vpack.c.bf16 %v40, %v39
  %v92 = vpack.c.bf16 %v42, %v41
  %v93 = vpack.c.bf16 %v44, %v43
  %v94 = vpack.c.bf16 %v46, %v45
  %v95 = vpack.c.bf16 %v48, %v47
  %v96 = vpack.c.bf16 %v50, %v49
  %v97 = vpack.c.bf16 %v52, %v51
  %v98 = vpack.c.bf16 %v54, %v53
  %v99 = vpack.c.bf16 %v56, %v55
  %v100 = vpack.c.bf16 %v58, %v57
  %v101 = vpack.c.bf16 %v60, %v59
  %v102 = vpack.c.bf16 %v62, %v61
  %v103 = vpack.c.bf16 %v64, %v63
  %v104 = vpack.c.bf16 %v66, %v65
  %v105 = vpack.c.bf16 %v68, %v67
  %v106 = vpack.c.bf16 %v70, %v69
  %v107 = vpack.c.bf16 %v72, %v71
  %v108 = vpack.c.bf16 %v74, %v73
  %v109 = vpack.c.bf16 %v76, %v75
  %v110 = vpack.c.bf16 %v78, %v77
  %v111 = vld [vmem:[%s1] sm:$0xf]
  %v112 = vld [vmem:[%s1 + $0x4] sm:$0xf]
  %v113 = vld [vmem:[%s1 + $0x8] sm:$0xf]
  %v114 = vld [vmem:[%s1 + $0xc] sm:$0xf]
  %v115 = vld [vmem:[%s1 + $0x10] sm:$0xf]
  %v116 = vld [vmem:[%s1 + $0x14] sm:$0xf]
  %v117 = vld [vmem:[%s1 + $0x18] sm:$0xf]
  %v118 = vld [vmem:[%s1 + $0x1c] sm:$0xf]
  %v127 = vunpack.c.l.b16 %v111
  %v128 = vunpack.c.l.b16 %v112
  %v129 = vunpack.c.l.b16 %v113
  %v130 = vunpack.c.l.b16 %v114
  %v131 = vunpack.c.l.b16 %v115
  %v132 = vunpack.c.l.b16 %v116
  %v133 = vunpack.c.l.b16 %v117
  %v134 = vunpack.c.l.b16 %v118
  %v135 = vpack.c.b16 %v128, %v127
  %v136 = vpack.c.b16 %v130, %v129
  %v137 = vpack.c.b16 %v132, %v131
  %v138 = vpack.c.b16 %v134, %v133
  %vm143 = vcmask 523264
  %v145 = vsel %vm143, %v79, 0
  %v148 = vsel %vm143, %v80, 0
  %v151 = vsel %vm143, %v81, 0
  %v154 = vsel %vm143, %v82, 0
  %v157 = vsel %vm143, %v83, 0
  %v160 = vsel %vm143, %v84, 0
  %v163 = vsel %vm143, %v85, 0
  %v166 = vsel %vm143, %v86, 0
  %v169 = vsel %vm143, %v87, 0
  %v172 = vsel %vm143, %v88, 0
  %v175 = vsel %vm143, %v89, 0
  %v178 = vsel %vm143, %v90, 0
  %v181 = vsel %vm143, %v91, 0
  %v184 = vsel %vm143, %v92, 0
  %v187 = vsel %vm143, %v93, 0
  %v190 = vsel %vm143, %v94, 0
  %v193 = vsel %vm143, %v95, 0
  %v196 = vsel %vm143, %v96, 0
  %v199 = vsel %vm143, %v97, 0
  %v202 = vsel %vm143, %v98, 0
  %v205 = vsel %vm143, %v99, 0
  %v208 = vsel %vm143, %v100, 0
  %v211 = vsel %vm143, %v101, 0
  %v214 = vsel %vm143, %v102, 0
  %v217 = vsel %vm143, %v103, 0
  %v220 = vsel %vm143, %v104, 0
  %v223 = vsel %vm143, %v105, 0
  %v226 = vsel %vm143, %v106, 0
  %v229 = vsel %vm143, %v107, 0
  %v232 = vsel %vm143, %v108, 0
  %v235 = vsel %vm143, %v109, 0
  %v238 = vsel %vm143, %v110, 0
  %240 = vmatpush.bf16.msra.mxu0 0
  %241 = vmatpush.bf16.msra.mxu0 0
  %242 = vmatpush.bf16.msra.mxu0 0
  %243 = vmatpush.bf16.msra.mxu0 0
  %244 = vmatpush.bf16.msra.mxu0 %v138
  %245 = vmatpush.bf16.msra.mxu0 %v137
  %246 = vmatpush.bf16.msra.mxu0 %v136
  %247 = vmatpush.bf16.msra.mxu0 %v135
  %248 = vmatmul.bf16.gmra.mxu0 %v145
  %v249 = vpop.f32.mrf.mxu0
  %v250 = vadd.f32 0.0, %v249
  %v251 = vpop.f32.mrf.mxu0
  %v252 = vadd.f32 0.0, %v251
  %253 = vmatmul.bf16.gmra.mxu0 %v148
  %v254 = vpop.f32.mrf.mxu0
  %v255 = vadd.f32 0.0, %v254
  %v256 = vpop.f32.mrf.mxu0
  %v257 = vadd.f32 0.0, %v256
  %258 = vmatmul.bf16.gmra.mxu0 %v151
  %v259 = vpop.f32.mrf.mxu0
  %v260 = vadd.f32 0.0, %v259
  %v261 = vpop.f32.mrf.mxu0
  %v262 = vadd.f32 0.0, %v261
  %263 = vmatmul.bf16.gmra.mxu0 %v154
  %v264 = vpop.f32.mrf.mxu0
  %v265 = vadd.f32 0.0, %v264
  %v266 = vpop.f32.mrf.mxu0
  %v267 = vadd.f32 0.0, %v266
  %268 = vmatmul.bf16.gmra.mxu0 %v157
  %v269 = vpop.f32.mrf.mxu0
  %v270 = vadd.f32 0.0, %v269
  %v271 = vpop.f32.mrf.mxu0
  %v272 = vadd.f32 0.0, %v271
  %273 = vmatmul.bf16.gmra.mxu0 %v160
  %v274 = vpop.f32.mrf.mxu0
  %v275 = vadd.f32 0.0, %v274
  %v276 = vpop.f32.mrf.mxu0
  %v277 = vadd.f32 0.0, %v276
  %278 = vmatmul.bf16.gmra.mxu0 %v163
  %v279 = vpop.f32.mrf.mxu0
  %v280 = vadd.f32 0.0, %v279
  %v281 = vpop.f32.mrf.mxu0
  %v282 = vadd.f32 0.0, %v281
  %283 = vmatmul.bf16.gmra.mxu0 %v166
  %v284 = vpop.f32.mrf.mxu0
  %v285 = vadd.f32 0.0, %v284
  %v286 = vpop.f32.mrf.mxu0
  %v287 = vadd.f32 0.0, %v286
  %288 = vmatmul.bf16.gmra.mxu0 %v169
  %v289 = vpop.f32.mrf.mxu0
  %v290 = vadd.f32 0.0, %v289
  %v291 = vpop.f32.mrf.mxu0
  %v292 = vadd.f32 0.0, %v291
  %293 = vmatmul.bf16.gmra.mxu0 %v172
  %v294 = vpop.f32.mrf.mxu0
  %v295 = vadd.f32 0.0, %v294
  %v296 = vpop.f32.mrf.mxu0
  %v297 = vadd.f32 0.0, %v296
  %298 = vmatmul.bf16.gmra.mxu0 %v175
  %v299 = vpop.f32.mrf.mxu0
  %v300 = vadd.f32 0.0, %v299
  %v301 = vpop.f32.mrf.mxu0
  %v302 = vadd.f32 0.0, %v301
  %303 = vmatmul.bf16.gmra.mxu0 %v178
  %v304 = vpop.f32.mrf.mxu0
  %v305 = vadd.f32 0.0, %v304
  %v306 = vpop.f32.mrf.mxu0
  %v307 = vadd.f32 0.0, %v306
  %308 = vmatmul.bf16.gmra.mxu0 %v181
  %v309 = vpop.f32.mrf.mxu0
  %v310 = vadd.f32 0.0, %v309
  %v311 = vpop.f32.mrf.mxu0
  %v312 = vadd.f32 0.0, %v311
  %313 = vmatmul.bf16.gmra.mxu0 %v184
  %v314 = vpop.f32.mrf.mxu0
  %v315 = vadd.f32 0.0, %v314
  %v316 = vpop.f32.mrf.mxu0
  %v317 = vadd.f32 0.0, %v316
  %318 = vmatmul.bf16.gmra.mxu0 %v187
  %v319 = vpop.f32.mrf.mxu0
  %v320 = vadd.f32 0.0, %v319
  %v321 = vpop.f32.mrf.mxu0
  %v322 = vadd.f32 0.0, %v321
  %323 = vmatmul.bf16.gmra.mxu0 %v190
  %v324 = vpop.f32.mrf.mxu0
  %v325 = vadd.f32 0.0, %v324
  %v326 = vpop.f32.mrf.mxu0
  %v327 = vadd.f32 0.0, %v326
  %328 = vmatmul.bf16.gmra.mxu0 %v193
  %v329 = vpop.f32.mrf.mxu0
  %v330 = vadd.f32 0.0, %v329
  %v331 = vpop.f32.mrf.mxu0
  %v332 = vadd.f32 0.0, %v331
  %333 = vmatmul.bf16.gmra.mxu0 %v196
  %v334 = vpop.f32.mrf.mxu0
  %v335 = vadd.f32 0.0, %v334
  %v336 = vpop.f32.mrf.mxu0
  %v337 = vadd.f32 0.0, %v336
  %338 = vmatmul.bf16.gmra.mxu0 %v199
  %v339 = vpop.f32.mrf.mxu0
  %v340 = vadd.f32 0.0, %v339
  %v341 = vpop.f32.mrf.mxu0
  %v342 = vadd.f32 0.0, %v341
  %343 = vmatmul.bf16.gmra.mxu0 %v202
  %v344 = vpop.f32.mrf.mxu0
  %v345 = vadd.f32 0.0, %v344
  %v346 = vpop.f32.mrf.mxu0
  %v347 = vadd.f32 0.0, %v346
  %348 = vmatmul.bf16.gmra.mxu0 %v205
  %v349 = vpop.f32.mrf.mxu0
  %v350 = vadd.f32 0.0, %v349
  %v351 = vpop.f32.mrf.mxu0
  %v352 = vadd.f32 0.0, %v351
  %353 = vmatmul.bf16.gmra.mxu0 %v208
  %v354 = vpop.f32.mrf.mxu0
  %v355 = vadd.f32 0.0, %v354
  %v356 = vpop.f32.mrf.mxu0
  %v357 = vadd.f32 0.0, %v356
  %358 = vmatmul.bf16.gmra.mxu0 %v211
  %v359 = vpop.f32.mrf.mxu0
  %v360 = vadd.f32 0.0, %v359
  %v361 = vpop.f32.mrf.mxu0
  %v362 = vadd.f32 0.0, %v361
  %363 = vmatmul.bf16.gmra.mxu0 %v214
  %v364 = vpop.f32.mrf.mxu0
  %v365 = vadd.f32 0.0, %v364
  %v366 = vpop.f32.mrf.mxu0
  %v367 = vadd.f32 0.0, %v366
  %368 = vmatmul.bf16.gmra.mxu0 %v217
  %v369 = vpop.f32.mrf.mxu0
  %v370 = vadd.f32 0.0, %v369
  %v371 = vpop.f32.mrf.mxu0
  %v372 = vadd.f32 0.0, %v371
  %373 = vmatmul.bf16.gmra.mxu0 %v220
  %v374 = vpop.f32.mrf.mxu0
  %v375 = vadd.f32 0.0, %v374
  %v376 = vpop.f32.mrf.mxu0
  %v377 = vadd.f32 0.0, %v376
  %378 = vmatmul.bf16.gmra.mxu0 %v223
  %v379 = vpop.f32.mrf.mxu0
  %v380 = vadd.f32 0.0, %v379
  %v381 = vpop.f32.mrf.mxu0
  %v382 = vadd.f32 0.0, %v381
  %383 = vmatmul.bf16.gmra.mxu0 %v226
  %v384 = vpop.f32.mrf.mxu0
  %v385 = vadd.f32 0.0, %v384
  %v386 = vpop.f32.mrf.mxu0
  %v387 = vadd.f32 0.0, %v386
  %388 = vmatmul.bf16.gmra.mxu0 %v229
  %v389 = vpop.f32.mrf.mxu0
  %v390 = vadd.f32 0.0, %v389
  %v391 = vpop.f32.mrf.mxu0
  %v392 = vadd.f32 0.0, %v391
  %393 = vmatmul.bf16.gmra.mxu0 %v232
  %v394 = vpop.f32.mrf.mxu0
  %v395 = vadd.f32 0.0, %v394
  %v396 = vpop.f32.mrf.mxu0
  %v397 = vadd.f32 0.0, %v396
  %398 = vmatmul.bf16.gmra.mxu0 %v235
  %v399 = vpop.f32.mrf.mxu0
  %v400 = vadd.f32 0.0, %v399
  %v401 = vpop.f32.mrf.mxu0
  %v402 = vadd.f32 0.0, %v401
  %403 = vmatmul.bf16.gmra.mxu0 %v238
  %v404 = vpop.f32.mrf.mxu0
  %v405 = vadd.f32 0.0, %v404
  %v406 = vpop.f32.mrf.mxu0
  %v407 = vadd.f32 0.0, %v406
  %408 = vdwg.mxu0
  %v409 = vpack.c.bf16 %v250, %v250
  %v410 = vpack.c.bf16 %v252, %v252
  %v411 = vpack.c.bf16 %v255, %v255
  %v412 = vpack.c.bf16 %v257, %v257
  %v413 = vpack.c.bf16 %v260, %v260
  %v414 = vpack.c.bf16 %v262, %v262
  %v415 = vpack.c.bf16 %v265, %v265
  %v416 = vpack.c.bf16 %v267, %v267
  %v417 = vpack.c.bf16 %v270, %v270
  %v418 = vpack.c.bf16 %v272, %v272
  %v419 = vpack.c.bf16 %v275, %v275
  %v420 = vpack.c.bf16 %v277, %v277
  %v421 = vpack.c.bf16 %v280, %v280
  %v422 = vpack.c.bf16 %v282, %v282
  %v423 = vpack.c.bf16 %v285, %v285
  %v424 = vpack.c.bf16 %v287, %v287
  %v425 = vpack.c.bf16 %v290, %v290
  %v426 = vpack.c.bf16 %v292, %v292
  %v427 = vpack.c.bf16 %v295, %v295
  %v428 = vpack.c.bf16 %v297, %v297
  %v429 = vpack.c.bf16 %v300, %v300
  %v430 = vpack.c.bf16 %v302, %v302
  %v431 = vpack.c.bf16 %v305, %v305
  %v432 = vpack.c.bf16 %v307, %v307
  %v433 = vpack.c.bf16 %v310, %v310
  %v434 = vpack.c.bf16 %v312, %v312
  %v435 = vpack.c.bf16 %v315, %v315
  %v436 = vpack.c.bf16 %v317, %v317
  %v437 = vpack.c.bf16 %v320, %v320
  %v438 = vpack.c.bf16 %v322, %v322
  %v439 = vpack.c.bf16 %v325, %v325
  %v440 = vpack.c.bf16 %v327, %v327
  %v441 = vpack.c.bf16 %v330, %v330
  %v442 = vpack.c.bf16 %v332, %v332
  %v443 = vpack.c.bf16 %v335, %v335
  %v444 = vpack.c.bf16 %v337, %v337
  %v445 = vpack.c.bf16 %v340, %v340
  %v446 = vpack.c.bf16 %v342, %v342
  %v447 = vpack.c.bf16 %v345, %v345
  %v448 = vpack.c.bf16 %v347, %v347
  %v449 = vpack.c.bf16 %v350, %v350
  %v450 = vpack.c.bf16 %v352, %v352
  %v451 = vpack.c.bf16 %v355, %v355
  %v452 = vpack.c.bf16 %v357, %v357
  %v453 = vpack.c.bf16 %v360, %v360
  %v454 = vpack.c.bf16 %v362, %v362
  %v455 = vpack.c.bf16 %v365, %v365
  %v456 = vpack.c.bf16 %v367, %v367
  %v457 = vpack.c.bf16 %v370, %v370
  %v458 = vpack.c.bf16 %v372, %v372
  %v459 = vpack.c.bf16 %v375, %v375
  %v460 = vpack.c.bf16 %v377, %v377
  %v461 = vpack.c.bf16 %v380, %v380
  %v462 = vpack.c.bf16 %v382, %v382
  %v463 = vpack.c.bf16 %v385, %v385
  %v464 = vpack.c.bf16 %v387, %v387
  %v465 = vpack.c.bf16 %v390, %v390
  %v466 = vpack.c.bf16 %v392, %v392
  %v467 = vpack.c.bf16 %v395, %v395
  %v468 = vpack.c.bf16 %v397, %v397
  %v469 = vpack.c.bf16 %v400, %v400
  %v470 = vpack.c.bf16 %v402, %v402
  %v471 = vpack.c.bf16 %v405, %v405
  %v472 = vpack.c.bf16 %v407, %v407
  %473 = vst [vmem:[%s2] sm:$0xf] %v409
  %474 = vst [vmem:[%s2 + $0x4] sm:$0xf] %v410
  %475 = vst [vmem:[%s2 + $0x8] sm:$0xf] %v411
  %476 = vst [vmem:[%s2 + $0xc] sm:$0xf] %v412
  %477 = vst [vmem:[%s2 + $0x10] sm:$0xf] %v413
  %478 = vst [vmem:[%s2 + $0x14] sm:$0xf] %v414
  %479 = vst [vmem:[%s2 + $0x18] sm:$0xf] %v415
  %480 = vst [vmem:[%s2 + $0x1c] sm:$0xf] %v416
  %481 = vst [vmem:[%s2 + $0x20] sm:$0xf] %v417
  %482 = vst [vmem:[%s2 + $0x24] sm:$0xf] %v418
  %483 = vst [vmem:[%s2 + $0x28] sm:$0xf] %v419
  %484 = vst [vmem:[%s2 + $0x2c] sm:$0xf] %v420
  %485 = vst [vmem:[%s2 + $0x30] sm:$0xf] %v421
  %486 = vst [vmem:[%s2 + $0x34] sm:$0xf] %v422
  %487 = vst [vmem:[%s2 + $0x38] sm:$0xf] %v423
  %488 = vst [vmem:[%s2 + $0x3c] sm:$0xf] %v424
  %489 = vst [vmem:[%s2 + $0x40] sm:$0xf] %v425
  %490 = vst [vmem:[%s2 + $0x44] sm:$0xf] %v426
  %491 = vst [vmem:[%s2 + $0x48] sm:$0xf] %v427
  %492 = vst [vmem:[%s2 + $0x4c] sm:$0xf] %v428
  %493 = vst [vmem:[%s2 + $0x50] sm:$0xf] %v429
  %494 = vst [vmem:[%s2 + $0x54] sm:$0xf] %v430
  %495 = vst [vmem:[%s2 + $0x58] sm:$0xf] %v431
  %496 = vst [vmem:[%s2 + $0x5c] sm:$0xf] %v432
  %497 = vst [vmem:[%s2 + $0x60] sm:$0xf] %v433
  %498 = vst [vmem:[%s2 + $0x64] sm:$0xf] %v434
  %499 = vst [vmem:[%s2 + $0x68] sm:$0xf] %v435
  %500 = vst [vmem:[%s2 + $0x6c] sm:$0xf] %v436
  %501 = vst [vmem:[%s2 + $0x70] sm:$0xf] %v437
  %502 = vst [vmem:[%s2 + $0x74] sm:$0xf] %v438
  %503 = vst [vmem:[%s2 + $0x78] sm:$0xf] %v439
  %504 = vst [vmem:[%s2 + $0x7c] sm:$0xf] %v440
  %505 = vst [vmem:[%s2 + $0x80] sm:$0xf] %v441
  %506 = vst [vmem:[%s2 + $0x84] sm:$0xf] %v442
  %507 = vst [vmem:[%s2 + $0x88] sm:$0xf] %v443
  %508 = vst [vmem:[%s2 + $0x8c] sm:$0xf] %v444
  %509 = vst [vmem:[%s2 + $0x90] sm:$0xf] %v445
  %510 = vst [vmem:[%s2 + $0x94] sm:$0xf] %v446
  %511 = vst [vmem:[%s2 + $0x98] sm:$0xf] %v447
  %512 = vst [vmem:[%s2 + $0x9c] sm:$0xf] %v448
  %513 = vst [vmem:[%s2 + $0xa0] sm:$0xf] %v449
  %514 = vst [vmem:[%s2 + $0xa4] sm:$0xf] %v450
  %515 = vst [vmem:[%s2 + $0xa8] sm:$0xf] %v451
  %516 = vst [vmem:[%s2 + $0xac] sm:$0xf] %v452
  %517 = vst [vmem:[%s2 + $0xb0] sm:$0xf] %v453
  %518 = vst [vmem:[%s2 + $0xb4] sm:$0xf] %v454
  %519 = vst [vmem:[%s2 + $0xb8] sm:$0xf] %v455
  %520 = vst [vmem:[%s2 + $0xbc] sm:$0xf] %v456
  %521 = vst [vmem:[%s2 + $0xc0] sm:$0xf] %v457
  %522 = vst [vmem:[%s2 + $0xc4] sm:$0xf] %v458
  %523 = vst [vmem:[%s2 + $0xc8] sm:$0xf] %v459
  %524 = vst [vmem:[%s2 + $0xcc] sm:$0xf] %v460
  %525 = vst [vmem:[%s2 + $0xd0] sm:$0xf] %v461
  %526 = vst [vmem:[%s2 + $0xd4] sm:$0xf] %v462
  %527 = vst [vmem:[%s2 + $0xd8] sm:$0xf] %v463
  %528 = vst [vmem:[%s2 + $0xdc] sm:$0xf] %v464
  %529 = vst [vmem:[%s2 + $0xe0] sm:$0xf] %v465
  %530 = vst [vmem:[%s2 + $0xe4] sm:$0xf] %v466
  %531 = vst [vmem:[%s2 + $0xe8] sm:$0xf] %v467
  %532 = vst [vmem:[%s2 + $0xec] sm:$0xf] %v468
  %533 = vst [vmem:[%s2 + $0xf0] sm:$0xf] %v469
  %534 = vst [vmem:[%s2 + $0xf4] sm:$0xf] %v470
  %535 = vst [vmem:[%s2 + $0xf8] sm:$0xf] %v471
  %536 = vst [vmem:[%s2 + $0xfc] sm:$0xf] %v472
  %v537 = vadd.f32 %v250, %v252
  %v538 = vadd.f32 %v537, %v255
  %v539 = vadd.f32 %v538, %v257
  %v540 = vadd.f32 %v539, %v260
  %v541 = vadd.f32 %v540, %v262
  %v542 = vadd.f32 %v541, %v265
  %v543 = vadd.f32 %v542, %v267
  %v544 = vadd.f32 %v543, %v270
  %v545 = vadd.f32 %v544, %v272
  %v546 = vadd.f32 %v545, %v275
  %v547 = vadd.f32 %v546, %v277
  %v548 = vadd.f32 %v547, %v280
  %v549 = vadd.f32 %v548, %v282
  %v550 = vadd.f32 %v549, %v285
  %v551 = vadd.f32 %v550, %v287
  %v552 = vadd.f32 %v551, %v290
  %v553 = vadd.f32 %v552, %v292
  %v554 = vadd.f32 %v553, %v295
  %v555 = vadd.f32 %v554, %v297
  %v556 = vadd.f32 %v555, %v300
  %v557 = vadd.f32 %v556, %v302
  %v558 = vadd.f32 %v557, %v305
  %v559 = vadd.f32 %v558, %v307
  %v560 = vadd.f32 %v559, %v310
  %v561 = vadd.f32 %v560, %v312
  %v562 = vadd.f32 %v561, %v315
  %v563 = vadd.f32 %v562, %v317
  %v564 = vadd.f32 %v563, %v320
  %v565 = vadd.f32 %v564, %v322
  %v566 = vadd.f32 %v565, %v325
  %v567 = vadd.f32 %v566, %v327
  %v568 = vadd.f32 %v567, %v330
  %v569 = vadd.f32 %v568, %v332
  %v570 = vadd.f32 %v569, %v335
  %v571 = vadd.f32 %v570, %v337
  %v572 = vadd.f32 %v571, %v340
  %v573 = vadd.f32 %v572, %v342
  %v574 = vadd.f32 %v573, %v345
  %v575 = vadd.f32 %v574, %v347
  %v576 = vadd.f32 %v575, %v350
  %v577 = vadd.f32 %v576, %v352
  %v578 = vadd.f32 %v577, %v355
  %v579 = vadd.f32 %v578, %v357
  %v580 = vadd.f32 %v579, %v360
  %v581 = vadd.f32 %v580, %v362
  %v582 = vadd.f32 %v581, %v365
  %v583 = vadd.f32 %v582, %v367
  %v584 = vadd.f32 %v583, %v370
  %v585 = vadd.f32 %v584, %v372
  %v586 = vadd.f32 %v585, %v375
  %v587 = vadd.f32 %v586, %v377
  %v588 = vadd.f32 %v587, %v380
  %v589 = vadd.f32 %v588, %v382
  %v590 = vadd.f32 %v589, %v385
  %v591 = vadd.f32 %v590, %v387
  %v592 = vadd.f32 %v591, %v390
  %v593 = vadd.f32 %v592, %v392
  %v594 = vadd.f32 %v593, %v395
  %v595 = vadd.f32 %v594, %v397
  %v596 = vadd.f32 %v595, %v400
  %v597 = vadd.f32 %v596, %v402
  %v598 = vadd.f32 %v597, %v405
  %v599 = vadd.f32 %v598, %v407
  %v600 = vrot.slane %v599, 4
  %v601 = vadd.f32 %v599, %v600
  %v602 = vrot.slane %v601, 2
  %v603 = vadd.f32 %v601, %v602
  %v604 = vrot.slane %v603, 1
  %v605 = vadd.f32 %v603, %v604
  %606 = vst [vmem:[%s3] sm:$0x1] %v605
  %v607 = vmul.f32 %v250, %v250
  %v608 = vmul.f32 %v252, %v252
  %v609 = vmul.f32 %v255, %v255
  %v610 = vmul.f32 %v257, %v257
  %v611 = vmul.f32 %v260, %v260
  %v612 = vmul.f32 %v262, %v262
  %v613 = vmul.f32 %v265, %v265
  %v614 = vmul.f32 %v267, %v267
  %v615 = vmul.f32 %v270, %v270
  %v616 = vmul.f32 %v272, %v272
  %v617 = vmul.f32 %v275, %v275
  %v618 = vmul.f32 %v277, %v277
  %v619 = vmul.f32 %v280, %v280
  %v620 = vmul.f32 %v282, %v282
  %v621 = vmul.f32 %v285, %v285
  %v622 = vmul.f32 %v287, %v287
  %v623 = vmul.f32 %v290, %v290
  %v624 = vmul.f32 %v292, %v292
  %v625 = vmul.f32 %v295, %v295
  %v626 = vmul.f32 %v297, %v297
  %v627 = vmul.f32 %v300, %v300
  %v628 = vmul.f32 %v302, %v302
  %v629 = vmul.f32 %v305, %v305
  %v630 = vmul.f32 %v307, %v307
  %v631 = vmul.f32 %v310, %v310
  %v632 = vmul.f32 %v312, %v312
  %v633 = vmul.f32 %v315, %v315
  %v634 = vmul.f32 %v317, %v317
  %v635 = vmul.f32 %v320, %v320
  %v636 = vmul.f32 %v322, %v322
  %v637 = vmul.f32 %v325, %v325
  %v638 = vmul.f32 %v327, %v327
  %v639 = vmul.f32 %v330, %v330
  %v640 = vmul.f32 %v332, %v332
  %v641 = vmul.f32 %v335, %v335
  %v642 = vmul.f32 %v337, %v337
  %v643 = vmul.f32 %v340, %v340
  %v644 = vmul.f32 %v342, %v342
  %v645 = vmul.f32 %v345, %v345
  %v646 = vmul.f32 %v347, %v347
  %v647 = vmul.f32 %v350, %v350
  %v648 = vmul.f32 %v352, %v352
  %v649 = vmul.f32 %v355, %v355
  %v650 = vmul.f32 %v357, %v357
  %v651 = vmul.f32 %v360, %v360
  %v652 = vmul.f32 %v362, %v362
  %v653 = vmul.f32 %v365, %v365
  %v654 = vmul.f32 %v367, %v367
  %v655 = vmul.f32 %v370, %v370
  %v656 = vmul.f32 %v372, %v372
  %v657 = vmul.f32 %v375, %v375
  %v658 = vmul.f32 %v377, %v377
  %v659 = vmul.f32 %v380, %v380
  %v660 = vmul.f32 %v382, %v382
  %v661 = vmul.f32 %v385, %v385
  %v662 = vmul.f32 %v387, %v387
  %v663 = vmul.f32 %v390, %v390
  %v664 = vmul.f32 %v392, %v392
  %v665 = vmul.f32 %v395, %v395
  %v666 = vmul.f32 %v397, %v397
  %v667 = vmul.f32 %v400, %v400
  %v668 = vmul.f32 %v402, %v402
  %v669 = vmul.f32 %v405, %v405
  %v670 = vmul.f32 %v407, %v407
  %v671 = vadd.f32 %v607, %v608
  %v672 = vadd.f32 %v671, %v609
  %v673 = vadd.f32 %v672, %v610
  %v674 = vadd.f32 %v673, %v611
  %v675 = vadd.f32 %v674, %v612
  %v676 = vadd.f32 %v675, %v613
  %v677 = vadd.f32 %v676, %v614
  %v678 = vadd.f32 %v677, %v615
  %v679 = vadd.f32 %v678, %v616
  %v680 = vadd.f32 %v679, %v617
  %v681 = vadd.f32 %v680, %v618
  %v682 = vadd.f32 %v681, %v619
  %v683 = vadd.f32 %v682, %v620
  %v684 = vadd.f32 %v683, %v621
  %v685 = vadd.f32 %v684, %v622
  %v686 = vadd.f32 %v685, %v623
  %v687 = vadd.f32 %v686, %v624
  %v688 = vadd.f32 %v687, %v625
  %v689 = vadd.f32 %v688, %v626
  %v690 = vadd.f32 %v689, %v627
  %v691 = vadd.f32 %v690, %v628
  %v692 = vadd.f32 %v691, %v629
  %v693 = vadd.f32 %v692, %v630
  %v694 = vadd.f32 %v693, %v631
  %v695 = vadd.f32 %v694, %v632
  %v696 = vadd.f32 %v695, %v633
  %v697 = vadd.f32 %v696, %v634
  %v698 = vadd.f32 %v697, %v635
  %v699 = vadd.f32 %v698, %v636
  %v700 = vadd.f32 %v699, %v637
  %v701 = vadd.f32 %v700, %v638
  %v702 = vadd.f32 %v701, %v639
  %v703 = vadd.f32 %v702, %v640
  %v704 = vadd.f32 %v703, %v641
  %v705 = vadd.f32 %v704, %v642
  %v706 = vadd.f32 %v705, %v643
  %v707 = vadd.f32 %v706, %v644
  %v708 = vadd.f32 %v707, %v645
  %v709 = vadd.f32 %v708, %v646
  %v710 = vadd.f32 %v709, %v647
  %v711 = vadd.f32 %v710, %v648
  %v712 = vadd.f32 %v711, %v649
  %v713 = vadd.f32 %v712, %v650
  %v714 = vadd.f32 %v713, %v651
  %v715 = vadd.f32 %v714, %v652
  %v716 = vadd.f32 %v715, %v653
  %v717 = vadd.f32 %v716, %v654
  %v718 = vadd.f32 %v717, %v655
  %v719 = vadd.f32 %v718, %v656
  %v720 = vadd.f32 %v719, %v657
  %v721 = vadd.f32 %v720, %v658
  %v722 = vadd.f32 %v721, %v659
  %v723 = vadd.f32 %v722, %v660
  %v724 = vadd.f32 %v723, %v661
  %v725 = vadd.f32 %v724, %v662
  %v726 = vadd.f32 %v725, %v663
  %v727 = vadd.f32 %v726, %v664
  %v728 = vadd.f32 %v727, %v665
  %v729 = vadd.f32 %v728, %v666
  %v730 = vadd.f32 %v729, %v667
  %v731 = vadd.f32 %v730, %v668
  %v732 = vadd.f32 %v731, %v669
  %v733 = vadd.f32 %v732, %v670
  %v734 = vrot.slane %v733, 4
  %v735 = vadd.f32 %v733, %v734
  %v736 = vrot.slane %v735, 2
  %v737 = vadd.f32 %v735, %v736
  %v738 = vrot.slane %v737, 1
  %v739 = vadd.f32 %v737, %v738
  %740 = vst [vmem:[%s4] sm:$0x1] %v739
  // Predicated region
  $region10: #{postres_bottleneck_forward.5} parent=0 // pred_check
    _
  $region11: #{postres_bottleneck_forward.5} parent=0 // pred_check_branch
    %742 = sbr.rel (0) target = $region13
  $region12: #{postres_bottleneck_forward.5} parent=0 // pred_region
    _
  $region13: #{postres_bottleneck_forward.5} parent=0 // pred_fallthru
    _
  // Predicated region
  $region14: #{postres_bottleneck_forward.5} parent=0 // pred_check
    _
  $region15: #{postres_bottleneck_forward.5} parent=0 // pred_check_branch
    %744 = sbr.rel (0) target = $region17
  $region16: #{postres_bottleneck_forward.5} parent=0 // pred_region
    _
  $region17: #{postres_bottleneck_forward.5} parent=0 // pred_fallthru
    _
  // Predicated region
  $region18: #{postres_bottleneck_forward.5} parent=0 // pred_check
    _
  $region19: #{postres_bottleneck_forward.5} parent=0 // pred_check_branch
    %746 = sbr.rel (0) target = $region21
  $region20: #{postres_bottleneck_forward.5} parent=0 // pred_region
    _
  $region21: #{postres_bottleneck_forward.5} parent=0 // pred_fallthru
    _
  // Predicated region
  $region22: #{postres_bottleneck_forward.5} parent=0 // pred_check
    _
  $region23: #{postres_bottleneck_forward.5} parent=0 // pred_check_branch
    %748 = sbr.rel (0) target = $region25
  $region24: #{postres_bottleneck_forward.5} parent=0 // pred_region
    _
  $region25: #{postres_bottleneck_forward.5} parent=0 // pred_fallthru
    _
  // Predicated region
  $region26: #{postres_bottleneck_forward.5} parent=0 // pred_check
    _
  $region27: #{postres_bottleneck_forward.5} parent=0 // pred_check_branch
    %750 = sbr.rel (0) target = $region29
  $region28: #{postres_bottleneck_forward.5} parent=0 // pred_region
    _
  $region29: #{postres_bottleneck_forward.5} parent=0 // pred_fallthru
    _
  // Predicated region
  $region30: #{postres_bottleneck_forward.5} parent=0 // pred_check
    _
  $region31: #{postres_bottleneck_forward.5} parent=0 // pred_check_branch
    %752 = sbr.rel (0) target = $region33
  $region32: #{postres_bottleneck_forward.5} parent=0 // pred_region
    _
  $region33: #{postres_bottleneck_forward.5} parent=0 // pred_fallthru
    _

// kernel: postres_bottleneck_forward.6
$region0: #{postres_bottleneck_forward.6}
  #allocation0 [shape = 'u32[]', space=smem, size = 0x4, offset = 0x4, fixed_abs, tag = 'smem constant byte address 0x4 - core index']
  #allocation1 [shape = 'u32[72,128]{1,0:T(1,128)}', space=vmem, size = 0x9000, scoped, tag = 'internal scratch']
  %s0 = inlined_call_operand.vmem [shape: bf16[512,128], index: 0, kind: input, shape index: {}]
  %s1 = inlined_call_operand.vmem [shape: f32[1,128], index: 1, kind: input, shape index: {}]
  %s2 = inlined_call_operand.vmem [shape: f32[1,128], index: 2, kind: input, shape index: {}]
  %s3 = inlined_call_operand.vmem [shape: bf16[512,128], index: 3, kind: output, shape index: {}]
  %s4 = sld [smem:[#allocation0]]
  $region22: #{postres_bottleneck_forward.6} parent=0
    _
  %s6 = ssub.s32 1, %s4
  %s7 = scalar_select 0, %s6, %s4
  // Predicated region
  $region2: #{postres_bottleneck_forward.6} parent=0 // pred_check
    _
  $region3: #{postres_bottleneck_forward.6} parent=0 // pred_check_branch
    %9 = sbr.rel (0) target = $region5
  $region4: #{postres_bottleneck_forward.6} parent=0 // pred_region
    _
  $region5: #{postres_bottleneck_forward.6} parent=0 // pred_fallthru
    _
  // Predicated region
  $region6: #{postres_bottleneck_forward.6} parent=0 // pred_check
    _
  $region7: #{postres_bottleneck_forward.6} parent=0 // pred_check_branch
    %11 = sbr.rel (0) target = $region9
  $region8: #{postres_bottleneck_forward.6} parent=0 // pred_region
    _
  $region9: #{postres_bottleneck_forward.6} parent=0 // pred_fallthru
    _
  // Predicated region
  $region10: #{postres_bottleneck_forward.6} parent=0 // pred_check
    _
  $region11: #{postres_bottleneck_forward.6} parent=0 // pred_check_branch
    %13 = sbr.rel (0) target = $region13
  $region12: #{postres_bottleneck_forward.6} parent=0 // pred_region
    _
  $region13: #{postres_bottleneck_forward.6} parent=0 // pred_fallthru
    _
  %v14 = vld [vmem:[%s0] sm:$0xf]
  %v15 = vld [vmem:[%s0 + $0x4] sm:$0xf]
  %v16 = vld [vmem:[%s0 + $0x8] sm:$0xf]
  %v17 = vld [vmem:[%s0 + $0xc] sm:$0xf]
  %v18 = vld [vmem:[%s0 + $0x10] sm:$0xf]
  %v19 = vld [vmem:[%s0 + $0x14] sm:$0xf]
  %v20 = vld [vmem:[%s0 + $0x18] sm:$0xf]
  %v21 = vld [vmem:[%s0 + $0x1c] sm:$0xf]
  %v22 = vld [vmem:[%s0 + $0x20] sm:$0xf]
  %v23 = vld [vmem:[%s0 + $0x24] sm:$0xf]
  %v24 = vld [vmem:[%s0 + $0x28] sm:$0xf]
  %v25 = vld [vmem:[%s0 + $0x2c] sm:$0xf]
  %v26 = vld [vmem:[%s0 + $0x30] sm:$0xf]
  %v27 = vld [vmem:[%s0 + $0x34] sm:$0xf]
  %v28 = vld [vmem:[%s0 + $0x38] sm:$0xf]
  %v29 = vld [vmem:[%s0 + $0x3c] sm:$0xf]
  %v30 = vld [vmem:[%s0 + $0x40] sm:$0xf]
  %v31 = vld [vmem:[%s0 + $0x44] sm:$0xf]
  %v32 = vld [vmem:[%s0 + $0x48] sm:$0xf]
  %v33 = vld [vmem:[%s0 + $0x4c] sm:$0xf]
  %v34 = vld [vmem:[%s0 + $0x50] sm:$0xf]
  %v35 = vld [vmem:[%s0 + $0x54] sm:$0xf]
  %v36 = vld [vmem:[%s0 + $0x58] sm:$0xf]
  %v37 = vld [vmem:[%s0 + $0x5c] sm:$0xf]
  %v38 = vld [vmem:[%s0 + $0x60] sm:$0xf]
  %v39 = vld [vmem:[%s0 + $0x64] sm:$0xf]
  %v40 = vld [vmem:[%s0 + $0x68] sm:$0xf]
  %v41 = vld [vmem:[%s0 + $0x6c] sm:$0xf]
  %v42 = vld [vmem:[%s0 + $0x70] sm:$0xf]
  %v43 = vld [vmem:[%s0 + $0x74] sm:$0xf]
  %v44 = vld [vmem:[%s0 + $0x78] sm:$0xf]
  %v45 = vld [vmem:[%s0 + $0x7c] sm:$0xf]
  %v46 = vld [vmem:[%s0 + $0x80] sm:$0xf]
  %v47 = vld [vmem:[%s0 + $0x84] sm:$0xf]
  %v48 = vld [vmem:[%s0 + $0x88] sm:$0xf]
  %v49 = vld [vmem:[%s0 + $0x8c] sm:$0xf]
  %v50 = vld [vmem:[%s0 + $0x90] sm:$0xf]
  %v51 = vld [vmem:[%s0 + $0x94] sm:$0xf]
  %v52 = vld [vmem:[%s0 + $0x98] sm:$0xf]
  %v53 = vld [vmem:[%s0 + $0x9c] sm:$0xf]
  %v54 = vld [vmem:[%s0 + $0xa0] sm:$0xf]
  %v55 = vld [vmem:[%s0 + $0xa4] sm:$0xf]
  %v56 = vld [vmem:[%s0 + $0xa8] sm:$0xf]
  %v57 = vld [vmem:[%s0 + $0xac] sm:$0xf]
  %v58 = vld [vmem:[%s0 + $0xb0] sm:$0xf]
  %v59 = vld [vmem:[%s0 + $0xb4] sm:$0xf]
  %v60 = vld [vmem:[%s0 + $0xb8] sm:$0xf]
  %v61 = vld [vmem:[%s0 + $0xbc] sm:$0xf]
  %v62 = vld [vmem:[%s0 + $0xc0] sm:$0xf]
  %v63 = vld [vmem:[%s0 + $0xc4] sm:$0xf]
  %v64 = vld [vmem:[%s0 + $0xc8] sm:$0xf]
  %v65 = vld [vmem:[%s0 + $0xcc] sm:$0xf]
  %v66 = vld [vmem:[%s0 + $0xd0] sm:$0xf]
  %v67 = vld [vmem:[%s0 + $0xd4] sm:$0xf]
  %v68 = vld [vmem:[%s0 + $0xd8] sm:$0xf]
  %v69 = vld [vmem:[%s0 + $0xdc] sm:$0xf]
  %v70 = vld [vmem:[%s0 + $0xe0] sm:$0xf]
  %v71 = vld [vmem:[%s0 + $0xe4] sm:$0xf]
  %v72 = vld [vmem:[%s0 + $0xe8] sm:$0xf]
  %v73 = vld [vmem:[%s0 + $0xec] sm:$0xf]
  %v74 = vld [vmem:[%s0 + $0xf0] sm:$0xf]
  %v75 = vld [vmem:[%s0 + $0xf4] sm:$0xf]
  %v76 = vld [vmem:[%s0 + $0xf8] sm:$0xf]
  %v77 = vld [vmem:[%s0 + $0xfc] sm:$0xf]
  %v78 = vunpack.c.l.bf16 %v14
  %v79 = vunpack.c.l.bf16 %v15
  %v80 = vunpack.c.l.bf16 %v16
  %v81 = vunpack.c.l.bf16 %v17
  %v82 = vunpack.c.l.bf16 %v18
  %v83 = vunpack.c.l.bf16 %v19
  %v84 = vunpack.c.l.bf16 %v20
  %v85 = vunpack.c.l.bf16 %v21
  %v86 = vunpack.c.l.bf16 %v22
  %v87 = vunpack.c.l.bf16 %v23
  %v88 = vunpack.c.l.bf16 %v24
  %v89 = vunpack.c.l.bf16 %v25
  %v90 = vunpack.c.l.bf16 %v26
  %v91 = vunpack.c.l.bf16 %v27
  %v92 = vunpack.c.l.bf16 %v28
  %v93 = vunpack.c.l.bf16 %v29
  %v94 = vunpack.c.l.bf16 %v30
  %v95 = vunpack.c.l.bf16 %v31
  %v96 = vunpack.c.l.bf16 %v32
  %v97 = vunpack.c.l.bf16 %v33
  %v98 = vunpack.c.l.bf16 %v34
  %v99 = vunpack.c.l.bf16 %v35
  %v100 = vunpack.c.l.bf16 %v36
  %v101 = vunpack.c.l.bf16 %v37
  %v102 = vunpack.c.l.bf16 %v38
  %v103 = vunpack.c.l.bf16 %v39
  %v104 = vunpack.c.l.bf16 %v40
  %v105 = vunpack.c.l.bf16 %v41
  %v106 = vunpack.c.l.bf16 %v42
  %v107 = vunpack.c.l.bf16 %v43
  %v108 = vunpack.c.l.bf16 %v44
  %v109 = vunpack.c.l.bf16 %v45
  %v110 = vunpack.c.l.bf16 %v46
  %v111 = vunpack.c.l.bf16 %v47
  %v112 = vunpack.c.l.bf16 %v48
  %v113 = vunpack.c.l.bf16 %v49
  %v114 = vunpack.c.l.bf16 %v50
  %v115 = vunpack.c.l.bf16 %v51
  %v116 = vunpack.c.l.bf16 %v52
  %v117 = vunpack.c.l.bf16 %v53
  %v118 = vunpack.c.l.bf16 %v54
  %v119 = vunpack.c.l.bf16 %v55
  %v120 = vunpack.c.l.bf16 %v56
  %v121 = vunpack.c.l.bf16 %v57
  %v122 = vunpack.c.l.bf16 %v58
  %v123 = vunpack.c.l.bf16 %v59
  %v124 = vunpack.c.l.bf16 %v60
  %v125 = vunpack.c.l.bf16 %v61
  %v126 = vunpack.c.l.bf16 %v62
  %v127 = vunpack.c.l.bf16 %v63
  %v128 = vunpack.c.l.bf16 %v64
  %v129 = vunpack.c.l.bf16 %v65
  %v130 = vunpack.c.l.bf16 %v66
  %v131 = vunpack.c.l.bf16 %v67
  %v132 = vunpack.c.l.bf16 %v68
  %v133 = vunpack.c.l.bf16 %v69
  %v134 = vunpack.c.l.bf16 %v70
  %v135 = vunpack.c.l.bf16 %v71
  %v136 = vunpack.c.l.bf16 %v72
  %v137 = vunpack.c.l.bf16 %v73
  %v138 = vunpack.c.l.bf16 %v74
  %v139 = vunpack.c.l.bf16 %v75
  %v140 = vunpack.c.l.bf16 %v76
  %v141 = vunpack.c.l.bf16 %v77
  %v142 = vld [vmem:[%s1] sm:$0x1]
  %v144 = vperm.slane %v142, 0
  %v146 = vmul.f32 %v78, %v144
  %v147 = vmul.f32 %v79, %v144
  %v148 = vmul.f32 %v80, %v144
  %v149 = vmul.f32 %v81, %v144
  %v150 = vmul.f32 %v82, %v144
  %v151 = vmul.f32 %v83, %v144
  %v152 = vmul.f32 %v84, %v144
  %v153 = vmul.f32 %v85, %v144
  %v154 = vmul.f32 %v86, %v144
  %v155 = vmul.f32 %v87, %v144
  %v156 = vmul.f32 %v88, %v144
  %v157 = vmul.f32 %v89, %v144
  %v158 = vmul.f32 %v90, %v144
  %v159 = vmul.f32 %v91, %v144
  %v160 = vmul.f32 %v92, %v144
  %v161 = vmul.f32 %v93, %v144
  %v162 = vmul.f32 %v94, %v144
  %v163 = vmul.f32 %v95, %v144
  %v164 = vmul.f32 %v96, %v144
  %v165 = vmul.f32 %v97, %v144
  %v166 = vmul.f32 %v98, %v144
  %v167 = vmul.f32 %v99, %v144
  %v168 = vmul.f32 %v100, %v144
  %v169 = vmul.f32 %v101, %v144
  %v170 = vmul.f32 %v102, %v144
  %v171 = vmul.f32 %v103, %v144
  %v172 = vmul.f32 %v104, %v144
  %v173 = vmul.f32 %v105, %v144
  %v174 = vmul.f32 %v106, %v144
  %v175 = vmul.f32 %v107, %v144
  %v176 = vmul.f32 %v108, %v144
  %v177 = vmul.f32 %v109, %v144
  %v178 = vmul.f32 %v110, %v144
  %v179 = vmul.f32 %v111, %v144
  %v180 = vmul.f32 %v112, %v144
  %v181 = vmul.f32 %v113, %v144
  %v182 = vmul.f32 %v114, %v144
  %v183 = vmul.f32 %v115, %v144
  %v184 = vmul.f32 %v116, %v144
  %v185 = vmul.f32 %v117, %v144
  %v186 = vmul.f32 %v118, %v144
  %v187 = vmul.f32 %v119, %v144
  %v188 = vmul.f32 %v120, %v144
  %v189 = vmul.f32 %v121, %v144
  %v190 = vmul.f32 %v122, %v144
  %v191 = vmul.f32 %v123, %v144
  %v192 = vmul.f32 %v124, %v144
  %v193 = vmul.f32 %v125, %v144
  %v194 = vmul.f32 %v126, %v144
  %v195 = vmul.f32 %v127, %v144
  %v196 = vmul.f32 %v128, %v144
  %v197 = vmul.f32 %v129, %v144
  %v198 = vmul.f32 %v130, %v144
  %v199 = vmul.f32 %v131, %v144
  %v200 = vmul.f32 %v132, %v144
  %v201 = vmul.f32 %v133, %v144
  %v202 = vmul.f32 %v134, %v144
  %v203 = vmul.f32 %v135, %v144
  %v204 = vmul.f32 %v136, %v144
  %v205 = vmul.f32 %v137, %v144
  %v206 = vmul.f32 %v138, %v144
  %v207 = vmul.f32 %v139, %v144
  %v208 = vmul.f32 %v140, %v144
  %v209 = vmul.f32 %v141, %v144
  %v210 = vld [vmem:[%s2] sm:$0x1]
  %v212 = vperm.slane %v210, 0
  %v214 = vadd.f32 %v146, %v212
  %v215 = vadd.f32 %v147, %v212
  %v216 = vadd.f32 %v148, %v212
  %v217 = vadd.f32 %v149, %v212
  %v218 = vadd.f32 %v150, %v212
  %v219 = vadd.f32 %v151, %v212
  %v220 = vadd.f32 %v152, %v212
  %v221 = vadd.f32 %v153, %v212
  %v222 = vadd.f32 %v154, %v212
  %v223 = vadd.f32 %v155, %v212
  %v224 = vadd.f32 %v156, %v212
  %v225 = vadd.f32 %v157, %v212
  %v226 = vadd.f32 %v158, %v212
  %v227 = vadd.f32 %v159, %v212
  %v228 = vadd.f32 %v160, %v212
  %v229 = vadd.f32 %v161, %v212
  %v230 = vadd.f32 %v162, %v212
  %v231 = vadd.f32 %v163, %v212
  %v232 = vadd.f32 %v164, %v212
  %v233 = vadd.f32 %v165, %v212
  %v234 = vadd.f32 %v166, %v212
  %v235 = vadd.f32 %v167, %v212
  %v236 = vadd.f32 %v168, %v212
  %v237 = vadd.f32 %v169, %v212
  %v238 = vadd.f32 %v170, %v212
  %v239 = vadd.f32 %v171, %v212
  %v240 = vadd.f32 %v172, %v212
  %v241 = vadd.f32 %v173, %v212
  %v242 = vadd.f32 %v174, %v212
  %v243 = vadd.f32 %v175, %v212
  %v244 = vadd.f32 %v176, %v212
  %v245 = vadd.f32 %v177, %v212
  %v246 = vadd.f32 %v178, %v212
  %v247 = vadd.f32 %v179, %v212
  %v248 = vadd.f32 %v180, %v212
  %v249 = vadd.f32 %v181, %v212
  %v250 = vadd.f32 %v182, %v212
  %v251 = vadd.f32 %v183, %v212
  %v252 = vadd.f32 %v184, %v212
  %v253 = vadd.f32 %v185, %v212
  %v254 = vadd.f32 %v186, %v212
  %v255 = vadd.f32 %v187, %v212
  %v256 = vadd.f32 %v188, %v212
  %v257 = vadd.f32 %v189, %v212
  %v258 = vadd.f32 %v190, %v212
  %v259 = vadd.f32 %v191, %v212
  %v260 = vadd.f32 %v192, %v212
  %v261 = vadd.f32 %v193, %v212
  %v262 = vadd.f32 %v194, %v212
  %v263 = vadd.f32 %v195, %v212
  %v264 = vadd.f32 %v196, %v212
  %v265 = vadd.f32 %v197, %v212
  %v266 = vadd.f32 %v198, %v212
  %v267 = vadd.f32 %v199, %v212
  %v268 = vadd.f32 %v200, %v212
  %v269 = vadd.f32 %v201, %v212
  %v270 = vadd.f32 %v202, %v212
  %v271 = vadd.f32 %v203, %v212
  %v272 = vadd.f32 %v204, %v212
  %v273 = vadd.f32 %v205, %v212
  %v274 = vadd.f32 %v206, %v212
  %v275 = vadd.f32 %v207, %v212
  %v276 = vadd.f32 %v208, %v212
  %v277 = vadd.f32 %v209, %v212
  %v278 = vmax.f32 %v214, 0.0
  %v279 = vmax.f32 %v215, 0.0
  %v280 = vmax.f32 %v216, 0.0
  %v281 = vmax.f32 %v217, 0.0
  %v282 = vmax.f32 %v218, 0.0
  %v283 = vmax.f32 %v219, 0.0
  %v284 = vmax.f32 %v220, 0.0
  %v285 = vmax.f32 %v221, 0.0
  %v286 = vmax.f32 %v222, 0.0
  %v287 = vmax.f32 %v223, 0.0
  %v288 = vmax.f32 %v224, 0.0
  %v289 = vmax.f32 %v225, 0.0
  %v290 = vmax.f32 %v226, 0.0
  %v291 = vmax.f32 %v227, 0.0
  %v292 = vmax.f32 %v228, 0.0
  %v293 = vmax.f32 %v229, 0.0
  %v294 = vmax.f32 %v230, 0.0
  %v295 = vmax.f32 %v231, 0.0
  %v296 = vmax.f32 %v232, 0.0
  %v297 = vmax.f32 %v233, 0.0
  %v298 = vmax.f32 %v234, 0.0
  %v299 = vmax.f32 %v235, 0.0
  %v300 = vmax.f32 %v236, 0.0
  %v301 = vmax.f32 %v237, 0.0
  %v302 = vmax.f32 %v238, 0.0
  %v303 = vmax.f32 %v239, 0.0
  %v304 = vmax.f32 %v240, 0.0
  %v305 = vmax.f32 %v241, 0.0
  %v306 = vmax.f32 %v242, 0.0
  %v307 = vmax.f32 %v243, 0.0
  %v308 = vmax.f32 %v244, 0.0
  %v309 = vmax.f32 %v245, 0.0
  %v310 = vmax.f32 %v246, 0.0
  %v311 = vmax.f32 %v247, 0.0
  %v312 = vmax.f32 %v248, 0.0
  %v313 = vmax.f32 %v249, 0.0
  %v314 = vmax.f32 %v250, 0.0
  %v315 = vmax.f32 %v251, 0.0
  %v316 = vmax.f32 %v252, 0.0
  %v317 = vmax.f32 %v253, 0.0
  %v318 = vmax.f32 %v254, 0.0
  %v319 = vmax.f32 %v255, 0.0
  %v320 = vmax.f32 %v256, 0.0
  %v321 = vmax.f32 %v257, 0.0
  %v322 = vmax.f32 %v258, 0.0
  %v323 = vmax.f32 %v259, 0.0
  %v324 = vmax.f32 %v260, 0.0
  %v325 = vmax.f32 %v261, 0.0
  %v326 = vmax.f32 %v262, 0.0
  %v327 = vmax.f32 %v263, 0.0
  %v328 = vmax.f32 %v264, 0.0
  %v329 = vmax.f32 %v265, 0.0
  %v330 = vmax.f32 %v266, 0.0
  %v331 = vmax.f32 %v267, 0.0
  %v332 = vmax.f32 %v268, 0.0
  %v333 = vmax.f32 %v269, 0.0
  %v334 = vmax.f32 %v270, 0.0
  %v335 = vmax.f32 %v271, 0.0
  %v336 = vmax.f32 %v272, 0.0
  %v337 = vmax.f32 %v273, 0.0
  %v338 = vmax.f32 %v274, 0.0
  %v339 = vmax.f32 %v275, 0.0
  %v340 = vmax.f32 %v276, 0.0
  %v341 = vmax.f32 %v277, 0.0
  %v342 = vpack.c.bf16 %v278, %v278
  %v343 = vpack.c.bf16 %v279, %v279
  %v344 = vpack.c.bf16 %v280, %v280
  %v345 = vpack.c.bf16 %v281, %v281
  %v346 = vpack.c.bf16 %v282, %v282
  %v347 = vpack.c.bf16 %v283, %v283
  %v348 = vpack.c.bf16 %v284, %v284
  %v349 = vpack.c.bf16 %v285, %v285
  %v350 = vpack.c.bf16 %v286, %v286
  %v351 = vpack.c.bf16 %v287, %v287
  %v352 = vpack.c.bf16 %v288, %v288
  %v353 = vpack.c.bf16 %v289, %v289
  %v354 = vpack.c.bf16 %v290, %v290
  %v355 = vpack.c.bf16 %v291, %v291
  %v356 = vpack.c.bf16 %v292, %v292
  %v357 = vpack.c.bf16 %v293, %v293
  %v358 = vpack.c.bf16 %v294, %v294
  %v359 = vpack.c.bf16 %v295, %v295
  %v360 = vpack.c.bf16 %v296, %v296
  %v361 = vpack.c.bf16 %v297, %v297
  %v362 = vpack.c.bf16 %v298, %v298
  %v363 = vpack.c.bf16 %v299, %v299
  %v364 = vpack.c.bf16 %v300, %v300
  %v365 = vpack.c.bf16 %v301, %v301
  %v366 = vpack.c.bf16 %v302, %v302
  %v367 = vpack.c.bf16 %v303, %v303
  %v368 = vpack.c.bf16 %v304, %v304
  %v369 = vpack.c.bf16 %v305, %v305
  %v370 = vpack.c.bf16 %v306, %v306
  %v371 = vpack.c.bf16 %v307, %v307
  %v372 = vpack.c.bf16 %v308, %v308
  %v373 = vpack.c.bf16 %v309, %v309
  %v374 = vpack.c.bf16 %v310, %v310
  %v375 = vpack.c.bf16 %v311, %v311
  %v376 = vpack.c.bf16 %v312, %v312
  %v377 = vpack.c.bf16 %v313, %v313
  %v378 = vpack.c.bf16 %v314, %v314
  %v379 = vpack.c.bf16 %v315, %v315
  %v380 = vpack.c.bf16 %v316, %v316
  %v381 = vpack.c.bf16 %v317, %v317
  %v382 = vpack.c.bf16 %v318, %v318
  %v383 = vpack.c.bf16 %v319, %v319
  %v384 = vpack.c.bf16 %v320, %v320
  %v385 = vpack.c.bf16 %v321, %v321
  %v386 = vpack.c.bf16 %v322, %v322
  %v387 = vpack.c.bf16 %v323, %v323
  %v388 = vpack.c.bf16 %v324, %v324
  %v389 = vpack.c.bf16 %v325, %v325
  %v390 = vpack.c.bf16 %v326, %v326
  %v391 = vpack.c.bf16 %v327, %v327
  %v392 = vpack.c.bf16 %v328, %v328
  %v393 = vpack.c.bf16 %v329, %v329
  %v394 = vpack.c.bf16 %v330, %v330
  %v395 = vpack.c.bf16 %v331, %v331
  %v396 = vpack.c.bf16 %v332, %v332
  %v397 = vpack.c.bf16 %v333, %v333
  %v398 = vpack.c.bf16 %v334, %v334
  %v399 = vpack.c.bf16 %v335, %v335
  %v400 = vpack.c.bf16 %v336, %v336
  %v401 = vpack.c.bf16 %v337, %v337
  %v402 = vpack.c.bf16 %v338, %v338
  %v403 = vpack.c.bf16 %v339, %v339
  %v404 = vpack.c.bf16 %v340, %v340
  %v405 = vpack.c.bf16 %v341, %v341
  %406 = vst [vmem:[%s3] sm:$0xf] %v342
  %407 = vst [vmem:[%s3 + $0x4] sm:$0xf] %v343
  %408 = vst [vmem:[%s3 + $0x8] sm:$0xf] %v344
  %409 = vst [vmem:[%s3 + $0xc] sm:$0xf] %v345
  %410 = vst [vmem:[%s3 + $0x10] sm:$0xf] %v346
  %411 = vst [vmem:[%s3 + $0x14] sm:$0xf] %v347
  %412 = vst [vmem:[%s3 + $0x18] sm:$0xf] %v348
  %413 = vst [vmem:[%s3 + $0x1c] sm:$0xf] %v349
  %414 = vst [vmem:[%s3 + $0x20] sm:$0xf] %v350
  %415 = vst [vmem:[%s3 + $0x24] sm:$0xf] %v351
  %416 = vst [vmem:[%s3 + $0x28] sm:$0xf] %v352
  %417 = vst [vmem:[%s3 + $0x2c] sm:$0xf] %v353
  %418 = vst [vmem:[%s3 + $0x30] sm:$0xf] %v354
  %419 = vst [vmem:[%s3 + $0x34] sm:$0xf] %v355
  %420 = vst [vmem:[%s3 + $0x38] sm:$0xf] %v356
  %421 = vst [vmem:[%s3 + $0x3c] sm:$0xf] %v357
  %422 = vst [vmem:[%s3 + $0x40] sm:$0xf] %v358
  %423 = vst [vmem:[%s3 + $0x44] sm:$0xf] %v359
  %424 = vst [vmem:[%s3 + $0x48] sm:$0xf] %v360
  %425 = vst [vmem:[%s3 + $0x4c] sm:$0xf] %v361
  %426 = vst [vmem:[%s3 + $0x50] sm:$0xf] %v362
  %427 = vst [vmem:[%s3 + $0x54] sm:$0xf] %v363
  %428 = vst [vmem:[%s3 + $0x58] sm:$0xf] %v364
  %429 = vst [vmem:[%s3 + $0x5c] sm:$0xf] %v365
  %430 = vst [vmem:[%s3 + $0x60] sm:$0xf] %v366
  %431 = vst [vmem:[%s3 + $0x64] sm:$0xf] %v367
  %432 = vst [vmem:[%s3 + $0x68] sm:$0xf] %v368
  %433 = vst [vmem:[%s3 + $0x6c] sm:$0xf] %v369
  %434 = vst [vmem:[%s3 + $0x70] sm:$0xf] %v370
  %435 = vst [vmem:[%s3 + $0x74] sm:$0xf] %v371
  %436 = vst [vmem:[%s3 + $0x78] sm:$0xf] %v372
  %437 = vst [vmem:[%s3 + $0x7c] sm:$0xf] %v373
  %438 = vst [vmem:[%s3 + $0x80] sm:$0xf] %v374
  %439 = vst [vmem:[%s3 + $0x84] sm:$0xf] %v375
  %440 = vst [vmem:[%s3 + $0x88] sm:$0xf] %v376
  %441 = vst [vmem:[%s3 + $0x8c] sm:$0xf] %v377
  %442 = vst [vmem:[%s3 + $0x90] sm:$0xf] %v378
  %443 = vst [vmem:[%s3 + $0x94] sm:$0xf] %v379
  %444 = vst [vmem:[%s3 + $0x98] sm:$0xf] %v380
  %445 = vst [vmem:[%s3 + $0x9c] sm:$0xf] %v381
  %446 = vst [vmem:[%s3 + $0xa0] sm:$0xf] %v382
  %447 = vst [vmem:[%s3 + $0xa4] sm:$0xf] %v383
  %448 = vst [vmem:[%s3 + $0xa8] sm:$0xf] %v384
  %449 = vst [vmem:[%s3 + $0xac] sm:$0xf] %v385
  %450 = vst [vmem:[%s3 + $0xb0] sm:$0xf] %v386
  %451 = vst [vmem:[%s3 + $0xb4] sm:$0xf] %v387
  %452 = vst [vmem:[%s3 + $0xb8] sm:$0xf] %v388
  %453 = vst [vmem:[%s3 + $0xbc] sm:$0xf] %v389
  %454 = vst [vmem:[%s3 + $0xc0] sm:$0xf] %v390
  %455 = vst [vmem:[%s3 + $0xc4] sm:$0xf] %v391
  %456 = vst [vmem:[%s3 + $0xc8] sm:$0xf] %v392
  %457 = vst [vmem:[%s3 + $0xcc] sm:$0xf] %v393
  %458 = vst [vmem:[%s3 + $0xd0] sm:$0xf] %v394
  %459 = vst [vmem:[%s3 + $0xd4] sm:$0xf] %v395
  %460 = vst [vmem:[%s3 + $0xd8] sm:$0xf] %v396
  %461 = vst [vmem:[%s3 + $0xdc] sm:$0xf] %v397
  %462 = vst [vmem:[%s3 + $0xe0] sm:$0xf] %v398
  %463 = vst [vmem:[%s3 + $0xe4] sm:$0xf] %v399
  %464 = vst [vmem:[%s3 + $0xe8] sm:$0xf] %v400
  %465 = vst [vmem:[%s3 + $0xec] sm:$0xf] %v401
  %466 = vst [vmem:[%s3 + $0xf0] sm:$0xf] %v402
  %467 = vst [vmem:[%s3 + $0xf4] sm:$0xf] %v403
  %468 = vst [vmem:[%s3 + $0xf8] sm:$0xf] %v404
  %469 = vst [vmem:[%s3 + $0xfc] sm:$0xf] %v405
  // Predicated region
  $region14: #{postres_bottleneck_forward.6} parent=0 // pred_check
    _
  $region15: #{postres_bottleneck_forward.6} parent=0 // pred_check_branch
    %471 = sbr.rel (0) target = $region17
  $region16: #{postres_bottleneck_forward.6} parent=0 // pred_region
    _
  $region17: #{postres_bottleneck_forward.6} parent=0 // pred_fallthru
    _
  // Predicated region
  $region18: #{postres_bottleneck_forward.6} parent=0 // pred_check
    _
  $region19: #{postres_bottleneck_forward.6} parent=0 // pred_check_branch
    %473 = sbr.rel (0) target = $region21
  $region20: #{postres_bottleneck_forward.6} parent=0 // pred_region
    _
  $region21: #{postres_bottleneck_forward.6} parent=0 // pred_fallthru
    _

// kernel: postres_bottleneck_forward.8
$region0: #{postres_bottleneck_forward.8}
  #allocation0 [shape = 'u32[]', space=smem, size = 0x4, offset = 0x4, fixed_abs, tag = 'smem constant byte address 0x4 - core index']
  #allocation1 [shape = 'u32[72,128]{1,0:T(1,128)}', space=vmem, size = 0x9000, scoped, tag = 'internal scratch']
  %s0 = inlined_call_operand.vmem [shape: bf16[128,64], index: 0, kind: input, shape index: {}]
  %s1 = inlined_call_operand.vmem [shape: bf16[64,128], index: 1, kind: input, shape index: {}]
  %s2 = inlined_call_operand.vmem [shape: f32[1,64], index: 2, kind: input, shape index: {}]
  %s3 = inlined_call_operand.vmem [shape: f32[1,64], index: 3, kind: input, shape index: {}]
  %s4 = inlined_call_operand.vmem [shape: f32[128,32], index: 4, kind: input, shape index: {}]
  %s5 = inlined_call_operand.vmem [shape: bf16[32,128], index: 5, kind: input, shape index: {}]
  %s6 = inlined_call_operand.vmem [shape: bf16[128,128], index: 6, kind: output, shape index: {0}]
  %s7 = inlined_call_operand.vmem [shape: f32[1,1,128], index: 7, kind: output, shape index: {1}]
  %s8 = inlined_call_operand.vmem [shape: f32[1,1,128], index: 8, kind: output, shape index: {2}]
  %s9 = inlined_call_operand.vmem [shape: bf16[128,128], index: 9, kind: output, shape index: {3}]
  %s10 = inlined_call_operand.vmem [shape: f32[1,1,128], index: 10, kind: output, shape index: {4}]
  %s11 = inlined_call_operand.vmem [shape: f32[1,1,128], index: 11, kind: output, shape index: {5}]
  %12 = xla_tuple %s6, %s7, %s8, %s9, %s10, %s11
  %s13 = sld [smem:[#allocation0]]
  $region74: #{postres_bottleneck_forward.8} parent=0
    _
  %s15 = ssub.s32 1, %s13
  %s16 = scalar_select 0, %s15, %s13
  // Predicated region
  $region2: #{postres_bottleneck_forward.8} parent=0 // pred_check
    _
  $region3: #{postres_bottleneck_forward.8} parent=0 // pred_check_branch
    %18 = sbr.rel (0) target = $region5
  $region4: #{postres_bottleneck_forward.8} parent=0 // pred_region
    _
  $region5: #{postres_bottleneck_forward.8} parent=0 // pred_fallthru
    _
  // Predicated region
  $region6: #{postres_bottleneck_forward.8} parent=0 // pred_check
    _
  $region7: #{postres_bottleneck_forward.8} parent=0 // pred_check_branch
    %20 = sbr.rel (0) target = $region9
  $region8: #{postres_bottleneck_forward.8} parent=0 // pred_region
    _
  $region9: #{postres_bottleneck_forward.8} parent=0 // pred_fallthru
    _
  // Predicated region
  $region10: #{postres_bottleneck_forward.8} parent=0 // pred_check
    _
  $region11: #{postres_bottleneck_forward.8} parent=0 // pred_check_branch
    %22 = sbr.rel (0) target = $region13
  $region12: #{postres_bottleneck_forward.8} parent=0 // pred_region
    _
  $region13: #{postres_bottleneck_forward.8} parent=0 // pred_fallthru
    _
  // Predicated region
  $region14: #{postres_bottleneck_forward.8} parent=0 // pred_check
    _
  $region15: #{postres_bottleneck_forward.8} parent=0 // pred_check_branch
    %24 = sbr.rel (0) target = $region17
  $region16: #{postres_bottleneck_forward.8} parent=0 // pred_region
    _
  $region17: #{postres_bottleneck_forward.8} parent=0 // pred_fallthru
    _
  // Predicated region
  $region18: #{postres_bottleneck_forward.8} parent=0 // pred_check
    _
  $region19: #{postres_bottleneck_forward.8} parent=0 // pred_check_branch
    %26 = sbr.rel (0) target = $region21
  $region20: #{postres_bottleneck_forward.8} parent=0 // pred_region
    _
  $region21: #{postres_bottleneck_forward.8} parent=0 // pred_fallthru
    _
  // Predicated region
  $region22: #{postres_bottleneck_forward.8} parent=0 // pred_check
    _
  $region23: #{postres_bottleneck_forward.8} parent=0 // pred_check_branch
    %28 = sbr.rel (0) target = $region25
  $region24: #{postres_bottleneck_forward.8} parent=0 // pred_region
    _
  $region25: #{postres_bottleneck_forward.8} parent=0 // pred_fallthru
    _
  %v30 = vld [vmem:[%s0] sm:$0xf]
  %v31 = vld [vmem:[%s0 + $0x4] sm:$0xf]
  %v32 = vld [vmem:[%s0 + $0x8] sm:$0xf]
  %v33 = vld [vmem:[%s0 + $0xc] sm:$0xf]
  %v34 = vld [vmem:[%s0 + $0x10] sm:$0xf]
  %v35 = vld [vmem:[%s0 + $0x14] sm:$0xf]
  %v36 = vld [vmem:[%s0 + $0x18] sm:$0xf]
  %v37 = vld [vmem:[%s0 + $0x1c] sm:$0xf]
  %v38 = vld [vmem:[%s0 + $0x20] sm:$0xf]
  %v39 = vld [vmem:[%s0 + $0x24] sm:$0xf]
  %v40 = vld [vmem:[%s0 + $0x28] sm:$0xf]
  %v41 = vld [vmem:[%s0 + $0x2c] sm:$0xf]
  %v42 = vld [vmem:[%s0 + $0x30] sm:$0xf]
  %v43 = vld [vmem:[%s0 + $0x34] sm:$0xf]
  %v44 = vld [vmem:[%s0 + $0x38] sm:$0xf]
  %v45 = vld [vmem:[%s0 + $0x3c] sm:$0xf]
  %v46 = vunpack.c.l.bf16 %v30
  %v47 = vunpack.c.l.bf16 %v31
  %v48 = vunpack.c.l.bf16 %v32
  %v49 = vunpack.c.l.bf16 %v33
  %v50 = vunpack.c.l.bf16 %v34
  %v51 = vunpack.c.l.bf16 %v35
  %v52 = vunpack.c.l.bf16 %v36
  %v53 = vunpack.c.l.bf16 %v37
  %v54 = vunpack.c.l.bf16 %v38
  %v55 = vunpack.c.l.bf16 %v39
  %v56 = vunpack.c.l.bf16 %v40
  %v57 = vunpack.c.l.bf16 %v41
  %v58 = vunpack.c.l.bf16 %v42
  %v59 = vunpack.c.l.bf16 %v43
  %v60 = vunpack.c.l.bf16 %v44
  %v61 = vunpack.c.l.bf16 %v45
  %v62 = vld [vmem:[%s2] sm:$0x1]
  %v64 = vperm.slane %v62, 0
  %v66 = vmul.f32 %v46, %v64
  %v67 = vmul.f32 %v47, %v64
  %v68 = vmul.f32 %v48, %v64
  %v69 = vmul.f32 %v49, %v64
  %v70 = vmul.f32 %v50, %v64
  %v71 = vmul.f32 %v51, %v64
  %v72 = vmul.f32 %v52, %v64
  %v73 = vmul.f32 %v53, %v64
  %v74 = vmul.f32 %v54, %v64
  %v75 = vmul.f32 %v55, %v64
  %v76 = vmul.f32 %v56, %v64
  %v77 = vmul.f32 %v57, %v64
  %v78 = vmul.f32 %v58, %v64
  %v79 = vmul.f32 %v59, %v64
  %v80 = vmul.f32 %v60, %v64
  %v81 = vmul.f32 %v61, %v64
  %v82 = vld [vmem:[%s3] sm:$0x1]
  %v84 = vperm.slane %v82, 0
  %v86 = vadd.f32 %v66, %v84
  %v87 = vadd.f32 %v67, %v84
  %v88 = vadd.f32 %v68, %v84
  %v89 = vadd.f32 %v69, %v84
  %v90 = vadd.f32 %v70, %v84
  %v91 = vadd.f32 %v71, %v84
  %v92 = vadd.f32 %v72, %v84
  %v93 = vadd.f32 %v73, %v84
  %v94 = vadd.f32 %v74, %v84
  %v95 = vadd.f32 %v75, %v84
  %v96 = vadd.f32 %v76, %v84
  %v97 = vadd.f32 %v77, %v84
  %v98 = vadd.f32 %v78, %v84
  %v99 = vadd.f32 %v79, %v84
  %v100 = vadd.f32 %v80, %v84
  %v101 = vadd.f32 %v81, %v84
  %v102 = vmax.f32 %v86, 0.0
  %v103 = vmax.f32 %v87, 0.0
  %v104 = vmax.f32 %v88, 0.0
  %v105 = vmax.f32 %v89, 0.0
  %v106 = vmax.f32 %v90, 0.0
  %v107 = vmax.f32 %v91, 0.0
  %v108 = vmax.f32 %v92, 0.0
  %v109 = vmax.f32 %v93, 0.0
  %v110 = vmax.f32 %v94, 0.0
  %v111 = vmax.f32 %v95, 0.0
  %v112 = vmax.f32 %v96, 0.0
  %v113 = vmax.f32 %v97, 0.0
  %v114 = vmax.f32 %v98, 0.0
  %v115 = vmax.f32 %v99, 0.0
  %v116 = vmax.f32 %v100, 0.0
  %v117 = vmax.f32 %v101, 0.0
  %v118 = vpack.c.bf16 %v103, %v102
  %v119 = vpack.c.bf16 %v105, %v104
  %v120 = vpack.c.bf16 %v107, %v106
  %v121 = vpack.c.bf16 %v109, %v108
  %v122 = vpack.c.bf16 %v111, %v110
  %v123 = vpack.c.bf16 %v113, %v112
  %v124 = vpack.c.bf16 %v115, %v114
  %v125 = vpack.c.bf16 %v117, %v116
  %v126 = vld [vmem:[%s1] sm:$0xf]
  %v127 = vld [vmem:[%s1 + $0x4] sm:$0xf]
  %v128 = vld [vmem:[%s1 + $0x8] sm:$0xf]
  %v129 = vld [vmem:[%s1 + $0xc] sm:$0xf]
  %v130 = vld [vmem:[%s1 + $0x10] sm:$0xf]
  %v131 = vld [vmem:[%s1 + $0x14] sm:$0xf]
  %v132 = vld [vmem:[%s1 + $0x18] sm:$0xf]
  %v133 = vld [vmem:[%s1 + $0x1c] sm:$0xf]
  %v142 = vunpack.c.l.b16 %v126
  %v143 = vunpack.c.l.b16 %v127
  %v144 = vunpack.c.l.b16 %v128
  %v145 = vunpack.c.l.b16 %v129
  %v146 = vunpack.c.l.b16 %v130
  %v147 = vunpack.c.l.b16 %v131
  %v148 = vunpack.c.l.b16 %v132
  %v149 = vunpack.c.l.b16 %v133
  %v150 = vpack.c.b16 %v143, %v142
  %v151 = vpack.c.b16 %v145, %v144
  %v152 = vpack.c.b16 %v147, %v146
  %v153 = vpack.c.b16 %v149, %v148
  %vm158 = vcmask 523264
  %v160 = vsel %vm158, %v118, 0
  %v163 = vsel %vm158, %v119, 0
  %v166 = vsel %vm158, %v120, 0
  %v169 = vsel %vm158, %v121, 0
  %v172 = vsel %vm158, %v122, 0
  %v175 = vsel %vm158, %v123, 0
  %v178 = vsel %vm158, %v124, 0
  %v181 = vsel %vm158, %v125, 0
  %183 = vmatpush.bf16.msra.mxu0 0
  %184 = vmatpush.bf16.msra.mxu0 0
  %185 = vmatpush.bf16.msra.mxu0 0
  %186 = vmatpush.bf16.msra.mxu0 0
  %187 = vmatpush.bf16.msra.mxu0 %v153
  %188 = vmatpush.bf16.msra.mxu0 %v152
  %189 = vmatpush.bf16.msra.mxu0 %v151
  %190 = vmatpush.bf16.msra.mxu0 %v150
  %191 = vmatmul.bf16.gmra.mxu0 %v160
  %v192 = vpop.f32.mrf.mxu0
  %v193 = vadd.f32 0.0, %v192
  %v194 = vpop.f32.mrf.mxu0
  %v195 = vadd.f32 0.0, %v194
  %196 = vmatmul.bf16.gmra.mxu0 %v163
  %v197 = vpop.f32.mrf.mxu0
  %v198 = vadd.f32 0.0, %v197
  %v199 = vpop.f32.mrf.mxu0
  %v200 = vadd.f32 0.0, %v199
  %201 = vmatmul.bf16.gmra.mxu0 %v166
  %v202 = vpop.f32.mrf.mxu0
  %v203 = vadd.f32 0.0, %v202
  %v204 = vpop.f32.mrf.mxu0
  %v205 = vadd.f32 0.0, %v204
  %206 = vmatmul.bf16.gmra.mxu0 %v169
  %v207 = vpop.f32.mrf.mxu0
  %v208 = vadd.f32 0.0, %v207
  %v209 = vpop.f32.mrf.mxu0
  %v210 = vadd.f32 0.0, %v209
  %211 = vmatmul.bf16.gmra.mxu0 %v172
  %v212 = vpop.f32.mrf.mxu0
  %v213 = vadd.f32 0.0, %v212
  %v214 = vpop.f32.mrf.mxu0
  %v215 = vadd.f32 0.0, %v214
  %216 = vmatmul.bf16.gmra.mxu0 %v175
  %v217 = vpop.f32.mrf.mxu0
  %v218 = vadd.f32 0.0, %v217
  %v219 = vpop.f32.mrf.mxu0
  %v220 = vadd.f32 0.0, %v219
  %221 = vmatmul.bf16.gmra.mxu0 %v178
  %v222 = vpop.f32.mrf.mxu0
  %v223 = vadd.f32 0.0, %v222
  %v224 = vpop.f32.mrf.mxu0
  %v225 = vadd.f32 0.0, %v224
  %226 = vmatmul.bf16.gmra.mxu0 %v181
  %v227 = vpop.f32.mrf.mxu0
  %v228 = vadd.f32 0.0, %v227
  %v229 = vpop.f32.mrf.mxu0
  %v230 = vadd.f32 0.0, %v229
  %231 = vdwg.mxu0
  %v232 = vpack.c.bf16 %v193, %v193
  %v233 = vpack.c.bf16 %v195, %v195
  %v234 = vpack.c.bf16 %v198, %v198
  %v235 = vpack.c.bf16 %v200, %v200
  %v236 = vpack.c.bf16 %v203, %v203
  %v237 = vpack.c.bf16 %v205, %v205
  %v238 = vpack.c.bf16 %v208, %v208
  %v239 = vpack.c.bf16 %v210, %v210
  %v240 = vpack.c.bf16 %v213, %v213
  %v241 = vpack.c.bf16 %v215, %v215
  %v242 = vpack.c.bf16 %v218, %v218
  %v243 = vpack.c.bf16 %v220, %v220
  %v244 = vpack.c.bf16 %v223, %v223
  %v245 = vpack.c.bf16 %v225, %v225
  %v246 = vpack.c.bf16 %v228, %v228
  %v247 = vpack.c.bf16 %v230, %v230
  %248 = vst [vmem:[%s6] sm:$0xf] %v232
  %249 = vst [vmem:[%s6 + $0x4] sm:$0xf] %v233
  %250 = vst [vmem:[%s6 + $0x8] sm:$0xf] %v234
  %251 = vst [vmem:[%s6 + $0xc] sm:$0xf] %v235
  %252 = vst [vmem:[%s6 + $0x10] sm:$0xf] %v236
  %253 = vst [vmem:[%s6 + $0x14] sm:$0xf] %v237
  %254 = vst [vmem:[%s6 + $0x18] sm:$0xf] %v238
  %255 = vst [vmem:[%s6 + $0x1c] sm:$0xf] %v239
  %256 = vst [vmem:[%s6 + $0x20] sm:$0xf] %v240
  %257 = vst [vmem:[%s6 + $0x24] sm:$0xf] %v241
  %258 = vst [vmem:[%s6 + $0x28] sm:$0xf] %v242
  %259 = vst [vmem:[%s6 + $0x2c] sm:$0xf] %v243
  %260 = vst [vmem:[%s6 + $0x30] sm:$0xf] %v244
  %261 = vst [vmem:[%s6 + $0x34] sm:$0xf] %v245
  %262 = vst [vmem:[%s6 + $0x38] sm:$0xf] %v246
  %263 = vst [vmem:[%s6 + $0x3c] sm:$0xf] %v247
  %v264 = vadd.f32 %v193, %v195
  %v265 = vadd.f32 %v264, %v198
  %v266 = vadd.f32 %v265, %v200
  %v267 = vadd.f32 %v266, %v203
  %v268 = vadd.f32 %v267, %v205
  %v269 = vadd.f32 %v268, %v208
  %v270 = vadd.f32 %v269, %v210
  %v271 = vadd.f32 %v270, %v213
  %v272 = vadd.f32 %v271, %v215
  %v273 = vadd.f32 %v272, %v218
  %v274 = vadd.f32 %v273, %v220
  %v275 = vadd.f32 %v274, %v223
  %v276 = vadd.f32 %v275, %v225
  %v277 = vadd.f32 %v276, %v228
  %v278 = vadd.f32 %v277, %v230
  %v279 = vrot.slane %v278, 4
  %v280 = vadd.f32 %v278, %v279
  %v281 = vrot.slane %v280, 2
  %v282 = vadd.f32 %v280, %v281
  %v283 = vrot.slane %v282, 1
  %v284 = vadd.f32 %v282, %v283
  %285 = vst [vmem:[%s7] sm:$0x1] %v284
  %v286 = vmul.f32 %v193, %v193
  %v287 = vmul.f32 %v195, %v195
  %v288 = vmul.f32 %v198, %v198
  %v289 = vmul.f32 %v200, %v200
  %v290 = vmul.f32 %v203, %v203
  %v291 = vmul.f32 %v205, %v205
  %v292 = vmul.f32 %v208, %v208
  %v293 = vmul.f32 %v210, %v210
  %v294 = vmul.f32 %v213, %v213
  %v295 = vmul.f32 %v215, %v215
  %v296 = vmul.f32 %v218, %v218
  %v297 = vmul.f32 %v220, %v220
  %v298 = vmul.f32 %v223, %v223
  %v299 = vmul.f32 %v225, %v225
  %v300 = vmul.f32 %v228, %v228
  %v301 = vmul.f32 %v230, %v230
  %v302 = vadd.f32 %v286, %v287
  %v303 = vadd.f32 %v302, %v288
  %v304 = vadd.f32 %v303, %v289
  %v305 = vadd.f32 %v304, %v290
  %v306 = vadd.f32 %v305, %v291
  %v307 = vadd.f32 %v306, %v292
  %v308 = vadd.f32 %v307, %v293
  %v309 = vadd.f32 %v308, %v294
  %v310 = vadd.f32 %v309, %v295
  %v311 = vadd.f32 %v310, %v296
  %v312 = vadd.f32 %v311, %v297
  %v313 = vadd.f32 %v312, %v298
  %v314 = vadd.f32 %v313, %v299
  %v315 = vadd.f32 %v314, %v300
  %v316 = vadd.f32 %v315, %v301
  %v317 = vrot.slane %v316, 4
  %v318 = vadd.f32 %v316, %v317
  %v319 = vrot.slane %v318, 2
  %v320 = vadd.f32 %v318, %v319
  %v321 = vrot.slane %v320, 1
  %v322 = vadd.f32 %v320, %v321
  %323 = vst [vmem:[%s8] sm:$0x1] %v322
  %v324 = vld [vmem:[%s4] sm:$0xff]
  %v325 = vld [vmem:[%s4 + $0x8] sm:$0xff]
  %v326 = vld [vmem:[%s4 + $0x10] sm:$0xff]
  %v327 = vld [vmem:[%s4 + $0x18] sm:$0xff]
  %v328 = vld [vmem:[%s4 + $0x20] sm:$0xff]
  %v329 = vld [vmem:[%s4 + $0x28] sm:$0xff]
  %v330 = vld [vmem:[%s4 + $0x30] sm:$0xff]
  %v331 = vld [vmem:[%s4 + $0x38] sm:$0xff]
  %v332 = vld [vmem:[%s4 + $0x40] sm:$0xff]
  %v333 = vld [vmem:[%s4 + $0x48] sm:$0xff]
  %v334 = vld [vmem:[%s4 + $0x50] sm:$0xff]
  %v335 = vld [vmem:[%s4 + $0x58] sm:$0xff]
  %v336 = vld [vmem:[%s4 + $0x60] sm:$0xff]
  %v337 = vld [vmem:[%s4 + $0x68] sm:$0xff]
  %v338 = vld [vmem:[%s4 + $0x70] sm:$0xff]
  %v339 = vld [vmem:[%s4 + $0x78] sm:$0xff]
  %v340 = vpack.c.bf16 %v325, %v324
  %v341 = vpack.c.bf16 %v327, %v326
  %v342 = vpack.c.bf16 %v329, %v328
  %v343 = vpack.c.bf16 %v331, %v330
  %v344 = vpack.c.bf16 %v333, %v332
  %v345 = vpack.c.bf16 %v335, %v334
  %v346 = vpack.c.bf16 %v337, %v336
  %v347 = vpack.c.bf16 %v339, %v338
  %v348 = vld [vmem:[%s5] sm:$0xf]
  %v349 = vld [vmem:[%s5 + $0x4] sm:$0xf]
  %v350 = vld [vmem:[%s5 + $0x8] sm:$0xf]
  %v351 = vld [vmem:[%s5 + $0xc] sm:$0xf]
  %v356 = vunpack.c.l.b16 %v348
  %v357 = vunpack.c.l.b16 %v349
  %v358 = vunpack.c.l.b16 %v350
  %v359 = vunpack.c.l.b16 %v351
  %v360 = vpack.c.b16 %v357, %v356
  %v361 = vpack.c.b16 %v359, %v358
  %vm364 = vcmask 261120
  %v366 = vsel %vm364, %v340, 0
  %v369 = vsel %vm364, %v341, 0
  %v372 = vsel %vm364, %v342, 0
  %v375 = vsel %vm364, %v343, 0
  %v378 = vsel %vm364, %v344, 0
  %v381 = vsel %vm364, %v345, 0
  %v384 = vsel %vm364, %v346, 0
  %v387 = vsel %vm364, %v347, 0
  %389 = vmatpush.bf16.msra.mxu0 0
  %390 = vmatpush.bf16.msra.mxu0 0
  %391 = vmatpush.bf16.msra.mxu0 0
  %392 = vmatpush.bf16.msra.mxu0 0
  %393 = vmatpush.bf16.msra.mxu0 0
  %394 = vmatpush.bf16.msra.mxu0 0
  %395 = vmatpush.bf16.msra.mxu0 %v361
  %396 = vmatpush.bf16.msra.mxu0 %v360
  %397 = vmatmul.bf16.gmra.mxu0 %v366
  %v398 = vpop.f32.mrf.mxu0
  %v399 = vadd.f32 0.0, %v398
  %v400 = vpop.f32.mrf.mxu0
  %v401 = vadd.f32 0.0, %v400
  %402 = vmatmul.bf16.gmra.mxu0 %v369
  %v403 = vpop.f32.mrf.mxu0
  %v404 = vadd.f32 0.0, %v403
  %v405 = vpop.f32.mrf.mxu0
  %v406 = vadd.f32 0.0, %v405
  %407 = vmatmul.bf16.gmra.mxu0 %v372
  %v408 = vpop.f32.mrf.mxu0
  %v409 = vadd.f32 0.0, %v408
  %v410 = vpop.f32.mrf.mxu0
  %v411 = vadd.f32 0.0, %v410
  %412 = vmatmul.bf16.gmra.mxu0 %v375
  %v413 = vpop.f32.mrf.mxu0
  %v414 = vadd.f32 0.0, %v413
  %v415 = vpop.f32.mrf.mxu0
  %v416 = vadd.f32 0.0, %v415
  %417 = vmatmul.bf16.gmra.mxu0 %v378
  %v418 = vpop.f32.mrf.mxu0
  %v419 = vadd.f32 0.0, %v418
  %v420 = vpop.f32.mrf.mxu0
  %v421 = vadd.f32 0.0, %v420
  %422 = vmatmul.bf16.gmra.mxu0 %v381
  %v423 = vpop.f32.mrf.mxu0
  %v424 = vadd.f32 0.0, %v423
  %v425 = vpop.f32.mrf.mxu0
  %v426 = vadd.f32 0.0, %v425
  %427 = vmatmul.bf16.gmra.mxu0 %v384
  %v428 = vpop.f32.mrf.mxu0
  %v429 = vadd.f32 0.0, %v428
  %v430 = vpop.f32.mrf.mxu0
  %v431 = vadd.f32 0.0, %v430
  %432 = vmatmul.bf16.gmra.mxu0 %v387
  %v433 = vpop.f32.mrf.mxu0
  %v434 = vadd.f32 0.0, %v433
  %v435 = vpop.f32.mrf.mxu0
  %v436 = vadd.f32 0.0, %v435
  %437 = vdwg.mxu0
  %v438 = vpack.c.bf16 %v399, %v399
  %v439 = vpack.c.bf16 %v401, %v401
  %v440 = vpack.c.bf16 %v404, %v404
  %v441 = vpack.c.bf16 %v406, %v406
  %v442 = vpack.c.bf16 %v409, %v409
  %v443 = vpack.c.bf16 %v411, %v411
  %v444 = vpack.c.bf16 %v414, %v414
  %v445 = vpack.c.bf16 %v416, %v416
  %v446 = vpack.c.bf16 %v419, %v419
  %v447 = vpack.c.bf16 %v421, %v421
  %v448 = vpack.c.bf16 %v424, %v424
  %v449 = vpack.c.bf16 %v426, %v426
  %v450 = vpack.c.bf16 %v429, %v429
  %v451 = vpack.c.bf16 %v431, %v431
  %v452 = vpack.c.bf16 %v434, %v434
  %v453 = vpack.c.bf16 %v436, %v436
  %454 = vst [vmem:[%s9] sm:$0xf] %v438
  %455 = vst [vmem:[%s9 + $0x4] sm:$0xf] %v439
  %456 = vst [vmem:[%s9 + $0x8] sm:$0xf] %v440
  %457 = vst [vmem:[%s9 + $0xc] sm:$0xf] %v441
  %458 = vst [vmem:[%s9 + $0x10] sm:$0xf] %v442
  %459 = vst [vmem:[%s9 + $0x14] sm:$0xf] %v443
  %460 = vst [vmem:[%s9 + $0x18] sm:$0xf] %v444
  %461 = vst [vmem:[%s9 + $0x1c] sm:$0xf] %v445
  %462 = vst [vmem:[%s9 + $0x20] sm:$0xf] %v446
  %463 = vst [vmem:[%s9 + $0x24] sm:$0xf] %v447
  %464 = vst [vmem:[%s9 + $0x28] sm:$0xf] %v448
  %465 = vst [vmem:[%s9 + $0x2c] sm:$0xf] %v449
  %466 = vst [vmem:[%s9 + $0x30] sm:$0xf] %v450
  %467 = vst [vmem:[%s9 + $0x34] sm:$0xf] %v451
  %468 = vst [vmem:[%s9 + $0x38] sm:$0xf] %v452
  %469 = vst [vmem:[%s9 + $0x3c] sm:$0xf] %v453
  %v470 = vadd.f32 %v399, %v401
  %v471 = vadd.f32 %v470, %v404
  %v472 = vadd.f32 %v471, %v406
  %v473 = vadd.f32 %v472, %v409
  %v474 = vadd.f32 %v473, %v411
  %v475 = vadd.f32 %v474, %v414
  %v476 = vadd.f32 %v475, %v416
  %v477 = vadd.f32 %v476, %v419
  %v478 = vadd.f32 %v477, %v421
  %v479 = vadd.f32 %v478, %v424
  %v480 = vadd.f32 %v479, %v426
  %v481 = vadd.f32 %v480, %v429
  %v482 = vadd.f32 %v481, %v431
  %v483 = vadd.f32 %v482, %v434
  %v484 = vadd.f32 %v483, %v436
  %v485 = vrot.slane %v484, 4
  %v486 = vadd.f32 %v484, %v485
  %v487 = vrot.slane %v486, 2
  %v488 = vadd.f32 %v486, %v487
  %v489 = vrot.slane %v488, 1
  %v490 = vadd.f32 %v488, %v489
  %491 = vst [vmem:[%s10] sm:$0x1] %v490
  %v492 = vmul.f32 %v399, %v399
  %v493 = vmul.f32 %v401, %v401
  %v494 = vmul.f32 %v404, %v404
  %v495 = vmul.f32 %v406, %v406
  %v496 = vmul.f32 %v409, %v409
  %v497 = vmul.f32 %v411, %v411
  %v498 = vmul.f32 %v414, %v414
  %v499 = vmul.f32 %v416, %v416
  %v500 = vmul.f32 %v419, %v419
  %v501 = vmul.f32 %v421, %v421
  %v502 = vmul.f32 %v424, %v424
  %v503 = vmul.f32 %v426, %v426
  %v504 = vmul.f32 %v429, %v429
  %v505 = vmul.f32 %v431, %v431
  %v506 = vmul.f32 %v434, %v434
  %v507 = vmul.f32 %v436, %v436
  %v508 = vadd.f32 %v492, %v493
  %v509 = vadd.f32 %v508, %v494
  %v510 = vadd.f32 %v509, %v495
  %v511 = vadd.f32 %v510, %v496
  %v512 = vadd.f32 %v511, %v497
  %v513 = vadd.f32 %v512, %v498
  %v514 = vadd.f32 %v513, %v499
  %v515 = vadd.f32 %v514, %v500
  %v516 = vadd.f32 %v515, %v501
  %v517 = vadd.f32 %v516, %v502
  %v518 = vadd.f32 %v517, %v503
  %v519 = vadd.f32 %v518, %v504
  %v520 = vadd.f32 %v519, %v505
  %v521 = vadd.f32 %v520, %v506
  %v522 = vadd.f32 %v521, %v507
  %v523 = vrot.slane %v522, 4
  %v524 = vadd.f32 %v522, %v523
  %v525 = vrot.slane %v524, 2
  %v526 = vadd.f32 %v524, %v525
  %v527 = vrot.slane %v526, 1
  %v528 = vadd.f32 %v526, %v527
  %529 = vst [vmem:[%s11] sm:$0x1] %v528
  // Predicated region
  $region26: #{postres_bottleneck_forward.8} parent=0 // pred_check
    _
  $region27: #{postres_bottleneck_forward.8} parent=0 // pred_check_branch
    %531 = sbr.rel (0) target = $region29
  $region28: #{postres_bottleneck_forward.8} parent=0 // pred_region
    _
  $region29: #{postres_bottleneck_forward.8} parent=0 // pred_fallthru
    _
  // Predicated region
  $region30: #{postres_bottleneck_forward.8} parent=0 // pred_check
    _
  $region31: #{postres_bottleneck_forward.8} parent=0 // pred_check_branch
    %533 = sbr.rel (0) target = $region33
  $region32: #{postres_bottleneck_forward.8} parent=0 // pred_region
    _
  $region33: #{postres_bottleneck_forward.8} parent=0 // pred_fallthru
    _
  // Predicated region
  $region34: #{postres_bottleneck_forward.8} parent=0 // pred_check
    _
  $region35: #{postres_bottleneck_forward.8} parent=0 // pred_check_branch
    %535 = sbr.rel (0) target = $region37
  $region36: #{postres_bottleneck_forward.8} parent=0 // pred_region
    _
  $region37: #{postres_bottleneck_forward.8} parent=0 // pred_fallthru
    _
  // Predicated region
  $region38: #{postres_bottleneck_forward.8} parent=0 // pred_check
    _
  $region39: #{postres_bottleneck_forward.8} parent=0 // pred_check_branch
    %537 = sbr.rel (0) target = $region41
  $region40: #{postres_bottleneck_forward.8} parent=0 // pred_region
    _
  $region41: #{postres_bottleneck_forward.8} parent=0 // pred_fallthru
    _
  // Predicated region
  $region42: #{postres_bottleneck_forward.8} parent=0 // pred_check
    _
  $region43: #{postres_bottleneck_forward.8} parent=0 // pred_check_branch
    %539 = sbr.rel (0) target = $region45
  $region44: #{postres_bottleneck_forward.8} parent=0 // pred_region
    _
  $region45: #{postres_bottleneck_forward.8} parent=0 // pred_fallthru
    _
  // Predicated region
  $region46: #{postres_bottleneck_forward.8} parent=0 // pred_check
    _
  $region47: #{postres_bottleneck_forward.8} parent=0 // pred_check_branch
    %541 = sbr.rel (0) target = $region49
  $region48: #{postres_bottleneck_forward.8} parent=0 // pred_region
    _
  $region49: #{postres_bottleneck_forward.8} parent=0 // pred_fallthru
    _
  // Predicated region
  $region50: #{postres_bottleneck_forward.8} parent=0 // pred_check
    _
  $region51: #{postres_bottleneck_forward.8} parent=0 // pred_check_branch
    %543 = sbr.rel (0) target = $region53
  $region52: #{postres_bottleneck_forward.8} parent=0 // pred_region
    _
  $region53: #{postres_bottleneck_forward.8} parent=0 // pred_fallthru
    _
  // Predicated region
  $region54: #{postres_bottleneck_forward.8} parent=0 // pred_check
    _
  $region55: #{postres_bottleneck_forward.8} parent=0 // pred_check_branch
    %545 = sbr.rel (0) target = $region57
  $region56: #{postres_bottleneck_forward.8} parent=0 // pred_region
    _
  $region57: #{postres_bottleneck_forward.8} parent=0 // pred_fallthru
    _
  // Predicated region
  $region58: #{postres_bottleneck_forward.8} parent=0 // pred_check
    _
  $region59: #{postres_bottleneck_forward.8} parent=0 // pred_check_branch
    %547 = sbr.rel (0) target = $region61
  $region60: #{postres_bottleneck_forward.8} parent=0 // pred_region
    _
  $region61: #{postres_bottleneck_forward.8} parent=0 // pred_fallthru
    _
  // Predicated region
  $region62: #{postres_bottleneck_forward.8} parent=0 // pred_check
    _
  $region63: #{postres_bottleneck_forward.8} parent=0 // pred_check_branch
    %549 = sbr.rel (0) target = $region65
  $region64: #{postres_bottleneck_forward.8} parent=0 // pred_region
    _
  $region65: #{postres_bottleneck_forward.8} parent=0 // pred_fallthru
    _
  // Predicated region
  $region66: #{postres_bottleneck_forward.8} parent=0 // pred_check
    _
  $region67: #{postres_bottleneck_forward.8} parent=0 // pred_check_branch
    %551 = sbr.rel (0) target = $region69
  $region68: #{postres_bottleneck_forward.8} parent=0 // pred_region
    _
  $region69: #{postres_bottleneck_forward.8} parent=0 // pred_fallthru
    _
  // Predicated region
  $region70: #{postres_bottleneck_forward.8} parent=0 // pred_check
    _
  $region71: #{postres_bottleneck_forward.8} parent=0 // pred_check_branch
    %553 = sbr.rel (0) target = $region73
  $region72: #{postres_bottleneck_forward.8} parent=0 // pred_region
    _
  $region73: #{postres_bottleneck_forward.8} parent=0 // pred_fallthru
    _

// kernel: postres_bottleneck_forward.9
$region0: #{postres_bottleneck_forward.9}
  #allocation0 [shape = 'u32[]', space=smem, size = 0x4, offset = 0x4, fixed_abs, tag = 'smem constant byte address 0x4 - core index']
  #allocation1 [shape = 'u32[72,128]{1,0:T(1,128)}', space=vmem, size = 0x9000, scoped, tag = 'internal scratch']
  %s0 = inlined_call_operand.vmem [shape: bf16[128,128], index: 0, kind: input, shape index: {}]
  %s1 = inlined_call_operand.vmem [shape: f32[1,128], index: 1, kind: input, shape index: {}]
  %s2 = inlined_call_operand.vmem [shape: f32[1,128], index: 2, kind: input, shape index: {}]
  %s3 = inlined_call_operand.vmem [shape: bf16[128,128], index: 3, kind: input, shape index: {}]
  %s4 = inlined_call_operand.vmem [shape: f32[1,128], index: 4, kind: input, shape index: {}]
  %s5 = inlined_call_operand.vmem [shape: f32[1,128], index: 5, kind: input, shape index: {}]
  %s6 = inlined_call_operand.vmem [shape: f32[128,128], index: 6, kind: output, shape index: {}]
  %s7 = sld [smem:[#allocation0]]
  $region34: #{postres_bottleneck_forward.9} parent=0
    _
  %s9 = ssub.s32 1, %s7
  %s10 = scalar_select 0, %s9, %s7
  // Predicated region
  $region2: #{postres_bottleneck_forward.9} parent=0 // pred_check
    _
  $region3: #{postres_bottleneck_forward.9} parent=0 // pred_check_branch
    %12 = sbr.rel (0) target = $region5
  $region4: #{postres_bottleneck_forward.9} parent=0 // pred_region
    _
  $region5: #{postres_bottleneck_forward.9} parent=0 // pred_fallthru
    _
  // Predicated region
  $region6: #{postres_bottleneck_forward.9} parent=0 // pred_check
    _
  $region7: #{postres_bottleneck_forward.9} parent=0 // pred_check_branch
    %14 = sbr.rel (0) target = $region9
  $region8: #{postres_bottleneck_forward.9} parent=0 // pred_region
    _
  $region9: #{postres_bottleneck_forward.9} parent=0 // pred_fallthru
    _
  // Predicated region
  $region10: #{postres_bottleneck_forward.9} parent=0 // pred_check
    _
  $region11: #{postres_bottleneck_forward.9} parent=0 // pred_check_branch
    %16 = sbr.rel (0) target = $region13
  $region12: #{postres_bottleneck_forward.9} parent=0 // pred_region
    _
  $region13: #{postres_bottleneck_forward.9} parent=0 // pred_fallthru
    _
  // Predicated region
  $region14: #{postres_bottleneck_forward.9} parent=0 // pred_check
    _
  $region15: #{postres_bottleneck_forward.9} parent=0 // pred_check_branch
    %18 = sbr.rel (0) target = $region17
  $region16: #{postres_bottleneck_forward.9} parent=0 // pred_region
    _
  $region17: #{postres_bottleneck_forward.9} parent=0 // pred_fallthru
    _
  // Predicated region
  $region18: #{postres_bottleneck_forward.9} parent=0 // pred_check
    _
  $region19: #{postres_bottleneck_forward.9} parent=0 // pred_check_branch
    %20 = sbr.rel (0) target = $region21
  $region20: #{postres_bottleneck_forward.9} parent=0 // pred_region
    _
  $region21: #{postres_bottleneck_forward.9} parent=0 // pred_fallthru
    _
  // Predicated region
  $region22: #{postres_bottleneck_forward.9} parent=0 // pred_check
    _
  $region23: #{postres_bottleneck_forward.9} parent=0 // pred_check_branch
    %22 = sbr.rel (0) target = $region25
  $region24: #{postres_bottleneck_forward.9} parent=0 // pred_region
    _
  $region25: #{postres_bottleneck_forward.9} parent=0 // pred_fallthru
    _
  %v23 = vld [vmem:[%s0] sm:$0xf]
  %v24 = vld [vmem:[%s0 + $0x4] sm:$0xf]
  %v25 = vld [vmem:[%s0 + $0x8] sm:$0xf]
  %v26 = vld [vmem:[%s0 + $0xc] sm:$0xf]
  %v27 = vld [vmem:[%s0 + $0x10] sm:$0xf]
  %v28 = vld [vmem:[%s0 + $0x14] sm:$0xf]
  %v29 = vld [vmem:[%s0 + $0x18] sm:$0xf]
  %v30 = vld [vmem:[%s0 + $0x1c] sm:$0xf]
  %v31 = vld [vmem:[%s0 + $0x20] sm:$0xf]
  %v32 = vld [vmem:[%s0 + $0x24] sm:$0xf]
  %v33 = vld [vmem:[%s0 + $0x28] sm:$0xf]
  %v34 = vld [vmem:[%s0 + $0x2c] sm:$0xf]
  %v35 = vld [vmem:[%s0 + $0x30] sm:$0xf]
  %v36 = vld [vmem:[%s0 + $0x34] sm:$0xf]
  %v37 = vld [vmem:[%s0 + $0x38] sm:$0xf]
  %v38 = vld [vmem:[%s0 + $0x3c] sm:$0xf]
  %v39 = vunpack.c.l.bf16 %v23
  %v40 = vunpack.c.l.bf16 %v24
  %v41 = vunpack.c.l.bf16 %v25
  %v42 = vunpack.c.l.bf16 %v26
  %v43 = vunpack.c.l.bf16 %v27
  %v44 = vunpack.c.l.bf16 %v28
  %v45 = vunpack.c.l.bf16 %v29
  %v46 = vunpack.c.l.bf16 %v30
  %v47 = vunpack.c.l.bf16 %v31
  %v48 = vunpack.c.l.bf16 %v32
  %v49 = vunpack.c.l.bf16 %v33
  %v50 = vunpack.c.l.bf16 %v34
  %v51 = vunpack.c.l.bf16 %v35
  %v52 = vunpack.c.l.bf16 %v36
  %v53 = vunpack.c.l.bf16 %v37
  %v54 = vunpack.c.l.bf16 %v38
  %v55 = vld [vmem:[%s1] sm:$0x1]
  %v57 = vperm.slane %v55, 0
  %v59 = vmul.f32 %v39, %v57
  %v60 = vmul.f32 %v40, %v57
  %v61 = vmul.f32 %v41, %v57
  %v62 = vmul.f32 %v42, %v57
  %v63 = vmul.f32 %v43, %v57
  %v64 = vmul.f32 %v44, %v57
  %v65 = vmul.f32 %v45, %v57
  %v66 = vmul.f32 %v46, %v57
  %v67 = vmul.f32 %v47, %v57
  %v68 = vmul.f32 %v48, %v57
  %v69 = vmul.f32 %v49, %v57
  %v70 = vmul.f32 %v50, %v57
  %v71 = vmul.f32 %v51, %v57
  %v72 = vmul.f32 %v52, %v57
  %v73 = vmul.f32 %v53, %v57
  %v74 = vmul.f32 %v54, %v57
  %v75 = vld [vmem:[%s2] sm:$0x1]
  %v77 = vperm.slane %v75, 0
  %v79 = vadd.f32 %v59, %v77
  %v80 = vadd.f32 %v60, %v77
  %v81 = vadd.f32 %v61, %v77
  %v82 = vadd.f32 %v62, %v77
  %v83 = vadd.f32 %v63, %v77
  %v84 = vadd.f32 %v64, %v77
  %v85 = vadd.f32 %v65, %v77
  %v86 = vadd.f32 %v66, %v77
  %v87 = vadd.f32 %v67, %v77
  %v88 = vadd.f32 %v68, %v77
  %v89 = vadd.f32 %v69, %v77
  %v90 = vadd.f32 %v70, %v77
  %v91 = vadd.f32 %v71, %v77
  %v92 = vadd.f32 %v72, %v77
  %v93 = vadd.f32 %v73, %v77
  %v94 = vadd.f32 %v74, %v77
  %v95 = vld [vmem:[%s3] sm:$0xf]
  %v96 = vld [vmem:[%s3 + $0x4] sm:$0xf]
  %v97 = vld [vmem:[%s3 + $0x8] sm:$0xf]
  %v98 = vld [vmem:[%s3 + $0xc] sm:$0xf]
  %v99 = vld [vmem:[%s3 + $0x10] sm:$0xf]
  %v100 = vld [vmem:[%s3 + $0x14] sm:$0xf]
  %v101 = vld [vmem:[%s3 + $0x18] sm:$0xf]
  %v102 = vld [vmem:[%s3 + $0x1c] sm:$0xf]
  %v103 = vld [vmem:[%s3 + $0x20] sm:$0xf]
  %v104 = vld [vmem:[%s3 + $0x24] sm:$0xf]
  %v105 = vld [vmem:[%s3 + $0x28] sm:$0xf]
  %v106 = vld [vmem:[%s3 + $0x2c] sm:$0xf]
  %v107 = vld [vmem:[%s3 + $0x30] sm:$0xf]
  %v108 = vld [vmem:[%s3 + $0x34] sm:$0xf]
  %v109 = vld [vmem:[%s3 + $0x38] sm:$0xf]
  %v110 = vld [vmem:[%s3 + $0x3c] sm:$0xf]
  %v111 = vunpack.c.l.bf16 %v95
  %v112 = vunpack.c.l.bf16 %v96
  %v113 = vunpack.c.l.bf16 %v97
  %v114 = vunpack.c.l.bf16 %v98
  %v115 = vunpack.c.l.bf16 %v99
  %v116 = vunpack.c.l.bf16 %v100
  %v117 = vunpack.c.l.bf16 %v101
  %v118 = vunpack.c.l.bf16 %v102
  %v119 = vunpack.c.l.bf16 %v103
  %v120 = vunpack.c.l.bf16 %v104
  %v121 = vunpack.c.l.bf16 %v105
  %v122 = vunpack.c.l.bf16 %v106
  %v123 = vunpack.c.l.bf16 %v107
  %v124 = vunpack.c.l.bf16 %v108
  %v125 = vunpack.c.l.bf16 %v109
  %v126 = vunpack.c.l.bf16 %v110
  %v127 = vld [vmem:[%s4] sm:$0x1]
  %v129 = vperm.slane %v127, 0
  %v131 = vmul.f32 %v111, %v129
  %v132 = vmul.f32 %v112, %v129
  %v133 = vmul.f32 %v113, %v129
  %v134 = vmul.f32 %v114, %v129
  %v135 = vmul.f32 %v115, %v129
  %v136 = vmul.f32 %v116, %v129
  %v137 = vmul.f32 %v117, %v129
  %v138 = vmul.f32 %v118, %v129
  %v139 = vmul.f32 %v119, %v129
  %v140 = vmul.f32 %v120, %v129
  %v141 = vmul.f32 %v121, %v129
  %v142 = vmul.f32 %v122, %v129
  %v143 = vmul.f32 %v123, %v129
  %v144 = vmul.f32 %v124, %v129
  %v145 = vmul.f32 %v125, %v129
  %v146 = vmul.f32 %v126, %v129
  %v147 = vld [vmem:[%s5] sm:$0x1]
  %v149 = vperm.slane %v147, 0
  %v151 = vadd.f32 %v131, %v149
  %v152 = vadd.f32 %v132, %v149
  %v153 = vadd.f32 %v133, %v149
  %v154 = vadd.f32 %v134, %v149
  %v155 = vadd.f32 %v135, %v149
  %v156 = vadd.f32 %v136, %v149
  %v157 = vadd.f32 %v137, %v149
  %v158 = vadd.f32 %v138, %v149
  %v159 = vadd.f32 %v139, %v149
  %v160 = vadd.f32 %v140, %v149
  %v161 = vadd.f32 %v141, %v149
  %v162 = vadd.f32 %v142, %v149
  %v163 = vadd.f32 %v143, %v149
  %v164 = vadd.f32 %v144, %v149
  %v165 = vadd.f32 %v145, %v149
  %v166 = vadd.f32 %v146, %v149
  %v167 = vadd.f32 %v79, %v151
  %v168 = vadd.f32 %v80, %v152
  %v169 = vadd.f32 %v81, %v153
  %v170 = vadd.f32 %v82, %v154
  %v171 = vadd.f32 %v83, %v155
  %v172 = vadd.f32 %v84, %v156
  %v173 = vadd.f32 %v85, %v157
  %v174 = vadd.f32 %v86, %v158
  %v175 = vadd.f32 %v87, %v159
  %v176 = vadd.f32 %v88, %v160
  %v177 = vadd.f32 %v89, %v161
  %v178 = vadd.f32 %v90, %v162
  %v179 = vadd.f32 %v91, %v163
  %v180 = vadd.f32 %v92, %v164
  %v181 = vadd.f32 %v93, %v165
  %v182 = vadd.f32 %v94, %v166
  %v183 = vmax.f32 %v167, 0.0
  %v184 = vmax.f32 %v168, 0.0
  %v185 = vmax.f32 %v169, 0.0
  %v186 = vmax.f32 %v170, 0.0
  %v187 = vmax.f32 %v171, 0.0
  %v188 = vmax.f32 %v172, 0.0
  %v189 = vmax.f32 %v173, 0.0
  %v190 = vmax.f32 %v174, 0.0
  %v191 = vmax.f32 %v175, 0.0
  %v192 = vmax.f32 %v176, 0.0
  %v193 = vmax.f32 %v177, 0.0
  %v194 = vmax.f32 %v178, 0.0
  %v195 = vmax.f32 %v179, 0.0
  %v196 = vmax.f32 %v180, 0.0
  %v197 = vmax.f32 %v181, 0.0
  %v198 = vmax.f32 %v182, 0.0
  %199 = vst [vmem:[%s6] sm:$0xff] %v183
  %200 = vst [vmem:[%s6 + $0x8] sm:$0xff] %v184
  %201 = vst [vmem:[%s6 + $0x10] sm:$0xff] %v185
  %202 = vst [vmem:[%s6 + $0x18] sm:$0xff] %v186
  %203 = vst [vmem:[%s6 + $0x20] sm:$0xff] %v187
  %204 = vst [vmem:[%s6 + $0x28] sm:$0xff] %v188
  %205 = vst [vmem:[%s6 + $0x30] sm:$0xff] %v189
  %206 = vst [vmem:[%s6 + $0x38] sm:$0xff] %v190
  %207 = vst [vmem:[%s6 + $0x40] sm:$0xff] %v191
  %208 = vst [vmem:[%s6 + $0x48] sm:$0xff] %v192
  %209 = vst [vmem:[%s6 + $0x50] sm:$0xff] %v193
  %210 = vst [vmem:[%s6 + $0x58] sm:$0xff] %v194
  %211 = vst [vmem:[%s6 + $0x60] sm:$0xff] %v195
  %212 = vst [vmem:[%s6 + $0x68] sm:$0xff] %v196
  %213 = vst [vmem:[%s6 + $0x70] sm:$0xff] %v197
  %214 = vst [vmem:[%s6 + $0x78] sm:$0xff] %v198
  // Predicated region
  $region26: #{postres_bottleneck_forward.9} parent=0 // pred_check
    _
  $region27: #{postres_bottleneck_forward.9} parent=0 // pred_check_branch
    %216 = sbr.rel (0) target = $region29
  $region28: #{postres_bottleneck_forward.9} parent=0 // pred_region
    _
  $region29: #{postres_bottleneck_forward.9} parent=0 // pred_fallthru
    _
  // Predicated region
  $region30: #{postres_bottleneck_forward.9} parent=0 // pred_check
    _
  $region31: #{postres_bottleneck_forward.9} parent=0 // pred_check_branch
    %218 = sbr.rel (0) target = $region33
  $region32: #{postres_bottleneck_forward.9} parent=0 // pred_region
    _
  $region33: #{postres_bottleneck_forward.9} parent=0 // pred_fallthru
    _

// kernel: postres_bottleneck_forward.7
$region0: #{postres_bottleneck_forward.7}
  #allocation0 [shape = 'u32[]', space=smem, size = 0x4, offset = 0x4, fixed_abs, tag = 'smem constant byte address 0x4 - core index']
  #allocation1 [shape = 'u32[72,128]{1,0:T(1,128)}', space=vmem, size = 0x9000, scoped, tag = 'internal scratch']
  %s0 = inlined_call_operand.vmem [shape: bf16[2,18,9,288], index: 0, kind: input, shape index: {}, may-alias: {0,1,2}]
  %s1 = inlined_call_operand.vmem [shape: bf16[2,18,9,288], index: 1, kind: input, shape index: {}, may-alias: {0,1,2}]
  %s2 = inlined_call_operand.vmem [shape: bf16[2,18,9,288], index: 2, kind: input, shape index: {}, may-alias: {0,1,2}]
  %s3 = inlined_call_operand.vmem [shape: bf16[27,256,64], index: 3, kind: input, shape index: {}]
  %s4 = inlined_call_operand.vmem [shape: bf16[2,8,8,64], index: 4, kind: output, shape index: {0}]
  %s5 = inlined_call_operand.vmem [shape: f32[2,8,1,64], index: 5, kind: output, shape index: {1}]
  %s6 = inlined_call_operand.vmem [shape: f32[2,8,1,64], index: 6, kind: output, shape index: {2}]
  %7 = xla_tuple %s4, %s5, %s6
  %s8 = sld [smem:[#allocation0]]
  $region65: #{postres_bottleneck_forward.7} parent=0
    _
  %s10 = ssub.s32 1, %s8
  %s11 = scalar_select 0, %s10, %s8
  loop: start=0, step=1, limit=18
  $region2: #{postres_bottleneck_forward.7} parent=0 // loop_pre_header
    _
  $region3: #{postres_bottleneck_forward.7} parent=0 // loop_header
    %s13 = sphi 0, %s17
    %p14 = scmp.ge.s32.totalorder %s13, 18
    %s20 = sphi 0, %s32
    %s21 = sphi 0, %s28
    %s22 = sphi 0, %s20
    %s23 = sphi 0, %s21
    %s24 = sphi 0, %s22
    %s25 = sphi 0, %s23
    %s39 = sphi 0, %s41
    %s42 = sphi 0, %s39
    %s43 = sphi 0, %s42
    %s59 = sphi 0, %s43
    %s71 = sphi 0, %s73
    %s74 = sphi 0, %s71
    %s75 = sphi 0, %s74
    %s91 = sphi 0, %s75
    %s103 = sphi 0, %s105
    %s106 = sphi 0, %s103
    %s107 = sphi 0, %s106
    %s123 = sphi 0, %s107
    %s127 = sphi 0, %s127
    %s129 = sphi 0, %s127
    %s130 = sphi 0, %s129
    %s144 = sphi 0, %s130
    %s152 = sphi 0, %s154
    %s155 = sphi 0, %s152
    %s156 = sphi 0, %s155
    %s172 = sphi 0, %s156
    %s180 = sphi 0, %s182
    %s183 = sphi 0, %s180
    %s184 = sphi 0, %s183
    %s200 = sphi 0, %s184
    %s208 = sphi 0, %s210
    %s211 = sphi 0, %s208
    %s212 = sphi 0, %s211
    %s228 = sphi 0, %s212
  $region4: #{postres_bottleneck_forward.7} parent=0 // loop_header_branch
    %16 = sbr.rel (%p14) target = $region8
  $region5: #{postres_bottleneck_forward.7} parent=0 // loop_body
    %s18 = ssub.s32 %s13, 1
    %s19 = ssub.s32 %s13, 2
    %s26 = sadd.s32 1, %s21
    %p27 = scmp.ge.s32.totalorder %s26, 8
    %s28 = scalar_select %p27, 0, %s26
    %s29 = sadd.s32 1, %s20
    %s30 = scalar_select %p27, %s29, %s20
    %p31 = scmp.ge.s32.totalorder %s30, 2
    %s32 = scalar_select %p31, 0, %s30
    %s33 = smul.u32 %s21, 2
    %s34 = smul.u32 %s28, 2
    %s35 = ssub.s32 %s20, %s32
    %s36 = ssub.s32 %s33, %s34
    %s37 = sor.u32 %s35, %s36
    %p38 = scmp.eq.s32.totalorder %s37, 0
    %s40 = sadd.s32 %s39, 1
    %s41 = scalar_select %p38, %s39, %s40
    %p44 = pneg %p38
    %p45 = scmp.eq.s32.totalorder %s13, 15
    %p46 = por %p44, %p45
    %p47 = scmp.ne.s32.totalorder %s39, %s42
    %p48 = scmp.eq.s32.totalorder %s13, 0
    %p49 = por %p47, %p48
    %p50 = scmp.ne.s32.totalorder %s39, %s42
    %p51 = scmp.eq.s32.totalorder %s18, 15
    %p52 = por %p50, %p51
    %p53 = scmp.ne.s32.totalorder %s42, %s43
    %p54 = scmp.eq.s32.totalorder %s18, 0
    %p55 = por %p53, %p54
    %p56 = scmp.ne.s32.totalorder %s42, %s43
    %p57 = scmp.eq.s32.totalorder %s19, 15
    %p58 = por %p56, %p57
    %p60 = scmp.ne.s32.totalorder %s43, %s59
    %p61 = scmp.eq.s32.totalorder %s19, 0
    %p62 = por %p60, %p61
    %s63 = smul.u32 %s21, 2
    %s64 = sadd.s32 %s63, 1
    %s65 = smul.u32 %s28, 2
    %s66 = sadd.s32 %s65, 1
    %s67 = ssub.s32 %s20, %s32
    %s68 = ssub.s32 %s64, %s66
    %s69 = sor.u32 %s67, %s68
    %p70 = scmp.eq.s32.totalorder %s69, 0
    %s72 = sadd.s32 %s71, 1
    %s73 = scalar_select %p70, %s71, %s72
    %p76 = pneg %p70
    %p77 = scmp.eq.s32.totalorder %s13, 15
    %p78 = por %p76, %p77
    %p79 = scmp.ne.s32.totalorder %s71, %s74
    %p80 = scmp.eq.s32.totalorder %s13, 0
    %p81 = por %p79, %p80
    %p82 = scmp.ne.s32.totalorder %s71, %s74
    %p83 = scmp.eq.s32.totalorder %s18, 15
    %p84 = por %p82, %p83
    %p85 = scmp.ne.s32.totalorder %s74, %s75
    %p86 = scmp.eq.s32.totalorder %s18, 0
    %p87 = por %p85, %p86
    %p88 = scmp.ne.s32.totalorder %s74, %s75
    %p89 = scmp.eq.s32.totalorder %s19, 15
    %p90 = por %p88, %p89
    %p92 = scmp.ne.s32.totalorder %s75, %s91
    %p93 = scmp.eq.s32.totalorder %s19, 0
    %p94 = por %p92, %p93
    %s95 = smul.u32 %s21, 2
    %s96 = sadd.s32 %s95, 2
    %s97 = smul.u32 %s28, 2
    %s98 = sadd.s32 %s97, 2
    %s99 = ssub.s32 %s20, %s32
    %s100 = ssub.s32 %s96, %s98
    %s101 = sor.u32 %s99, %s100
    %p102 = scmp.eq.s32.totalorder %s101, 0
    %s104 = sadd.s32 %s103, 1
    %s105 = scalar_select %p102, %s103, %s104
    %p108 = pneg %p102
    %p109 = scmp.eq.s32.totalorder %s13, 15
    %p110 = por %p108, %p109
    %p111 = scmp.ne.s32.totalorder %s103, %s106
    %p112 = scmp.eq.s32.totalorder %s13, 0
    %p113 = por %p111, %p112
    %p114 = scmp.ne.s32.totalorder %s103, %s106
    %p115 = scmp.eq.s32.totalorder %s18, 15
    %p116 = por %p114, %p115
    %p117 = scmp.ne.s32.totalorder %s106, %s107
    %p118 = scmp.eq.s32.totalorder %s18, 0
    %p119 = por %p117, %p118
    %p120 = scmp.ne.s32.totalorder %s106, %s107
    %p121 = scmp.eq.s32.totalorder %s19, 15
    %p122 = por %p120, %p121
    %p124 = scmp.ne.s32.totalorder %s107, %s123
    %p125 = scmp.eq.s32.totalorder %s19, 0
    %p126 = por %p124, %p125
    %s128 = sadd.s32 %s127, 1
    %p131 = scmp.eq.s32.totalorder %s13, 15
    %p132 = scmp.ne.s32.totalorder %s127, %s129
    %p133 = scmp.eq.s32.totalorder %s13, 0
    %p134 = por %p132, %p133
    %p135 = scmp.ne.s32.totalorder %s127, %s129
    %p136 = scmp.eq.s32.totalorder %s18, 15
    %p137 = por %p135, %p136
    %p138 = scmp.ne.s32.totalorder %s129, %s130
    %p139 = scmp.eq.s32.totalorder %s18, 0
    %p140 = por %p138, %p139
    %p141 = scmp.ne.s32.totalorder %s129, %s130
    %p142 = scmp.eq.s32.totalorder %s19, 15
    %p143 = por %p141, %p142
    %p145 = scmp.ne.s32.totalorder %s130, %s144
    %p146 = scmp.eq.s32.totalorder %s19, 0
    %p147 = por %p145, %p146
    %s148 = ssub.s32 %s20, %s32
    %s149 = ssub.s32 %s21, %s28
    %s150 = sor.u32 %s148, %s149
    %p151 = scmp.eq.s32.totalorder %s150, 0
    %s153 = sadd.s32 %s152, 1
    %s154 = scalar_select %p151, %s152, %s153
    %p157 = pneg %p151
    %p158 = scmp.eq.s32.totalorder %s13, 15
    %p159 = por %p157, %p158
    %p160 = scmp.ne.s32.totalorder %s152, %s155
    %p161 = scmp.eq.s32.totalorder %s13, 0
    %p162 = por %p160, %p161
    %p163 = scmp.ne.s32.totalorder %s152, %s155
    %p164 = scmp.eq.s32.totalorder %s18, 15
    %p165 = por %p163, %p164
    %p166 = scmp.ne.s32.totalorder %s155, %s156
    %p167 = scmp.eq.s32.totalorder %s18, 0
    %p168 = por %p166, %p167
    %p169 = scmp.ne.s32.totalorder %s155, %s156
    %p170 = scmp.eq.s32.totalorder %s19, 15
    %p171 = por %p169, %p170
    %p173 = scmp.ne.s32.totalorder %s156, %s172
    %p174 = scmp.eq.s32.totalorder %s19, 0
    %p175 = por %p173, %p174
    %s176 = ssub.s32 %s20, %s32
    %s177 = ssub.s32 %s21, %s28
    %s178 = sor.u32 %s176, %s177
    %p179 = scmp.eq.s32.totalorder %s178, 0
    %s181 = sadd.s32 %s180, 1
    %s182 = scalar_select %p179, %s180, %s181
    %p185 = pneg %p179
    %p186 = scmp.eq.s32.totalorder %s13, 15
    %p187 = por %p185, %p186
    %p188 = scmp.ne.s32.totalorder %s180, %s183
    %p189 = scmp.eq.s32.totalorder %s13, 0
    %p190 = por %p188, %p189
    %p191 = scmp.ne.s32.totalorder %s180, %s183
    %p192 = scmp.eq.s32.totalorder %s18, 15
    %p193 = por %p191, %p192
    %p194 = scmp.ne.s32.totalorder %s183, %s184
    %p195 = scmp.eq.s32.totalorder %s18, 0
    %p196 = por %p194, %p195
    %p197 = scmp.ne.s32.totalorder %s183, %s184
    %p198 = scmp.eq.s32.totalorder %s19, 15
    %p199 = por %p197, %p198
    %p201 = scmp.ne.s32.totalorder %s184, %s200
    %p202 = scmp.eq.s32.totalorder %s19, 0
    %p203 = por %p201, %p202
    %s204 = ssub.s32 %s20, %s32
    %s205 = ssub.s32 %s21, %s28
    %s206 = sor.u32 %s204, %s205
    %p207 = scmp.eq.s32.totalorder %s206, 0
    %s209 = sadd.s32 %s208, 1
    %s210 = scalar_select %p207, %s208, %s209
    %p213 = pneg %p207
    %p214 = scmp.eq.s32.totalorder %s13, 15
    %p215 = por %p213, %p214
    %p216 = scmp.ne.s32.totalorder %s208, %s211
    %p217 = scmp.eq.s32.totalorder %s13, 0
    %p218 = por %p216, %p217
    %p219 = scmp.ne.s32.totalorder %s208, %s211
    %p220 = scmp.eq.s32.totalorder %s18, 15
    %p221 = por %p219, %p220
    %p222 = scmp.ne.s32.totalorder %s211, %s212
    %p223 = scmp.eq.s32.totalorder %s18, 0
    %p224 = por %p222, %p223
    %p225 = scmp.ne.s32.totalorder %s211, %s212
    %p226 = scmp.eq.s32.totalorder %s19, 15
    %p227 = por %p225, %p226
    %p229 = scmp.ne.s32.totalorder %s212, %s228
    %p230 = scmp.eq.s32.totalorder %s19, 0
    %p231 = por %p229, %p230
    %p232 = scmp.le.s32.totalorder 1, %s13
    %p233 = scmp.lt.s32.totalorder %s13, 17
    %p234 = pnand %p232, %p233
    %p235 = pneg %p234
    // Predicated region
    $region9: #{postres_bottleneck_forward.7} parent=5 // pred_check
      _
    $region10: #{postres_bottleneck_forward.7} parent=5 // pred_check_branch
      %237 = sbr.rel (%p234) target = $region12
    $region11: #{postres_bottleneck_forward.7} parent=5 // pred_region
      %s238 = ssub.s32 %s13, 1
      // Predicated region
      $region13: #{postres_bottleneck_forward.7} parent=11 // pred_check
        %p239 = pneg %p140
      $region14: #{postres_bottleneck_forward.7} parent=11 // pred_check_branch
        %241 = sbr.rel (%p239) target = $region16
      $region15: #{postres_bottleneck_forward.7} parent=11 // pred_region
        _
      $region16: #{postres_bottleneck_forward.7} parent=11 // pred_fallthru
        _
    $region12: #{postres_bottleneck_forward.7} parent=5 // pred_fallthru
      _
    %p242 = scmp.lt.s32.totalorder %s13, 16
    // Predicated region
    $region17: #{postres_bottleneck_forward.7} parent=5 // pred_check
      %p243 = pneg %p242
    $region18: #{postres_bottleneck_forward.7} parent=5 // pred_check_branch
      %245 = sbr.rel (%p243) target = $region20
    $region19: #{postres_bottleneck_forward.7} parent=5 // pred_region
      // Predicated region
      $region21: #{postres_bottleneck_forward.7} parent=19 // pred_check
        %p246 = pneg %p49
      $region22: #{postres_bottleneck_forward.7} parent=19 // pred_check_branch
        %248 = sbr.rel (%p246) target = $region24
      $region23: #{postres_bottleneck_forward.7} parent=19 // pred_region
        %s249 = smul.u32 %s21, 2
        %p250 = scmp.lt.s32.totalorder %s20, 1
        %s251 = scalar_select %p250, %s20, 1
        %p252 = scmp.lt.s32.totalorder %s249, 17
        %s253 = scalar_select %p252, %s249, 17
        %s254 = smul.addr %s253, 6
        %s255 = smul.addr %s251, 108
        %s256 = sadd.s32 %s254, %s255
        %s257 = smul.addr %s256, 4
        %s258 = scalar_lea.vmem %s0, %s257
        %s259 = smul.u32 %s21, 2
      $region24: #{postres_bottleneck_forward.7} parent=19 // pred_fallthru
        _
      // Predicated region
      $region25: #{postres_bottleneck_forward.7} parent=19 // pred_check
        %p260 = pneg %p81
      $region26: #{postres_bottleneck_forward.7} parent=19 // pred_check_branch
        %262 = sbr.rel (%p260) target = $region28
      $region27: #{postres_bottleneck_forward.7} parent=19 // pred_region
        %s263 = smul.u32 %s21, 2
        %s264 = sadd.s32 %s263, 1
        %p265 = scmp.lt.s32.totalorder %s20, 1
        %s266 = scalar_select %p265, %s20, 1
        %p267 = scmp.lt.s32.totalorder %s264, 17
        %s268 = scalar_select %p267, %s264, 17
        %s269 = smul.addr %s268, 6
        %s270 = smul.addr %s266, 108
        %s271 = sadd.s32 %s269, %s270
        %s272 = smul.addr %s271, 4
        %s273 = scalar_lea.vmem %s1, %s272
        %s274 = smul.u32 %s21, 2
        %s275 = sadd.s32 %s274, 1
      $region28: #{postres_bottleneck_forward.7} parent=19 // pred_fallthru
        _
      // Predicated region
      $region29: #{postres_bottleneck_forward.7} parent=19 // pred_check
        %p276 = pneg %p113
      $region30: #{postres_bottleneck_forward.7} parent=19 // pred_check_branch
        %278 = sbr.rel (%p276) target = $region32
      $region31: #{postres_bottleneck_forward.7} parent=19 // pred_region
        %s279 = smul.u32 %s21, 2
        %s280 = sadd.s32 %s279, 2
        %p281 = scmp.lt.s32.totalorder %s20, 1
        %s282 = scalar_select %p281, %s20, 1
        %p283 = scmp.lt.s32.totalorder %s280, 17
        %s284 = scalar_select %p283, %s280, 17
        %s285 = smul.addr %s284, 6
        %s286 = smul.addr %s282, 108
        %s287 = sadd.s32 %s285, %s286
        %s288 = smul.addr %s287, 4
        %s289 = scalar_lea.vmem %s2, %s288
        %s290 = smul.u32 %s21, 2
        %s291 = sadd.s32 %s290, 2
      $region32: #{postres_bottleneck_forward.7} parent=19 // pred_fallthru
        _
    $region20: #{postres_bottleneck_forward.7} parent=5 // pred_fallthru
      _
    %p292 = scmp.le.s32.totalorder 1, %s13
    %p293 = scmp.lt.s32.totalorder %s13, 17
    %p294 = pnand %p292, %p293
    %p295 = pneg %p294
    // Predicated region
    $region33: #{postres_bottleneck_forward.7} parent=5 // pred_check
      _
    $region34: #{postres_bottleneck_forward.7} parent=5 // pred_check_branch
      %297 = sbr.rel (%p294) target = $region36
    $region35: #{postres_bottleneck_forward.7} parent=5 // pred_region
      %s298 = ssub.s32 %s13, 1
      %s299 = smul.u32 %s23, 2
      %p300 = scmp.lt.s32.totalorder %s22, 1
      %s301 = scalar_select %p300, %s22, 1
      %p302 = scmp.lt.s32.totalorder %s299, 17
      %s303 = scalar_select %p302, %s299, 17
      %s304 = smul.addr %s303, 6
      %s305 = smul.addr %s301, 108
      %s306 = sadd.s32 %s304, %s305
      %s307 = smul.addr %s306, 4
      %s308 = scalar_lea.vmem %s0, %s307
      %p309 = pneg %p55
      %p310 = pneg %p52
      %s311 = smul.u32 %s23, 2
      %s312 = sadd.s32 %s311, 1
      %p313 = scmp.lt.s32.totalorder %s22, 1
      %s314 = scalar_select %p313, %s22, 1
      %p315 = scmp.lt.s32.totalorder %s312, 17
      %s316 = scalar_select %p315, %s312, 17
      %s317 = smul.addr %s316, 6
      %s318 = smul.addr %s314, 108
      %s319 = sadd.s32 %s317, %s318
      %s320 = smul.addr %s319, 4
      %s321 = scalar_lea.vmem %s1, %s320
      %p322 = pneg %p87
      %p323 = pneg %p84
      %s324 = smul.u32 %s23, 2
      %s325 = sadd.s32 %s324, 2
      %p326 = scmp.lt.s32.totalorder %s22, 1
      %s327 = scalar_select %p326, %s22, 1
      %p328 = scmp.lt.s32.totalorder %s325, 17
      %s329 = scalar_select %p328, %s325, 17
      %s330 = smul.addr %s329, 6
      %s331 = smul.addr %s327, 108
      %s332 = sadd.s32 %s330, %s331
      %s333 = smul.addr %s332, 4
      %s334 = scalar_lea.vmem %s2, %s333
      %p335 = pneg %p119
      %p336 = pneg %p116
      %p337 = pneg %p140
      %p338 = pneg %p137
      %p339 = pneg %p168
      %p340 = pneg %p165
      %p341 = scmp.lt.s32.totalorder %s22, 1
      %s342 = scalar_select %p341, %s22, 1
      %p343 = scmp.lt.s32.totalorder %s23, 7
      %s344 = scalar_select %p343, %s23, 7
      %s345 = smul.addr %s342, 8
      %s346 = sadd.s32 %s344, %s345
      %s347 = smul.addr %s346, 4
      %s348 = scalar_lea.vmem %s4, %s347
      %p349 = pneg %p196
      %p350 = pneg %p193
      %p351 = scmp.lt.s32.totalorder %s22, 1
      %s352 = scalar_select %p351, %s22, 1
      %p353 = scmp.lt.s32.totalorder %s23, 7
      %s354 = scalar_select %p353, %s23, 7
      %s355 = smul.addr %s352, 8
      %s356 = sadd.s32 %s354, %s355
      %s357 = scalar_lea.vmem %s5, %s356
      %p358 = pneg %p224
      %p359 = pneg %p221
      %p360 = scmp.lt.s32.totalorder %s22, 1
      %s361 = scalar_select %p360, %s22, 1
      %p362 = scmp.lt.s32.totalorder %s23, 7
      %s363 = scalar_select %p362, %s23, 7
      %s364 = smul.addr %s361, 8
      %s365 = sadd.s32 %s363, %s364
      %s366 = scalar_lea.vmem %s6, %s365
      %s367 = smul.u32 %s23, 2
      %p368 = scmp.lt.s32.totalorder %s22, 1
      %s369 = scalar_select %p368, %s22, 1
      %p370 = scmp.lt.s32.totalorder %s367, 17
      %s371 = scalar_select %p370, %s367, 17
      %s372 = smul.addr %s371, 6
      %s373 = smul.addr %s369, 108
      %s374 = sadd.s32 %s372, %s373
      %s375 = smul.addr %s374, 4
      %s376 = scalar_lea.vmem %s0, %s375
      %s377 = smul.u32 %s23, 2
      %s378 = smul.u32 %s23, 2
      %s379 = sadd.s32 %s378, 1
      %p380 = scmp.lt.s32.totalorder %s22, 1
      %s381 = scalar_select %p380, %s22, 1
      %p382 = scmp.lt.s32.totalorder %s379, 17
      %s383 = scalar_select %p382, %s379, 17
      %s384 = smul.addr %s383, 6
      %s385 = smul.addr %s381, 108
      %s386 = sadd.s32 %s384, %s385
      %s387 = smul.addr %s386, 4
      %s388 = scalar_lea.vmem %s1, %s387
      %s389 = smul.u32 %s23, 2
      %s390 = sadd.s32 %s389, 1
      %s391 = smul.u32 %s23, 2
      %s392 = sadd.s32 %s391, 2
      %p393 = scmp.lt.s32.totalorder %s22, 1
      %s394 = scalar_select %p393, %s22, 1
      %p395 = scmp.lt.s32.totalorder %s392, 17
      %s396 = scalar_select %p395, %s392, 17
      %s397 = smul.addr %s396, 6
      %s398 = smul.addr %s394, 108
      %s399 = sadd.s32 %s397, %s398
      %s400 = smul.addr %s399, 4
      %s401 = scalar_lea.vmem %s2, %s400
      %s402 = smul.u32 %s23, 2
      %s403 = sadd.s32 %s402, 2
      %p404 = scmp.lt.s32.totalorder %s22, 1
      %s405 = scalar_select %p404, %s22, 1
      %p406 = scmp.lt.s32.totalorder %s23, 7
      %s407 = scalar_select %p406, %s23, 7
      %s408 = smul.addr %s405, 8
      %s409 = sadd.s32 %s407, %s408
      %s410 = smul.addr %s409, 4
      %s411 = scalar_lea.vmem %s4, %s410
      %p412 = scmp.lt.s32.totalorder %s22, 1
      %s413 = scalar_select %p412, %s22, 1
      %p414 = scmp.lt.s32.totalorder %s23, 7
      %s415 = scalar_select %p414, %s23, 7
      %s416 = smul.addr %s413, 8
      %s417 = sadd.s32 %s415, %s416
      %s418 = scalar_lea.vmem %s5, %s417
      %p419 = scmp.lt.s32.totalorder %s22, 1
      %s420 = scalar_select %p419, %s22, 1
      %p421 = scmp.lt.s32.totalorder %s23, 7
      %s422 = scalar_select %p421, %s23, 7
      %s423 = smul.addr %s420, 8
      %s424 = sadd.s32 %s422, %s423
      %s425 = scalar_lea.vmem %s6, %s424
      %v426 = vld [vmem:[%s376] sm:$0xff]
      %v427 = vld [vmem:[%s376 + $0x8] sm:$0xf]
      %v428 = vld [vmem:[%s376 + $0xc] sm:$0x11]
      %v429 = vld [vmem:[%s376 + $0x14] sm:$0x1]
      %v430 = vld [vmem:[%s3] sm:$0xf]
      %v431 = vld [vmem:[%s3 + $0x4] sm:$0xf]
      %v432 = vld [vmem:[%s3 + $0x8] sm:$0xf]
      %v433 = vld [vmem:[%s3 + $0xc] sm:$0xf]
      %v434 = vld [vmem:[%s3 + $0x10] sm:$0xf]
      %v435 = vld [vmem:[%s3 + $0x14] sm:$0xf]
      %v436 = vld [vmem:[%s3 + $0x18] sm:$0xf]
      %v437 = vld [vmem:[%s3 + $0x1c] sm:$0xf]
      %v438 = vld [vmem:[%s3 + $0x20] sm:$0xf]
      %v439 = vld [vmem:[%s3 + $0x24] sm:$0xf]
      %v440 = vld [vmem:[%s3 + $0x28] sm:$0xf]
      %v441 = vld [vmem:[%s3 + $0x2c] sm:$0xf]
      %v442 = vld [vmem:[%s3 + $0x30] sm:$0xf]
      %v443 = vld [vmem:[%s3 + $0x34] sm:$0xf]
      %v444 = vld [vmem:[%s3 + $0x38] sm:$0xf]
      %v445 = vld [vmem:[%s3 + $0x3c] sm:$0xf]
      %v446 = vld [vmem:[%s3 + $0x40] sm:$0xf]
      %v447 = vld [vmem:[%s3 + $0x44] sm:$0xf]
      %v448 = vld [vmem:[%s3 + $0x48] sm:$0xf]
      %v449 = vld [vmem:[%s3 + $0x4c] sm:$0xf]
      %v450 = vld [vmem:[%s3 + $0x50] sm:$0xf]
      %v451 = vld [vmem:[%s3 + $0x54] sm:$0xf]
      %v452 = vld [vmem:[%s3 + $0x58] sm:$0xf]
      %v453 = vld [vmem:[%s3 + $0x5c] sm:$0xf]
      %v454 = vld [vmem:[%s3 + $0x60] sm:$0xf]
      %v455 = vld [vmem:[%s3 + $0x64] sm:$0xf]
      %v456 = vld [vmem:[%s3 + $0x68] sm:$0xf]
      %v457 = vld [vmem:[%s3 + $0x6c] sm:$0xf]
      %v458 = vld [vmem:[%s3 + $0x70] sm:$0xf]
      %v459 = vld [vmem:[%s3 + $0x74] sm:$0xf]
      %v460 = vld [vmem:[%s3 + $0x78] sm:$0xf]
      %v461 = vld [vmem:[%s3 + $0x7c] sm:$0xf]
      %s462 = scalar_lea.vmem %s3, 128
      %v463 = vld [vmem:[%s462] sm:$0xf]
      %v464 = vld [vmem:[%s462 + $0x4] sm:$0xf]
      %v465 = vld [vmem:[%s462 + $0x8] sm:$0xf]
      %v466 = vld [vmem:[%s462 + $0xc] sm:$0xf]
      %v467 = vld [vmem:[%s462 + $0x10] sm:$0xf]
      %v468 = vld [vmem:[%s462 + $0x14] sm:$0xf]
      %v469 = vld [vmem:[%s462 + $0x18] sm:$0xf]
      %v470 = vld [vmem:[%s462 + $0x1c] sm:$0xf]
      %v471 = vld [vmem:[%s462 + $0x20] sm:$0xf]
      %v472 = vld [vmem:[%s462 + $0x24] sm:$0xf]
      %v473 = vld [vmem:[%s462 + $0x28] sm:$0xf]
      %v474 = vld [vmem:[%s462 + $0x2c] sm:$0xf]
      %v475 = vld [vmem:[%s462 + $0x30] sm:$0xf]
      %v476 = vld [vmem:[%s462 + $0x34] sm:$0xf]
      %v477 = vld [vmem:[%s462 + $0x38] sm:$0xf]
      %v478 = vld [vmem:[%s462 + $0x3c] sm:$0xf]
      %v479 = vld [vmem:[%s462 + $0x40] sm:$0xf]
      %v480 = vld [vmem:[%s462 + $0x44] sm:$0xf]
      %v481 = vld [vmem:[%s462 + $0x48] sm:$0xf]
      %v482 = vld [vmem:[%s462 + $0x4c] sm:$0xf]
      %v483 = vld [vmem:[%s462 + $0x50] sm:$0xf]
      %v484 = vld [vmem:[%s462 + $0x54] sm:$0xf]
      %v485 = vld [vmem:[%s462 + $0x58] sm:$0xf]
      %v486 = vld [vmem:[%s462 + $0x5c] sm:$0xf]
      %v487 = vld [vmem:[%s462 + $0x60] sm:$0xf]
      %v488 = vld [vmem:[%s462 + $0x64] sm:$0xf]
      %v489 = vld [vmem:[%s462 + $0x68] sm:$0xf]
      %v490 = vld [vmem:[%s462 + $0x6c] sm:$0xf]
      %v491 = vld [vmem:[%s462 + $0x70] sm:$0xf]
      %v492 = vld [vmem:[%s462 + $0x74] sm:$0xf]
      %v493 = vld [vmem:[%s462 + $0x78] sm:$0xf]
      %v494 = vld [vmem:[%s462 + $0x7c] sm:$0xf]
      %v496 = vunpack.c.l.b16 %v426
      %v497 = vunpack.c.h.b16 %v426
      %v498 = vpack.c.b16 %v496, %v496
      %v499 = vpack.c.b16 %v497, %v497
      %v534 = vunpack.c.l.b16 %v463
      %v535 = vunpack.c.l.b16 %v464
      %v536 = vunpack.c.l.b16 %v465
      %v537 = vunpack.c.l.b16 %v466
      %v538 = vunpack.c.l.b16 %v467
      %v539 = vunpack.c.l.b16 %v468
      %v540 = vunpack.c.l.b16 %v469
      %v541 = vunpack.c.l.b16 %v470
      %v542 = vunpack.c.l.b16 %v471
      %v543 = vunpack.c.l.b16 %v472
      %v544 = vunpack.c.l.b16 %v473
      %v545 = vunpack.c.l.b16 %v474
      %v546 = vunpack.c.l.b16 %v475
      %v547 = vunpack.c.l.b16 %v476
      %v548 = vunpack.c.l.b16 %v477
      %v549 = vunpack.c.l.b16 %v478
      %v550 = vunpack.c.l.b16 %v479
      %v551 = vunpack.c.l.b16 %v480
      %v552 = vunpack.c.l.b16 %v481
      %v553 = vunpack.c.l.b16 %v482
      %v554 = vunpack.c.l.b16 %v483
      %v555 = vunpack.c.l.b16 %v484
      %v556 = vunpack.c.l.b16 %v485
      %v557 = vunpack.c.l.b16 %v486
      %v558 = vunpack.c.l.b16 %v487
      %v559 = vunpack.c.l.b16 %v488
      %v560 = vunpack.c.l.b16 %v489
      %v561 = vunpack.c.l.b16 %v490
      %v562 = vunpack.c.l.b16 %v491
      %v563 = vunpack.c.l.b16 %v492
      %v564 = vunpack.c.l.b16 %v493
      %v565 = vunpack.c.l.b16 %v494
      %v566 = vpack.c.b16 %v535, %v534
      %v567 = vpack.c.b16 %v537, %v536
      %v568 = vpack.c.b16 %v539, %v538
      %v569 = vpack.c.b16 %v541, %v540
      %v570 = vpack.c.b16 %v543, %v542
      %v571 = vpack.c.b16 %v545, %v544
      %v572 = vpack.c.b16 %v547, %v546
      %v573 = vpack.c.b16 %v549, %v548
      %v574 = vpack.c.b16 %v551, %v550
      %v575 = vpack.c.b16 %v553, %v552
      %v576 = vpack.c.b16 %v555, %v554
      %v577 = vpack.c.b16 %v557, %v556
      %v578 = vpack.c.b16 %v559, %v558
      %v579 = vpack.c.b16 %v561, %v560
      %v580 = vpack.c.b16 %v563, %v562
      %v581 = vpack.c.b16 %v565, %v564
      %598 = vmatpush.bf16.msra.mxu0 %v573
      %599 = vmatpush.bf16.msra.mxu0 %v572
      %600 = vmatpush.bf16.msra.mxu0 %v571
      %601 = vmatpush.bf16.msra.mxu0 %v570
      %602 = vmatpush.bf16.msra.mxu0 %v569
      %603 = vmatpush.bf16.msra.mxu0 %v568
      %604 = vmatpush.bf16.msra.mxu0 %v567
      %605 = vmatpush.bf16.msra.mxu0 %v566
      %606 = vmatmul.bf16.gmra.mxu0 %v498
      %v607 = vpop.f32.mrf.mxu0
      %v608 = vadd.f32 0.0, %v607
      %v609 = vpop.f32.mrf.mxu0
      %610 = vdwg.mxu0
      %611 = vmatpush.bf16.msra.mxu0 %v581
      %612 = vmatpush.bf16.msra.mxu0 %v580
      %613 = vmatpush.bf16.msra.mxu0 %v579
      %614 = vmatpush.bf16.msra.mxu0 %v578
      %615 = vmatpush.bf16.msra.mxu0 %v577
      %616 = vmatpush.bf16.msra.mxu0 %v576
      %617 = vmatpush.bf16.msra.mxu0 %v575
      %618 = vmatpush.bf16.msra.mxu0 %v574
      %619 = vmatmul.bf16.gmra.mxu0 %v499
      %v620 = vpop.f32.mrf.mxu0
      %v621 = vadd.f32 %v608, %v620
      %v622 = vpop.f32.mrf.mxu0
      %623 = vdwg.mxu0
      %v656 = vunpack.c.l.b16 %v430
      %v657 = vunpack.c.l.b16 %v431
      %v658 = vunpack.c.l.b16 %v432
      %v659 = vunpack.c.l.b16 %v433
      %v660 = vunpack.c.l.b16 %v434
      %v661 = vunpack.c.l.b16 %v435
      %v662 = vunpack.c.l.b16 %v436
      %v663 = vunpack.c.l.b16 %v437
      %v664 = vunpack.c.l.b16 %v438
      %v665 = vunpack.c.l.b16 %v439
      %v666 = vunpack.c.l.b16 %v440
      %v667 = vunpack.c.l.b16 %v441
      %v668 = vunpack.c.l.b16 %v442
      %v669 = vunpack.c.l.b16 %v443
      %v670 = vunpack.c.l.b16 %v444
      %v671 = vunpack.c.l.b16 %v445
      %v672 = vunpack.c.l.b16 %v446
      %v673 = vunpack.c.l.b16 %v447
      %v674 = vunpack.c.l.b16 %v448
      %v675 = vunpack.c.l.b16 %v449
      %v676 = vunpack.c.l.b16 %v450
      %v677 = vunpack.c.l.b16 %v451
      %v678 = vunpack.c.l.b16 %v452
      %v679 = vunpack.c.l.b16 %v453
      %v680 = vunpack.c.l.b16 %v454
      %v681 = vunpack.c.l.b16 %v455
      %v682 = vunpack.c.l.b16 %v456
      %v683 = vunpack.c.l.b16 %v457
      %v684 = vunpack.c.l.b16 %v458
      %v685 = vunpack.c.l.b16 %v459
      %v686 = vunpack.c.l.b16 %v460
      %v687 = vunpack.c.l.b16 %v461
      %v688 = vpack.c.b16 %v657, %v656
      %v689 = vpack.c.b16 %v659, %v658
      %v690 = vpack.c.b16 %v661, %v660
      %v691 = vpack.c.b16 %v663, %v662
      %v692 = vpack.c.b16 %v665, %v664
      %v693 = vpack.c.b16 %v667, %v666
      %v694 = vpack.c.b16 %v669, %v668
      %v695 = vpack.c.b16 %v671, %v670
      %v696 = vpack.c.b16 %v673, %v672
      %v697 = vpack.c.b16 %v675, %v674
      %v698 = vpack.c.b16 %v677, %v676
      %v699 = vpack.c.b16 %v679, %v678
      %v700 = vpack.c.b16 %v681, %v680
      %v701 = vpack.c.b16 %v683, %v682
      %v702 = vpack.c.b16 %v685, %v684
      %v703 = vpack.c.b16 %v687, %v686
      %720 = vmatpush.bf16.msra.mxu0 %v695
      %721 = vmatpush.bf16.msra.mxu0 %v694
      %722 = vmatpush.bf16.msra.mxu0 %v693
      %723 = vmatpush.bf16.msra.mxu0 %v692
      %724 = vmatpush.bf16.msra.mxu0 %v691
      %725 = vmatpush.bf16.msra.mxu0 %v690
      %726 = vmatpush.bf16.msra.mxu0 %v689
      %727 = vmatpush.bf16.msra.mxu0 %v688
      %728 = vmatmul.bf16.gmra.mxu0 %v498
      %v729 = vpop.f32.mrf.mxu0
      %v730 = vadd.f32 %v621, %v729
      %v731 = vpop.f32.mrf.mxu0
      %732 = vdwg.mxu0
      %733 = vmatpush.bf16.msra.mxu0 %v703
      %734 = vmatpush.bf16.msra.mxu0 %v702
      %735 = vmatpush.bf16.msra.mxu0 %v701
      %736 = vmatpush.bf16.msra.mxu0 %v700
      %737 = vmatpush.bf16.msra.mxu0 %v699
      %738 = vmatpush.bf16.msra.mxu0 %v698
      %739 = vmatpush.bf16.msra.mxu0 %v697
      %740 = vmatpush.bf16.msra.mxu0 %v696
      %741 = vmatmul.bf16.gmra.mxu0 %v499
      %v742 = vpop.f32.mrf.mxu0
      %v743 = vadd.f32 %v730, %v742
      %v744 = vpop.f32.mrf.mxu0
      %745 = vdwg.mxu0
      %s746 = scalar_lea.vmem %s3, 256
      %v747 = vld [vmem:[%s746] sm:$0xf]
      %v748 = vld [vmem:[%s746 + $0x4] sm:$0xf]
      %v749 = vld [vmem:[%s746 + $0x8] sm:$0xf]
      %v750 = vld [vmem:[%s746 + $0xc] sm:$0xf]
      %v751 = vld [vmem:[%s746 + $0x10] sm:$0xf]
      %v752 = vld [vmem:[%s746 + $0x14] sm:$0xf]
      %v753 = vld [vmem:[%s746 + $0x18] sm:$0xf]
      %v754 = vld [vmem:[%s746 + $0x1c] sm:$0xf]
      %v755 = vld [vmem:[%s746 + $0x20] sm:$0xf]
      %v756 = vld [vmem:[%s746 + $0x24] sm:$0xf]
      %v757 = vld [vmem:[%s746 + $0x28] sm:$0xf]
      %v758 = vld [vmem:[%s746 + $0x2c] sm:$0xf]
      %v759 = vld [vmem:[%s746 + $0x30] sm:$0xf]
      %v760 = vld [vmem:[%s746 + $0x34] sm:$0xf]
      %v761 = vld [vmem:[%s746 + $0x38] sm:$0xf]
      %v762 = vld [vmem:[%s746 + $0x3c] sm:$0xf]
      %v763 = vld [vmem:[%s746 + $0x40] sm:$0xf]
      %v764 = vld [vmem:[%s746 + $0x44] sm:$0xf]
      %v765 = vld [vmem:[%s746 + $0x48] sm:$0xf]
      %v766 = vld [vmem:[%s746 + $0x4c] sm:$0xf]
      %v767 = vld [vmem:[%s746 + $0x50] sm:$0xf]
      %v768 = vld [vmem:[%s746 + $0x54] sm:$0xf]
      %v769 = vld [vmem:[%s746 + $0x58] sm:$0xf]
      %v770 = vld [vmem:[%s746 + $0x5c] sm:$0xf]
      %v771 = vld [vmem:[%s746 + $0x60] sm:$0xf]
      %v772 = vld [vmem:[%s746 + $0x64] sm:$0xf]
      %v773 = vld [vmem:[%s746 + $0x68] sm:$0xf]
      %v774 = vld [vmem:[%s746 + $0x6c] sm:$0xf]
      %v775 = vld [vmem:[%s746 + $0x70] sm:$0xf]
      %v776 = vld [vmem:[%s746 + $0x74] sm:$0xf]
      %v777 = vld [vmem:[%s746 + $0x78] sm:$0xf]
      %v778 = vld [vmem:[%s746 + $0x7c] sm:$0xf]
      %v780 = vunpack.c.l.b16 %v427
      %v781 = vpack.c.b16 %v780, %v780
      %782 = vrot.lane.b32.xlu0 %v498, 96
      %v783 = vpop.permute.xlu0 %782
      %784 = vrot.lane.b32.xlu0 %v499, 96
      %v785 = vpop.permute.xlu0 %784
      %786 = vrot.lane.b32.xlu0 %v781, 96
      %v787 = vpop.permute.xlu0 %786
      %vm788 = vcmask 785408
      %v789 = vsel %vm788, %v783, %v785
      %v790 = vsel %vm788, %v785, %v787
      %v825 = vunpack.c.l.b16 %v747
      %v826 = vunpack.c.l.b16 %v748
      %v827 = vunpack.c.l.b16 %v749
      %v828 = vunpack.c.l.b16 %v750
      %v829 = vunpack.c.l.b16 %v751
      %v830 = vunpack.c.l.b16 %v752
      %v831 = vunpack.c.l.b16 %v753
      %v832 = vunpack.c.l.b16 %v754
      %v833 = vunpack.c.l.b16 %v755
      %v834 = vunpack.c.l.b16 %v756
      %v835 = vunpack.c.l.b16 %v757
      %v836 = vunpack.c.l.b16 %v758
      %v837 = vunpack.c.l.b16 %v759
      %v838 = vunpack.c.l.b16 %v760
      %v839 = vunpack.c.l.b16 %v761
      %v840 = vunpack.c.l.b16 %v762
      %v841 = vunpack.c.l.b16 %v763
      %v842 = vunpack.c.l.b16 %v764
      %v843 = vunpack.c.l.b16 %v765
      %v844 = vunpack.c.l.b16 %v766
      %v845 = vunpack.c.l.b16 %v767
      %v846 = vunpack.c.l.b16 %v768
      %v847 = vunpack.c.l.b16 %v769
      %v848 = vunpack.c.l.b16 %v770
      %v849 = vunpack.c.l.b16 %v771
      %v850 = vunpack.c.l.b16 %v772
      %v851 = vunpack.c.l.b16 %v773
      %v852 = vunpack.c.l.b16 %v774
      %v853 = vunpack.c.l.b16 %v775
      %v854 = vunpack.c.l.b16 %v776
      %v855 = vunpack.c.l.b16 %v777
      %v856 = vunpack.c.l.b16 %v778
      %v857 = vpack.c.b16 %v826, %v825
      %v858 = vpack.c.b16 %v828, %v827
      %v859 = vpack.c.b16 %v830, %v829
      %v860 = vpack.c.b16 %v832, %v831
      %v861 = vpack.c.b16 %v834, %v833
      %v862 = vpack.c.b16 %v836, %v835
      %v863 = vpack.c.b16 %v838, %v837
      %v864 = vpack.c.b16 %v840, %v839
      %v865 = vpack.c.b16 %v842, %v841
      %v866 = vpack.c.b16 %v844, %v843
      %v867 = vpack.c.b16 %v846, %v845
      %v868 = vpack.c.b16 %v848, %v847
      %v869 = vpack.c.b16 %v850, %v849
      %v870 = vpack.c.b16 %v852, %v851
      %v871 = vpack.c.b16 %v854, %v853
      %v872 = vpack.c.b16 %v856, %v855
      %889 = vmatpush.bf16.msra.mxu0 %v864
      %890 = vmatpush.bf16.msra.mxu0 %v863
      %891 = vmatpush.bf16.msra.mxu0 %v862
      %892 = vmatpush.bf16.msra.mxu0 %v861
      %893 = vmatpush.bf16.msra.mxu0 %v860
      %894 = vmatpush.bf16.msra.mxu0 %v859
      %895 = vmatpush.bf16.msra.mxu0 %v858
      %896 = vmatpush.bf16.msra.mxu0 %v857
      %897 = vmatmul.bf16.gmra.mxu0 %v789
      %v898 = vpop.f32.mrf.mxu0
      %v899 = vadd.f32 0.0, %v898
      %v900 = vpop.f32.mrf.mxu0
      %901 = vdwg.mxu0
      %902 = vmatpush.bf16.msra.mxu0 %v872
      %903 = vmatpush.bf16.msra.mxu0 %v871
      %904 = vmatpush.bf16.msra.mxu0 %v870
      %905 = vmatpush.bf16.msra.mxu0 %v869
      %906 = vmatpush.bf16.msra.mxu0 %v868
      %907 = vmatpush.bf16.msra.mxu0 %v867
      %908 = vmatpush.bf16.msra.mxu0 %v866
      %909 = vmatpush.bf16.msra.mxu0 %v865
      %910 = vmatmul.bf16.gmra.mxu0 %v790
      %v911 = vpop.f32.mrf.mxu0
      %v912 = vadd.f32 %v899, %v911
      %v913 = vpop.f32.mrf.mxu0
      %914 = vdwg.mxu0
      %v915 = vadd.f32 %v743, %v912
      %s916 = scalar_lea.vmem %s3, 384
      %v917 = vld [vmem:[%s916] sm:$0xf]
      %v918 = vld [vmem:[%s916 + $0x4] sm:$0xf]
      %v919 = vld [vmem:[%s916 + $0x8] sm:$0xf]
      %v920 = vld [vmem:[%s916 + $0xc] sm:$0xf]
      %v921 = vld [vmem:[%s916 + $0x10] sm:$0xf]
      %v922 = vld [vmem:[%s916 + $0x14] sm:$0xf]
      %v923 = vld [vmem:[%s916 + $0x18] sm:$0xf]
      %v924 = vld [vmem:[%s916 + $0x1c] sm:$0xf]
      %v925 = vld [vmem:[%s916 + $0x20] sm:$0xf]
      %v926 = vld [vmem:[%s916 + $0x24] sm:$0xf]
      %v927 = vld [vmem:[%s916 + $0x28] sm:$0xf]
      %v928 = vld [vmem:[%s916 + $0x2c] sm:$0xf]
      %v929 = vld [vmem:[%s916 + $0x30] sm:$0xf]
      %v930 = vld [vmem:[%s916 + $0x34] sm:$0xf]
      %v931 = vld [vmem:[%s916 + $0x38] sm:$0xf]
      %v932 = vld [vmem:[%s916 + $0x3c] sm:$0xf]
      %v933 = vld [vmem:[%s916 + $0x40] sm:$0xf]
      %v934 = vld [vmem:[%s916 + $0x44] sm:$0xf]
      %v935 = vld [vmem:[%s916 + $0x48] sm:$0xf]
      %v936 = vld [vmem:[%s916 + $0x4c] sm:$0xf]
      %v937 = vld [vmem:[%s916 + $0x50] sm:$0xf]
      %v938 = vld [vmem:[%s916 + $0x54] sm:$0xf]
      %v939 = vld [vmem:[%s916 + $0x58] sm:$0xf]
      %v940 = vld [vmem:[%s916 + $0x5c] sm:$0xf]
      %v941 = vld [vmem:[%s916 + $0x60] sm:$0xf]
      %v942 = vld [vmem:[%s916 + $0x64] sm:$0xf]
      %v943 = vld [vmem:[%s916 + $0x68] sm:$0xf]
      %v944 = vld [vmem:[%s916 + $0x6c] sm:$0xf]
      %v945 = vld [vmem:[%s916 + $0x70] sm:$0xf]
      %v946 = vld [vmem:[%s916 + $0x74] sm:$0xf]
      %v947 = vld [vmem:[%s916 + $0x78] sm:$0xf]
      %v948 = vld [vmem:[%s916 + $0x7c] sm:$0xf]
      %v981 = vunpack.c.l.b16 %v917
      %v982 = vunpack.c.l.b16 %v918
      %v983 = vunpack.c.l.b16 %v919
      %v984 = vunpack.c.l.b16 %v920
      %v985 = vunpack.c.l.b16 %v921
      %v986 = vunpack.c.l.b16 %v922
      %v987 = vunpack.c.l.b16 %v923
      %v988 = vunpack.c.l.b16 %v924
      %v989 = vunpack.c.l.b16 %v925
      %v990 = vunpack.c.l.b16 %v926
      %v991 = vunpack.c.l.b16 %v927
      %v992 = vunpack.c.l.b16 %v928
      %v993 = vunpack.c.l.b16 %v929
      %v994 = vunpack.c.l.b16 %v930
      %v995 = vunpack.c.l.b16 %v931
      %v996 = vunpack.c.l.b16 %v932
      %v997 = vunpack.c.l.b16 %v933
      %v998 = vunpack.c.l.b16 %v934
      %v999 = vunpack.c.l.b16 %v935
      %v1000 = vunpack.c.l.b16 %v936
      %v1001 = vunpack.c.l.b16 %v937
      %v1002 = vunpack.c.l.b16 %v938
      %v1003 = vunpack.c.l.b16 %v939
      %v1004 = vunpack.c.l.b16 %v940
      %v1005 = vunpack.c.l.b16 %v941
      %v1006 = vunpack.c.l.b16 %v942
      %v1007 = vunpack.c.l.b16 %v943
      %v1008 = vunpack.c.l.b16 %v944
      %v1009 = vunpack.c.l.b16 %v945
      %v1010 = vunpack.c.l.b16 %v946
      %v1011 = vunpack.c.l.b16 %v947
      %v1012 = vunpack.c.l.b16 %v948
      %v1013 = vpack.c.b16 %v982, %v981
      %v1014 = vpack.c.b16 %v984, %v983
      %v1015 = vpack.c.b16 %v986, %v985
      %v1016 = vpack.c.b16 %v988, %v987
      %v1017 = vpack.c.b16 %v990, %v989
      %v1018 = vpack.c.b16 %v992, %v991
      %v1019 = vpack.c.b16 %v994, %v993
      %v1020 = vpack.c.b16 %v996, %v995
      %v1021 = vpack.c.b16 %v998, %v997
      %v1022 = vpack.c.b16 %v1000, %v999
      %v1023 = vpack.c.b16 %v1002, %v1001
      %v1024 = vpack.c.b16 %v1004, %v1003
      %v1025 = vpack.c.b16 %v1006, %v1005
      %v1026 = vpack.c.b16 %v1008, %v1007
      %v1027 = vpack.c.b16 %v1010, %v1009
      %v1028 = vpack.c.b16 %v1012, %v1011
      %1045 = vmatpush.bf16.msra.mxu0 %v1020
      %1046 = vmatpush.bf16.msra.mxu0 %v1019
      %1047 = vmatpush.bf16.msra.mxu0 %v1018
      %1048 = vmatpush.bf16.msra.mxu0 %v1017
      %1049 = vmatpush.bf16.msra.mxu0 %v1016
      %1050 = vmatpush.bf16.msra.mxu0 %v1015
      %1051 = vmatpush.bf16.msra.mxu0 %v1014
      %1052 = vmatpush.bf16.msra.mxu0 %v1013
      %1053 = vmatmul.bf16.gmra.mxu0 %v498
      %v1054 = vpop.f32.mrf.mxu0
      %v1055 = vadd.f32 0.0, %v1054
      %v1056 = vpop.f32.mrf.mxu0
      %1057 = vdwg.mxu0
      %1058 = vmatpush.bf16.msra.mxu0 %v1028
      %1059 = vmatpush.bf16.msra.mxu0 %v1027
      %1060 = vmatpush.bf16.msra.mxu0 %v1026
      %1061 = vmatpush.bf16.msra.mxu0 %v1025
      %1062 = vmatpush.bf16.msra.mxu0 %v1024
      %1063 = vmatpush.bf16.msra.mxu0 %v1023
      %1064 = vmatpush.bf16.msra.mxu0 %v1022
      %1065 = vmatpush.bf16.msra.mxu0 %v1021
      %1066 = vmatmul.bf16.gmra.mxu0 %v499
      %v1067 = vpop.f32.mrf.mxu0
      %v1068 = vadd.f32 %v1055, %v1067
      %v1069 = vpop.f32.mrf.mxu0
      %1070 = vdwg.mxu0
      %v1071 = vadd.f32 %v915, %v1068
      %s1072 = scalar_lea.vmem %s3, 512
      %v1073 = vld [vmem:[%s1072] sm:$0xf]
      %v1074 = vld [vmem:[%s1072 + $0x4] sm:$0xf]
      %v1075 = vld [vmem:[%s1072 + $0x8] sm:$0xf]
      %v1076 = vld [vmem:[%s1072 + $0xc] sm:$0xf]
      %v1077 = vld [vmem:[%s1072 + $0x10] sm:$0xf]
      %v1078 = vld [vmem:[%s1072 + $0x14] sm:$0xf]
      %v1079 = vld [vmem:[%s1072 + $0x18] sm:$0xf]
      %v1080 = vld [vmem:[%s1072 + $0x1c] sm:$0xf]
      %v1081 = vld [vmem:[%s1072 + $0x20] sm:$0xf]
      %v1082 = vld [vmem:[%s1072 + $0x24] sm:$0xf]
      %v1083 = vld [vmem:[%s1072 + $0x28] sm:$0xf]
      %v1084 = vld [vmem:[%s1072 + $0x2c] sm:$0xf]
      %v1085 = vld [vmem:[%s1072 + $0x30] sm:$0xf]
      %v1086 = vld [vmem:[%s1072 + $0x34] sm:$0xf]
      %v1087 = vld [vmem:[%s1072 + $0x38] sm:$0xf]
      %v1088 = vld [vmem:[%s1072 + $0x3c] sm:$0xf]
      %v1089 = vld [vmem:[%s1072 + $0x40] sm:$0xf]
      %v1090 = vld [vmem:[%s1072 + $0x44] sm:$0xf]
      %v1091 = vld [vmem:[%s1072 + $0x48] sm:$0xf]
      %v1092 = vld [vmem:[%s1072 + $0x4c] sm:$0xf]
      %v1093 = vld [vmem:[%s1072 + $0x50] sm:$0xf]
      %v1094 = vld [vmem:[%s1072 + $0x54] sm:$0xf]
      %v1095 = vld [vmem:[%s1072 + $0x58] sm:$0xf]
      %v1096 = vld [vmem:[%s1072 + $0x5c] sm:$0xf]
      %v1097 = vld [vmem:[%s1072 + $0x60] sm:$0xf]
      %v1098 = vld [vmem:[%s1072 + $0x64] sm:$0xf]
      %v1099 = vld [vmem:[%s1072 + $0x68] sm:$0xf]
      %v1100 = vld [vmem:[%s1072 + $0x6c] sm:$0xf]
      %v1101 = vld [vmem:[%s1072 + $0x70] sm:$0xf]
      %v1102 = vld [vmem:[%s1072 + $0x74] sm:$0xf]
      %v1103 = vld [vmem:[%s1072 + $0x78] sm:$0xf]
      %v1104 = vld [vmem:[%s1072 + $0x7c] sm:$0xf]
      %v1137 = vunpack.c.l.b16 %v1073
      %v1138 = vunpack.c.l.b16 %v1074
      %v1139 = vunpack.c.l.b16 %v1075
      %v1140 = vunpack.c.l.b16 %v1076
      %v1141 = vunpack.c.l.b16 %v1077
      %v1142 = vunpack.c.l.b16 %v1078
      %v1143 = vunpack.c.l.b16 %v1079
      %v1144 = vunpack.c.l.b16 %v1080
      %v1145 = vunpack.c.l.b16 %v1081
      %v1146 = vunpack.c.l.b16 %v1082
      %v1147 = vunpack.c.l.b16 %v1083
      %v1148 = vunpack.c.l.b16 %v1084
      %v1149 = vunpack.c.l.b16 %v1085
      %v1150 = vunpack.c.l.b16 %v1086
      %v1151 = vunpack.c.l.b16 %v1087
      %v1152 = vunpack.c.l.b16 %v1088
      %v1153 = vunpack.c.l.b16 %v1089
      %v1154 = vunpack.c.l.b16 %v1090
      %v1155 = vunpack.c.l.b16 %v1091
      %v1156 = vunpack.c.l.b16 %v1092
      %v1157 = vunpack.c.l.b16 %v1093
      %v1158 = vunpack.c.l.b16 %v1094
      %v1159 = vunpack.c.l.b16 %v1095
      %v1160 = vunpack.c.l.b16 %v1096
      %v1161 = vunpack.c.l.b16 %v1097
      %v1162 = vunpack.c.l.b16 %v1098
      %v1163 = vunpack.c.l.b16 %v1099
      %v1164 = vunpack.c.l.b16 %v1100
      %v1165 = vunpack.c.l.b16 %v1101
      %v1166 = vunpack.c.l.b16 %v1102
      %v1167 = vunpack.c.l.b16 %v1103
      %v1168 = vunpack.c.l.b16 %v1104
      %v1169 = vpack.c.b16 %v1138, %v1137
      %v1170 = vpack.c.b16 %v1140, %v1139
      %v1171 = vpack.c.b16 %v1142, %v1141
      %v1172 = vpack.c.b16 %v1144, %v1143
      %v1173 = vpack.c.b16 %v1146, %v1145
      %v1174 = vpack.c.b16 %v1148, %v1147
      %v1175 = vpack.c.b16 %v1150, %v1149
      %v1176 = vpack.c.b16 %v1152, %v1151
      %v1177 = vpack.c.b16 %v1154, %v1153
      %v1178 = vpack.c.b16 %v1156, %v1155
      %v1179 = vpack.c.b16 %v1158, %v1157
      %v1180 = vpack.c.b16 %v1160, %v1159
      %v1181 = vpack.c.b16 %v1162, %v1161
      %v1182 = vpack.c.b16 %v1164, %v1163
      %v1183 = vpack.c.b16 %v1166, %v1165
      %v1184 = vpack.c.b16 %v1168, %v1167
      %1201 = vmatpush.bf16.msra.mxu0 %v1176
      %1202 = vmatpush.bf16.msra.mxu0 %v1175
      %1203 = vmatpush.bf16.msra.mxu0 %v1174
      %1204 = vmatpush.bf16.msra.mxu0 %v1173
      %1205 = vmatpush.bf16.msra.mxu0 %v1172
      %1206 = vmatpush.bf16.msra.mxu0 %v1171
      %1207 = vmatpush.bf16.msra.mxu0 %v1170
      %1208 = vmatpush.bf16.msra.mxu0 %v1169
      %1209 = vmatmul.bf16.gmra.mxu0 %v498
      %v1210 = vpop.f32.mrf.mxu0
      %v1211 = vadd.f32 0.0, %v1210
      %v1212 = vpop.f32.mrf.mxu0
      %1213 = vdwg.mxu0
      %1214 = vmatpush.bf16.msra.mxu0 %v1184
      %1215 = vmatpush.bf16.msra.mxu0 %v1183
      %1216 = vmatpush.bf16.msra.mxu0 %v1182
      %1217 = vmatpush.bf16.msra.mxu0 %v1181
      %1218 = vmatpush.bf16.msra.mxu0 %v1180
      %1219 = vmatpush.bf16.msra.mxu0 %v1179
      %1220 = vmatpush.bf16.msra.mxu0 %v1178
      %1221 = vmatpush.bf16.msra.mxu0 %v1177
      %1222 = vmatmul.bf16.gmra.mxu0 %v499
      %v1223 = vpop.f32.mrf.mxu0
      %v1224 = vadd.f32 %v1211, %v1223
      %v1225 = vpop.f32.mrf.mxu0
      %1226 = vdwg.mxu0
      %v1227 = vadd.f32 %v1071, %v1224
      %s1228 = scalar_lea.vmem %s3, 640
      %v1229 = vld [vmem:[%s1228] sm:$0xf]
      %v1230 = vld [vmem:[%s1228 + $0x4] sm:$0xf]
      %v1231 = vld [vmem:[%s1228 + $0x8] sm:$0xf]
      %v1232 = vld [vmem:[%s1228 + $0xc] sm:$0xf]
      %v1233 = vld [vmem:[%s1228 + $0x10] sm:$0xf]
      %v1234 = vld [vmem:[%s1228 + $0x14] sm:$0xf]
      %v1235 = vld [vmem:[%s1228 + $0x18] sm:$0xf]
      %v1236 = vld [vmem:[%s1228 + $0x1c] sm:$0xf]
      %v1237 = vld [vmem:[%s1228 + $0x20] sm:$0xf]
      %v1238 = vld [vmem:[%s1228 + $0x24] sm:$0xf]
      %v1239 = vld [vmem:[%s1228 + $0x28] sm:$0xf]
      %v1240 = vld [vmem:[%s1228 + $0x2c] sm:$0xf]
      %v1241 = vld [vmem:[%s1228 + $0x30] sm:$0xf]
      %v1242 = vld [vmem:[%s1228 + $0x34] sm:$0xf]
      %v1243 = vld [vmem:[%s1228 + $0x38] sm:$0xf]
      %v1244 = vld [vmem:[%s1228 + $0x3c] sm:$0xf]
      %v1245 = vld [vmem:[%s1228 + $0x40] sm:$0xf]
      %v1246 = vld [vmem:[%s1228 + $0x44] sm:$0xf]
      %v1247 = vld [vmem:[%s1228 + $0x48] sm:$0xf]
      %v1248 = vld [vmem:[%s1228 + $0x4c] sm:$0xf]
      %v1249 = vld [vmem:[%s1228 + $0x50] sm:$0xf]
      %v1250 = vld [vmem:[%s1228 + $0x54] sm:$0xf]
      %v1251 = vld [vmem:[%s1228 + $0x58] sm:$0xf]
      %v1252 = vld [vmem:[%s1228 + $0x5c] sm:$0xf]
      %v1253 = vld [vmem:[%s1228 + $0x60] sm:$0xf]
      %v1254 = vld [vmem:[%s1228 + $0x64] sm:$0xf]
      %v1255 = vld [vmem:[%s1228 + $0x68] sm:$0xf]
      %v1256 = vld [vmem:[%s1228 + $0x6c] sm:$0xf]
      %v1257 = vld [vmem:[%s1228 + $0x70] sm:$0xf]
      %v1258 = vld [vmem:[%s1228 + $0x74] sm:$0xf]
      %v1259 = vld [vmem:[%s1228 + $0x78] sm:$0xf]
      %v1260 = vld [vmem:[%s1228 + $0x7c] sm:$0xf]
      %v1293 = vunpack.c.l.b16 %v1229
      %v1294 = vunpack.c.l.b16 %v1230
      %v1295 = vunpack.c.l.b16 %v1231
      %v1296 = vunpack.c.l.b16 %v1232
      %v1297 = vunpack.c.l.b16 %v1233
      %v1298 = vunpack.c.l.b16 %v1234
      %v1299 = vunpack.c.l.b16 %v1235
      %v1300 = vunpack.c.l.b16 %v1236
      %v1301 = vunpack.c.l.b16 %v1237
      %v1302 = vunpack.c.l.b16 %v1238
      %v1303 = vunpack.c.l.b16 %v1239
      %v1304 = vunpack.c.l.b16 %v1240
      %v1305 = vunpack.c.l.b16 %v1241
      %v1306 = vunpack.c.l.b16 %v1242
      %v1307 = vunpack.c.l.b16 %v1243
      %v1308 = vunpack.c.l.b16 %v1244
      %v1309 = vunpack.c.l.b16 %v1245
      %v1310 = vunpack.c.l.b16 %v1246
      %v1311 = vunpack.c.l.b16 %v1247
      %v1312 = vunpack.c.l.b16 %v1248
      %v1313 = vunpack.c.l.b16 %v1249
      %v1314 = vunpack.c.l.b16 %v1250
      %v1315 = vunpack.c.l.b16 %v1251
      %v1316 = vunpack.c.l.b16 %v1252
      %v1317 = vunpack.c.l.b16 %v1253
      %v1318 = vunpack.c.l.b16 %v1254
      %v1319 = vunpack.c.l.b16 %v1255
      %v1320 = vunpack.c.l.b16 %v1256
      %v1321 = vunpack.c.l.b16 %v1257
      %v1322 = vunpack.c.l.b16 %v1258
      %v1323 = vunpack.c.l.b16 %v1259
      %v1324 = vunpack.c.l.b16 %v1260
      %v1325 = vpack.c.b16 %v1294, %v1293
      %v1326 = vpack.c.b16 %v1296, %v1295
      %v1327 = vpack.c.b16 %v1298, %v1297
      %v1328 = vpack.c.b16 %v1300, %v1299
      %v1329 = vpack.c.b16 %v1302, %v1301
      %v1330 = vpack.c.b16 %v1304, %v1303
      %v1331 = vpack.c.b16 %v1306, %v1305
      %v1332 = vpack.c.b16 %v1308, %v1307
      %v1333 = vpack.c.b16 %v1310, %v1309
      %v1334 = vpack.c.b16 %v1312, %v1311
      %v1335 = vpack.c.b16 %v1314, %v1313
      %v1336 = vpack.c.b16 %v1316, %v1315
      %v1337 = vpack.c.b16 %v1318, %v1317
      %v1338 = vpack.c.b16 %v1320, %v1319
      %v1339 = vpack.c.b16 %v1322, %v1321
      %v1340 = vpack.c.b16 %v1324, %v1323
      %1357 = vmatpush.bf16.msra.mxu0 %v1332
      %1358 = vmatpush.bf16.msra.mxu0 %v1331
      %1359 = vmatpush.bf16.msra.mxu0 %v1330
      %1360 = vmatpush.bf16.msra.mxu0 %v1329
      %1361 = vmatpush.bf16.msra.mxu0 %v1328
      %1362 = vmatpush.bf16.msra.mxu0 %v1327
      %1363 = vmatpush.bf16.msra.mxu0 %v1326
      %1364 = vmatpush.bf16.msra.mxu0 %v1325
      %1365 = vmatmul.bf16.gmra.mxu0 %v789
      %v1366 = vpop.f32.mrf.mxu0
      %v1367 = vadd.f32 0.0, %v1366
      %v1368 = vpop.f32.mrf.mxu0
      %1369 = vdwg.mxu0
      %1370 = vmatpush.bf16.msra.mxu0 %v1340
      %1371 = vmatpush.bf16.msra.mxu0 %v1339
      %1372 = vmatpush.bf16.msra.mxu0 %v1338
      %1373 = vmatpush.bf16.msra.mxu0 %v1337
      %1374 = vmatpush.bf16.msra.mxu0 %v1336
      %1375 = vmatpush.bf16.msra.mxu0 %v1335
      %1376 = vmatpush.bf16.msra.mxu0 %v1334
      %1377 = vmatpush.bf16.msra.mxu0 %v1333
      %1378 = vmatmul.bf16.gmra.mxu0 %v790
      %v1379 = vpop.f32.mrf.mxu0
      %v1380 = vadd.f32 %v1367, %v1379
      %v1381 = vpop.f32.mrf.mxu0
      %1382 = vdwg.mxu0
      %v1383 = vadd.f32 %v1227, %v1380
      %s1384 = scalar_lea.vmem %s3, 768
      %v1385 = vld [vmem:[%s1384] sm:$0xf]
      %v1386 = vld [vmem:[%s1384 + $0x4] sm:$0xf]
      %v1387 = vld [vmem:[%s1384 + $0x8] sm:$0xf]
      %v1388 = vld [vmem:[%s1384 + $0xc] sm:$0xf]
      %v1389 = vld [vmem:[%s1384 + $0x10] sm:$0xf]
      %v1390 = vld [vmem:[%s1384 + $0x14] sm:$0xf]
      %v1391 = vld [vmem:[%s1384 + $0x18] sm:$0xf]
      %v1392 = vld [vmem:[%s1384 + $0x1c] sm:$0xf]
      %v1393 = vld [vmem:[%s1384 + $0x20] sm:$0xf]
      %v1394 = vld [vmem:[%s1384 + $0x24] sm:$0xf]
      %v1395 = vld [vmem:[%s1384 + $0x28] sm:$0xf]
      %v1396 = vld [vmem:[%s1384 + $0x2c] sm:$0xf]
      %v1397 = vld [vmem:[%s1384 + $0x30] sm:$0xf]
      %v1398 = vld [vmem:[%s1384 + $0x34] sm:$0xf]
      %v1399 = vld [vmem:[%s1384 + $0x38] sm:$0xf]
      %v1400 = vld [vmem:[%s1384 + $0x3c] sm:$0xf]
      %v1401 = vld [vmem:[%s1384 + $0x40] sm:$0xf]
      %v1402 = vld [vmem:[%s1384 + $0x44] sm:$0xf]
      %v1403 = vld [vmem:[%s1384 + $0x48] sm:$0xf]
      %v1404 = vld [vmem:[%s1384 + $0x4c] sm:$0xf]
      %v1405 = vld [vmem:[%s1384 + $0x50] sm:$0xf]
      %v1406 = vld [vmem:[%s1384 + $0x54] sm:$0xf]
      %v1407 = vld [vmem:[%s1384 + $0x58] sm:$0xf]
      %v1408 = vld [vmem:[%s1384 + $0x5c] sm:$0xf]
      %v1409 = vld [vmem:[%s1384 + $0x60] sm:$0xf]
      %v1410 = vld [vmem:[%s1384 + $0x64] sm:$0xf]
      %v1411 = vld [vmem:[%s1384 + $0x68] sm:$0xf]
      %v1412 = vld [vmem:[%s1384 + $0x6c] sm:$0xf]
      %v1413 = vld [vmem:[%s1384 + $0x70] sm:$0xf]
      %v1414 = vld [vmem:[%s1384 + $0x74] sm:$0xf]
      %v1415 = vld [vmem:[%s1384 + $0x78] sm:$0xf]
      %v1416 = vld [vmem:[%s1384 + $0x7c] sm:$0xf]
      %v1418 = vunpack.c.l.b16 %v428
      %v1419 = vunpack.c.h.b16 %v428
      %v1420 = vpack.c.b16 %v1418, %v496
      %v1421 = vpack.c.b16 %v1419, %v497
      %v1423 = vshrl.u32 %v1420, 16
      %v1425 = vshll.u32 %v1420, 16
      %v1427 = vrot.slane %v1425, 1
      %v1428 = vor.u32 %v1423, %v1427
      %v1430 = vshrl.u32 %v1421, 16
      %v1432 = vshll.u32 %v1421, 16
      %v1434 = vrot.slane %v1432, 1
      %v1435 = vor.u32 %v1430, %v1434
      %v1470 = vunpack.c.l.b16 %v1385
      %v1471 = vunpack.c.l.b16 %v1386
      %v1472 = vunpack.c.l.b16 %v1387
      %v1473 = vunpack.c.l.b16 %v1388
      %v1474 = vunpack.c.l.b16 %v1389
      %v1475 = vunpack.c.l.b16 %v1390
      %v1476 = vunpack.c.l.b16 %v1391
      %v1477 = vunpack.c.l.b16 %v1392
      %v1478 = vunpack.c.l.b16 %v1393
      %v1479 = vunpack.c.l.b16 %v1394
      %v1480 = vunpack.c.l.b16 %v1395
      %v1481 = vunpack.c.l.b16 %v1396
      %v1482 = vunpack.c.l.b16 %v1397
      %v1483 = vunpack.c.l.b16 %v1398
      %v1484 = vunpack.c.l.b16 %v1399
      %v1485 = vunpack.c.l.b16 %v1400
      %v1486 = vunpack.c.l.b16 %v1401
      %v1487 = vunpack.c.l.b16 %v1402
      %v1488 = vunpack.c.l.b16 %v1403
      %v1489 = vunpack.c.l.b16 %v1404
      %v1490 = vunpack.c.l.b16 %v1405
      %v1491 = vunpack.c.l.b16 %v1406
      %v1492 = vunpack.c.l.b16 %v1407
      %v1493 = vunpack.c.l.b16 %v1408
      %v1494 = vunpack.c.l.b16 %v1409
      %v1495 = vunpack.c.l.b16 %v1410
      %v1496 = vunpack.c.l.b16 %v1411
      %v1497 = vunpack.c.l.b16 %v1412
      %v1498 = vunpack.c.l.b16 %v1413
      %v1499 = vunpack.c.l.b16 %v1414
      %v1500 = vunpack.c.l.b16 %v1415
      %v1501 = vunpack.c.l.b16 %v1416
      %v1502 = vpack.c.b16 %v1471, %v1470
      %v1503 = vpack.c.b16 %v1473, %v1472
      %v1504 = vpack.c.b16 %v1475, %v1474
      %v1505 = vpack.c.b16 %v1477, %v1476
      %v1506 = vpack.c.b16 %v1479, %v1478
      %v1507 = vpack.c.b16 %v1481, %v1480
      %v1508 = vpack.c.b16 %v1483, %v1482
      %v1509 = vpack.c.b16 %v1485, %v1484
      %v1510 = vpack.c.b16 %v1487, %v1486
      %v1511 = vpack.c.b16 %v1489, %v1488
      %v1512 = vpack.c.b16 %v1491, %v1490
      %v1513 = vpack.c.b16 %v1493, %v1492
      %v1514 = vpack.c.b16 %v1495, %v1494
      %v1515 = vpack.c.b16 %v1497, %v1496
      %v1516 = vpack.c.b16 %v1499, %v1498
      %v1517 = vpack.c.b16 %v1501, %v1500
      %1534 = vmatpush.bf16.msra.mxu0 %v1509
      %1535 = vmatpush.bf16.msra.mxu0 %v1508
      %1536 = vmatpush.bf16.msra.mxu0 %v1507
      %1537 = vmatpush.bf16.msra.mxu0 %v1506
      %1538 = vmatpush.bf16.msra.mxu0 %v1505
      %1539 = vmatpush.bf16.msra.mxu0 %v1504
      %1540 = vmatpush.bf16.msra.mxu0 %v1503
      %1541 = vmatpush.bf16.msra.mxu0 %v1502
      %1542 = vmatmul.bf16.gmra.mxu0 %v1428
      %v1543 = vpop.f32.mrf.mxu0
      %v1544 = vadd.f32 0.0, %v1543
      %v1545 = vpop.f32.mrf.mxu0
      %1546 = vdwg.mxu0
      %1547 = vmatpush.bf16.msra.mxu0 %v1517
      %1548 = vmatpush.bf16.msra.mxu0 %v1516
      %1549 = vmatpush.bf16.msra.mxu0 %v1515
      %1550 = vmatpush.bf16.msra.mxu0 %v1514
      %1551 = vmatpush.bf16.msra.mxu0 %v1513
      %1552 = vmatpush.bf16.msra.mxu0 %v1512
      %1553 = vmatpush.bf16.msra.mxu0 %v1511
      %1554 = vmatpush.bf16.msra.mxu0 %v1510
      %1555 = vmatmul.bf16.gmra.mxu0 %v1435
      %v1556 = vpop.f32.mrf.mxu0
      %v1557 = vadd.f32 %v1544, %v1556
      %v1558 = vpop.f32.mrf.mxu0
      %1559 = vdwg.mxu0
      %v1560 = vadd.f32 %v1383, %v1557
      %s1561 = scalar_lea.vmem %s3, 896
      %v1562 = vld [vmem:[%s1561] sm:$0xf]
      %v1563 = vld [vmem:[%s1561 + $0x4] sm:$0xf]
      %v1564 = vld [vmem:[%s1561 + $0x8] sm:$0xf]
      %v1565 = vld [vmem:[%s1561 + $0xc] sm:$0xf]
      %v1566 = vld [vmem:[%s1561 + $0x10] sm:$0xf]
      %v1567 = vld [vmem:[%s1561 + $0x14] sm:$0xf]
      %v1568 = vld [vmem:[%s1561 + $0x18] sm:$0xf]
      %v1569 = vld [vmem:[%s1561 + $0x1c] sm:$0xf]
      %v1570 = vld [vmem:[%s1561 + $0x20] sm:$0xf]
      %v1571 = vld [vmem:[%s1561 + $0x24] sm:$0xf]
      %v1572 = vld [vmem:[%s1561 + $0x28] sm:$0xf]
      %v1573 = vld [vmem:[%s1561 + $0x2c] sm:$0xf]
      %v1574 = vld [vmem:[%s1561 + $0x30] sm:$0xf]
      %v1575 = vld [vmem:[%s1561 + $0x34] sm:$0xf]
      %v1576 = vld [vmem:[%s1561 + $0x38] sm:$0xf]
      %v1577 = vld [vmem:[%s1561 + $0x3c] sm:$0xf]
      %v1578 = vld [vmem:[%s1561 + $0x40] sm:$0xf]
      %v1579 = vld [vmem:[%s1561 + $0x44] sm:$0xf]
      %v1580 = vld [vmem:[%s1561 + $0x48] sm:$0xf]
      %v1581 = vld [vmem:[%s1561 + $0x4c] sm:$0xf]
      %v1582 = vld [vmem:[%s1561 + $0x50] sm:$0xf]
      %v1583 = vld [vmem:[%s1561 + $0x54] sm:$0xf]
      %v1584 = vld [vmem:[%s1561 + $0x58] sm:$0xf]
      %v1585 = vld [vmem:[%s1561 + $0x5c] sm:$0xf]
      %v1586 = vld [vmem:[%s1561 + $0x60] sm:$0xf]
      %v1587 = vld [vmem:[%s1561 + $0x64] sm:$0xf]
      %v1588 = vld [vmem:[%s1561 + $0x68] sm:$0xf]
      %v1589 = vld [vmem:[%s1561 + $0x6c] sm:$0xf]
      %v1590 = vld [vmem:[%s1561 + $0x70] sm:$0xf]
      %v1591 = vld [vmem:[%s1561 + $0x74] sm:$0xf]
      %v1592 = vld [vmem:[%s1561 + $0x78] sm:$0xf]
      %v1593 = vld [vmem:[%s1561 + $0x7c] sm:$0xf]
      %v1626 = vunpack.c.l.b16 %v1562
      %v1627 = vunpack.c.l.b16 %v1563
      %v1628 = vunpack.c.l.b16 %v1564
      %v1629 = vunpack.c.l.b16 %v1565
      %v1630 = vunpack.c.l.b16 %v1566
      %v1631 = vunpack.c.l.b16 %v1567
      %v1632 = vunpack.c.l.b16 %v1568
      %v1633 = vunpack.c.l.b16 %v1569
      %v1634 = vunpack.c.l.b16 %v1570
      %v1635 = vunpack.c.l.b16 %v1571
      %v1636 = vunpack.c.l.b16 %v1572
      %v1637 = vunpack.c.l.b16 %v1573
      %v1638 = vunpack.c.l.b16 %v1574
      %v1639 = vunpack.c.l.b16 %v1575
      %v1640 = vunpack.c.l.b16 %v1576
      %v1641 = vunpack.c.l.b16 %v1577
      %v1642 = vunpack.c.l.b16 %v1578
      %v1643 = vunpack.c.l.b16 %v1579
      %v1644 = vunpack.c.l.b16 %v1580
      %v1645 = vunpack.c.l.b16 %v1581
      %v1646 = vunpack.c.l.b16 %v1582
      %v1647 = vunpack.c.l.b16 %v1583
      %v1648 = vunpack.c.l.b16 %v1584
      %v1649 = vunpack.c.l.b16 %v1585
      %v1650 = vunpack.c.l.b16 %v1586
      %v1651 = vunpack.c.l.b16 %v1587
      %v1652 = vunpack.c.l.b16 %v1588
      %v1653 = vunpack.c.l.b16 %v1589
      %v1654 = vunpack.c.l.b16 %v1590
      %v1655 = vunpack.c.l.b16 %v1591
      %v1656 = vunpack.c.l.b16 %v1592
      %v1657 = vunpack.c.l.b16 %v1593
      %v1658 = vpack.c.b16 %v1627, %v1626
      %v1659 = vpack.c.b16 %v1629, %v1628
      %v1660 = vpack.c.b16 %v1631, %v1630
      %v1661 = vpack.c.b16 %v1633, %v1632
      %v1662 = vpack.c.b16 %v1635, %v1634
      %v1663 = vpack.c.b16 %v1637, %v1636
      %v1664 = vpack.c.b16 %v1639, %v1638
      %v1665 = vpack.c.b16 %v1641, %v1640
      %v1666 = vpack.c.b16 %v1643, %v1642
      %v1667 = vpack.c.b16 %v1645, %v1644
      %v1668 = vpack.c.b16 %v1647, %v1646
      %v1669 = vpack.c.b16 %v1649, %v1648
      %v1670 = vpack.c.b16 %v1651, %v1650
      %v1671 = vpack.c.b16 %v1653, %v1652
      %v1672 = vpack.c.b16 %v1655, %v1654
      %v1673 = vpack.c.b16 %v1657, %v1656
      %1690 = vmatpush.bf16.msra.mxu0 %v1665
      %1691 = vmatpush.bf16.msra.mxu0 %v1664
      %1692 = vmatpush.bf16.msra.mxu0 %v1663
      %1693 = vmatpush.bf16.msra.mxu0 %v1662
      %1694 = vmatpush.bf16.msra.mxu0 %v1661
      %1695 = vmatpush.bf16.msra.mxu0 %v1660
      %1696 = vmatpush.bf16.msra.mxu0 %v1659
      %1697 = vmatpush.bf16.msra.mxu0 %v1658
      %1698 = vmatmul.bf16.gmra.mxu0 %v1428
      %v1699 = vpop.f32.mrf.mxu0
      %v1700 = vadd.f32 0.0, %v1699
      %v1701 = vpop.f32.mrf.mxu0
      %1702 = vdwg.mxu0
      %1703 = vmatpush.bf16.msra.mxu0 %v1673
      %1704 = vmatpush.bf16.msra.mxu0 %v1672
      %1705 = vmatpush.bf16.msra.mxu0 %v1671
      %1706 = vmatpush.bf16.msra.mxu0 %v1670
      %1707 = vmatpush.bf16.msra.mxu0 %v1669
      %1708 = vmatpush.bf16.msra.mxu0 %v1668
      %1709 = vmatpush.bf16.msra.mxu0 %v1667
      %1710 = vmatpush.bf16.msra.mxu0 %v1666
      %1711 = vmatmul.bf16.gmra.mxu0 %v1435
      %v1712 = vpop.f32.mrf.mxu0
      %v1713 = vadd.f32 %v1700, %v1712
      %v1714 = vpop.f32.mrf.mxu0
      %1715 = vdwg.mxu0
      %v1716 = vadd.f32 %v1560, %v1713
      %s1717 = scalar_lea.vmem %s3, 1024
      %v1718 = vld [vmem:[%s1717] sm:$0xf]
      %v1719 = vld [vmem:[%s1717 + $0x4] sm:$0xf]
      %v1720 = vld [vmem:[%s1717 + $0x8] sm:$0xf]
      %v1721 = vld [vmem:[%s1717 + $0xc] sm:$0xf]
      %v1722 = vld [vmem:[%s1717 + $0x10] sm:$0xf]
      %v1723 = vld [vmem:[%s1717 + $0x14] sm:$0xf]
      %v1724 = vld [vmem:[%s1717 + $0x18] sm:$0xf]
      %v1725 = vld [vmem:[%s1717 + $0x1c] sm:$0xf]
      %v1726 = vld [vmem:[%s1717 + $0x20] sm:$0xf]
      %v1727 = vld [vmem:[%s1717 + $0x24] sm:$0xf]
      %v1728 = vld [vmem:[%s1717 + $0x28] sm:$0xf]
      %v1729 = vld [vmem:[%s1717 + $0x2c] sm:$0xf]
      %v1730 = vld [vmem:[%s1717 + $0x30] sm:$0xf]
      %v1731 = vld [vmem:[%s1717 + $0x34] sm:$0xf]
      %v1732 = vld [vmem:[%s1717 + $0x38] sm:$0xf]
      %v1733 = vld [vmem:[%s1717 + $0x3c] sm:$0xf]
      %v1734 = vld [vmem:[%s1717 + $0x40] sm:$0xf]
      %v1735 = vld [vmem:[%s1717 + $0x44] sm:$0xf]
      %v1736 = vld [vmem:[%s1717 + $0x48] sm:$0xf]
      %v1737 = vld [vmem:[%s1717 + $0x4c] sm:$0xf]
      %v1738 = vld [vmem:[%s1717 + $0x50] sm:$0xf]
      %v1739 = vld [vmem:[%s1717 + $0x54] sm:$0xf]
      %v1740 = vld [vmem:[%s1717 + $0x58] sm:$0xf]
      %v1741 = vld [vmem:[%s1717 + $0x5c] sm:$0xf]
      %v1742 = vld [vmem:[%s1717 + $0x60] sm:$0xf]
      %v1743 = vld [vmem:[%s1717 + $0x64] sm:$0xf]
      %v1744 = vld [vmem:[%s1717 + $0x68] sm:$0xf]
      %v1745 = vld [vmem:[%s1717 + $0x6c] sm:$0xf]
      %v1746 = vld [vmem:[%s1717 + $0x70] sm:$0xf]
      %v1747 = vld [vmem:[%s1717 + $0x74] sm:$0xf]
      %v1748 = vld [vmem:[%s1717 + $0x78] sm:$0xf]
      %v1749 = vld [vmem:[%s1717 + $0x7c] sm:$0xf]
      %v1751 = vunpack.c.l.b16 %v429
      %v1752 = vpack.c.b16 %v1751, %v780
      %v1754 = vshrl.u32 %v1752, 16
      %v1756 = vshll.u32 %v1752, 16
      %v1758 = vrot.slane %v1756, 1
      %v1759 = vor.u32 %v1754, %v1758
      %1760 = vrot.lane.b32.xlu0 %v1428, 96
      %v1761 = vpop.permute.xlu0 %1760
      %1762 = vrot.lane.b32.xlu0 %v1435, 96
      %v1763 = vpop.permute.xlu0 %1762
      %1764 = vrot.lane.b32.xlu0 %v1759, 96
      %v1765 = vpop.permute.xlu0 %1764
      %v1766 = vsel %vm788, %v1761, %v1763
      %v1767 = vsel %vm788, %v1763, %v1765
      %v1802 = vunpack.c.l.b16 %v1718
      %v1803 = vunpack.c.l.b16 %v1719
      %v1804 = vunpack.c.l.b16 %v1720
      %v1805 = vunpack.c.l.b16 %v1721
      %v1806 = vunpack.c.l.b16 %v1722
      %v1807 = vunpack.c.l.b16 %v1723
      %v1808 = vunpack.c.l.b16 %v1724
      %v1809 = vunpack.c.l.b16 %v1725
      %v1810 = vunpack.c.l.b16 %v1726
      %v1811 = vunpack.c.l.b16 %v1727
      %v1812 = vunpack.c.l.b16 %v1728
      %v1813 = vunpack.c.l.b16 %v1729
      %v1814 = vunpack.c.l.b16 %v1730
      %v1815 = vunpack.c.l.b16 %v1731
      %v1816 = vunpack.c.l.b16 %v1732
      %v1817 = vunpack.c.l.b16 %v1733
      %v1818 = vunpack.c.l.b16 %v1734
      %v1819 = vunpack.c.l.b16 %v1735
      %v1820 = vunpack.c.l.b16 %v1736
      %v1821 = vunpack.c.l.b16 %v1737
      %v1822 = vunpack.c.l.b16 %v1738
      %v1823 = vunpack.c.l.b16 %v1739
      %v1824 = vunpack.c.l.b16 %v1740
      %v1825 = vunpack.c.l.b16 %v1741
      %v1826 = vunpack.c.l.b16 %v1742
      %v1827 = vunpack.c.l.b16 %v1743
      %v1828 = vunpack.c.l.b16 %v1744
      %v1829 = vunpack.c.l.b16 %v1745
      %v1830 = vunpack.c.l.b16 %v1746
      %v1831 = vunpack.c.l.b16 %v1747
      %v1832 = vunpack.c.l.b16 %v1748
      %v1833 = vunpack.c.l.b16 %v1749
      %v1834 = vpack.c.b16 %v1803, %v1802
      %v1835 = vpack.c.b16 %v1805, %v1804
      %v1836 = vpack.c.b16 %v1807, %v1806
      %v1837 = vpack.c.b16 %v1809, %v1808
      %v1838 = vpack.c.b16 %v1811, %v1810
      %v1839 = vpack.c.b16 %v1813, %v1812
      %v1840 = vpack.c.b16 %v1815, %v1814
      %v1841 = vpack.c.b16 %v1817, %v1816
      %v1842 = vpack.c.b16 %v1819, %v1818
      %v1843 = vpack.c.b16 %v1821, %v1820
      %v1844 = vpack.c.b16 %v1823, %v1822
      %v1845 = vpack.c.b16 %v1825, %v1824
      %v1846 = vpack.c.b16 %v1827, %v1826
      %v1847 = vpack.c.b16 %v1829, %v1828
      %v1848 = vpack.c.b16 %v1831, %v1830
      %v1849 = vpack.c.b16 %v1833, %v1832
      %1866 = vmatpush.bf16.msra.mxu0 %v1841
      %1867 = vmatpush.bf16.msra.mxu0 %v1840
      %1868 = vmatpush.bf16.msra.mxu0 %v1839
      %1869 = vmatpush.bf16.msra.mxu0 %v1838
      %1870 = vmatpush.bf16.msra.mxu0 %v1837
      %1871 = vmatpush.bf16.msra.mxu0 %v1836
      %1872 = vmatpush.bf16.msra.mxu0 %v1835
      %1873 = vmatpush.bf16.msra.mxu0 %v1834
      %1874 = vmatmul.bf16.gmra.mxu0 %v1766
      %v1875 = vpop.f32.mrf.mxu0
      %v1876 = vadd.f32 0.0, %v1875
      %v1877 = vpop.f32.mrf.mxu0
      %1878 = vdwg.mxu0
      %1879 = vmatpush.bf16.msra.mxu0 %v1849
      %1880 = vmatpush.bf16.msra.mxu0 %v1848
      %1881 = vmatpush.bf16.msra.mxu0 %v1847
      %1882 = vmatpush.bf16.msra.mxu0 %v1846
      %1883 = vmatpush.bf16.msra.mxu0 %v1845
      %1884 = vmatpush.bf16.msra.mxu0 %v1844
      %1885 = vmatpush.bf16.msra.mxu0 %v1843
      %1886 = vmatpush.bf16.msra.mxu0 %v1842
      %1887 = vmatmul.bf16.gmra.mxu0 %v1767
      %v1888 = vpop.f32.mrf.mxu0
      %v1889 = vadd.f32 %v1876, %v1888
      %v1890 = vpop.f32.mrf.mxu0
      %1891 = vdwg.mxu0
      %v1892 = vadd.f32 %v1716, %v1889
      %v1893 = vld [vmem:[%s388] sm:$0xff]
      %v1894 = vld [vmem:[%s388 + $0x8] sm:$0xf]
      %v1895 = vld [vmem:[%s388 + $0xc] sm:$0x11]
      %v1896 = vld [vmem:[%s388 + $0x14] sm:$0x1]
      %s1897 = scalar_lea.vmem %s3, 1152
      %v1898 = vld [vmem:[%s1897] sm:$0xf]
      %v1899 = vld [vmem:[%s1897 + $0x4] sm:$0xf]
      %v1900 = vld [vmem:[%s1897 + $0x8] sm:$0xf]
      %v1901 = vld [vmem:[%s1897 + $0xc] sm:$0xf]
      %v1902 = vld [vmem:[%s1897 + $0x10] sm:$0xf]
      %v1903 = vld [vmem:[%s1897 + $0x14] sm:$0xf]
      %v1904 = vld [vmem:[%s1897 + $0x18] sm:$0xf]
      %v1905 = vld [vmem:[%s1897 + $0x1c] sm:$0xf]
      %v1906 = vld [vmem:[%s1897 + $0x20] sm:$0xf]
      %v1907 = vld [vmem:[%s1897 + $0x24] sm:$0xf]
      %v1908 = vld [vmem:[%s1897 + $0x28] sm:$0xf]
      %v1909 = vld [vmem:[%s1897 + $0x2c] sm:$0xf]
      %v1910 = vld [vmem:[%s1897 + $0x30] sm:$0xf]
      %v1911 = vld [vmem:[%s1897 + $0x34] sm:$0xf]
      %v1912 = vld [vmem:[%s1897 + $0x38] sm:$0xf]
      %v1913 = vld [vmem:[%s1897 + $0x3c] sm:$0xf]
      %v1914 = vld [vmem:[%s1897 + $0x40] sm:$0xf]
      %v1915 = vld [vmem:[%s1897 + $0x44] sm:$0xf]
      %v1916 = vld [vmem:[%s1897 + $0x48] sm:$0xf]
      %v1917 = vld [vmem:[%s1897 + $0x4c] sm:$0xf]
      %v1918 = vld [vmem:[%s1897 + $0x50] sm:$0xf]
      %v1919 = vld [vmem:[%s1897 + $0x54] sm:$0xf]
      %v1920 = vld [vmem:[%s1897 + $0x58] sm:$0xf]
      %v1921 = vld [vmem:[%s1897 + $0x5c] sm:$0xf]
      %v1922 = vld [vmem:[%s1897 + $0x60] sm:$0xf]
      %v1923 = vld [vmem:[%s1897 + $0x64] sm:$0xf]
      %v1924 = vld [vmem:[%s1897 + $0x68] sm:$0xf]
      %v1925 = vld [vmem:[%s1897 + $0x6c] sm:$0xf]
      %v1926 = vld [vmem:[%s1897 + $0x70] sm:$0xf]
      %v1927 = vld [vmem:[%s1897 + $0x74] sm:$0xf]
      %v1928 = vld [vmem:[%s1897 + $0x78] sm:$0xf]
      %v1929 = vld [vmem:[%s1897 + $0x7c] sm:$0xf]
      %v1931 = vunpack.c.l.b16 %v1893
      %v1932 = vunpack.c.h.b16 %v1893
      %v1933 = vpack.c.b16 %v1931, %v1931
      %v1934 = vpack.c.b16 %v1932, %v1932
      %v1969 = vunpack.c.l.b16 %v1898
      %v1970 = vunpack.c.l.b16 %v1899
      %v1971 = vunpack.c.l.b16 %v1900
      %v1972 = vunpack.c.l.b16 %v1901
      %v1973 = vunpack.c.l.b16 %v1902
      %v1974 = vunpack.c.l.b16 %v1903
      %v1975 = vunpack.c.l.b16 %v1904
      %v1976 = vunpack.c.l.b16 %v1905
      %v1977 = vunpack.c.l.b16 %v1906
      %v1978 = vunpack.c.l.b16 %v1907
      %v1979 = vunpack.c.l.b16 %v1908
      %v1980 = vunpack.c.l.b16 %v1909
      %v1981 = vunpack.c.l.b16 %v1910
      %v1982 = vunpack.c.l.b16 %v1911
      %v1983 = vunpack.c.l.b16 %v1912
      %v1984 = vunpack.c.l.b16 %v1913
      %v1985 = vunpack.c.l.b16 %v1914
      %v1986 = vunpack.c.l.b16 %v1915
      %v1987 = vunpack.c.l.b16 %v1916
      %v1988 = vunpack.c.l.b16 %v1917
      %v1989 = vunpack.c.l.b16 %v1918
      %v1990 = vunpack.c.l.b16 %v1919
      %v1991 = vunpack.c.l.b16 %v1920
      %v1992 = vunpack.c.l.b16 %v1921
      %v1993 = vunpack.c.l.b16 %v1922
      %v1994 = vunpack.c.l.b16 %v1923
      %v1995 = vunpack.c.l.b16 %v1924
      %v1996 = vunpack.c.l.b16 %v1925
      %v1997 = vunpack.c.l.b16 %v1926
      %v1998 = vunpack.c.l.b16 %v1927
      %v1999 = vunpack.c.l.b16 %v1928
      %v2000 = vunpack.c.l.b16 %v1929
      %v2001 = vpack.c.b16 %v1970, %v1969
      %v2002 = vpack.c.b16 %v1972, %v1971
      %v2003 = vpack.c.b16 %v1974, %v1973
      %v2004 = vpack.c.b16 %v1976, %v1975
      %v2005 = vpack.c.b16 %v1978, %v1977
      %v2006 = vpack.c.b16 %v1980, %v1979
      %v2007 = vpack.c.b16 %v1982, %v1981
      %v2008 = vpack.c.b16 %v1984, %v1983
      %v2009 = vpack.c.b16 %v1986, %v1985
      %v2010 = vpack.c.b16 %v1988, %v1987
      %v2011 = vpack.c.b16 %v1990, %v1989
      %v2012 = vpack.c.b16 %v1992, %v1991
      %v2013 = vpack.c.b16 %v1994, %v1993
      %v2014 = vpack.c.b16 %v1996, %v1995
      %v2015 = vpack.c.b16 %v1998, %v1997
      %v2016 = vpack.c.b16 %v2000, %v1999
      %2033 = vmatpush.bf16.msra.mxu0 %v2008
      %2034 = vmatpush.bf16.msra.mxu0 %v2007
      %2035 = vmatpush.bf16.msra.mxu0 %v2006
      %2036 = vmatpush.bf16.msra.mxu0 %v2005
      %2037 = vmatpush.bf16.msra.mxu0 %v2004
      %2038 = vmatpush.bf16.msra.mxu0 %v2003
      %2039 = vmatpush.bf16.msra.mxu0 %v2002
      %2040 = vmatpush.bf16.msra.mxu0 %v2001
      %2041 = vmatmul.bf16.gmra.mxu0 %v1933
      %v2042 = vpop.f32.mrf.mxu0
      %v2043 = vadd.f32 0.0, %v2042
      %v2044 = vpop.f32.mrf.mxu0
      %2045 = vdwg.mxu0
      %2046 = vmatpush.bf16.msra.mxu0 %v2016
      %2047 = vmatpush.bf16.msra.mxu0 %v2015
      %2048 = vmatpush.bf16.msra.mxu0 %v2014
      %2049 = vmatpush.bf16.msra.mxu0 %v2013
      %2050 = vmatpush.bf16.msra.mxu0 %v2012
      %2051 = vmatpush.bf16.msra.mxu0 %v2011
      %2052 = vmatpush.bf16.msra.mxu0 %v2010
      %2053 = vmatpush.bf16.msra.mxu0 %v2009
      %2054 = vmatmul.bf16.gmra.mxu0 %v1934
      %v2055 = vpop.f32.mrf.mxu0
      %v2056 = vadd.f32 %v2043, %v2055
      %v2057 = vpop.f32.mrf.mxu0
      %2058 = vdwg.mxu0
      %v2059 = vadd.f32 %v1892, %v2056
      %s2060 = scalar_lea.vmem %s3, 1280
      %v2061 = vld [vmem:[%s2060] sm:$0xf]
      %v2062 = vld [vmem:[%s2060 + $0x4] sm:$0xf]
      %v2063 = vld [vmem:[%s2060 + $0x8] sm:$0xf]
      %v2064 = vld [vmem:[%s2060 + $0xc] sm:$0xf]
      %v2065 = vld [vmem:[%s2060 + $0x10] sm:$0xf]
      %v2066 = vld [vmem:[%s2060 + $0x14] sm:$0xf]
      %v2067 = vld [vmem:[%s2060 + $0x18] sm:$0xf]
      %v2068 = vld [vmem:[%s2060 + $0x1c] sm:$0xf]
      %v2069 = vld [vmem:[%s2060 + $0x20] sm:$0xf]
      %v2070 = vld [vmem:[%s2060 + $0x24] sm:$0xf]
      %v2071 = vld [vmem:[%s2060 + $0x28] sm:$0xf]
      %v2072 = vld [vmem:[%s2060 + $0x2c] sm:$0xf]
      %v2073 = vld [vmem:[%s2060 + $0x30] sm:$0xf]
      %v2074 = vld [vmem:[%s2060 + $0x34] sm:$0xf]
      %v2075 = vld [vmem:[%s2060 + $0x38] sm:$0xf]
      %v2076 = vld [vmem:[%s2060 + $0x3c] sm:$0xf]
      %v2077 = vld [vmem:[%s2060 + $0x40] sm:$0xf]
      %v2078 = vld [vmem:[%s2060 + $0x44] sm:$0xf]
      %v2079 = vld [vmem:[%s2060 + $0x48] sm:$0xf]
      %v2080 = vld [vmem:[%s2060 + $0x4c] sm:$0xf]
      %v2081 = vld [vmem:[%s2060 + $0x50] sm:$0xf]
      %v2082 = vld [vmem:[%s2060 + $0x54] sm:$0xf]
      %v2083 = vld [vmem:[%s2060 + $0x58] sm:$0xf]
      %v2084 = vld [vmem:[%s2060 + $0x5c] sm:$0xf]
      %v2085 = vld [vmem:[%s2060 + $0x60] sm:$0xf]
      %v2086 = vld [vmem:[%s2060 + $0x64] sm:$0xf]
      %v2087 = vld [vmem:[%s2060 + $0x68] sm:$0xf]
      %v2088 = vld [vmem:[%s2060 + $0x6c] sm:$0xf]
      %v2089 = vld [vmem:[%s2060 + $0x70] sm:$0xf]
      %v2090 = vld [vmem:[%s2060 + $0x74] sm:$0xf]
      %v2091 = vld [vmem:[%s2060 + $0x78] sm:$0xf]
      %v2092 = vld [vmem:[%s2060 + $0x7c] sm:$0xf]
      %v2125 = vunpack.c.l.b16 %v2061
      %v2126 = vunpack.c.l.b16 %v2062
      %v2127 = vunpack.c.l.b16 %v2063
      %v2128 = vunpack.c.l.b16 %v2064
      %v2129 = vunpack.c.l.b16 %v2065
      %v2130 = vunpack.c.l.b16 %v2066
      %v2131 = vunpack.c.l.b16 %v2067
      %v2132 = vunpack.c.l.b16 %v2068
      %v2133 = vunpack.c.l.b16 %v2069
      %v2134 = vunpack.c.l.b16 %v2070
      %v2135 = vunpack.c.l.b16 %v2071
      %v2136 = vunpack.c.l.b16 %v2072
      %v2137 = vunpack.c.l.b16 %v2073
      %v2138 = vunpack.c.l.b16 %v2074
      %v2139 = vunpack.c.l.b16 %v2075
      %v2140 = vunpack.c.l.b16 %v2076
      %v2141 = vunpack.c.l.b16 %v2077
      %v2142 = vunpack.c.l.b16 %v2078
      %v2143 = vunpack.c.l.b16 %v2079
      %v2144 = vunpack.c.l.b16 %v2080
      %v2145 = vunpack.c.l.b16 %v2081
      %v2146 = vunpack.c.l.b16 %v2082
      %v2147 = vunpack.c.l.b16 %v2083
      %v2148 = vunpack.c.l.b16 %v2084
      %v2149 = vunpack.c.l.b16 %v2085
      %v2150 = vunpack.c.l.b16 %v2086
      %v2151 = vunpack.c.l.b16 %v2087
      %v2152 = vunpack.c.l.b16 %v2088
      %v2153 = vunpack.c.l.b16 %v2089
      %v2154 = vunpack.c.l.b16 %v2090
      %v2155 = vunpack.c.l.b16 %v2091
      %v2156 = vunpack.c.l.b16 %v2092
      %v2157 = vpack.c.b16 %v2126, %v2125
      %v2158 = vpack.c.b16 %v2128, %v2127
      %v2159 = vpack.c.b16 %v2130, %v2129
      %v2160 = vpack.c.b16 %v2132, %v2131
      %v2161 = vpack.c.b16 %v2134, %v2133
      %v2162 = vpack.c.b16 %v2136, %v2135
      %v2163 = vpack.c.b16 %v2138, %v2137
      %v2164 = vpack.c.b16 %v2140, %v2139
      %v2165 = vpack.c.b16 %v2142, %v2141
      %v2166 = vpack.c.b16 %v2144, %v2143
      %v2167 = vpack.c.b16 %v2146, %v2145
      %v2168 = vpack.c.b16 %v2148, %v2147
      %v2169 = vpack.c.b16 %v2150, %v2149
      %v2170 = vpack.c.b16 %v2152, %v2151
      %v2171 = vpack.c.b16 %v2154, %v2153
      %v2172 = vpack.c.b16 %v2156, %v2155
      %2189 = vmatpush.bf16.msra.mxu0 %v2164
      %2190 = vmatpush.bf16.msra.mxu0 %v2163
      %2191 = vmatpush.bf16.msra.mxu0 %v2162
      %2192 = vmatpush.bf16.msra.mxu0 %v2161
      %2193 = vmatpush.bf16.msra.mxu0 %v2160
      %2194 = vmatpush.bf16.msra.mxu0 %v2159
      %2195 = vmatpush.bf16.msra.mxu0 %v2158
      %2196 = vmatpush.bf16.msra.mxu0 %v2157
      %2197 = vmatmul.bf16.gmra.mxu0 %v1933
      %v2198 = vpop.f32.mrf.mxu0
      %v2199 = vadd.f32 0.0, %v2198
      %v2200 = vpop.f32.mrf.mxu0
      %2201 = vdwg.mxu0
      %2202 = vmatpush.bf16.msra.mxu0 %v2172
      %2203 = vmatpush.bf16.msra.mxu0 %v2171
      %2204 = vmatpush.bf16.msra.mxu0 %v2170
      %2205 = vmatpush.bf16.msra.mxu0 %v2169
      %2206 = vmatpush.bf16.msra.mxu0 %v2168
      %2207 = vmatpush.bf16.msra.mxu0 %v2167
      %2208 = vmatpush.bf16.msra.mxu0 %v2166
      %2209 = vmatpush.bf16.msra.mxu0 %v2165
      %2210 = vmatmul.bf16.gmra.mxu0 %v1934
      %v2211 = vpop.f32.mrf.mxu0
      %v2212 = vadd.f32 %v2199, %v2211
      %v2213 = vpop.f32.mrf.mxu0
      %2214 = vdwg.mxu0
      %v2215 = vadd.f32 %v2059, %v2212
      %s2216 = scalar_lea.vmem %s3, 1408
      %v2217 = vld [vmem:[%s2216] sm:$0xf]
      %v2218 = vld [vmem:[%s2216 + $0x4] sm:$0xf]
      %v2219 = vld [vmem:[%s2216 + $0x8] sm:$0xf]
      %v2220 = vld [vmem:[%s2216 + $0xc] sm:$0xf]
      %v2221 = vld [vmem:[%s2216 + $0x10] sm:$0xf]
      %v2222 = vld [vmem:[%s2216 + $0x14] sm:$0xf]
      %v2223 = vld [vmem:[%s2216 + $0x18] sm:$0xf]
      %v2224 = vld [vmem:[%s2216 + $0x1c] sm:$0xf]
      %v2225 = vld [vmem:[%s2216 + $0x20] sm:$0xf]
      %v2226 = vld [vmem:[%s2216 + $0x24] sm:$0xf]
      %v2227 = vld [vmem:[%s2216 + $0x28] sm:$0xf]
      %v2228 = vld [vmem:[%s2216 + $0x2c] sm:$0xf]
      %v2229 = vld [vmem:[%s2216 + $0x30] sm:$0xf]
      %v2230 = vld [vmem:[%s2216 + $0x34] sm:$0xf]
      %v2231 = vld [vmem:[%s2216 + $0x38] sm:$0xf]
      %v2232 = vld [vmem:[%s2216 + $0x3c] sm:$0xf]
      %v2233 = vld [vmem:[%s2216 + $0x40] sm:$0xf]
      %v2234 = vld [vmem:[%s2216 + $0x44] sm:$0xf]
      %v2235 = vld [vmem:[%s2216 + $0x48] sm:$0xf]
      %v2236 = vld [vmem:[%s2216 + $0x4c] sm:$0xf]
      %v2237 = vld [vmem:[%s2216 + $0x50] sm:$0xf]
      %v2238 = vld [vmem:[%s2216 + $0x54] sm:$0xf]
      %v2239 = vld [vmem:[%s2216 + $0x58] sm:$0xf]
      %v2240 = vld [vmem:[%s2216 + $0x5c] sm:$0xf]
      %v2241 = vld [vmem:[%s2216 + $0x60] sm:$0xf]
      %v2242 = vld [vmem:[%s2216 + $0x64] sm:$0xf]
      %v2243 = vld [vmem:[%s2216 + $0x68] sm:$0xf]
      %v2244 = vld [vmem:[%s2216 + $0x6c] sm:$0xf]
      %v2245 = vld [vmem:[%s2216 + $0x70] sm:$0xf]
      %v2246 = vld [vmem:[%s2216 + $0x74] sm:$0xf]
      %v2247 = vld [vmem:[%s2216 + $0x78] sm:$0xf]
      %v2248 = vld [vmem:[%s2216 + $0x7c] sm:$0xf]
      %v2250 = vunpack.c.l.b16 %v1894
      %v2251 = vpack.c.b16 %v2250, %v2250
      %2252 = vrot.lane.b32.xlu0 %v1933, 96
      %v2253 = vpop.permute.xlu0 %2252
      %2254 = vrot.lane.b32.xlu0 %v1934, 96
      %v2255 = vpop.permute.xlu0 %2254
      %2256 = vrot.lane.b32.xlu0 %v2251, 96
      %v2257 = vpop.permute.xlu0 %2256
      %v2258 = vsel %vm788, %v2253, %v2255
      %v2259 = vsel %vm788, %v2255, %v2257
      %v2294 = vunpack.c.l.b16 %v2217
      %v2295 = vunpack.c.l.b16 %v2218
      %v2296 = vunpack.c.l.b16 %v2219
      %v2297 = vunpack.c.l.b16 %v2220
      %v2298 = vunpack.c.l.b16 %v2221
      %v2299 = vunpack.c.l.b16 %v2222
      %v2300 = vunpack.c.l.b16 %v2223
      %v2301 = vunpack.c.l.b16 %v2224
      %v2302 = vunpack.c.l.b16 %v2225
      %v2303 = vunpack.c.l.b16 %v2226
      %v2304 = vunpack.c.l.b16 %v2227
      %v2305 = vunpack.c.l.b16 %v2228
      %v2306 = vunpack.c.l.b16 %v2229
      %v2307 = vunpack.c.l.b16 %v2230
      %v2308 = vunpack.c.l.b16 %v2231
      %v2309 = vunpack.c.l.b16 %v2232
      %v2310 = vunpack.c.l.b16 %v2233
      %v2311 = vunpack.c.l.b16 %v2234
      %v2312 = vunpack.c.l.b16 %v2235
      %v2313 = vunpack.c.l.b16 %v2236
      %v2314 = vunpack.c.l.b16 %v2237
      %v2315 = vunpack.c.l.b16 %v2238
      %v2316 = vunpack.c.l.b16 %v2239
      %v2317 = vunpack.c.l.b16 %v2240
      %v2318 = vunpack.c.l.b16 %v2241
      %v2319 = vunpack.c.l.b16 %v2242
      %v2320 = vunpack.c.l.b16 %v2243
      %v2321 = vunpack.c.l.b16 %v2244
      %v2322 = vunpack.c.l.b16 %v2245
      %v2323 = vunpack.c.l.b16 %v2246
      %v2324 = vunpack.c.l.b16 %v2247
      %v2325 = vunpack.c.l.b16 %v2248
      %v2326 = vpack.c.b16 %v2295, %v2294
      %v2327 = vpack.c.b16 %v2297, %v2296
      %v2328 = vpack.c.b16 %v2299, %v2298
      %v2329 = vpack.c.b16 %v2301, %v2300
      %v2330 = vpack.c.b16 %v2303, %v2302
      %v2331 = vpack.c.b16 %v2305, %v2304
      %v2332 = vpack.c.b16 %v2307, %v2306
      %v2333 = vpack.c.b16 %v2309, %v2308
      %v2334 = vpack.c.b16 %v2311, %v2310
      %v2335 = vpack.c.b16 %v2313, %v2312
      %v2336 = vpack.c.b16 %v2315, %v2314
      %v2337 = vpack.c.b16 %v2317, %v2316
      %v2338 = vpack.c.b16 %v2319, %v2318
      %v2339 = vpack.c.b16 %v2321, %v2320
      %v2340 = vpack.c.b16 %v2323, %v2322
      %v2341 = vpack.c.b16 %v2325, %v2324
      %2358 = vmatpush.bf16.msra.mxu0 %v2333
      %2359 = vmatpush.bf16.msra.mxu0 %v2332
      %2360 = vmatpush.bf16.msra.mxu0 %v2331
      %2361 = vmatpush.bf16.msra.mxu0 %v2330
      %2362 = vmatpush.bf16.msra.mxu0 %v2329
      %2363 = vmatpush.bf16.msra.mxu0 %v2328
      %2364 = vmatpush.bf16.msra.mxu0 %v2327
      %2365 = vmatpush.bf16.msra.mxu0 %v2326
      %2366 = vmatmul.bf16.gmra.mxu0 %v2258
      %v2367 = vpop.f32.mrf.mxu0
      %v2368 = vadd.f32 0.0, %v2367
      %v2369 = vpop.f32.mrf.mxu0
      %2370 = vdwg.mxu0
      %2371 = vmatpush.bf16.msra.mxu0 %v2341
      %2372 = vmatpush.bf16.msra.mxu0 %v2340
      %2373 = vmatpush.bf16.msra.mxu0 %v2339
      %2374 = vmatpush.bf16.msra.mxu0 %v2338
      %2375 = vmatpush.bf16.msra.mxu0 %v2337
      %2376 = vmatpush.bf16.msra.mxu0 %v2336
      %2377 = vmatpush.bf16.msra.mxu0 %v2335
      %2378 = vmatpush.bf16.msra.mxu0 %v2334
      %2379 = vmatmul.bf16.gmra.mxu0 %v2259
      %v2380 = vpop.f32.mrf.mxu0
      %v2381 = vadd.f32 %v2368, %v2380
      %v2382 = vpop.f32.mrf.mxu0
      %2383 = vdwg.mxu0
      %v2384 = vadd.f32 %v2215, %v2381
      %s2385 = scalar_lea.vmem %s3, 1536
      %v2386 = vld [vmem:[%s2385] sm:$0xf]
      %v2387 = vld [vmem:[%s2385 + $0x4] sm:$0xf]
      %v2388 = vld [vmem:[%s2385 + $0x8] sm:$0xf]
      %v2389 = vld [vmem:[%s2385 + $0xc] sm:$0xf]
      %v2390 = vld [vmem:[%s2385 + $0x10] sm:$0xf]
      %v2391 = vld [vmem:[%s2385 + $0x14] sm:$0xf]
      %v2392 = vld [vmem:[%s2385 + $0x18] sm:$0xf]
      %v2393 = vld [vmem:[%s2385 + $0x1c] sm:$0xf]
      %v2394 = vld [vmem:[%s2385 + $0x20] sm:$0xf]
      %v2395 = vld [vmem:[%s2385 + $0x24] sm:$0xf]
      %v2396 = vld [vmem:[%s2385 + $0x28] sm:$0xf]
      %v2397 = vld [vmem:[%s2385 + $0x2c] sm:$0xf]
      %v2398 = vld [vmem:[%s2385 + $0x30] sm:$0xf]
      %v2399 = vld [vmem:[%s2385 + $0x34] sm:$0xf]
      %v2400 = vld [vmem:[%s2385 + $0x38] sm:$0xf]
      %v2401 = vld [vmem:[%s2385 + $0x3c] sm:$0xf]
      %v2402 = vld [vmem:[%s2385 + $0x40] sm:$0xf]
      %v2403 = vld [vmem:[%s2385 + $0x44] sm:$0xf]
      %v2404 = vld [vmem:[%s2385 + $0x48] sm:$0xf]
      %v2405 = vld [vmem:[%s2385 + $0x4c] sm:$0xf]
      %v2406 = vld [vmem:[%s2385 + $0x50] sm:$0xf]
      %v2407 = vld [vmem:[%s2385 + $0x54] sm:$0xf]
      %v2408 = vld [vmem:[%s2385 + $0x58] sm:$0xf]
      %v2409 = vld [vmem:[%s2385 + $0x5c] sm:$0xf]
      %v2410 = vld [vmem:[%s2385 + $0x60] sm:$0xf]
      %v2411 = vld [vmem:[%s2385 + $0x64] sm:$0xf]
      %v2412 = vld [vmem:[%s2385 + $0x68] sm:$0xf]
      %v2413 = vld [vmem:[%s2385 + $0x6c] sm:$0xf]
      %v2414 = vld [vmem:[%s2385 + $0x70] sm:$0xf]
      %v2415 = vld [vmem:[%s2385 + $0x74] sm:$0xf]
      %v2416 = vld [vmem:[%s2385 + $0x78] sm:$0xf]
      %v2417 = vld [vmem:[%s2385 + $0x7c] sm:$0xf]
      %v2450 = vunpack.c.l.b16 %v2386
      %v2451 = vunpack.c.l.b16 %v2387
      %v2452 = vunpack.c.l.b16 %v2388
      %v2453 = vunpack.c.l.b16 %v2389
      %v2454 = vunpack.c.l.b16 %v2390
      %v2455 = vunpack.c.l.b16 %v2391
      %v2456 = vunpack.c.l.b16 %v2392
      %v2457 = vunpack.c.l.b16 %v2393
      %v2458 = vunpack.c.l.b16 %v2394
      %v2459 = vunpack.c.l.b16 %v2395
      %v2460 = vunpack.c.l.b16 %v2396
      %v2461 = vunpack.c.l.b16 %v2397
      %v2462 = vunpack.c.l.b16 %v2398
      %v2463 = vunpack.c.l.b16 %v2399
      %v2464 = vunpack.c.l.b16 %v2400
      %v2465 = vunpack.c.l.b16 %v2401
      %v2466 = vunpack.c.l.b16 %v2402
      %v2467 = vunpack.c.l.b16 %v2403
      %v2468 = vunpack.c.l.b16 %v2404
      %v2469 = vunpack.c.l.b16 %v2405
      %v2470 = vunpack.c.l.b16 %v2406
      %v2471 = vunpack.c.l.b16 %v2407
      %v2472 = vunpack.c.l.b16 %v2408
      %v2473 = vunpack.c.l.b16 %v2409
      %v2474 = vunpack.c.l.b16 %v2410
      %v2475 = vunpack.c.l.b16 %v2411
      %v2476 = vunpack.c.l.b16 %v2412
      %v2477 = vunpack.c.l.b16 %v2413
      %v2478 = vunpack.c.l.b16 %v2414
      %v2479 = vunpack.c.l.b16 %v2415
      %v2480 = vunpack.c.l.b16 %v2416
      %v2481 = vunpack.c.l.b16 %v2417
      %v2482 = vpack.c.b16 %v2451, %v2450
      %v2483 = vpack.c.b16 %v2453, %v2452
      %v2484 = vpack.c.b16 %v2455, %v2454
      %v2485 = vpack.c.b16 %v2457, %v2456
      %v2486 = vpack.c.b16 %v2459, %v2458
      %v2487 = vpack.c.b16 %v2461, %v2460
      %v2488 = vpack.c.b16 %v2463, %v2462
      %v2489 = vpack.c.b16 %v2465, %v2464
      %v2490 = vpack.c.b16 %v2467, %v2466
      %v2491 = vpack.c.b16 %v2469, %v2468
      %v2492 = vpack.c.b16 %v2471, %v2470
      %v2493 = vpack.c.b16 %v2473, %v2472
      %v2494 = vpack.c.b16 %v2475, %v2474
      %v2495 = vpack.c.b16 %v2477, %v2476
      %v2496 = vpack.c.b16 %v2479, %v2478
      %v2497 = vpack.c.b16 %v2481, %v2480
      %2514 = vmatpush.bf16.msra.mxu0 %v2489
      %2515 = vmatpush.bf16.msra.mxu0 %v2488
      %2516 = vmatpush.bf16.msra.mxu0 %v2487
      %2517 = vmatpush.bf16.msra.mxu0 %v2486
      %2518 = vmatpush.bf16.msra.mxu0 %v2485
      %2519 = vmatpush.bf16.msra.mxu0 %v2484
      %2520 = vmatpush.bf16.msra.mxu0 %v2483
      %2521 = vmatpush.bf16.msra.mxu0 %v2482
      %2522 = vmatmul.bf16.gmra.mxu0 %v1933
      %v2523 = vpop.f32.mrf.mxu0
      %v2524 = vadd.f32 0.0, %v2523
      %v2525 = vpop.f32.mrf.mxu0
      %2526 = vdwg.mxu0
      %2527 = vmatpush.bf16.msra.mxu0 %v2497
      %2528 = vmatpush.bf16.msra.mxu0 %v2496
      %2529 = vmatpush.bf16.msra.mxu0 %v2495
      %2530 = vmatpush.bf16.msra.mxu0 %v2494
      %2531 = vmatpush.bf16.msra.mxu0 %v2493
      %2532 = vmatpush.bf16.msra.mxu0 %v2492
      %2533 = vmatpush.bf16.msra.mxu0 %v2491
      %2534 = vmatpush.bf16.msra.mxu0 %v2490
      %2535 = vmatmul.bf16.gmra.mxu0 %v1934
      %v2536 = vpop.f32.mrf.mxu0
      %v2537 = vadd.f32 %v2524, %v2536
      %v2538 = vpop.f32.mrf.mxu0
      %2539 = vdwg.mxu0
      %v2540 = vadd.f32 %v2384, %v2537
      %s2541 = scalar_lea.vmem %s3, 1664
      %v2542 = vld [vmem:[%s2541] sm:$0xf]
      %v2543 = vld [vmem:[%s2541 + $0x4] sm:$0xf]
      %v2544 = vld [vmem:[%s2541 + $0x8] sm:$0xf]
      %v2545 = vld [vmem:[%s2541 + $0xc] sm:$0xf]
      %v2546 = vld [vmem:[%s2541 + $0x10] sm:$0xf]
      %v2547 = vld [vmem:[%s2541 + $0x14] sm:$0xf]
      %v2548 = vld [vmem:[%s2541 + $0x18] sm:$0xf]
      %v2549 = vld [vmem:[%s2541 + $0x1c] sm:$0xf]
      %v2550 = vld [vmem:[%s2541 + $0x20] sm:$0xf]
      %v2551 = vld [vmem:[%s2541 + $0x24] sm:$0xf]
      %v2552 = vld [vmem:[%s2541 + $0x28] sm:$0xf]
      %v2553 = vld [vmem:[%s2541 + $0x2c] sm:$0xf]
      %v2554 = vld [vmem:[%s2541 + $0x30] sm:$0xf]
      %v2555 = vld [vmem:[%s2541 + $0x34] sm:$0xf]
      %v2556 = vld [vmem:[%s2541 + $0x38] sm:$0xf]
      %v2557 = vld [vmem:[%s2541 + $0x3c] sm:$0xf]
      %v2558 = vld [vmem:[%s2541 + $0x40] sm:$0xf]
      %v2559 = vld [vmem:[%s2541 + $0x44] sm:$0xf]
      %v2560 = vld [vmem:[%s2541 + $0x48] sm:$0xf]
      %v2561 = vld [vmem:[%s2541 + $0x4c] sm:$0xf]
      %v2562 = vld [vmem:[%s2541 + $0x50] sm:$0xf]
      %v2563 = vld [vmem:[%s2541 + $0x54] sm:$0xf]
      %v2564 = vld [vmem:[%s2541 + $0x58] sm:$0xf]
      %v2565 = vld [vmem:[%s2541 + $0x5c] sm:$0xf]
      %v2566 = vld [vmem:[%s2541 + $0x60] sm:$0xf]
      %v2567 = vld [vmem:[%s2541 + $0x64] sm:$0xf]
      %v2568 = vld [vmem:[%s2541 + $0x68] sm:$0xf]
      %v2569 = vld [vmem:[%s2541 + $0x6c] sm:$0xf]
      %v2570 = vld [vmem:[%s2541 + $0x70] sm:$0xf]
      %v2571 = vld [vmem:[%s2541 + $0x74] sm:$0xf]
      %v2572 = vld [vmem:[%s2541 + $0x78] sm:$0xf]
      %v2573 = vld [vmem:[%s2541 + $0x7c] sm:$0xf]
      %v2606 = vunpack.c.l.b16 %v2542
      %v2607 = vunpack.c.l.b16 %v2543
      %v2608 = vunpack.c.l.b16 %v2544
      %v2609 = vunpack.c.l.b16 %v2545
      %v2610 = vunpack.c.l.b16 %v2546
      %v2611 = vunpack.c.l.b16 %v2547
      %v2612 = vunpack.c.l.b16 %v2548
      %v2613 = vunpack.c.l.b16 %v2549
      %v2614 = vunpack.c.l.b16 %v2550
      %v2615 = vunpack.c.l.b16 %v2551
      %v2616 = vunpack.c.l.b16 %v2552
      %v2617 = vunpack.c.l.b16 %v2553
      %v2618 = vunpack.c.l.b16 %v2554
      %v2619 = vunpack.c.l.b16 %v2555
      %v2620 = vunpack.c.l.b16 %v2556
      %v2621 = vunpack.c.l.b16 %v2557
      %v2622 = vunpack.c.l.b16 %v2558
      %v2623 = vunpack.c.l.b16 %v2559
      %v2624 = vunpack.c.l.b16 %v2560
      %v2625 = vunpack.c.l.b16 %v2561
      %v2626 = vunpack.c.l.b16 %v2562
      %v2627 = vunpack.c.l.b16 %v2563
      %v2628 = vunpack.c.l.b16 %v2564
      %v2629 = vunpack.c.l.b16 %v2565
      %v2630 = vunpack.c.l.b16 %v2566
      %v2631 = vunpack.c.l.b16 %v2567
      %v2632 = vunpack.c.l.b16 %v2568
      %v2633 = vunpack.c.l.b16 %v2569
      %v2634 = vunpack.c.l.b16 %v2570
      %v2635 = vunpack.c.l.b16 %v2571
      %v2636 = vunpack.c.l.b16 %v2572
      %v2637 = vunpack.c.l.b16 %v2573
      %v2638 = vpack.c.b16 %v2607, %v2606
      %v2639 = vpack.c.b16 %v2609, %v2608
      %v2640 = vpack.c.b16 %v2611, %v2610
      %v2641 = vpack.c.b16 %v2613, %v2612
      %v2642 = vpack.c.b16 %v2615, %v2614
      %v2643 = vpack.c.b16 %v2617, %v2616
      %v2644 = vpack.c.b16 %v2619, %v2618
      %v2645 = vpack.c.b16 %v2621, %v2620
      %v2646 = vpack.c.b16 %v2623, %v2622
      %v2647 = vpack.c.b16 %v2625, %v2624
      %v2648 = vpack.c.b16 %v2627, %v2626
      %v2649 = vpack.c.b16 %v2629, %v2628
      %v2650 = vpack.c.b16 %v2631, %v2630
      %v2651 = vpack.c.b16 %v2633, %v2632
      %v2652 = vpack.c.b16 %v2635, %v2634
      %v2653 = vpack.c.b16 %v2637, %v2636
      %2670 = vmatpush.bf16.msra.mxu0 %v2645
      %2671 = vmatpush.bf16.msra.mxu0 %v2644
      %2672 = vmatpush.bf16.msra.mxu0 %v2643
      %2673 = vmatpush.bf16.msra.mxu0 %v2642
      %2674 = vmatpush.bf16.msra.mxu0 %v2641
      %2675 = vmatpush.bf16.msra.mxu0 %v2640
      %2676 = vmatpush.bf16.msra.mxu0 %v2639
      %2677 = vmatpush.bf16.msra.mxu0 %v2638
      %2678 = vmatmul.bf16.gmra.mxu0 %v1933
      %v2679 = vpop.f32.mrf.mxu0
      %v2680 = vadd.f32 0.0, %v2679
      %v2681 = vpop.f32.mrf.mxu0
      %2682 = vdwg.mxu0
      %2683 = vmatpush.bf16.msra.mxu0 %v2653
      %2684 = vmatpush.bf16.msra.mxu0 %v2652
      %2685 = vmatpush.bf16.msra.mxu0 %v2651
      %2686 = vmatpush.bf16.msra.mxu0 %v2650
      %2687 = vmatpush.bf16.msra.mxu0 %v2649
      %2688 = vmatpush.bf16.msra.mxu0 %v2648
      %2689 = vmatpush.bf16.msra.mxu0 %v2647
      %2690 = vmatpush.bf16.msra.mxu0 %v2646
      %2691 = vmatmul.bf16.gmra.mxu0 %v1934
      %v2692 = vpop.f32.mrf.mxu0
      %v2693 = vadd.f32 %v2680, %v2692
      %v2694 = vpop.f32.mrf.mxu0
      %2695 = vdwg.mxu0
      %v2696 = vadd.f32 %v2540, %v2693
      %s2697 = scalar_lea.vmem %s3, 1792
      %v2698 = vld [vmem:[%s2697] sm:$0xf]
      %v2699 = vld [vmem:[%s2697 + $0x4] sm:$0xf]
      %v2700 = vld [vmem:[%s2697 + $0x8] sm:$0xf]
      %v2701 = vld [vmem:[%s2697 + $0xc] sm:$0xf]
      %v2702 = vld [vmem:[%s2697 + $0x10] sm:$0xf]
      %v2703 = vld [vmem:[%s2697 + $0x14] sm:$0xf]
      %v2704 = vld [vmem:[%s2697 + $0x18] sm:$0xf]
      %v2705 = vld [vmem:[%s2697 + $0x1c] sm:$0xf]
      %v2706 = vld [vmem:[%s2697 + $0x20] sm:$0xf]
      %v2707 = vld [vmem:[%s2697 + $0x24] sm:$0xf]
      %v2708 = vld [vmem:[%s2697 + $0x28] sm:$0xf]
      %v2709 = vld [vmem:[%s2697 + $0x2c] sm:$0xf]
      %v2710 = vld [vmem:[%s2697 + $0x30] sm:$0xf]
      %v2711 = vld [vmem:[%s2697 + $0x34] sm:$0xf]
      %v2712 = vld [vmem:[%s2697 + $0x38] sm:$0xf]
      %v2713 = vld [vmem:[%s2697 + $0x3c] sm:$0xf]
      %v2714 = vld [vmem:[%s2697 + $0x40] sm:$0xf]
      %v2715 = vld [vmem:[%s2697 + $0x44] sm:$0xf]
      %v2716 = vld [vmem:[%s2697 + $0x48] sm:$0xf]
      %v2717 = vld [vmem:[%s2697 + $0x4c] sm:$0xf]
      %v2718 = vld [vmem:[%s2697 + $0x50] sm:$0xf]
      %v2719 = vld [vmem:[%s2697 + $0x54] sm:$0xf]
      %v2720 = vld [vmem:[%s2697 + $0x58] sm:$0xf]
      %v2721 = vld [vmem:[%s2697 + $0x5c] sm:$0xf]
      %v2722 = vld [vmem:[%s2697 + $0x60] sm:$0xf]
      %v2723 = vld [vmem:[%s2697 + $0x64] sm:$0xf]
      %v2724 = vld [vmem:[%s2697 + $0x68] sm:$0xf]
      %v2725 = vld [vmem:[%s2697 + $0x6c] sm:$0xf]
      %v2726 = vld [vmem:[%s2697 + $0x70] sm:$0xf]
      %v2727 = vld [vmem:[%s2697 + $0x74] sm:$0xf]
      %v2728 = vld [vmem:[%s2697 + $0x78] sm:$0xf]
      %v2729 = vld [vmem:[%s2697 + $0x7c] sm:$0xf]
      %v2762 = vunpack.c.l.b16 %v2698
      %v2763 = vunpack.c.l.b16 %v2699
      %v2764 = vunpack.c.l.b16 %v2700
      %v2765 = vunpack.c.l.b16 %v2701
      %v2766 = vunpack.c.l.b16 %v2702
      %v2767 = vunpack.c.l.b16 %v2703
      %v2768 = vunpack.c.l.b16 %v2704
      %v2769 = vunpack.c.l.b16 %v2705
      %v2770 = vunpack.c.l.b16 %v2706
      %v2771 = vunpack.c.l.b16 %v2707
      %v2772 = vunpack.c.l.b16 %v2708
      %v2773 = vunpack.c.l.b16 %v2709
      %v2774 = vunpack.c.l.b16 %v2710
      %v2775 = vunpack.c.l.b16 %v2711
      %v2776 = vunpack.c.l.b16 %v2712
      %v2777 = vunpack.c.l.b16 %v2713
      %v2778 = vunpack.c.l.b16 %v2714
      %v2779 = vunpack.c.l.b16 %v2715
      %v2780 = vunpack.c.l.b16 %v2716
      %v2781 = vunpack.c.l.b16 %v2717
      %v2782 = vunpack.c.l.b16 %v2718
      %v2783 = vunpack.c.l.b16 %v2719
      %v2784 = vunpack.c.l.b16 %v2720
      %v2785 = vunpack.c.l.b16 %v2721
      %v2786 = vunpack.c.l.b16 %v2722
      %v2787 = vunpack.c.l.b16 %v2723
      %v2788 = vunpack.c.l.b16 %v2724
      %v2789 = vunpack.c.l.b16 %v2725
      %v2790 = vunpack.c.l.b16 %v2726
      %v2791 = vunpack.c.l.b16 %v2727
      %v2792 = vunpack.c.l.b16 %v2728
      %v2793 = vunpack.c.l.b16 %v2729
      %v2794 = vpack.c.b16 %v2763, %v2762
      %v2795 = vpack.c.b16 %v2765, %v2764
      %v2796 = vpack.c.b16 %v2767, %v2766
      %v2797 = vpack.c.b16 %v2769, %v2768
      %v2798 = vpack.c.b16 %v2771, %v2770
      %v2799 = vpack.c.b16 %v2773, %v2772
      %v2800 = vpack.c.b16 %v2775, %v2774
      %v2801 = vpack.c.b16 %v2777, %v2776
      %v2802 = vpack.c.b16 %v2779, %v2778
      %v2803 = vpack.c.b16 %v2781, %v2780
      %v2804 = vpack.c.b16 %v2783, %v2782
      %v2805 = vpack.c.b16 %v2785, %v2784
      %v2806 = vpack.c.b16 %v2787, %v2786
      %v2807 = vpack.c.b16 %v2789, %v2788
      %v2808 = vpack.c.b16 %v2791, %v2790
      %v2809 = vpack.c.b16 %v2793, %v2792
      %2826 = vmatpush.bf16.msra.mxu0 %v2801
      %2827 = vmatpush.bf16.msra.mxu0 %v2800
      %2828 = vmatpush.bf16.msra.mxu0 %v2799
      %2829 = vmatpush.bf16.msra.mxu0 %v2798
      %2830 = vmatpush.bf16.msra.mxu0 %v2797
      %2831 = vmatpush.bf16.msra.mxu0 %v2796
      %2832 = vmatpush.bf16.msra.mxu0 %v2795
      %2833 = vmatpush.bf16.msra.mxu0 %v2794
      %2834 = vmatmul.bf16.gmra.mxu0 %v2258
      %v2835 = vpop.f32.mrf.mxu0
      %v2836 = vadd.f32 0.0, %v2835
      %v2837 = vpop.f32.mrf.mxu0
      %2838 = vdwg.mxu0
      %2839 = vmatpush.bf16.msra.mxu0 %v2809
      %2840 = vmatpush.bf16.msra.mxu0 %v2808
      %2841 = vmatpush.bf16.msra.mxu0 %v2807
      %2842 = vmatpush.bf16.msra.mxu0 %v2806
      %2843 = vmatpush.bf16.msra.mxu0 %v2805
      %2844 = vmatpush.bf16.msra.mxu0 %v2804
      %2845 = vmatpush.bf16.msra.mxu0 %v2803
      %2846 = vmatpush.bf16.msra.mxu0 %v2802
      %2847 = vmatmul.bf16.gmra.mxu0 %v2259
      %v2848 = vpop.f32.mrf.mxu0
      %v2849 = vadd.f32 %v2836, %v2848
      %v2850 = vpop.f32.mrf.mxu0
      %2851 = vdwg.mxu0
      %v2852 = vadd.f32 %v2696, %v2849
      %s2853 = scalar_lea.vmem %s3, 1920
      %v2854 = vld [vmem:[%s2853] sm:$0xf]
      %v2855 = vld [vmem:[%s2853 + $0x4] sm:$0xf]
      %v2856 = vld [vmem:[%s2853 + $0x8] sm:$0xf]
      %v2857 = vld [vmem:[%s2853 + $0xc] sm:$0xf]
      %v2858 = vld [vmem:[%s2853 + $0x10] sm:$0xf]
      %v2859 = vld [vmem:[%s2853 + $0x14] sm:$0xf]
      %v2860 = vld [vmem:[%s2853 + $0x18] sm:$0xf]
      %v2861 = vld [vmem:[%s2853 + $0x1c] sm:$0xf]
      %v2862 = vld [vmem:[%s2853 + $0x20] sm:$0xf]
      %v2863 = vld [vmem:[%s2853 + $0x24] sm:$0xf]
      %v2864 = vld [vmem:[%s2853 + $0x28] sm:$0xf]
      %v2865 = vld [vmem:[%s2853 + $0x2c] sm:$0xf]
      %v2866 = vld [vmem:[%s2853 + $0x30] sm:$0xf]
      %v2867 = vld [vmem:[%s2853 + $0x34] sm:$0xf]
      %v2868 = vld [vmem:[%s2853 + $0x38] sm:$0xf]
      %v2869 = vld [vmem:[%s2853 + $0x3c] sm:$0xf]
      %v2870 = vld [vmem:[%s2853 + $0x40] sm:$0xf]
      %v2871 = vld [vmem:[%s2853 + $0x44] sm:$0xf]
      %v2872 = vld [vmem:[%s2853 + $0x48] sm:$0xf]
      %v2873 = vld [vmem:[%s2853 + $0x4c] sm:$0xf]
      %v2874 = vld [vmem:[%s2853 + $0x50] sm:$0xf]
      %v2875 = vld [vmem:[%s2853 + $0x54] sm:$0xf]
      %v2876 = vld [vmem:[%s2853 + $0x58] sm:$0xf]
      %v2877 = vld [vmem:[%s2853 + $0x5c] sm:$0xf]
      %v2878 = vld [vmem:[%s2853 + $0x60] sm:$0xf]
      %v2879 = vld [vmem:[%s2853 + $0x64] sm:$0xf]
      %v2880 = vld [vmem:[%s2853 + $0x68] sm:$0xf]
      %v2881 = vld [vmem:[%s2853 + $0x6c] sm:$0xf]
      %v2882 = vld [vmem:[%s2853 + $0x70] sm:$0xf]
      %v2883 = vld [vmem:[%s2853 + $0x74] sm:$0xf]
      %v2884 = vld [vmem:[%s2853 + $0x78] sm:$0xf]
      %v2885 = vld [vmem:[%s2853 + $0x7c] sm:$0xf]
      %v2887 = vunpack.c.l.b16 %v1895
      %v2888 = vunpack.c.h.b16 %v1895
      %v2889 = vpack.c.b16 %v2887, %v1931
      %v2890 = vpack.c.b16 %v2888, %v1932
      %v2892 = vshrl.u32 %v2889, 16
      %v2894 = vshll.u32 %v2889, 16
      %v2896 = vrot.slane %v2894, 1
      %v2897 = vor.u32 %v2892, %v2896
      %v2899 = vshrl.u32 %v2890, 16
      %v2901 = vshll.u32 %v2890, 16
      %v2903 = vrot.slane %v2901, 1
      %v2904 = vor.u32 %v2899, %v2903
      %v2939 = vunpack.c.l.b16 %v2854
      %v2940 = vunpack.c.l.b16 %v2855
      %v2941 = vunpack.c.l.b16 %v2856
      %v2942 = vunpack.c.l.b16 %v2857
      %v2943 = vunpack.c.l.b16 %v2858
      %v2944 = vunpack.c.l.b16 %v2859
      %v2945 = vunpack.c.l.b16 %v2860
      %v2946 = vunpack.c.l.b16 %v2861
      %v2947 = vunpack.c.l.b16 %v2862
      %v2948 = vunpack.c.l.b16 %v2863
      %v2949 = vunpack.c.l.b16 %v2864
      %v2950 = vunpack.c.l.b16 %v2865
      %v2951 = vunpack.c.l.b16 %v2866
      %v2952 = vunpack.c.l.b16 %v2867
      %v2953 = vunpack.c.l.b16 %v2868
      %v2954 = vunpack.c.l.b16 %v2869
      %v2955 = vunpack.c.l.b16 %v2870
      %v2956 = vunpack.c.l.b16 %v2871
      %v2957 = vunpack.c.l.b16 %v2872
      %v2958 = vunpack.c.l.b16 %v2873
      %v2959 = vunpack.c.l.b16 %v2874
      %v2960 = vunpack.c.l.b16 %v2875
      %v2961 = vunpack.c.l.b16 %v2876
      %v2962 = vunpack.c.l.b16 %v2877
      %v2963 = vunpack.c.l.b16 %v2878
      %v2964 = vunpack.c.l.b16 %v2879
      %v2965 = vunpack.c.l.b16 %v2880
      %v2966 = vunpack.c.l.b16 %v2881
      %v2967 = vunpack.c.l.b16 %v2882
      %v2968 = vunpack.c.l.b16 %v2883
      %v2969 = vunpack.c.l.b16 %v2884
      %v2970 = vunpack.c.l.b16 %v2885
      %v2971 = vpack.c.b16 %v2940, %v2939
      %v2972 = vpack.c.b16 %v2942, %v2941
      %v2973 = vpack.c.b16 %v2944, %v2943
      %v2974 = vpack.c.b16 %v2946, %v2945
      %v2975 = vpack.c.b16 %v2948, %v2947
      %v2976 = vpack.c.b16 %v2950, %v2949
      %v2977 = vpack.c.b16 %v2952, %v2951
      %v2978 = vpack.c.b16 %v2954, %v2953
      %v2979 = vpack.c.b16 %v2956, %v2955
      %v2980 = vpack.c.b16 %v2958, %v2957
      %v2981 = vpack.c.b16 %v2960, %v2959
      %v2982 = vpack.c.b16 %v2962, %v2961
      %v2983 = vpack.c.b16 %v2964, %v2963
      %v2984 = vpack.c.b16 %v2966, %v2965
      %v2985 = vpack.c.b16 %v2968, %v2967
      %v2986 = vpack.c.b16 %v2970, %v2969
      %3003 = vmatpush.bf16.msra.mxu0 %v2978
      %3004 = vmatpush.bf16.msra.mxu0 %v2977
      %3005 = vmatpush.bf16.msra.mxu0 %v2976
      %3006 = vmatpush.bf16.msra.mxu0 %v2975
      %3007 = vmatpush.bf16.msra.mxu0 %v2974
      %3008 = vmatpush.bf16.msra.mxu0 %v2973
      %3009 = vmatpush.bf16.msra.mxu0 %v2972
      %3010 = vmatpush.bf16.msra.mxu0 %v2971
      %3011 = vmatmul.bf16.gmra.mxu0 %v2897
      %v3012 = vpop.f32.mrf.mxu0
      %v3013 = vadd.f32 0.0, %v3012
      %v3014 = vpop.f32.mrf.mxu0
      %3015 = vdwg.mxu0
      %3016 = vmatpush.bf16.msra.mxu0 %v2986
      %3017 = vmatpush.bf16.msra.mxu0 %v2985
      %3018 = vmatpush.bf16.msra.mxu0 %v2984
      %3019 = vmatpush.bf16.msra.mxu0 %v2983
      %3020 = vmatpush.bf16.msra.mxu0 %v2982
      %3021 = vmatpush.bf16.msra.mxu0 %v2981
      %3022 = vmatpush.bf16.msra.mxu0 %v2980
      %3023 = vmatpush.bf16.msra.mxu0 %v2979
      %3024 = vmatmul.bf16.gmra.mxu0 %v2904
      %v3025 = vpop.f32.mrf.mxu0
      %v3026 = vadd.f32 %v3013, %v3025
      %v3027 = vpop.f32.mrf.mxu0
      %3028 = vdwg.mxu0
      %v3029 = vadd.f32 %v2852, %v3026
      %s3030 = scalar_lea.vmem %s3, 2048
      %v3031 = vld [vmem:[%s3030] sm:$0xf]
      %v3032 = vld [vmem:[%s3030 + $0x4] sm:$0xf]
      %v3033 = vld [vmem:[%s3030 + $0x8] sm:$0xf]
      %v3034 = vld [vmem:[%s3030 + $0xc] sm:$0xf]
      %v3035 = vld [vmem:[%s3030 + $0x10] sm:$0xf]
      %v3036 = vld [vmem:[%s3030 + $0x14] sm:$0xf]
      %v3037 = vld [vmem:[%s3030 + $0x18] sm:$0xf]
      %v3038 = vld [vmem:[%s3030 + $0x1c] sm:$0xf]
      %v3039 = vld [vmem:[%s3030 + $0x20] sm:$0xf]
      %v3040 = vld [vmem:[%s3030 + $0x24] sm:$0xf]
      %v3041 = vld [vmem:[%s3030 + $0x28] sm:$0xf]
      %v3042 = vld [vmem:[%s3030 + $0x2c] sm:$0xf]
      %v3043 = vld [vmem:[%s3030 + $0x30] sm:$0xf]
      %v3044 = vld [vmem:[%s3030 + $0x34] sm:$0xf]
      %v3045 = vld [vmem:[%s3030 + $0x38] sm:$0xf]
      %v3046 = vld [vmem:[%s3030 + $0x3c] sm:$0xf]
      %v3047 = vld [vmem:[%s3030 + $0x40] sm:$0xf]
      %v3048 = vld [vmem:[%s3030 + $0x44] sm:$0xf]
      %v3049 = vld [vmem:[%s3030 + $0x48] sm:$0xf]
      %v3050 = vld [vmem:[%s3030 + $0x4c] sm:$0xf]
      %v3051 = vld [vmem:[%s3030 + $0x50] sm:$0xf]
      %v3052 = vld [vmem:[%s3030 + $0x54] sm:$0xf]
      %v3053 = vld [vmem:[%s3030 + $0x58] sm:$0xf]
      %v3054 = vld [vmem:[%s3030 + $0x5c] sm:$0xf]
      %v3055 = vld [vmem:[%s3030 + $0x60] sm:$0xf]
      %v3056 = vld [vmem:[%s3030 + $0x64] sm:$0xf]
      %v3057 = vld [vmem:[%s3030 + $0x68] sm:$0xf]
      %v3058 = vld [vmem:[%s3030 + $0x6c] sm:$0xf]
      %v3059 = vld [vmem:[%s3030 + $0x70] sm:$0xf]
      %v3060 = vld [vmem:[%s3030 + $0x74] sm:$0xf]
      %v3061 = vld [vmem:[%s3030 + $0x78] sm:$0xf]
      %v3062 = vld [vmem:[%s3030 + $0x7c] sm:$0xf]
      %v3095 = vunpack.c.l.b16 %v3031
      %v3096 = vunpack.c.l.b16 %v3032
      %v3097 = vunpack.c.l.b16 %v3033
      %v3098 = vunpack.c.l.b16 %v3034
      %v3099 = vunpack.c.l.b16 %v3035
      %v3100 = vunpack.c.l.b16 %v3036
      %v3101 = vunpack.c.l.b16 %v3037
      %v3102 = vunpack.c.l.b16 %v3038
      %v3103 = vunpack.c.l.b16 %v3039
      %v3104 = vunpack.c.l.b16 %v3040
      %v3105 = vunpack.c.l.b16 %v3041
      %v3106 = vunpack.c.l.b16 %v3042
      %v3107 = vunpack.c.l.b16 %v3043
      %v3108 = vunpack.c.l.b16 %v3044
      %v3109 = vunpack.c.l.b16 %v3045
      %v3110 = vunpack.c.l.b16 %v3046
      %v3111 = vunpack.c.l.b16 %v3047
      %v3112 = vunpack.c.l.b16 %v3048
      %v3113 = vunpack.c.l.b16 %v3049
      %v3114 = vunpack.c.l.b16 %v3050
      %v3115 = vunpack.c.l.b16 %v3051
      %v3116 = vunpack.c.l.b16 %v3052
      %v3117 = vunpack.c.l.b16 %v3053
      %v3118 = vunpack.c.l.b16 %v3054
      %v3119 = vunpack.c.l.b16 %v3055
      %v3120 = vunpack.c.l.b16 %v3056
      %v3121 = vunpack.c.l.b16 %v3057
      %v3122 = vunpack.c.l.b16 %v3058
      %v3123 = vunpack.c.l.b16 %v3059
      %v3124 = vunpack.c.l.b16 %v3060
      %v3125 = vunpack.c.l.b16 %v3061
      %v3126 = vunpack.c.l.b16 %v3062
      %v3127 = vpack.c.b16 %v3096, %v3095
      %v3128 = vpack.c.b16 %v3098, %v3097
      %v3129 = vpack.c.b16 %v3100, %v3099
      %v3130 = vpack.c.b16 %v3102, %v3101
      %v3131 = vpack.c.b16 %v3104, %v3103
      %v3132 = vpack.c.b16 %v3106, %v3105
      %v3133 = vpack.c.b16 %v3108, %v3107
      %v3134 = vpack.c.b16 %v3110, %v3109
      %v3135 = vpack.c.b16 %v3112, %v3111
      %v3136 = vpack.c.b16 %v3114, %v3113
      %v3137 = vpack.c.b16 %v3116, %v3115
      %v3138 = vpack.c.b16 %v3118, %v3117
      %v3139 = vpack.c.b16 %v3120, %v3119
      %v3140 = vpack.c.b16 %v3122, %v3121
      %v3141 = vpack.c.b16 %v3124, %v3123
      %v3142 = vpack.c.b16 %v3126, %v3125
      %3159 = vmatpush.bf16.msra.mxu0 %v3134
      %3160 = vmatpush.bf16.msra.mxu0 %v3133
      %3161 = vmatpush.bf16.msra.mxu0 %v3132
      %3162 = vmatpush.bf16.msra.mxu0 %v3131
      %3163 = vmatpush.bf16.msra.mxu0 %v3130
      %3164 = vmatpush.bf16.msra.mxu0 %v3129
      %3165 = vmatpush.bf16.msra.mxu0 %v3128
      %3166 = vmatpush.bf16.msra.mxu0 %v3127
      %3167 = vmatmul.bf16.gmra.mxu0 %v2897
      %v3168 = vpop.f32.mrf.mxu0
      %v3169 = vadd.f32 0.0, %v3168
      %v3170 = vpop.f32.mrf.mxu0
      %3171 = vdwg.mxu0
      %3172 = vmatpush.bf16.msra.mxu0 %v3142
      %3173 = vmatpush.bf16.msra.mxu0 %v3141
      %3174 = vmatpush.bf16.msra.mxu0 %v3140
      %3175 = vmatpush.bf16.msra.mxu0 %v3139
      %3176 = vmatpush.bf16.msra.mxu0 %v3138
      %3177 = vmatpush.bf16.msra.mxu0 %v3137
      %3178 = vmatpush.bf16.msra.mxu0 %v3136
      %3179 = vmatpush.bf16.msra.mxu0 %v3135
      %3180 = vmatmul.bf16.gmra.mxu0 %v2904
      %v3181 = vpop.f32.mrf.mxu0
      %v3182 = vadd.f32 %v3169, %v3181
      %v3183 = vpop.f32.mrf.mxu0
      %3184 = vdwg.mxu0
      %v3185 = vadd.f32 %v3029, %v3182
      %s3186 = scalar_lea.vmem %s3, 2176
      %v3187 = vld [vmem:[%s3186] sm:$0xf]
      %v3188 = vld [vmem:[%s3186 + $0x4] sm:$0xf]
      %v3189 = vld [vmem:[%s3186 + $0x8] sm:$0xf]
      %v3190 = vld [vmem:[%s3186 + $0xc] sm:$0xf]
      %v3191 = vld [vmem:[%s3186 + $0x10] sm:$0xf]
      %v3192 = vld [vmem:[%s3186 + $0x14] sm:$0xf]
      %v3193 = vld [vmem:[%s3186 + $0x18] sm:$0xf]
      %v3194 = vld [vmem:[%s3186 + $0x1c] sm:$0xf]
      %v3195 = vld [vmem:[%s3186 + $0x20] sm:$0xf]
      %v3196 = vld [vmem:[%s3186 + $0x24] sm:$0xf]
      %v3197 = vld [vmem:[%s3186 + $0x28] sm:$0xf]
      %v3198 = vld [vmem:[%s3186 + $0x2c] sm:$0xf]
      %v3199 = vld [vmem:[%s3186 + $0x30] sm:$0xf]
      %v3200 = vld [vmem:[%s3186 + $0x34] sm:$0xf]
      %v3201 = vld [vmem:[%s3186 + $0x38] sm:$0xf]
      %v3202 = vld [vmem:[%s3186 + $0x3c] sm:$0xf]
      %v3203 = vld [vmem:[%s3186 + $0x40] sm:$0xf]
      %v3204 = vld [vmem:[%s3186 + $0x44] sm:$0xf]
      %v3205 = vld [vmem:[%s3186 + $0x48] sm:$0xf]
      %v3206 = vld [vmem:[%s3186 + $0x4c] sm:$0xf]
      %v3207 = vld [vmem:[%s3186 + $0x50] sm:$0xf]
      %v3208 = vld [vmem:[%s3186 + $0x54] sm:$0xf]
      %v3209 = vld [vmem:[%s3186 + $0x58] sm:$0xf]
      %v3210 = vld [vmem:[%s3186 + $0x5c] sm:$0xf]
      %v3211 = vld [vmem:[%s3186 + $0x60] sm:$0xf]
      %v3212 = vld [vmem:[%s3186 + $0x64] sm:$0xf]
      %v3213 = vld [vmem:[%s3186 + $0x68] sm:$0xf]
      %v3214 = vld [vmem:[%s3186 + $0x6c] sm:$0xf]
      %v3215 = vld [vmem:[%s3186 + $0x70] sm:$0xf]
      %v3216 = vld [vmem:[%s3186 + $0x74] sm:$0xf]
      %v3217 = vld [vmem:[%s3186 + $0x78] sm:$0xf]
      %v3218 = vld [vmem:[%s3186 + $0x7c] sm:$0xf]
      %v3220 = vunpack.c.l.b16 %v1896
      %v3221 = vpack.c.b16 %v3220, %v2250
      %v3223 = vshrl.u32 %v3221, 16
      %v3225 = vshll.u32 %v3221, 16
      %v3227 = vrot.slane %v3225, 1
      %v3228 = vor.u32 %v3223, %v3227
      %3229 = vrot.lane.b32.xlu0 %v2897, 96
      %v3230 = vpop.permute.xlu0 %3229
      %3231 = vrot.lane.b32.xlu0 %v2904, 96
      %v3232 = vpop.permute.xlu0 %3231
      %3233 = vrot.lane.b32.xlu0 %v3228, 96
      %v3234 = vpop.permute.xlu0 %3233
      %v3235 = vsel %vm788, %v3230, %v3232
      %v3236 = vsel %vm788, %v3232, %v3234
      %v3271 = vunpack.c.l.b16 %v3187
      %v3272 = vunpack.c.l.b16 %v3188
      %v3273 = vunpack.c.l.b16 %v3189
      %v3274 = vunpack.c.l.b16 %v3190
      %v3275 = vunpack.c.l.b16 %v3191
      %v3276 = vunpack.c.l.b16 %v3192
      %v3277 = vunpack.c.l.b16 %v3193
      %v3278 = vunpack.c.l.b16 %v3194
      %v3279 = vunpack.c.l.b16 %v3195
      %v3280 = vunpack.c.l.b16 %v3196
      %v3281 = vunpack.c.l.b16 %v3197
      %v3282 = vunpack.c.l.b16 %v3198
      %v3283 = vunpack.c.l.b16 %v3199
      %v3284 = vunpack.c.l.b16 %v3200
      %v3285 = vunpack.c.l.b16 %v3201
      %v3286 = vunpack.c.l.b16 %v3202
      %v3287 = vunpack.c.l.b16 %v3203
      %v3288 = vunpack.c.l.b16 %v3204
      %v3289 = vunpack.c.l.b16 %v3205
      %v3290 = vunpack.c.l.b16 %v3206
      %v3291 = vunpack.c.l.b16 %v3207
      %v3292 = vunpack.c.l.b16 %v3208
      %v3293 = vunpack.c.l.b16 %v3209
      %v3294 = vunpack.c.l.b16 %v3210
      %v3295 = vunpack.c.l.b16 %v3211
      %v3296 = vunpack.c.l.b16 %v3212
      %v3297 = vunpack.c.l.b16 %v3213
      %v3298 = vunpack.c.l.b16 %v3214
      %v3299 = vunpack.c.l.b16 %v3215
      %v3300 = vunpack.c.l.b16 %v3216
      %v3301 = vunpack.c.l.b16 %v3217
      %v3302 = vunpack.c.l.b16 %v3218
      %v3303 = vpack.c.b16 %v3272, %v3271
      %v3304 = vpack.c.b16 %v3274, %v3273
      %v3305 = vpack.c.b16 %v3276, %v3275
      %v3306 = vpack.c.b16 %v3278, %v3277
      %v3307 = vpack.c.b16 %v3280, %v3279
      %v3308 = vpack.c.b16 %v3282, %v3281
      %v3309 = vpack.c.b16 %v3284, %v3283
      %v3310 = vpack.c.b16 %v3286, %v3285
      %v3311 = vpack.c.b16 %v3288, %v3287
      %v3312 = vpack.c.b16 %v3290, %v3289
      %v3313 = vpack.c.b16 %v3292, %v3291
      %v3314 = vpack.c.b16 %v3294, %v3293
      %v3315 = vpack.c.b16 %v3296, %v3295
      %v3316 = vpack.c.b16 %v3298, %v3297
      %v3317 = vpack.c.b16 %v3300, %v3299
      %v3318 = vpack.c.b16 %v3302, %v3301
      %3335 = vmatpush.bf16.msra.mxu0 %v3310
      %3336 = vmatpush.bf16.msra.mxu0 %v3309
      %3337 = vmatpush.bf16.msra.mxu0 %v3308
      %3338 = vmatpush.bf16.msra.mxu0 %v3307
      %3339 = vmatpush.bf16.msra.mxu0 %v3306
      %3340 = vmatpush.bf16.msra.mxu0 %v3305
      %3341 = vmatpush.bf16.msra.mxu0 %v3304
      %3342 = vmatpush.bf16.msra.mxu0 %v3303
      %3343 = vmatmul.bf16.gmra.mxu0 %v3235
      %v3344 = vpop.f32.mrf.mxu0
      %v3345 = vadd.f32 0.0, %v3344
      %v3346 = vpop.f32.mrf.mxu0
      %3347 = vdwg.mxu0
      %3348 = vmatpush.bf16.msra.mxu0 %v3318
      %3349 = vmatpush.bf16.msra.mxu0 %v3317
      %3350 = vmatpush.bf16.msra.mxu0 %v3316
      %3351 = vmatpush.bf16.msra.mxu0 %v3315
      %3352 = vmatpush.bf16.msra.mxu0 %v3314
      %3353 = vmatpush.bf16.msra.mxu0 %v3313
      %3354 = vmatpush.bf16.msra.mxu0 %v3312
      %3355 = vmatpush.bf16.msra.mxu0 %v3311
      %3356 = vmatmul.bf16.gmra.mxu0 %v3236
      %v3357 = vpop.f32.mrf.mxu0
      %v3358 = vadd.f32 %v3345, %v3357
      %v3359 = vpop.f32.mrf.mxu0
      %3360 = vdwg.mxu0
      %v3361 = vadd.f32 %v3185, %v3358
      %v3362 = vld [vmem:[%s401] sm:$0xff]
      %v3363 = vld [vmem:[%s401 + $0x8] sm:$0xf]
      %v3364 = vld [vmem:[%s401 + $0xc] sm:$0x11]
      %v3365 = vld [vmem:[%s401 + $0x14] sm:$0x1]
      %s3366 = scalar_lea.vmem %s3, 2304
      %v3367 = vld [vmem:[%s3366] sm:$0xf]
      %v3368 = vld [vmem:[%s3366 + $0x4] sm:$0xf]
      %v3369 = vld [vmem:[%s3366 + $0x8] sm:$0xf]
      %v3370 = vld [vmem:[%s3366 + $0xc] sm:$0xf]
      %v3371 = vld [vmem:[%s3366 + $0x10] sm:$0xf]
      %v3372 = vld [vmem:[%s3366 + $0x14] sm:$0xf]
      %v3373 = vld [vmem:[%s3366 + $0x18] sm:$0xf]
      %v3374 = vld [vmem:[%s3366 + $0x1c] sm:$0xf]
      %v3375 = vld [vmem:[%s3366 + $0x20] sm:$0xf]
      %v3376 = vld [vmem:[%s3366 + $0x24] sm:$0xf]
      %v3377 = vld [vmem:[%s3366 + $0x28] sm:$0xf]
      %v3378 = vld [vmem:[%s3366 + $0x2c] sm:$0xf]
      %v3379 = vld [vmem:[%s3366 + $0x30] sm:$0xf]
      %v3380 = vld [vmem:[%s3366 + $0x34] sm:$0xf]
      %v3381 = vld [vmem:[%s3366 + $0x38] sm:$0xf]
      %v3382 = vld [vmem:[%s3366 + $0x3c] sm:$0xf]
      %v3383 = vld [vmem:[%s3366 + $0x40] sm:$0xf]
      %v3384 = vld [vmem:[%s3366 + $0x44] sm:$0xf]
      %v3385 = vld [vmem:[%s3366 + $0x48] sm:$0xf]
      %v3386 = vld [vmem:[%s3366 + $0x4c] sm:$0xf]
      %v3387 = vld [vmem:[%s3366 + $0x50] sm:$0xf]
      %v3388 = vld [vmem:[%s3366 + $0x54] sm:$0xf]
      %v3389 = vld [vmem:[%s3366 + $0x58] sm:$0xf]
      %v3390 = vld [vmem:[%s3366 + $0x5c] sm:$0xf]
      %v3391 = vld [vmem:[%s3366 + $0x60] sm:$0xf]
      %v3392 = vld [vmem:[%s3366 + $0x64] sm:$0xf]
      %v3393 = vld [vmem:[%s3366 + $0x68] sm:$0xf]
      %v3394 = vld [vmem:[%s3366 + $0x6c] sm:$0xf]
      %v3395 = vld [vmem:[%s3366 + $0x70] sm:$0xf]
      %v3396 = vld [vmem:[%s3366 + $0x74] sm:$0xf]
      %v3397 = vld [vmem:[%s3366 + $0x78] sm:$0xf]
      %v3398 = vld [vmem:[%s3366 + $0x7c] sm:$0xf]
      %v3400 = vunpack.c.l.b16 %v3362
      %v3401 = vunpack.c.h.b16 %v3362
      %v3402 = vpack.c.b16 %v3400, %v3400
      %v3403 = vpack.c.b16 %v3401, %v3401
      %v3438 = vunpack.c.l.b16 %v3367
      %v3439 = vunpack.c.l.b16 %v3368
      %v3440 = vunpack.c.l.b16 %v3369
      %v3441 = vunpack.c.l.b16 %v3370
      %v3442 = vunpack.c.l.b16 %v3371
      %v3443 = vunpack.c.l.b16 %v3372
      %v3444 = vunpack.c.l.b16 %v3373
      %v3445 = vunpack.c.l.b16 %v3374
      %v3446 = vunpack.c.l.b16 %v3375
      %v3447 = vunpack.c.l.b16 %v3376
      %v3448 = vunpack.c.l.b16 %v3377
      %v3449 = vunpack.c.l.b16 %v3378
      %v3450 = vunpack.c.l.b16 %v3379
      %v3451 = vunpack.c.l.b16 %v3380
      %v3452 = vunpack.c.l.b16 %v3381
      %v3453 = vunpack.c.l.b16 %v3382
      %v3454 = vunpack.c.l.b16 %v3383
      %v3455 = vunpack.c.l.b16 %v3384
      %v3456 = vunpack.c.l.b16 %v3385
      %v3457 = vunpack.c.l.b16 %v3386
      %v3458 = vunpack.c.l.b16 %v3387
      %v3459 = vunpack.c.l.b16 %v3388
      %v3460 = vunpack.c.l.b16 %v3389
      %v3461 = vunpack.c.l.b16 %v3390
      %v3462 = vunpack.c.l.b16 %v3391
      %v3463 = vunpack.c.l.b16 %v3392
      %v3464 = vunpack.c.l.b16 %v3393
      %v3465 = vunpack.c.l.b16 %v3394
      %v3466 = vunpack.c.l.b16 %v3395
      %v3467 = vunpack.c.l.b16 %v3396
      %v3468 = vunpack.c.l.b16 %v3397
      %v3469 = vunpack.c.l.b16 %v3398
      %v3470 = vpack.c.b16 %v3439, %v3438
      %v3471 = vpack.c.b16 %v3441, %v3440
      %v3472 = vpack.c.b16 %v3443, %v3442
      %v3473 = vpack.c.b16 %v3445, %v3444
      %v3474 = vpack.c.b16 %v3447, %v3446
      %v3475 = vpack.c.b16 %v3449, %v3448
      %v3476 = vpack.c.b16 %v3451, %v3450
      %v3477 = vpack.c.b16 %v3453, %v3452
      %v3478 = vpack.c.b16 %v3455, %v3454
      %v3479 = vpack.c.b16 %v3457, %v3456
      %v3480 = vpack.c.b16 %v3459, %v3458
      %v3481 = vpack.c.b16 %v3461, %v3460
      %v3482 = vpack.c.b16 %v3463, %v3462
      %v3483 = vpack.c.b16 %v3465, %v3464
      %v3484 = vpack.c.b16 %v3467, %v3466
      %v3485 = vpack.c.b16 %v3469, %v3468
      %3502 = vmatpush.bf16.msra.mxu0 %v3477
      %3503 = vmatpush.bf16.msra.mxu0 %v3476
      %3504 = vmatpush.bf16.msra.mxu0 %v3475
      %3505 = vmatpush.bf16.msra.mxu0 %v3474
      %3506 = vmatpush.bf16.msra.mxu0 %v3473
      %3507 = vmatpush.bf16.msra.mxu0 %v3472
      %3508 = vmatpush.bf16.msra.mxu0 %v3471
      %3509 = vmatpush.bf16.msra.mxu0 %v3470
      %3510 = vmatmul.bf16.gmra.mxu0 %v3402
      %v3511 = vpop.f32.mrf.mxu0
      %v3512 = vadd.f32 0.0, %v3511
      %v3513 = vpop.f32.mrf.mxu0
      %3514 = vdwg.mxu0
      %3515 = vmatpush.bf16.msra.mxu0 %v3485
      %3516 = vmatpush.bf16.msra.mxu0 %v3484
      %3517 = vmatpush.bf16.msra.mxu0 %v3483
      %3518 = vmatpush.bf16.msra.mxu0 %v3482
      %3519 = vmatpush.bf16.msra.mxu0 %v3481
      %3520 = vmatpush.bf16.msra.mxu0 %v3480
      %3521 = vmatpush.bf16.msra.mxu0 %v3479
      %3522 = vmatpush.bf16.msra.mxu0 %v3478
      %3523 = vmatmul.bf16.gmra.mxu0 %v3403
      %v3524 = vpop.f32.mrf.mxu0
      %v3525 = vadd.f32 %v3512, %v3524
      %v3526 = vpop.f32.mrf.mxu0
      %3527 = vdwg.mxu0
      %v3528 = vadd.f32 %v3361, %v3525
      %s3529 = scalar_lea.vmem %s3, 2432
      %v3530 = vld [vmem:[%s3529] sm:$0xf]
      %v3531 = vld [vmem:[%s3529 + $0x4] sm:$0xf]
      %v3532 = vld [vmem:[%s3529 + $0x8] sm:$0xf]
      %v3533 = vld [vmem:[%s3529 + $0xc] sm:$0xf]
      %v3534 = vld [vmem:[%s3529 + $0x10] sm:$0xf]
      %v3535 = vld [vmem:[%s3529 + $0x14] sm:$0xf]
      %v3536 = vld [vmem:[%s3529 + $0x18] sm:$0xf]
      %v3537 = vld [vmem:[%s3529 + $0x1c] sm:$0xf]
      %v3538 = vld [vmem:[%s3529 + $0x20] sm:$0xf]
      %v3539 = vld [vmem:[%s3529 + $0x24] sm:$0xf]
      %v3540 = vld [vmem:[%s3529 + $0x28] sm:$0xf]
      %v3541 = vld [vmem:[%s3529 + $0x2c] sm:$0xf]
      %v3542 = vld [vmem:[%s3529 + $0x30] sm:$0xf]
      %v3543 = vld [vmem:[%s3529 + $0x34] sm:$0xf]
      %v3544 = vld [vmem:[%s3529 + $0x38] sm:$0xf]
      %v3545 = vld [vmem:[%s3529 + $0x3c] sm:$0xf]
      %v3546 = vld [vmem:[%s3529 + $0x40] sm:$0xf]
      %v3547 = vld [vmem:[%s3529 + $0x44] sm:$0xf]
      %v3548 = vld [vmem:[%s3529 + $0x48] sm:$0xf]
      %v3549 = vld [vmem:[%s3529 + $0x4c] sm:$0xf]
      %v3550 = vld [vmem:[%s3529 + $0x50] sm:$0xf]
      %v3551 = vld [vmem:[%s3529 + $0x54] sm:$0xf]
      %v3552 = vld [vmem:[%s3529 + $0x58] sm:$0xf]
      %v3553 = vld [vmem:[%s3529 + $0x5c] sm:$0xf]
      %v3554 = vld [vmem:[%s3529 + $0x60] sm:$0xf]
      %v3555 = vld [vmem:[%s3529 + $0x64] sm:$0xf]
      %v3556 = vld [vmem:[%s3529 + $0x68] sm:$0xf]
      %v3557 = vld [vmem:[%s3529 + $0x6c] sm:$0xf]
      %v3558 = vld [vmem:[%s3529 + $0x70] sm:$0xf]
      %v3559 = vld [vmem:[%s3529 + $0x74] sm:$0xf]
      %v3560 = vld [vmem:[%s3529 + $0x78] sm:$0xf]
      %v3561 = vld [vmem:[%s3529 + $0x7c] sm:$0xf]
      %v3594 = vunpack.c.l.b16 %v3530
      %v3595 = vunpack.c.l.b16 %v3531
      %v3596 = vunpack.c.l.b16 %v3532
      %v3597 = vunpack.c.l.b16 %v3533
      %v3598 = vunpack.c.l.b16 %v3534
      %v3599 = vunpack.c.l.b16 %v3535
      %v3600 = vunpack.c.l.b16 %v3536
      %v3601 = vunpack.c.l.b16 %v3537
      %v3602 = vunpack.c.l.b16 %v3538
      %v3603 = vunpack.c.l.b16 %v3539
      %v3604 = vunpack.c.l.b16 %v3540
      %v3605 = vunpack.c.l.b16 %v3541
      %v3606 = vunpack.c.l.b16 %v3542
      %v3607 = vunpack.c.l.b16 %v3543
      %v3608 = vunpack.c.l.b16 %v3544
      %v3609 = vunpack.c.l.b16 %v3545
      %v3610 = vunpack.c.l.b16 %v3546
      %v3611 = vunpack.c.l.b16 %v3547
      %v3612 = vunpack.c.l.b16 %v3548
      %v3613 = vunpack.c.l.b16 %v3549
      %v3614 = vunpack.c.l.b16 %v3550
      %v3615 = vunpack.c.l.b16 %v3551
      %v3616 = vunpack.c.l.b16 %v3552
      %v3617 = vunpack.c.l.b16 %v3553
      %v3618 = vunpack.c.l.b16 %v3554
      %v3619 = vunpack.c.l.b16 %v3555
      %v3620 = vunpack.c.l.b16 %v3556
      %v3621 = vunpack.c.l.b16 %v3557
      %v3622 = vunpack.c.l.b16 %v3558
      %v3623 = vunpack.c.l.b16 %v3559
      %v3624 = vunpack.c.l.b16 %v3560
      %v3625 = vunpack.c.l.b16 %v3561
      %v3626 = vpack.c.b16 %v3595, %v3594
      %v3627 = vpack.c.b16 %v3597, %v3596
      %v3628 = vpack.c.b16 %v3599, %v3598
      %v3629 = vpack.c.b16 %v3601, %v3600
      %v3630 = vpack.c.b16 %v3603, %v3602
      %v3631 = vpack.c.b16 %v3605, %v3604
      %v3632 = vpack.c.b16 %v3607, %v3606
      %v3633 = vpack.c.b16 %v3609, %v3608
      %v3634 = vpack.c.b16 %v3611, %v3610
      %v3635 = vpack.c.b16 %v3613, %v3612
      %v3636 = vpack.c.b16 %v3615, %v3614
      %v3637 = vpack.c.b16 %v3617, %v3616
      %v3638 = vpack.c.b16 %v3619, %v3618
      %v3639 = vpack.c.b16 %v3621, %v3620
      %v3640 = vpack.c.b16 %v3623, %v3622
      %v3641 = vpack.c.b16 %v3625, %v3624
      %3658 = vmatpush.bf16.msra.mxu0 %v3633
      %3659 = vmatpush.bf16.msra.mxu0 %v3632
      %3660 = vmatpush.bf16.msra.mxu0 %v3631
      %3661 = vmatpush.bf16.msra.mxu0 %v3630
      %3662 = vmatpush.bf16.msra.mxu0 %v3629
      %3663 = vmatpush.bf16.msra.mxu0 %v3628
      %3664 = vmatpush.bf16.msra.mxu0 %v3627
      %3665 = vmatpush.bf16.msra.mxu0 %v3626
      %3666 = vmatmul.bf16.gmra.mxu0 %v3402
      %v3667 = vpop.f32.mrf.mxu0
      %v3668 = vadd.f32 0.0, %v3667
      %v3669 = vpop.f32.mrf.mxu0
      %3670 = vdwg.mxu0
      %3671 = vmatpush.bf16.msra.mxu0 %v3641
      %3672 = vmatpush.bf16.msra.mxu0 %v3640
      %3673 = vmatpush.bf16.msra.mxu0 %v3639
      %3674 = vmatpush.bf16.msra.mxu0 %v3638
      %3675 = vmatpush.bf16.msra.mxu0 %v3637
      %3676 = vmatpush.bf16.msra.mxu0 %v3636
      %3677 = vmatpush.bf16.msra.mxu0 %v3635
      %3678 = vmatpush.bf16.msra.mxu0 %v3634
      %3679 = vmatmul.bf16.gmra.mxu0 %v3403
      %v3680 = vpop.f32.mrf.mxu0
      %v3681 = vadd.f32 %v3668, %v3680
      %v3682 = vpop.f32.mrf.mxu0
      %3683 = vdwg.mxu0
      %v3684 = vadd.f32 %v3528, %v3681
      %s3685 = scalar_lea.vmem %s3, 2560
      %v3686 = vld [vmem:[%s3685] sm:$0xf]
      %v3687 = vld [vmem:[%s3685 + $0x4] sm:$0xf]
      %v3688 = vld [vmem:[%s3685 + $0x8] sm:$0xf]
      %v3689 = vld [vmem:[%s3685 + $0xc] sm:$0xf]
      %v3690 = vld [vmem:[%s3685 + $0x10] sm:$0xf]
      %v3691 = vld [vmem:[%s3685 + $0x14] sm:$0xf]
      %v3692 = vld [vmem:[%s3685 + $0x18] sm:$0xf]
      %v3693 = vld [vmem:[%s3685 + $0x1c] sm:$0xf]
      %v3694 = vld [vmem:[%s3685 + $0x20] sm:$0xf]
      %v3695 = vld [vmem:[%s3685 + $0x24] sm:$0xf]
      %v3696 = vld [vmem:[%s3685 + $0x28] sm:$0xf]
      %v3697 = vld [vmem:[%s3685 + $0x2c] sm:$0xf]
      %v3698 = vld [vmem:[%s3685 + $0x30] sm:$0xf]
      %v3699 = vld [vmem:[%s3685 + $0x34] sm:$0xf]
      %v3700 = vld [vmem:[%s3685 + $0x38] sm:$0xf]
      %v3701 = vld [vmem:[%s3685 + $0x3c] sm:$0xf]
      %v3702 = vld [vmem:[%s3685 + $0x40] sm:$0xf]
      %v3703 = vld [vmem:[%s3685 + $0x44] sm:$0xf]
      %v3704 = vld [vmem:[%s3685 + $0x48] sm:$0xf]
      %v3705 = vld [vmem:[%s3685 + $0x4c] sm:$0xf]
      %v3706 = vld [vmem:[%s3685 + $0x50] sm:$0xf]
      %v3707 = vld [vmem:[%s3685 + $0x54] sm:$0xf]
      %v3708 = vld [vmem:[%s3685 + $0x58] sm:$0xf]
      %v3709 = vld [vmem:[%s3685 + $0x5c] sm:$0xf]
      %v3710 = vld [vmem:[%s3685 + $0x60] sm:$0xf]
      %v3711 = vld [vmem:[%s3685 + $0x64] sm:$0xf]
      %v3712 = vld [vmem:[%s3685 + $0x68] sm:$0xf]
      %v3713 = vld [vmem:[%s3685 + $0x6c] sm:$0xf]
      %v3714 = vld [vmem:[%s3685 + $0x70] sm:$0xf]
      %v3715 = vld [vmem:[%s3685 + $0x74] sm:$0xf]
      %v3716 = vld [vmem:[%s3685 + $0x78] sm:$0xf]
      %v3717 = vld [vmem:[%s3685 + $0x7c] sm:$0xf]
      %v3719 = vunpack.c.l.b16 %v3363
      %v3720 = vpack.c.b16 %v3719, %v3719
      %3721 = vrot.lane.b32.xlu0 %v3402, 96
      %v3722 = vpop.permute.xlu0 %3721
      %3723 = vrot.lane.b32.xlu0 %v3403, 96
      %v3724 = vpop.permute.xlu0 %3723
      %3725 = vrot.lane.b32.xlu0 %v3720, 96
      %v3726 = vpop.permute.xlu0 %3725
      %v3727 = vsel %vm788, %v3722, %v3724
      %v3728 = vsel %vm788, %v3724, %v3726
      %v3763 = vunpack.c.l.b16 %v3686
      %v3764 = vunpack.c.l.b16 %v3687
      %v3765 = vunpack.c.l.b16 %v3688
      %v3766 = vunpack.c.l.b16 %v3689
      %v3767 = vunpack.c.l.b16 %v3690
      %v3768 = vunpack.c.l.b16 %v3691
      %v3769 = vunpack.c.l.b16 %v3692
      %v3770 = vunpack.c.l.b16 %v3693
      %v3771 = vunpack.c.l.b16 %v3694
      %v3772 = vunpack.c.l.b16 %v3695
      %v3773 = vunpack.c.l.b16 %v3696
      %v3774 = vunpack.c.l.b16 %v3697
      %v3775 = vunpack.c.l.b16 %v3698
      %v3776 = vunpack.c.l.b16 %v3699
      %v3777 = vunpack.c.l.b16 %v3700
      %v3778 = vunpack.c.l.b16 %v3701
      %v3779 = vunpack.c.l.b16 %v3702
      %v3780 = vunpack.c.l.b16 %v3703
      %v3781 = vunpack.c.l.b16 %v3704
      %v3782 = vunpack.c.l.b16 %v3705
      %v3783 = vunpack.c.l.b16 %v3706
      %v3784 = vunpack.c.l.b16 %v3707
      %v3785 = vunpack.c.l.b16 %v3708
      %v3786 = vunpack.c.l.b16 %v3709
      %v3787 = vunpack.c.l.b16 %v3710
      %v3788 = vunpack.c.l.b16 %v3711
      %v3789 = vunpack.c.l.b16 %v3712
      %v3790 = vunpack.c.l.b16 %v3713
      %v3791 = vunpack.c.l.b16 %v3714
      %v3792 = vunpack.c.l.b16 %v3715
      %v3793 = vunpack.c.l.b16 %v3716
      %v3794 = vunpack.c.l.b16 %v3717
      %v3795 = vpack.c.b16 %v3764, %v3763
      %v3796 = vpack.c.b16 %v3766, %v3765
      %v3797 = vpack.c.b16 %v3768, %v3767
      %v3798 = vpack.c.b16 %v3770, %v3769
      %v3799 = vpack.c.b16 %v3772, %v3771
      %v3800 = vpack.c.b16 %v3774, %v3773
      %v3801 = vpack.c.b16 %v3776, %v3775
      %v3802 = vpack.c.b16 %v3778, %v3777
      %v3803 = vpack.c.b16 %v3780, %v3779
      %v3804 = vpack.c.b16 %v3782, %v3781
      %v3805 = vpack.c.b16 %v3784, %v3783
      %v3806 = vpack.c.b16 %v3786, %v3785
      %v3807 = vpack.c.b16 %v3788, %v3787
      %v3808 = vpack.c.b16 %v3790, %v3789
      %v3809 = vpack.c.b16 %v3792, %v3791
      %v3810 = vpack.c.b16 %v3794, %v3793
      %3827 = vmatpush.bf16.msra.mxu0 %v3802
      %3828 = vmatpush.bf16.msra.mxu0 %v3801
      %3829 = vmatpush.bf16.msra.mxu0 %v3800
      %3830 = vmatpush.bf16.msra.mxu0 %v3799
      %3831 = vmatpush.bf16.msra.mxu0 %v3798
      %3832 = vmatpush.bf16.msra.mxu0 %v3797
      %3833 = vmatpush.bf16.msra.mxu0 %v3796
      %3834 = vmatpush.bf16.msra.mxu0 %v3795
      %3835 = vmatmul.bf16.gmra.mxu0 %v3727
      %v3836 = vpop.f32.mrf.mxu0
      %v3837 = vadd.f32 0.0, %v3836
      %v3838 = vpop.f32.mrf.mxu0
      %3839 = vdwg.mxu0
      %3840 = vmatpush.bf16.msra.mxu0 %v3810
      %3841 = vmatpush.bf16.msra.mxu0 %v3809
      %3842 = vmatpush.bf16.msra.mxu0 %v3808
      %3843 = vmatpush.bf16.msra.mxu0 %v3807
      %3844 = vmatpush.bf16.msra.mxu0 %v3806
      %3845 = vmatpush.bf16.msra.mxu0 %v3805
      %3846 = vmatpush.bf16.msra.mxu0 %v3804
      %3847 = vmatpush.bf16.msra.mxu0 %v3803
      %3848 = vmatmul.bf16.gmra.mxu0 %v3728
      %v3849 = vpop.f32.mrf.mxu0
      %v3850 = vadd.f32 %v3837, %v3849
      %v3851 = vpop.f32.mrf.mxu0
      %3852 = vdwg.mxu0
      %v3853 = vadd.f32 %v3684, %v3850
      %s3854 = scalar_lea.vmem %s3, 2688
      %v3855 = vld [vmem:[%s3854] sm:$0xf]
      %v3856 = vld [vmem:[%s3854 + $0x4] sm:$0xf]
      %v3857 = vld [vmem:[%s3854 + $0x8] sm:$0xf]
      %v3858 = vld [vmem:[%s3854 + $0xc] sm:$0xf]
      %v3859 = vld [vmem:[%s3854 + $0x10] sm:$0xf]
      %v3860 = vld [vmem:[%s3854 + $0x14] sm:$0xf]
      %v3861 = vld [vmem:[%s3854 + $0x18] sm:$0xf]
      %v3862 = vld [vmem:[%s3854 + $0x1c] sm:$0xf]
      %v3863 = vld [vmem:[%s3854 + $0x20] sm:$0xf]
      %v3864 = vld [vmem:[%s3854 + $0x24] sm:$0xf]
      %v3865 = vld [vmem:[%s3854 + $0x28] sm:$0xf]
      %v3866 = vld [vmem:[%s3854 + $0x2c] sm:$0xf]
      %v3867 = vld [vmem:[%s3854 + $0x30] sm:$0xf]
      %v3868 = vld [vmem:[%s3854 + $0x34] sm:$0xf]
      %v3869 = vld [vmem:[%s3854 + $0x38] sm:$0xf]
      %v3870 = vld [vmem:[%s3854 + $0x3c] sm:$0xf]
      %v3871 = vld [vmem:[%s3854 + $0x40] sm:$0xf]
      %v3872 = vld [vmem:[%s3854 + $0x44] sm:$0xf]
      %v3873 = vld [vmem:[%s3854 + $0x48] sm:$0xf]
      %v3874 = vld [vmem:[%s3854 + $0x4c] sm:$0xf]
      %v3875 = vld [vmem:[%s3854 + $0x50] sm:$0xf]
      %v3876 = vld [vmem:[%s3854 + $0x54] sm:$0xf]
      %v3877 = vld [vmem:[%s3854 + $0x58] sm:$0xf]
      %v3878 = vld [vmem:[%s3854 + $0x5c] sm:$0xf]
      %v3879 = vld [vmem:[%s3854 + $0x60] sm:$0xf]
      %v3880 = vld [vmem:[%s3854 + $0x64] sm:$0xf]
      %v3881 = vld [vmem:[%s3854 + $0x68] sm:$0xf]
      %v3882 = vld [vmem:[%s3854 + $0x6c] sm:$0xf]
      %v3883 = vld [vmem:[%s3854 + $0x70] sm:$0xf]
      %v3884 = vld [vmem:[%s3854 + $0x74] sm:$0xf]
      %v3885 = vld [vmem:[%s3854 + $0x78] sm:$0xf]
      %v3886 = vld [vmem:[%s3854 + $0x7c] sm:$0xf]
      %v3919 = vunpack.c.l.b16 %v3855
      %v3920 = vunpack.c.l.b16 %v3856
      %v3921 = vunpack.c.l.b16 %v3857
      %v3922 = vunpack.c.l.b16 %v3858
      %v3923 = vunpack.c.l.b16 %v3859
      %v3924 = vunpack.c.l.b16 %v3860
      %v3925 = vunpack.c.l.b16 %v3861
      %v3926 = vunpack.c.l.b16 %v3862
      %v3927 = vunpack.c.l.b16 %v3863
      %v3928 = vunpack.c.l.b16 %v3864
      %v3929 = vunpack.c.l.b16 %v3865
      %v3930 = vunpack.c.l.b16 %v3866
      %v3931 = vunpack.c.l.b16 %v3867
      %v3932 = vunpack.c.l.b16 %v3868
      %v3933 = vunpack.c.l.b16 %v3869
      %v3934 = vunpack.c.l.b16 %v3870
      %v3935 = vunpack.c.l.b16 %v3871
      %v3936 = vunpack.c.l.b16 %v3872
      %v3937 = vunpack.c.l.b16 %v3873
      %v3938 = vunpack.c.l.b16 %v3874
      %v3939 = vunpack.c.l.b16 %v3875
      %v3940 = vunpack.c.l.b16 %v3876
      %v3941 = vunpack.c.l.b16 %v3877
      %v3942 = vunpack.c.l.b16 %v3878
      %v3943 = vunpack.c.l.b16 %v3879
      %v3944 = vunpack.c.l.b16 %v3880
      %v3945 = vunpack.c.l.b16 %v3881
      %v3946 = vunpack.c.l.b16 %v3882
      %v3947 = vunpack.c.l.b16 %v3883
      %v3948 = vunpack.c.l.b16 %v3884
      %v3949 = vunpack.c.l.b16 %v3885
      %v3950 = vunpack.c.l.b16 %v3886
      %v3951 = vpack.c.b16 %v3920, %v3919
      %v3952 = vpack.c.b16 %v3922, %v3921
      %v3953 = vpack.c.b16 %v3924, %v3923
      %v3954 = vpack.c.b16 %v3926, %v3925
      %v3955 = vpack.c.b16 %v3928, %v3927
      %v3956 = vpack.c.b16 %v3930, %v3929
      %v3957 = vpack.c.b16 %v3932, %v3931
      %v3958 = vpack.c.b16 %v3934, %v3933
      %v3959 = vpack.c.b16 %v3936, %v3935
      %v3960 = vpack.c.b16 %v3938, %v3937
      %v3961 = vpack.c.b16 %v3940, %v3939
      %v3962 = vpack.c.b16 %v3942, %v3941
      %v3963 = vpack.c.b16 %v3944, %v3943
      %v3964 = vpack.c.b16 %v3946, %v3945
      %v3965 = vpack.c.b16 %v3948, %v3947
      %v3966 = vpack.c.b16 %v3950, %v3949
      %3983 = vmatpush.bf16.msra.mxu0 %v3958
      %3984 = vmatpush.bf16.msra.mxu0 %v3957
      %3985 = vmatpush.bf16.msra.mxu0 %v3956
      %3986 = vmatpush.bf16.msra.mxu0 %v3955
      %3987 = vmatpush.bf16.msra.mxu0 %v3954
      %3988 = vmatpush.bf16.msra.mxu0 %v3953
      %3989 = vmatpush.bf16.msra.mxu0 %v3952
      %3990 = vmatpush.bf16.msra.mxu0 %v3951
      %3991 = vmatmul.bf16.gmra.mxu0 %v3402
      %v3992 = vpop.f32.mrf.mxu0
      %v3993 = vadd.f32 0.0, %v3992
      %v3994 = vpop.f32.mrf.mxu0
      %3995 = vdwg.mxu0
      %3996 = vmatpush.bf16.msra.mxu0 %v3966
      %3997 = vmatpush.bf16.msra.mxu0 %v3965
      %3998 = vmatpush.bf16.msra.mxu0 %v3964
      %3999 = vmatpush.bf16.msra.mxu0 %v3963
      %4000 = vmatpush.bf16.msra.mxu0 %v3962
      %4001 = vmatpush.bf16.msra.mxu0 %v3961
      %4002 = vmatpush.bf16.msra.mxu0 %v3960
      %4003 = vmatpush.bf16.msra.mxu0 %v3959
      %4004 = vmatmul.bf16.gmra.mxu0 %v3403
      %v4005 = vpop.f32.mrf.mxu0
      %v4006 = vadd.f32 %v3993, %v4005
      %v4007 = vpop.f32.mrf.mxu0
      %4008 = vdwg.mxu0
      %v4009 = vadd.f32 %v3853, %v4006
      %s4010 = scalar_lea.vmem %s3, 2816
      %v4011 = vld [vmem:[%s4010] sm:$0xf]
      %v4012 = vld [vmem:[%s4010 + $0x4] sm:$0xf]
      %v4013 = vld [vmem:[%s4010 + $0x8] sm:$0xf]
      %v4014 = vld [vmem:[%s4010 + $0xc] sm:$0xf]
      %v4015 = vld [vmem:[%s4010 + $0x10] sm:$0xf]
      %v4016 = vld [vmem:[%s4010 + $0x14] sm:$0xf]
      %v4017 = vld [vmem:[%s4010 + $0x18] sm:$0xf]
      %v4018 = vld [vmem:[%s4010 + $0x1c] sm:$0xf]
      %v4019 = vld [vmem:[%s4010 + $0x20] sm:$0xf]
      %v4020 = vld [vmem:[%s4010 + $0x24] sm:$0xf]
      %v4021 = vld [vmem:[%s4010 + $0x28] sm:$0xf]
      %v4022 = vld [vmem:[%s4010 + $0x2c] sm:$0xf]
      %v4023 = vld [vmem:[%s4010 + $0x30] sm:$0xf]
      %v4024 = vld [vmem:[%s4010 + $0x34] sm:$0xf]
      %v4025 = vld [vmem:[%s4010 + $0x38] sm:$0xf]
      %v4026 = vld [vmem:[%s4010 + $0x3c] sm:$0xf]
      %v4027 = vld [vmem:[%s4010 + $0x40] sm:$0xf]
      %v4028 = vld [vmem:[%s4010 + $0x44] sm:$0xf]
      %v4029 = vld [vmem:[%s4010 + $0x48] sm:$0xf]
      %v4030 = vld [vmem:[%s4010 + $0x4c] sm:$0xf]
      %v4031 = vld [vmem:[%s4010 + $0x50] sm:$0xf]
      %v4032 = vld [vmem:[%s4010 + $0x54] sm:$0xf]
      %v4033 = vld [vmem:[%s4010 + $0x58] sm:$0xf]
      %v4034 = vld [vmem:[%s4010 + $0x5c] sm:$0xf]
      %v4035 = vld [vmem:[%s4010 + $0x60] sm:$0xf]
      %v4036 = vld [vmem:[%s4010 + $0x64] sm:$0xf]
      %v4037 = vld [vmem:[%s4010 + $0x68] sm:$0xf]
      %v4038 = vld [vmem:[%s4010 + $0x6c] sm:$0xf]
      %v4039 = vld [vmem:[%s4010 + $0x70] sm:$0xf]
      %v4040 = vld [vmem:[%s4010 + $0x74] sm:$0xf]
      %v4041 = vld [vmem:[%s4010 + $0x78] sm:$0xf]
      %v4042 = vld [vmem:[%s4010 + $0x7c] sm:$0xf]
      %v4075 = vunpack.c.l.b16 %v4011
      %v4076 = vunpack.c.l.b16 %v4012
      %v4077 = vunpack.c.l.b16 %v4013
      %v4078 = vunpack.c.l.b16 %v4014
      %v4079 = vunpack.c.l.b16 %v4015
      %v4080 = vunpack.c.l.b16 %v4016
      %v4081 = vunpack.c.l.b16 %v4017
      %v4082 = vunpack.c.l.b16 %v4018
      %v4083 = vunpack.c.l.b16 %v4019
      %v4084 = vunpack.c.l.b16 %v4020
      %v4085 = vunpack.c.l.b16 %v4021
      %v4086 = vunpack.c.l.b16 %v4022
      %v4087 = vunpack.c.l.b16 %v4023
      %v4088 = vunpack.c.l.b16 %v4024
      %v4089 = vunpack.c.l.b16 %v4025
      %v4090 = vunpack.c.l.b16 %v4026
      %v4091 = vunpack.c.l.b16 %v4027
      %v4092 = vunpack.c.l.b16 %v4028
      %v4093 = vunpack.c.l.b16 %v4029
      %v4094 = vunpack.c.l.b16 %v4030
      %v4095 = vunpack.c.l.b16 %v4031
      %v4096 = vunpack.c.l.b16 %v4032
      %v4097 = vunpack.c.l.b16 %v4033
      %v4098 = vunpack.c.l.b16 %v4034
      %v4099 = vunpack.c.l.b16 %v4035
      %v4100 = vunpack.c.l.b16 %v4036
      %v4101 = vunpack.c.l.b16 %v4037
      %v4102 = vunpack.c.l.b16 %v4038
      %v4103 = vunpack.c.l.b16 %v4039
      %v4104 = vunpack.c.l.b16 %v4040
      %v4105 = vunpack.c.l.b16 %v4041
      %v4106 = vunpack.c.l.b16 %v4042
      %v4107 = vpack.c.b16 %v4076, %v4075
      %v4108 = vpack.c.b16 %v4078, %v4077
      %v4109 = vpack.c.b16 %v4080, %v4079
      %v4110 = vpack.c.b16 %v4082, %v4081
      %v4111 = vpack.c.b16 %v4084, %v4083
      %v4112 = vpack.c.b16 %v4086, %v4085
      %v4113 = vpack.c.b16 %v4088, %v4087
      %v4114 = vpack.c.b16 %v4090, %v4089
      %v4115 = vpack.c.b16 %v4092, %v4091
      %v4116 = vpack.c.b16 %v4094, %v4093
      %v4117 = vpack.c.b16 %v4096, %v4095
      %v4118 = vpack.c.b16 %v4098, %v4097
      %v4119 = vpack.c.b16 %v4100, %v4099
      %v4120 = vpack.c.b16 %v4102, %v4101
      %v4121 = vpack.c.b16 %v4104, %v4103
      %v4122 = vpack.c.b16 %v4106, %v4105
      %4139 = vmatpush.bf16.msra.mxu0 %v4114
      %4140 = vmatpush.bf16.msra.mxu0 %v4113
      %4141 = vmatpush.bf16.msra.mxu0 %v4112
      %4142 = vmatpush.bf16.msra.mxu0 %v4111
      %4143 = vmatpush.bf16.msra.mxu0 %v4110
      %4144 = vmatpush.bf16.msra.mxu0 %v4109
      %4145 = vmatpush.bf16.msra.mxu0 %v4108
      %4146 = vmatpush.bf16.msra.mxu0 %v4107
      %4147 = vmatmul.bf16.gmra.mxu0 %v3402
      %v4148 = vpop.f32.mrf.mxu0
      %v4149 = vadd.f32 0.0, %v4148
      %v4150 = vpop.f32.mrf.mxu0
      %4151 = vdwg.mxu0
      %4152 = vmatpush.bf16.msra.mxu0 %v4122
      %4153 = vmatpush.bf16.msra.mxu0 %v4121
      %4154 = vmatpush.bf16.msra.mxu0 %v4120
      %4155 = vmatpush.bf16.msra.mxu0 %v4119
      %4156 = vmatpush.bf16.msra.mxu0 %v4118
      %4157 = vmatpush.bf16.msra.mxu0 %v4117
      %4158 = vmatpush.bf16.msra.mxu0 %v4116
      %4159 = vmatpush.bf16.msra.mxu0 %v4115
      %4160 = vmatmul.bf16.gmra.mxu0 %v3403
      %v4161 = vpop.f32.mrf.mxu0
      %v4162 = vadd.f32 %v4149, %v4161
      %v4163 = vpop.f32.mrf.mxu0
      %4164 = vdwg.mxu0
      %v4165 = vadd.f32 %v4009, %v4162
      %s4166 = scalar_lea.vmem %s3, 2944
      %v4167 = vld [vmem:[%s4166] sm:$0xf]
      %v4168 = vld [vmem:[%s4166 + $0x4] sm:$0xf]
      %v4169 = vld [vmem:[%s4166 + $0x8] sm:$0xf]
      %v4170 = vld [vmem:[%s4166 + $0xc] sm:$0xf]
      %v4171 = vld [vmem:[%s4166 + $0x10] sm:$0xf]
      %v4172 = vld [vmem:[%s4166 + $0x14] sm:$0xf]
      %v4173 = vld [vmem:[%s4166 + $0x18] sm:$0xf]
      %v4174 = vld [vmem:[%s4166 + $0x1c] sm:$0xf]
      %v4175 = vld [vmem:[%s4166 + $0x20] sm:$0xf]
      %v4176 = vld [vmem:[%s4166 + $0x24] sm:$0xf]
      %v4177 = vld [vmem:[%s4166 + $0x28] sm:$0xf]
      %v4178 = vld [vmem:[%s4166 + $0x2c] sm:$0xf]
      %v4179 = vld [vmem:[%s4166 + $0x30] sm:$0xf]
      %v4180 = vld [vmem:[%s4166 + $0x34] sm:$0xf]
      %v4181 = vld [vmem:[%s4166 + $0x38] sm:$0xf]
      %v4182 = vld [vmem:[%s4166 + $0x3c] sm:$0xf]
      %v4183 = vld [vmem:[%s4166 + $0x40] sm:$0xf]
      %v4184 = vld [vmem:[%s4166 + $0x44] sm:$0xf]
      %v4185 = vld [vmem:[%s4166 + $0x48] sm:$0xf]
      %v4186 = vld [vmem:[%s4166 + $0x4c] sm:$0xf]
      %v4187 = vld [vmem:[%s4166 + $0x50] sm:$0xf]
      %v4188 = vld [vmem:[%s4166 + $0x54] sm:$0xf]
      %v4189 = vld [vmem:[%s4166 + $0x58] sm:$0xf]
      %v4190 = vld [vmem:[%s4166 + $0x5c] sm:$0xf]
      %v4191 = vld [vmem:[%s4166 + $0x60] sm:$0xf]
      %v4192 = vld [vmem:[%s4166 + $0x64] sm:$0xf]
      %v4193 = vld [vmem:[%s4166 + $0x68] sm:$0xf]
      %v4194 = vld [vmem:[%s4166 + $0x6c] sm:$0xf]
      %v4195 = vld [vmem:[%s4166 + $0x70] sm:$0xf]
      %v4196 = vld [vmem:[%s4166 + $0x74] sm:$0xf]
      %v4197 = vld [vmem:[%s4166 + $0x78] sm:$0xf]
      %v4198 = vld [vmem:[%s4166 + $0x7c] sm:$0xf]
      %v4231 = vunpack.c.l.b16 %v4167
      %v4232 = vunpack.c.l.b16 %v4168
      %v4233 = vunpack.c.l.b16 %v4169
      %v4234 = vunpack.c.l.b16 %v4170
      %v4235 = vunpack.c.l.b16 %v4171
      %v4236 = vunpack.c.l.b16 %v4172
      %v4237 = vunpack.c.l.b16 %v4173
      %v4238 = vunpack.c.l.b16 %v4174
      %v4239 = vunpack.c.l.b16 %v4175
      %v4240 = vunpack.c.l.b16 %v4176
      %v4241 = vunpack.c.l.b16 %v4177
      %v4242 = vunpack.c.l.b16 %v4178
      %v4243 = vunpack.c.l.b16 %v4179
      %v4244 = vunpack.c.l.b16 %v4180
      %v4245 = vunpack.c.l.b16 %v4181
      %v4246 = vunpack.c.l.b16 %v4182
      %v4247 = vunpack.c.l.b16 %v4183
      %v4248 = vunpack.c.l.b16 %v4184
      %v4249 = vunpack.c.l.b16 %v4185
      %v4250 = vunpack.c.l.b16 %v4186
      %v4251 = vunpack.c.l.b16 %v4187
      %v4252 = vunpack.c.l.b16 %v4188
      %v4253 = vunpack.c.l.b16 %v4189
      %v4254 = vunpack.c.l.b16 %v4190
      %v4255 = vunpack.c.l.b16 %v4191
      %v4256 = vunpack.c.l.b16 %v4192
      %v4257 = vunpack.c.l.b16 %v4193
      %v4258 = vunpack.c.l.b16 %v4194
      %v4259 = vunpack.c.l.b16 %v4195
      %v4260 = vunpack.c.l.b16 %v4196
      %v4261 = vunpack.c.l.b16 %v4197
      %v4262 = vunpack.c.l.b16 %v4198
      %v4263 = vpack.c.b16 %v4232, %v4231
      %v4264 = vpack.c.b16 %v4234, %v4233
      %v4265 = vpack.c.b16 %v4236, %v4235
      %v4266 = vpack.c.b16 %v4238, %v4237
      %v4267 = vpack.c.b16 %v4240, %v4239
      %v4268 = vpack.c.b16 %v4242, %v4241
      %v4269 = vpack.c.b16 %v4244, %v4243
      %v4270 = vpack.c.b16 %v4246, %v4245
      %v4271 = vpack.c.b16 %v4248, %v4247
      %v4272 = vpack.c.b16 %v4250, %v4249
      %v4273 = vpack.c.b16 %v4252, %v4251
      %v4274 = vpack.c.b16 %v4254, %v4253
      %v4275 = vpack.c.b16 %v4256, %v4255
      %v4276 = vpack.c.b16 %v4258, %v4257
      %v4277 = vpack.c.b16 %v4260, %v4259
      %v4278 = vpack.c.b16 %v4262, %v4261
      %4295 = vmatpush.bf16.msra.mxu0 %v4270
      %4296 = vmatpush.bf16.msra.mxu0 %v4269
      %4297 = vmatpush.bf16.msra.mxu0 %v4268
      %4298 = vmatpush.bf16.msra.mxu0 %v4267
      %4299 = vmatpush.bf16.msra.mxu0 %v4266
      %4300 = vmatpush.bf16.msra.mxu0 %v4265
      %4301 = vmatpush.bf16.msra.mxu0 %v4264
      %4302 = vmatpush.bf16.msra.mxu0 %v4263
      %4303 = vmatmul.bf16.gmra.mxu0 %v3727
      %v4304 = vpop.f32.mrf.mxu0
      %v4305 = vadd.f32 0.0, %v4304
      %v4306 = vpop.f32.mrf.mxu0
      %4307 = vdwg.mxu0
      %4308 = vmatpush.bf16.msra.mxu0 %v4278
      %4309 = vmatpush.bf16.msra.mxu0 %v4277
      %4310 = vmatpush.bf16.msra.mxu0 %v4276
      %4311 = vmatpush.bf16.msra.mxu0 %v4275
      %4312 = vmatpush.bf16.msra.mxu0 %v4274
      %4313 = vmatpush.bf16.msra.mxu0 %v4273
      %4314 = vmatpush.bf16.msra.mxu0 %v4272
      %4315 = vmatpush.bf16.msra.mxu0 %v4271
      %4316 = vmatmul.bf16.gmra.mxu0 %v3728
      %v4317 = vpop.f32.mrf.mxu0
      %v4318 = vadd.f32 %v4305, %v4317
      %v4319 = vpop.f32.mrf.mxu0
      %4320 = vdwg.mxu0
      %v4321 = vadd.f32 %v4165, %v4318
      %s4322 = scalar_lea.vmem %s3, 3072
      %v4323 = vld [vmem:[%s4322] sm:$0xf]
      %v4324 = vld [vmem:[%s4322 + $0x4] sm:$0xf]
      %v4325 = vld [vmem:[%s4322 + $0x8] sm:$0xf]
      %v4326 = vld [vmem:[%s4322 + $0xc] sm:$0xf]
      %v4327 = vld [vmem:[%s4322 + $0x10] sm:$0xf]
      %v4328 = vld [vmem:[%s4322 + $0x14] sm:$0xf]
      %v4329 = vld [vmem:[%s4322 + $0x18] sm:$0xf]
      %v4330 = vld [vmem:[%s4322 + $0x1c] sm:$0xf]
      %v4331 = vld [vmem:[%s4322 + $0x20] sm:$0xf]
      %v4332 = vld [vmem:[%s4322 + $0x24] sm:$0xf]
      %v4333 = vld [vmem:[%s4322 + $0x28] sm:$0xf]
      %v4334 = vld [vmem:[%s4322 + $0x2c] sm:$0xf]
      %v4335 = vld [vmem:[%s4322 + $0x30] sm:$0xf]
      %v4336 = vld [vmem:[%s4322 + $0x34] sm:$0xf]
      %v4337 = vld [vmem:[%s4322 + $0x38] sm:$0xf]
      %v4338 = vld [vmem:[%s4322 + $0x3c] sm:$0xf]
      %v4339 = vld [vmem:[%s4322 + $0x40] sm:$0xf]
      %v4340 = vld [vmem:[%s4322 + $0x44] sm:$0xf]
      %v4341 = vld [vmem:[%s4322 + $0x48] sm:$0xf]
      %v4342 = vld [vmem:[%s4322 + $0x4c] sm:$0xf]
      %v4343 = vld [vmem:[%s4322 + $0x50] sm:$0xf]
      %v4344 = vld [vmem:[%s4322 + $0x54] sm:$0xf]
      %v4345 = vld [vmem:[%s4322 + $0x58] sm:$0xf]
      %v4346 = vld [vmem:[%s4322 + $0x5c] sm:$0xf]
      %v4347 = vld [vmem:[%s4322 + $0x60] sm:$0xf]
      %v4348 = vld [vmem:[%s4322 + $0x64] sm:$0xf]
      %v4349 = vld [vmem:[%s4322 + $0x68] sm:$0xf]
      %v4350 = vld [vmem:[%s4322 + $0x6c] sm:$0xf]
      %v4351 = vld [vmem:[%s4322 + $0x70] sm:$0xf]
      %v4352 = vld [vmem:[%s4322 + $0x74] sm:$0xf]
      %v4353 = vld [vmem:[%s4322 + $0x78] sm:$0xf]
      %v4354 = vld [vmem:[%s4322 + $0x7c] sm:$0xf]
      %v4356 = vunpack.c.l.b16 %v3364
      %v4357 = vunpack.c.h.b16 %v3364
      %v4358 = vpack.c.b16 %v4356, %v3400
      %v4359 = vpack.c.b16 %v4357, %v3401
      %v4361 = vshrl.u32 %v4358, 16
      %v4363 = vshll.u32 %v4358, 16
      %v4365 = vrot.slane %v4363, 1
      %v4366 = vor.u32 %v4361, %v4365
      %v4368 = vshrl.u32 %v4359, 16
      %v4370 = vshll.u32 %v4359, 16
      %v4372 = vrot.slane %v4370, 1
      %v4373 = vor.u32 %v4368, %v4372
      %v4408 = vunpack.c.l.b16 %v4323
      %v4409 = vunpack.c.l.b16 %v4324
      %v4410 = vunpack.c.l.b16 %v4325
      %v4411 = vunpack.c.l.b16 %v4326
      %v4412 = vunpack.c.l.b16 %v4327
      %v4413 = vunpack.c.l.b16 %v4328
      %v4414 = vunpack.c.l.b16 %v4329
      %v4415 = vunpack.c.l.b16 %v4330
      %v4416 = vunpack.c.l.b16 %v4331
      %v4417 = vunpack.c.l.b16 %v4332
      %v4418 = vunpack.c.l.b16 %v4333
      %v4419 = vunpack.c.l.b16 %v4334
      %v4420 = vunpack.c.l.b16 %v4335
      %v4421 = vunpack.c.l.b16 %v4336
      %v4422 = vunpack.c.l.b16 %v4337
      %v4423 = vunpack.c.l.b16 %v4338
      %v4424 = vunpack.c.l.b16 %v4339
      %v4425 = vunpack.c.l.b16 %v4340
      %v4426 = vunpack.c.l.b16 %v4341
      %v4427 = vunpack.c.l.b16 %v4342
      %v4428 = vunpack.c.l.b16 %v4343
      %v4429 = vunpack.c.l.b16 %v4344
      %v4430 = vunpack.c.l.b16 %v4345
      %v4431 = vunpack.c.l.b16 %v4346
      %v4432 = vunpack.c.l.b16 %v4347
      %v4433 = vunpack.c.l.b16 %v4348
      %v4434 = vunpack.c.l.b16 %v4349
      %v4435 = vunpack.c.l.b16 %v4350
      %v4436 = vunpack.c.l.b16 %v4351
      %v4437 = vunpack.c.l.b16 %v4352
      %v4438 = vunpack.c.l.b16 %v4353
      %v4439 = vunpack.c.l.b16 %v4354
      %v4440 = vpack.c.b16 %v4409, %v4408
      %v4441 = vpack.c.b16 %v4411, %v4410
      %v4442 = vpack.c.b16 %v4413, %v4412
      %v4443 = vpack.c.b16 %v4415, %v4414
      %v4444 = vpack.c.b16 %v4417, %v4416
      %v4445 = vpack.c.b16 %v4419, %v4418
      %v4446 = vpack.c.b16 %v4421, %v4420
      %v4447 = vpack.c.b16 %v4423, %v4422
      %v4448 = vpack.c.b16 %v4425, %v4424
      %v4449 = vpack.c.b16 %v4427, %v4426
      %v4450 = vpack.c.b16 %v4429, %v4428
      %v4451 = vpack.c.b16 %v4431, %v4430
      %v4452 = vpack.c.b16 %v4433, %v4432
      %v4453 = vpack.c.b16 %v4435, %v4434
      %v4454 = vpack.c.b16 %v4437, %v4436
      %v4455 = vpack.c.b16 %v4439, %v4438
      %4472 = vmatpush.bf16.msra.mxu0 %v4447
      %4473 = vmatpush.bf16.msra.mxu0 %v4446
      %4474 = vmatpush.bf16.msra.mxu0 %v4445
      %4475 = vmatpush.bf16.msra.mxu0 %v4444
      %4476 = vmatpush.bf16.msra.mxu0 %v4443
      %4477 = vmatpush.bf16.msra.mxu0 %v4442
      %4478 = vmatpush.bf16.msra.mxu0 %v4441
      %4479 = vmatpush.bf16.msra.mxu0 %v4440
      %4480 = vmatmul.bf16.gmra.mxu0 %v4366
      %v4481 = vpop.f32.mrf.mxu0
      %v4482 = vadd.f32 0.0, %v4481
      %v4483 = vpop.f32.mrf.mxu0
      %4484 = vdwg.mxu0
      %4485 = vmatpush.bf16.msra.mxu0 %v4455
      %4486 = vmatpush.bf16.msra.mxu0 %v4454
      %4487 = vmatpush.bf16.msra.mxu0 %v4453
      %4488 = vmatpush.bf16.msra.mxu0 %v4452
      %4489 = vmatpush.bf16.msra.mxu0 %v4451
      %4490 = vmatpush.bf16.msra.mxu0 %v4450
      %4491 = vmatpush.bf16.msra.mxu0 %v4449
      %4492 = vmatpush.bf16.msra.mxu0 %v4448
      %4493 = vmatmul.bf16.gmra.mxu0 %v4373
      %v4494 = vpop.f32.mrf.mxu0
      %v4495 = vadd.f32 %v4482, %v4494
      %v4496 = vpop.f32.mrf.mxu0
      %4497 = vdwg.mxu0
      %v4498 = vadd.f32 %v4321, %v4495
      %s4499 = scalar_lea.vmem %s3, 3200
      %v4500 = vld [vmem:[%s4499] sm:$0xf]
      %v4501 = vld [vmem:[%s4499 + $0x4] sm:$0xf]
      %v4502 = vld [vmem:[%s4499 + $0x8] sm:$0xf]
      %v4503 = vld [vmem:[%s4499 + $0xc] sm:$0xf]
      %v4504 = vld [vmem:[%s4499 + $0x10] sm:$0xf]
      %v4505 = vld [vmem:[%s4499 + $0x14] sm:$0xf]
      %v4506 = vld [vmem:[%s4499 + $0x18] sm:$0xf]
      %v4507 = vld [vmem:[%s4499 + $0x1c] sm:$0xf]
      %v4508 = vld [vmem:[%s4499 + $0x20] sm:$0xf]
      %v4509 = vld [vmem:[%s4499 + $0x24] sm:$0xf]
      %v4510 = vld [vmem:[%s4499 + $0x28] sm:$0xf]
      %v4511 = vld [vmem:[%s4499 + $0x2c] sm:$0xf]
      %v4512 = vld [vmem:[%s4499 + $0x30] sm:$0xf]
      %v4513 = vld [vmem:[%s4499 + $0x34] sm:$0xf]
      %v4514 = vld [vmem:[%s4499 + $0x38] sm:$0xf]
      %v4515 = vld [vmem:[%s4499 + $0x3c] sm:$0xf]
      %v4516 = vld [vmem:[%s4499 + $0x40] sm:$0xf]
      %v4517 = vld [vmem:[%s4499 + $0x44] sm:$0xf]
      %v4518 = vld [vmem:[%s4499 + $0x48] sm:$0xf]
      %v4519 = vld [vmem:[%s4499 + $0x4c] sm:$0xf]
      %v4520 = vld [vmem:[%s4499 + $0x50] sm:$0xf]
      %v4521 = vld [vmem:[%s4499 + $0x54] sm:$0xf]
      %v4522 = vld [vmem:[%s4499 + $0x58] sm:$0xf]
      %v4523 = vld [vmem:[%s4499 + $0x5c] sm:$0xf]
      %v4524 = vld [vmem:[%s4499 + $0x60] sm:$0xf]
      %v4525 = vld [vmem:[%s4499 + $0x64] sm:$0xf]
      %v4526 = vld [vmem:[%s4499 + $0x68] sm:$0xf]
      %v4527 = vld [vmem:[%s4499 + $0x6c] sm:$0xf]
      %v4528 = vld [vmem:[%s4499 + $0x70] sm:$0xf]
      %v4529 = vld [vmem:[%s4499 + $0x74] sm:$0xf]
      %v4530 = vld [vmem:[%s4499 + $0x78] sm:$0xf]
      %v4531 = vld [vmem:[%s4499 + $0x7c] sm:$0xf]
      %v4564 = vunpack.c.l.b16 %v4500
      %v4565 = vunpack.c.l.b16 %v4501
      %v4566 = vunpack.c.l.b16 %v4502
      %v4567 = vunpack.c.l.b16 %v4503
      %v4568 = vunpack.c.l.b16 %v4504
      %v4569 = vunpack.c.l.b16 %v4505
      %v4570 = vunpack.c.l.b16 %v4506
      %v4571 = vunpack.c.l.b16 %v4507
      %v4572 = vunpack.c.l.b16 %v4508
      %v4573 = vunpack.c.l.b16 %v4509
      %v4574 = vunpack.c.l.b16 %v4510
      %v4575 = vunpack.c.l.b16 %v4511
      %v4576 = vunpack.c.l.b16 %v4512
      %v4577 = vunpack.c.l.b16 %v4513
      %v4578 = vunpack.c.l.b16 %v4514
      %v4579 = vunpack.c.l.b16 %v4515
      %v4580 = vunpack.c.l.b16 %v4516
      %v4581 = vunpack.c.l.b16 %v4517
      %v4582 = vunpack.c.l.b16 %v4518
      %v4583 = vunpack.c.l.b16 %v4519
      %v4584 = vunpack.c.l.b16 %v4520
      %v4585 = vunpack.c.l.b16 %v4521
      %v4586 = vunpack.c.l.b16 %v4522
      %v4587 = vunpack.c.l.b16 %v4523
      %v4588 = vunpack.c.l.b16 %v4524
      %v4589 = vunpack.c.l.b16 %v4525
      %v4590 = vunpack.c.l.b16 %v4526
      %v4591 = vunpack.c.l.b16 %v4527
      %v4592 = vunpack.c.l.b16 %v4528
      %v4593 = vunpack.c.l.b16 %v4529
      %v4594 = vunpack.c.l.b16 %v4530
      %v4595 = vunpack.c.l.b16 %v4531
      %v4596 = vpack.c.b16 %v4565, %v4564
      %v4597 = vpack.c.b16 %v4567, %v4566
      %v4598 = vpack.c.b16 %v4569, %v4568
      %v4599 = vpack.c.b16 %v4571, %v4570
      %v4600 = vpack.c.b16 %v4573, %v4572
      %v4601 = vpack.c.b16 %v4575, %v4574
      %v4602 = vpack.c.b16 %v4577, %v4576
      %v4603 = vpack.c.b16 %v4579, %v4578
      %v4604 = vpack.c.b16 %v4581, %v4580
      %v4605 = vpack.c.b16 %v4583, %v4582
      %v4606 = vpack.c.b16 %v4585, %v4584
      %v4607 = vpack.c.b16 %v4587, %v4586
      %v4608 = vpack.c.b16 %v4589, %v4588
      %v4609 = vpack.c.b16 %v4591, %v4590
      %v4610 = vpack.c.b16 %v4593, %v4592
      %v4611 = vpack.c.b16 %v4595, %v4594
      %4628 = vmatpush.bf16.msra.mxu0 %v4603
      %4629 = vmatpush.bf16.msra.mxu0 %v4602
      %4630 = vmatpush.bf16.msra.mxu0 %v4601
      %4631 = vmatpush.bf16.msra.mxu0 %v4600
      %4632 = vmatpush.bf16.msra.mxu0 %v4599
      %4633 = vmatpush.bf16.msra.mxu0 %v4598
      %4634 = vmatpush.bf16.msra.mxu0 %v4597
      %4635 = vmatpush.bf16.msra.mxu0 %v4596
      %4636 = vmatmul.bf16.gmra.mxu0 %v4366
      %v4637 = vpop.f32.mrf.mxu0
      %v4638 = vadd.f32 0.0, %v4637
      %v4639 = vpop.f32.mrf.mxu0
      %4640 = vdwg.mxu0
      %4641 = vmatpush.bf16.msra.mxu0 %v4611
      %4642 = vmatpush.bf16.msra.mxu0 %v4610
      %4643 = vmatpush.bf16.msra.mxu0 %v4609
      %4644 = vmatpush.bf16.msra.mxu0 %v4608
      %4645 = vmatpush.bf16.msra.mxu0 %v4607
      %4646 = vmatpush.bf16.msra.mxu0 %v4606
      %4647 = vmatpush.bf16.msra.mxu0 %v4605
      %4648 = vmatpush.bf16.msra.mxu0 %v4604
      %4649 = vmatmul.bf16.gmra.mxu0 %v4373
      %v4650 = vpop.f32.mrf.mxu0
      %v4651 = vadd.f32 %v4638, %v4650
      %v4652 = vpop.f32.mrf.mxu0
      %4653 = vdwg.mxu0
      %v4654 = vadd.f32 %v4498, %v4651
      %s4655 = scalar_lea.vmem %s3, 3328
      %v4656 = vld [vmem:[%s4655] sm:$0xf]
      %v4657 = vld [vmem:[%s4655 + $0x4] sm:$0xf]
      %v4658 = vld [vmem:[%s4655 + $0x8] sm:$0xf]
      %v4659 = vld [vmem:[%s4655 + $0xc] sm:$0xf]
      %v4660 = vld [vmem:[%s4655 + $0x10] sm:$0xf]
      %v4661 = vld [vmem:[%s4655 + $0x14] sm:$0xf]
      %v4662 = vld [vmem:[%s4655 + $0x18] sm:$0xf]
      %v4663 = vld [vmem:[%s4655 + $0x1c] sm:$0xf]
      %v4664 = vld [vmem:[%s4655 + $0x20] sm:$0xf]
      %v4665 = vld [vmem:[%s4655 + $0x24] sm:$0xf]
      %v4666 = vld [vmem:[%s4655 + $0x28] sm:$0xf]
      %v4667 = vld [vmem:[%s4655 + $0x2c] sm:$0xf]
      %v4668 = vld [vmem:[%s4655 + $0x30] sm:$0xf]
      %v4669 = vld [vmem:[%s4655 + $0x34] sm:$0xf]
      %v4670 = vld [vmem:[%s4655 + $0x38] sm:$0xf]
      %v4671 = vld [vmem:[%s4655 + $0x3c] sm:$0xf]
      %v4672 = vld [vmem:[%s4655 + $0x40] sm:$0xf]
      %v4673 = vld [vmem:[%s4655 + $0x44] sm:$0xf]
      %v4674 = vld [vmem:[%s4655 + $0x48] sm:$0xf]
      %v4675 = vld [vmem:[%s4655 + $0x4c] sm:$0xf]
      %v4676 = vld [vmem:[%s4655 + $0x50] sm:$0xf]
      %v4677 = vld [vmem:[%s4655 + $0x54] sm:$0xf]
      %v4678 = vld [vmem:[%s4655 + $0x58] sm:$0xf]
      %v4679 = vld [vmem:[%s4655 + $0x5c] sm:$0xf]
      %v4680 = vld [vmem:[%s4655 + $0x60] sm:$0xf]
      %v4681 = vld [vmem:[%s4655 + $0x64] sm:$0xf]
      %v4682 = vld [vmem:[%s4655 + $0x68] sm:$0xf]
      %v4683 = vld [vmem:[%s4655 + $0x6c] sm:$0xf]
      %v4684 = vld [vmem:[%s4655 + $0x70] sm:$0xf]
      %v4685 = vld [vmem:[%s4655 + $0x74] sm:$0xf]
      %v4686 = vld [vmem:[%s4655 + $0x78] sm:$0xf]
      %v4687 = vld [vmem:[%s4655 + $0x7c] sm:$0xf]
      %v4689 = vunpack.c.l.b16 %v3365
      %v4690 = vpack.c.b16 %v4689, %v3719
      %v4692 = vshrl.u32 %v4690, 16
      %v4694 = vshll.u32 %v4690, 16
      %v4696 = vrot.slane %v4694, 1
      %v4697 = vor.u32 %v4692, %v4696
      %4698 = vrot.lane.b32.xlu0 %v4366, 96
      %v4699 = vpop.permute.xlu0 %4698
      %4700 = vrot.lane.b32.xlu0 %v4373, 96
      %v4701 = vpop.permute.xlu0 %4700
      %4702 = vrot.lane.b32.xlu0 %v4697, 96
      %v4703 = vpop.permute.xlu0 %4702
      %v4704 = vsel %vm788, %v4699, %v4701
      %v4705 = vsel %vm788, %v4701, %v4703
      %v4740 = vunpack.c.l.b16 %v4656
      %v4741 = vunpack.c.l.b16 %v4657
      %v4742 = vunpack.c.l.b16 %v4658
      %v4743 = vunpack.c.l.b16 %v4659
      %v4744 = vunpack.c.l.b16 %v4660
      %v4745 = vunpack.c.l.b16 %v4661
      %v4746 = vunpack.c.l.b16 %v4662
      %v4747 = vunpack.c.l.b16 %v4663
      %v4748 = vunpack.c.l.b16 %v4664
      %v4749 = vunpack.c.l.b16 %v4665
      %v4750 = vunpack.c.l.b16 %v4666
      %v4751 = vunpack.c.l.b16 %v4667
      %v4752 = vunpack.c.l.b16 %v4668
      %v4753 = vunpack.c.l.b16 %v4669
      %v4754 = vunpack.c.l.b16 %v4670
      %v4755 = vunpack.c.l.b16 %v4671
      %v4756 = vunpack.c.l.b16 %v4672
      %v4757 = vunpack.c.l.b16 %v4673
      %v4758 = vunpack.c.l.b16 %v4674
      %v4759 = vunpack.c.l.b16 %v4675
      %v4760 = vunpack.c.l.b16 %v4676
      %v4761 = vunpack.c.l.b16 %v4677
      %v4762 = vunpack.c.l.b16 %v4678
      %v4763 = vunpack.c.l.b16 %v4679
      %v4764 = vunpack.c.l.b16 %v4680
      %v4765 = vunpack.c.l.b16 %v4681
      %v4766 = vunpack.c.l.b16 %v4682
      %v4767 = vunpack.c.l.b16 %v4683
      %v4768 = vunpack.c.l.b16 %v4684
      %v4769 = vunpack.c.l.b16 %v4685
      %v4770 = vunpack.c.l.b16 %v4686
      %v4771 = vunpack.c.l.b16 %v4687
      %v4772 = vpack.c.b16 %v4741, %v4740
      %v4773 = vpack.c.b16 %v4743, %v4742
      %v4774 = vpack.c.b16 %v4745, %v4744
      %v4775 = vpack.c.b16 %v4747, %v4746
      %v4776 = vpack.c.b16 %v4749, %v4748
      %v4777 = vpack.c.b16 %v4751, %v4750
      %v4778 = vpack.c.b16 %v4753, %v4752
      %v4779 = vpack.c.b16 %v4755, %v4754
      %v4780 = vpack.c.b16 %v4757, %v4756
      %v4781 = vpack.c.b16 %v4759, %v4758
      %v4782 = vpack.c.b16 %v4761, %v4760
      %v4783 = vpack.c.b16 %v4763, %v4762
      %v4784 = vpack.c.b16 %v4765, %v4764
      %v4785 = vpack.c.b16 %v4767, %v4766
      %v4786 = vpack.c.b16 %v4769, %v4768
      %v4787 = vpack.c.b16 %v4771, %v4770
      %4804 = vmatpush.bf16.msra.mxu0 %v4779
      %4805 = vmatpush.bf16.msra.mxu0 %v4778
      %4806 = vmatpush.bf16.msra.mxu0 %v4777
      %4807 = vmatpush.bf16.msra.mxu0 %v4776
      %4808 = vmatpush.bf16.msra.mxu0 %v4775
      %4809 = vmatpush.bf16.msra.mxu0 %v4774
      %4810 = vmatpush.bf16.msra.mxu0 %v4773
      %4811 = vmatpush.bf16.msra.mxu0 %v4772
      %4812 = vmatmul.bf16.gmra.mxu0 %v4704
      %v4813 = vpop.f32.mrf.mxu0
      %v4814 = vadd.f32 0.0, %v4813
      %v4815 = vpop.f32.mrf.mxu0
      %4816 = vdwg.mxu0
      %4817 = vmatpush.bf16.msra.mxu0 %v4787
      %4818 = vmatpush.bf16.msra.mxu0 %v4786
      %4819 = vmatpush.bf16.msra.mxu0 %v4785
      %4820 = vmatpush.bf16.msra.mxu0 %v4784
      %4821 = vmatpush.bf16.msra.mxu0 %v4783
      %4822 = vmatpush.bf16.msra.mxu0 %v4782
      %4823 = vmatpush.bf16.msra.mxu0 %v4781
      %4824 = vmatpush.bf16.msra.mxu0 %v4780
      %4825 = vmatmul.bf16.gmra.mxu0 %v4705
      %v4826 = vpop.f32.mrf.mxu0
      %v4827 = vadd.f32 %v4814, %v4826
      %v4828 = vpop.f32.mrf.mxu0
      %4829 = vdwg.mxu0
      %v4830 = vadd.f32 %v4654, %v4827
      %v4831 = vpack.c.bf16 %v4830, %v4830
      %vm4832 = vcmask 519168
      %4833 = vst.msk [vmem:[%s411] sm:$0xf] %vm4832, %v4831
      %vm4834 = vcmask 523264
      %v4835 = vsel %vm4834, %v4830, 0.0
      %v4836 = vrot.slane %v4835, 4
      %v4837 = vadd.f32 %v4835, %v4836
      %v4838 = vrot.slane %v4837, 2
      %v4839 = vadd.f32 %v4837, %v4838
      %v4840 = vrot.slane %v4839, 1
      %v4841 = vadd.f32 %v4839, %v4840
      %vm4842 = vcmask 516096
      %4843 = vst.msk [vmem:[%s418] sm:$0x1] %vm4842, %v4841
      %v4844 = vmul.f32 %v4830, %v4830
      %v4845 = vsel %vm4834, %v4844, 0.0
      %v4846 = vrot.slane %v4845, 4
      %v4847 = vadd.f32 %v4845, %v4846
      %v4848 = vrot.slane %v4847, 2
      %v4849 = vadd.f32 %v4847, %v4848
      %v4850 = vrot.slane %v4849, 1
      %v4851 = vadd.f32 %v4849, %v4850
      %4852 = vst.msk [vmem:[%s425] sm:$0x1] %vm4842, %v4851
      %p4853 = scmp.lt.s32.totalorder %s22, 1
      %s4854 = scalar_select %p4853, %s22, 1
      %p4855 = scmp.lt.s32.totalorder %s23, 7
      %s4856 = scalar_select %p4855, %s23, 7
      %s4857 = smul.addr %s4854, 8
      %s4858 = sadd.s32 %s4856, %s4857
      %s4859 = smul.addr %s4858, 4
      %s4860 = scalar_lea.vmem %s4, %s4859
      %p4861 = scmp.lt.s32.totalorder %s22, 1
      %s4862 = scalar_select %p4861, %s22, 1
      %p4863 = scmp.lt.s32.totalorder %s23, 7
      %s4864 = scalar_select %p4863, %s23, 7
      %s4865 = smul.addr %s4862, 8
      %s4866 = sadd.s32 %s4864, %s4865
      %s4867 = scalar_lea.vmem %s5, %s4866
      %p4868 = scmp.lt.s32.totalorder %s22, 1
      %s4869 = scalar_select %p4868, %s22, 1
      %p4870 = scmp.lt.s32.totalorder %s23, 7
      %s4871 = scalar_select %p4870, %s23, 7
      %s4872 = smul.addr %s4869, 8
      %s4873 = sadd.s32 %s4871, %s4872
      %s4874 = scalar_lea.vmem %s6, %s4873
      // Predicated region
      $region37: #{postres_bottleneck_forward.7} parent=35 // pred_check
        %p4875 = pneg %p165
      $region38: #{postres_bottleneck_forward.7} parent=35 // pred_check_branch
        %4877 = sbr.rel (%p4875) target = $region40
      $region39: #{postres_bottleneck_forward.7} parent=35 // pred_region
        _
      $region40: #{postres_bottleneck_forward.7} parent=35 // pred_fallthru
        _
      // Predicated region
      $region41: #{postres_bottleneck_forward.7} parent=35 // pred_check
        %p4878 = pneg %p193
      $region42: #{postres_bottleneck_forward.7} parent=35 // pred_check_branch
        %4880 = sbr.rel (%p4878) target = $region44
      $region43: #{postres_bottleneck_forward.7} parent=35 // pred_region
        _
      $region44: #{postres_bottleneck_forward.7} parent=35 // pred_fallthru
        _
      // Predicated region
      $region45: #{postres_bottleneck_forward.7} parent=35 // pred_check
        %p4881 = pneg %p221
      $region46: #{postres_bottleneck_forward.7} parent=35 // pred_check_branch
        %4883 = sbr.rel (%p4881) target = $region48
      $region47: #{postres_bottleneck_forward.7} parent=35 // pred_region
        _
      $region48: #{postres_bottleneck_forward.7} parent=35 // pred_fallthru
        _
    $region36: #{postres_bottleneck_forward.7} parent=5 // pred_fallthru
      _
    %p4884 = scmp.le.s32.totalorder 2, %s13
    // Predicated region
    $region49: #{postres_bottleneck_forward.7} parent=5 // pred_check
      %p4885 = pneg %p4884
    $region50: #{postres_bottleneck_forward.7} parent=5 // pred_check_branch
      %4887 = sbr.rel (%p4885) target = $region52
    $region51: #{postres_bottleneck_forward.7} parent=5 // pred_region
      %s4888 = ssub.s32 %s13, 2
      // Predicated region
      $region53: #{postres_bottleneck_forward.7} parent=51 // pred_check
        %p4889 = pneg %p171
      $region54: #{postres_bottleneck_forward.7} parent=51 // pred_check_branch
        %4891 = sbr.rel (%p4889) target = $region56
      $region55: #{postres_bottleneck_forward.7} parent=51 // pred_region
        %p4892 = scmp.lt.s32.totalorder %s24, 1
        %s4893 = scalar_select %p4892, %s24, 1
        %p4894 = scmp.lt.s32.totalorder %s25, 7
        %s4895 = scalar_select %p4894, %s25, 7
        %s4896 = smul.addr %s4893, 8
        %s4897 = sadd.s32 %s4895, %s4896
        %s4898 = smul.addr %s4897, 4
        %s4899 = scalar_lea.vmem %s4, %s4898
      $region56: #{postres_bottleneck_forward.7} parent=51 // pred_fallthru
        _
      // Predicated region
      $region57: #{postres_bottleneck_forward.7} parent=51 // pred_check
        %p4900 = pneg %p199
      $region58: #{postres_bottleneck_forward.7} parent=51 // pred_check_branch
        %4902 = sbr.rel (%p4900) target = $region60
      $region59: #{postres_bottleneck_forward.7} parent=51 // pred_region
        %p4903 = scmp.lt.s32.totalorder %s24, 1
        %s4904 = scalar_select %p4903, %s24, 1
        %p4905 = scmp.lt.s32.totalorder %s25, 7
        %s4906 = scalar_select %p4905, %s25, 7
        %s4907 = smul.addr %s4904, 8
        %s4908 = sadd.s32 %s4906, %s4907
        %s4909 = scalar_lea.vmem %s5, %s4908
      $region60: #{postres_bottleneck_forward.7} parent=51 // pred_fallthru
        _
      // Predicated region
      $region61: #{postres_bottleneck_forward.7} parent=51 // pred_check
        %p4910 = pneg %p227
      $region62: #{postres_bottleneck_forward.7} parent=51 // pred_check_branch
        %4912 = sbr.rel (%p4910) target = $region64
      $region63: #{postres_bottleneck_forward.7} parent=51 // pred_region
        %p4913 = scmp.lt.s32.totalorder %s24, 1
        %s4914 = scalar_select %p4913, %s24, 1
        %p4915 = scmp.lt.s32.totalorder %s25, 7
        %s4916 = scalar_select %p4915, %s25, 7
        %s4917 = smul.addr %s4914, 8
        %s4918 = sadd.s32 %s4916, %s4917
        %s4919 = scalar_lea.vmem %s6, %s4918
      $region64: #{postres_bottleneck_forward.7} parent=51 // pred_fallthru
        _
    $region52: #{postres_bottleneck_forward.7} parent=5 // pred_fallthru
      _
  $region6: #{postres_bottleneck_forward.7} parent=0 // loop_footer
    %s17 = sadd.s32 1, %s13
  $region7: #{postres_bottleneck_forward.7} parent=0 // loop_footer_branch
    %12 = sbr.rel target = $region3
  $region8: #{postres_bottleneck_forward.7} parent=0 // loop_exit
    _

</llo_original>
